<compile_context>
chip_gen: v7x
topology: tpu7x:2x2x1
jax: 0.10.0
libtpu: 0.0.40
codegen_flags: <defaults>
</compile_context>

<pallas_src>
import functools

import jax
import jax.numpy as jnp
from jax.experimental import pallas as pl
from jax.experimental.pallas import tpu as pltpu


def _silu(v):
    return v * jax.nn.sigmoid(v)


def _pick_tile(total, target):
    """Largest multiple-of-8 tile <= target that exactly divides `total`,
    preferring a proper divisor (>= 2 grid steps, so v7x's 2 TCs both work).
    Falls back to the full extent, which is always a legal block shape."""
    best = 0
    limit = min(target, total // 2)
    d = 8
    while d <= limit:
        if total % d == 0:
            best = d
        d += 8
    return best if best else total


# ---------------------------------------------------------------------------
# Kernel 1: fused pointwise (1x1) conv:  y = SiLU(x @ W + b)
#   bf16 operands -> MXU, f32 accumulation / bias / SiLU.
# ---------------------------------------------------------------------------
def _pw_conv_kernel(x_ref, w_ref, b_ref, o_ref):
    y = jnp.dot(x_ref[...], w_ref[...],
                preferred_element_type=jnp.float32) + b_ref[...]
    o_ref[...] = _silu(y).astype(o_ref.dtype)


def pointwise_conv_silu(x2d, w, b, *, tile_target=1024, out_dtype=jnp.bfloat16):
    M, cin = x2d.shape
    cout = w.shape[1]
    tm = _pick_tile(M, tile_target)
    return pl.pallas_call(
        _pw_conv_kernel,
        out_shape=jax.ShapeDtypeStruct((M, cout), out_dtype),
        grid=(M // tm,),
        in_specs=[
            pl.BlockSpec((tm, cin), lambda i: (i, 0)),
            pl.BlockSpec((cin, cout), lambda i: (0, 0)),
            pl.BlockSpec((1, cout), lambda i: (0, 0)),
        ],
        out_specs=pl.BlockSpec((tm, cout), lambda i: (i, 0)),
        compiler_params=pltpu.CompilerParams(
            dimension_semantics=("parallel",),
            vmem_limit_bytes=32 * 1024 * 1024),
    )(x2d, w, b)


# ---------------------------------------------------------------------------
# Kernel 2: fused Bottleneck (one full image per grid step):
#   h   = SiLU(t @ W1 + b1)                    (1x1 conv, one MXU matmul)
#   y   = SiLU(conv3x3(h) + b2)                (9 accumulated MXU matmuls)
#   out = t + y
#
# The 3x3 conv's zero padding is handled by staging three column-shifted,
# pre-masked bf16 copies of h (left/center/right), each with one zero guard
# row of W pixels above and below.  Every tap (dy, dx) is then one contiguous
# slice at row offset dy*W of the dx-copy -> sublane-aligned reads, no in-loop
# masking, all boundary logic folded into the staging.
# ---------------------------------------------------------------------------
def _bottleneck_kernel(t_ref, w1_ref, b1_ref, w2_ref, b2_ref, o_ref,
                       c0_ref, c1_ref, c2_ref, *, hw, wdim, c):
    t = t_ref[...]                                              # (hw, c) bf16

    # Bottleneck.cv1: 1x1 conv + bias + SiLU (bf16 MXU operands, f32 accum)
    h = _silu(jnp.dot(t, w1_ref[...],
                      preferred_element_type=jnp.float32) + b1_ref[...])

    # Column index of every flattened pixel (hoisted boundary masks).
    col = jax.lax.broadcasted_iota(jnp.int32, (hw, 1), 0) % wdim
    h_c = h.astype(jnp.bfloat16)
    # value at column x taken from column x-1 (zero at x == 0)
    h_l = jnp.where(col != 0,
                    pltpu.roll(h, 1, axis=0), 0.0).astype(jnp.bfloat16)
    # value at column x taken from column x+1 (zero at x == W-1)
    h_r = jnp.where(col != wdim - 1,
                    pltpu.roll(h, hw - 1, axis=0), 0.0).astype(jnp.bfloat16)

    zguard = jnp.zeros((wdim, c), jnp.bfloat16)
    for ref, body in ((c0_ref, h_l), (c1_ref, h_c), (c2_ref, h_r)):
        ref[pl.ds(0, wdim), :] = zguard                 # top zero-pad row
        ref[pl.ds(wdim, hw), :] = body                  # image body
        ref[pl.ds(wdim + hw, wdim), :] = zguard         # bottom zero-pad row

    # Bottleneck.cv2: 3x3 conv as 9 accumulated (hw, c) @ (c, c) matmuls.
    # (For very small c an im2col (hw, 9c)@(9c, c) form would raise MXU
    #  utilisation further; the accumulated form is kept for generality.)
    taps = (c0_ref, c1_ref, c2_ref)
    acc = jnp.zeros((hw, c), jnp.float32)
    for dy in range(3):
        for dx in range(3):
            patch = taps[dx][pl.ds(dy * wdim, hw), :]   # aligned, pre-masked
            acc = acc + jnp.dot(patch, w2_ref[dy * 3 + dx],
                                preferred_element_type=jnp.float32)
    y = _silu(acc + b2_ref[...])

    # residual add in f32, store bf16
    o_ref[...] = (t.astype(jnp.float32) + y).astype(o_ref.dtype)


def bottleneck_block(t3, wdim, w1, b1, w2, b2):
    n, hw, c = t3.shape
    kernel = functools.partial(_bottleneck_kernel, hw=hw, wdim=wdim, c=c)
    guard_rows = hw + 2 * wdim
    return pl.pallas_call(
        kernel,
        out_shape=jax.ShapeDtypeStruct(t3.shape, jnp.bfloat16),
        grid=(n,),
        in_specs=[
            pl.BlockSpec((None, hw, c), lambda ni: (ni, 0, 0)),
            pl.BlockSpec((c, c), lambda ni: (0, 0)),
            pl.BlockSpec((1, c), lambda ni: (0, 0)),
            pl.BlockSpec((9, c, c), lambda ni: (0, 0, 0)),
            pl.BlockSpec((1, c), lambda ni: (0, 0)),
        ],
        out_specs=pl.BlockSpec((None, hw, c), lambda ni: (ni, 0, 0)),
        scratch_shapes=[pltpu.VMEM((guard_rows, c), jnp.bfloat16)
                        for _ in range(3)],
        compiler_params=pltpu.CompilerParams(
            dimension_semantics=("parallel",),
            vmem_limit_bytes=48 * 1024 * 1024),
    )(t3, w1, b1, w2, b2)


# ---------------------------------------------------------------------------
# Kernel 3: fused CSP tail:  y2  = SiLU(x @ W2 + b2)                 (cv2)
#                            out = SiLU(t @ W3a + y2 @ W3b + b3)     (cat+cv3)
# ---------------------------------------------------------------------------
def _tail_kernel(t_ref, x_ref, w2_ref, b2_ref, w3a_ref, w3b_ref, b3_ref, o_ref):
    y2 = _silu(jnp.dot(x_ref[...], w2_ref[...],
                       preferred_element_type=jnp.float32) + b2_ref[...])
    z = (jnp.dot(t_ref[...], w3a_ref[...], preferred_element_type=jnp.float32)
         + jnp.dot(y2.astype(jnp.bfloat16), w3b_ref[...],
                   preferred_element_type=jnp.float32)
         + b3_ref[...])
    o_ref[...] = _silu(z).astype(o_ref.dtype)


def csp_tail(t2d, x2d, w2, b2, w3a, w3b, b3, *, tile_target=1024):
    M, c = t2d.shape
    c1 = x2d.shape[1]
    c2 = w3a.shape[1]
    tm = _pick_tile(M, tile_target)
    return pl.pallas_call(
        _tail_kernel,
        out_shape=jax.ShapeDtypeStruct((M, c2), jnp.float32),
        grid=(M // tm,),
        in_specs=[
            pl.BlockSpec((tm, c), lambda i: (i, 0)),
            pl.BlockSpec((tm, c1), lambda i: (i, 0)),
            pl.BlockSpec((c1, c), lambda i: (0, 0)),
            pl.BlockSpec((1, c), lambda i: (0, 0)),
            pl.BlockSpec((c, c2), lambda i: (0, 0)),
            pl.BlockSpec((c, c2), lambda i: (0, 0)),
            pl.BlockSpec((1, c2), lambda i: (0, 0)),
        ],
        out_specs=pl.BlockSpec((tm, c2), lambda i: (i, 0)),
        compiler_params=pltpu.CompilerParams(
            dimension_semantics=("parallel",),
            vmem_limit_bytes=32 * 1024 * 1024),
    )(t2d, x2d, w2, b2, w3a, w3b, b3)


# ---------------------------------------------------------------------------
# One-time parameter preprocessing (hoisted out of the forward pass):
# bf16 MXU weight casts, bias reshapes, 3x3 weight flattening, cv3 split.
# ---------------------------------------------------------------------------
def prepare_params(p):
    bf = jnp.bfloat16
    f32 = jnp.float32
    c_ = p["cv1_w"].shape[1]
    q = dict(
        cv1_w=p["cv1_w"].astype(bf), cv1_b=p["cv1_b"].reshape(1, -1).astype(f32),
        cv2_w=p["cv2_w"].astype(bf), cv2_b=p["cv2_b"].reshape(1, -1).astype(f32),
        cv3_wa=p["cv3_w"][:c_].astype(bf),          # concat(t, y2) @ w3 ==
        cv3_wb=p["cv3_w"][c_:].astype(bf),          # t @ w3a + y2 @ w3b
        cv3_b=p["cv3_b"].reshape(1, -1).astype(f32),
        m=[],
    )
    for blk in p["m"]:
        c = blk["cv1_w"].shape[1]
        q["m"].append(dict(
            cv1_w=blk["cv1_w"].astype(bf),
            cv1_b=blk["cv1_b"].reshape(1, -1).astype(f32),
            cv2_w=blk["cv2_w"].reshape(9, c, c).astype(bf),     # (dy*3+dx, ci, co)
            cv2_b=blk["cv2_b"].reshape(1, -1).astype(f32),
        ))
    return q


# ---------------------------------------------------------------------------
# Full C3 forward (glue in plain JAX, compute in Pallas kernels)
# ---------------------------------------------------------------------------
def c3_forward(x_nhwc, q):
    N, H, W, c1 = x_nhwc.shape
    c_ = q["cv1_w"].shape[1]
    c2 = q["cv3_b"].shape[1]
    M = N * H * W

    x2d = x_nhwc.reshape(M, c1).astype(jnp.bfloat16)

    t2d = pointwise_conv_silu(x2d, q["cv1_w"], q["cv1_b"])          # cv1
    t3 = t2d.reshape(N, H * W, c_)
    for blk in q["m"]:                                              # m
        t3 = bottleneck_block(t3, W, blk["cv1_w"], blk["cv1_b"],
                              blk["cv2_w"], blk["cv2_b"])
    t2d = t3.reshape(M, c_)
    out2d = csp_tail(t2d, x2d, q["cv2_w"], q["cv2_b"],              # cv2+cat+cv3
                     q["cv3_wa"], q["cv3_wb"], q["cv3_b"])
    return out2d.reshape(N, H, W, c2)


# ---------------------------------------------------------------------------
# Pure-JAX f32 reference (for verification)
# ---------------------------------------------------------------------------
def ref_forward(x, p):
    def pw(x4, w, b):
        return _silu(jnp.einsum("nhwc,cd->nhwd", x4, w) + b)

    def conv3(x4, w, b):
        y = jax.lax.conv_general_dilated(
            x4, w, (1, 1), "SAME",
            dimension_numbers=("NHWC", "HWIO", "NHWC")) + b
        return _silu(y)

    t = pw(x, p["cv1_w"], p["cv1_b"])
    for blk in p["m"]:
        h = pw(t, blk["cv1_w"], blk["cv1_b"])
        t = t + conv3(h, blk["cv2_w"], blk["cv2_b"])
    y2 = pw(x, p["cv2_w"], p["cv2_b"])
    y = jnp.concatenate([t, y2], axis=-1)
    return pw(y, p["cv3_w"], p["cv3_b"])


# ---------------------------------------------------------------------------
# Deterministic parameter init (shapes follow C3.__init__)
# ---------------------------------------------------------------------------
def init_params(key, c1, c2, n, e=0.5):
    c_ = int(c2 * e)
    ks = jax.random.split(key, 6 + 4 * n)
    w = lambda k, s: 0.1 * jax.random.normal(k, s, jnp.float32)
    p = dict(
        cv1_w=w(ks[0], (c1, c_)), cv1_b=w(ks[1], (c_,)),
        cv2_w=w(ks[2], (c1, c_)), cv2_b=w(ks[3], (c_,)),
        cv3_w=w(ks[4], (2 * c_, c2)), cv3_b=w(ks[5], (c2,)),
        m=[],
    )
    for i in range(n):
        k0, k1, k2, k3 = ks[6 + 4 * i: 10 + 4 * i]
        p["m"].append(dict(
            cv1_w=w(k0, (c_, c_)), cv1_b=w(k1, (c_,)),
            cv2_w=w(k2, (3, 3, c_, c_)), cv2_b=w(k3, (c_,)),   # HWIO
        ))
    return p


if __name__ == "__main__":
    N, C1, H, W = 2, 4, 16, 16
    C2, N_BLOCKS = 8, 2

    x_nchw = jax.random.normal(jax.random.PRNGKey(0), (N, C1, H, W), jnp.float32)
    params = init_params(jax.random.PRNGKey(1), C1, C2, N_BLOCKS, e=0.5)
    prepped = prepare_params(params)

    # PyTorch NCHW -> kernel NHWC
    x_nhwc = jnp.transpose(x_nchw, (0, 2, 3, 1))
    out_nhwc = jax.jit(c3_forward)(x_nhwc, prepped)
    out_nchw = jnp.transpose(out_nhwc, (0, 3, 1, 2))
    jax.block_until_ready(out_nchw)

    ref_nchw = jnp.transpose(ref_forward(x_nhwc, params), (0, 3, 1, 2))
    assert out_nchw.shape == (N, C2, H, W)
    # Tolerance covers bf16 MXU operands / bf16 HBM intermediates vs f32 ref.
    assert jnp.allclose(out_nchw, ref_nchw, atol=2e-2, rtol=2e-2), \
        "mismatch vs reference"

    print("KERNEL_OK")
</pallas_src>

<mosaic_0001>
module attributes {stable_mosaic.version = 11 : i64} {
  func.func @_pw_conv_kernel(%arg0: i32, %arg1: memref<256x4xbf16, #tpu.memory_space<vmem>>, %arg2: memref<4x4xbf16, #tpu.memory_space<vmem>>, %arg3: memref<1x4xf32, #tpu.memory_space<vmem>>, %arg4: memref<256x4xbf16, #tpu.memory_space<vmem>>) attributes {dimension_semantics = [#tpu.dimension_semantics<parallel>], iteration_bounds = array<i64: 2>, scalar_prefetch = 0 : i64, scratch_operands = 0 : i64, tpu.core_type = #tpu.core_type<tc>, window_params = [{transform_indices = @transform_0, window_bounds = array<i64: 256, 4>}, {pipeline_mode = #tpu.pipeline_mode<synchronous>, transform_indices = @transform_1, window_bounds = array<i64: 4, 4>}, {pipeline_mode = #tpu.pipeline_mode<synchronous>, transform_indices = @transform_2, window_bounds = array<i64: 1, 4>}, {transform_indices = @transform_3, window_bounds = array<i64: 256, 4>}]} {
    %c0 = arith.constant 0 : index
    %c0_0 = arith.constant 0 : index
    %0 = vector.load %arg1[%c0, %c0_0] : memref<256x4xbf16, #tpu.memory_space<vmem>>, vector<256x4xbf16>
    %c0_1 = arith.constant 0 : index
    %c0_2 = arith.constant 0 : index
    %1 = vector.load %arg2[%c0_1, %c0_2] : memref<4x4xbf16, #tpu.memory_space<vmem>>, vector<4x4xbf16>
    %cst = arith.constant dense<0.000000e+00> : vector<256x4xf32>
    %2 = tpu.matmul %0, %1, %cst {dimension_numbers = #tpu.dot_dimension_numbers<[1], [0], [0], [1], [0, 0, 1, 1], [], []>} : vector<256x4xbf16>, vector<4x4xbf16>, vector<256x4xf32> -> vector<256x4xf32>
    %c0_3 = arith.constant 0 : index
    %c0_4 = arith.constant 0 : index
    %3 = vector.load %arg3[%c0_3, %c0_4] : memref<1x4xf32, #tpu.memory_space<vmem>>, vector<1x4xf32>
    %4 = vector.broadcast %3 : vector<1x4xf32> to vector<256x4xf32>
    %5 = arith.addf %2, %4 : vector<256x4xf32>
    %6 = arith.negf %5 : vector<256x4xf32>
    %7 = math.exp %6 : vector<256x4xf32>
    %cst_5 = arith.constant 1.000000e+00 : f32
    %8 = vector.broadcast %cst_5 : f32 to vector<256x4xf32>
    %9 = arith.addf %8, %7 : vector<256x4xf32>
    %10 = arith.divf %8, %9 : vector<256x4xf32>
    %11 = arith.mulf %5, %10 : vector<256x4xf32>
    %12 = arith.truncf %11 : vector<256x4xf32> to vector<256x4xbf16>
    %c0_6 = arith.constant 0 : index
    %c0_7 = arith.constant 0 : index
    %13 = vector.load %arg4[%c0_6, %c0_7] : memref<256x4xbf16, #tpu.memory_space<vmem>>, vector<256x4xbf16>
    tpu.vector_store %arg4[%c0_6, %c0_7], %12 {strides = array<i32>} : memref<256x4xbf16, #tpu.memory_space<vmem>>, vector<256x4xbf16>,
    return
  }
  func.func @transform_0(%arg0: i32) -> (i32, i32) {
    %c0_i32 = arith.constant 0 : i32
    %c0_i32_0 = arith.constant 0 : i32
    return %arg0, %c0_i32 : i32, i32
  }
  func.func @transform_1(%arg0: i32) -> (i32, i32) {
    %c0_i32 = arith.constant 0 : i32
    %c0_i32_0 = arith.constant 0 : i32
    %c0_i32_1 = arith.constant 0 : i32
    return %c0_i32, %c0_i32_0 : i32, i32
  }
  func.func @transform_2(%arg0: i32) -> (i32, i32) {
    %c0_i32 = arith.constant 0 : i32
    %c0_i32_0 = arith.constant 0 : i32
    %c0_i32_1 = arith.constant 0 : i32
    return %c0_i32, %c0_i32_0 : i32, i32
  }
  func.func @transform_3(%arg0: i32) -> (i32, i32) {
    %c0_i32 = arith.constant 0 : i32
    %c0_i32_0 = arith.constant 0 : i32
    return %arg0, %c0_i32 : i32, i32
  }
}

module attributes {stable_mosaic.version = 11 : i64} {
  func.func @_tail_kernel(%arg0: i32, %arg1: memref<256x4xbf16, #tpu.memory_space<vmem>>, %arg2: memref<256x4xbf16, #tpu.memory_space<vmem>>, %arg3: memref<4x4xbf16, #tpu.memory_space<vmem>>, %arg4: memref<1x4xf32, #tpu.memory_space<vmem>>, %arg5: memref<4x8xbf16, #tpu.memory_space<vmem>>, %arg6: memref<4x8xbf16, #tpu.memory_space<vmem>>, %arg7: memref<1x8xf32, #tpu.memory_space<vmem>>, %arg8: memref<256x8xf32, #tpu.memory_space<vmem>>) attributes {dimension_semantics = [#tpu.dimension_semantics<parallel>], iteration_bounds = array<i64: 2>, scalar_prefetch = 0 : i64, scratch_operands = 0 : i64, tpu.core_type = #tpu.core_type<tc>, window_params = [{transform_indices = @transform_0, window_bounds = array<i64: 256, 4>}, {transform_indices = @transform_1, window_bounds = array<i64: 256, 4>}, {pipeline_mode = #tpu.pipeline_mode<synchronous>, transform_indices = @transform_2, window_bounds = array<i64: 4, 4>}, {pipeline_mode = #tpu.pipeline_mode<synchronous>, transform_indices = @transform_3, window_bounds = array<i64: 1, 4>}, {pipeline_mode = #tpu.pipeline_mode<synchronous>, transform_indices = @transform_4, window_bounds = array<i64: 4, 8>}, {pipeline_mode = #tpu.pipeline_mode<synchronous>, transform_indices = @transform_5, window_bounds = array<i64: 4, 8>}, {pipeline_mode = #tpu.pipeline_mode<synchronous>, transform_indices = @transform_6, window_bounds = array<i64: 1, 8>}, {transform_indices = @transform_7, window_bounds = array<i64: 256, 8>}]} {
    %c0 = arith.constant 0 : index
    %c0_0 = arith.constant 0 : index
    %0 = vector.load %arg2[%c0, %c0_0] : memref<256x4xbf16, #tpu.memory_space<vmem>>, vector<256x4xbf16>
    %c0_1 = arith.constant 0 : index
    %c0_2 = arith.constant 0 : index
    %1 = vector.load %arg3[%c0_1, %c0_2] : memref<4x4xbf16, #tpu.memory_space<vmem>>, vector<4x4xbf16>
    %cst = arith.constant dense<0.000000e+00> : vector<256x4xf32>
    %2 = tpu.matmul %0, %1, %cst {dimension_numbers = #tpu.dot_dimension_numbers<[1], [0], [0], [1], [0, 0, 1, 1], [], []>} : vector<256x4xbf16>, vector<4x4xbf16>, vector<256x4xf32> -> vector<256x4xf32>
    %c0_3 = arith.constant 0 : index
    %c0_4 = arith.constant 0 : index
    %3 = vector.load %arg4[%c0_3, %c0_4] : memref<1x4xf32, #tpu.memory_space<vmem>>, vector<1x4xf32>
    %4 = vector.broadcast %3 : vector<1x4xf32> to vector<256x4xf32>
    %5 = arith.addf %2, %4 : vector<256x4xf32>
    %6 = arith.negf %5 : vector<256x4xf32>
    %7 = math.exp %6 : vector<256x4xf32>
    %cst_5 = arith.constant 1.000000e+00 : f32
    %8 = vector.broadcast %cst_5 : f32 to vector<256x4xf32>
    %9 = arith.addf %8, %7 : vector<256x4xf32>
    %10 = arith.divf %8, %9 : vector<256x4xf32>
    %11 = arith.mulf %5, %10 : vector<256x4xf32>
    %c0_6 = arith.constant 0 : index
    %c0_7 = arith.constant 0 : index
    %12 = vector.load %arg1[%c0_6, %c0_7] : memref<256x4xbf16, #tpu.memory_space<vmem>>, vector<256x4xbf16>
    %c0_8 = arith.constant 0 : index
    %c0_9 = arith.constant 0 : index
    %13 = vector.load %arg5[%c0_8, %c0_9] : memref<4x8xbf16, #tpu.memory_space<vmem>>, vector<4x8xbf16>
    %cst_10 = arith.constant dense<0.000000e+00> : vector<256x8xf32>
    %14 = tpu.matmul %12, %13, %cst_10 {dimension_numbers = #tpu.dot_dimension_numbers<[1], [0], [0], [1], [0, 0, 1, 1], [], []>} : vector<256x4xbf16>, vector<4x8xbf16>, vector<256x8xf32> -> vector<256x8xf32>
    %15 = arith.truncf %11 : vector<256x4xf32> to vector<256x4xbf16>
    %c0_11 = arith.constant 0 : index
    %c0_12 = arith.constant 0 : index
    %16 = vector.load %arg6[%c0_11, %c0_12] : memref<4x8xbf16, #tpu.memory_space<vmem>>, vector<4x8xbf16>
    %cst_13 = arith.constant dense<0.000000e+00> : vector<256x8xf32>
    %17 = tpu.matmul %15, %16, %cst_13 {dimension_numbers = #tpu.dot_dimension_numbers<[1], [0], [0], [1], [0, 0, 1, 1], [], []>} : vector<256x4xbf16>, vector<4x8xbf16>, vector<256x8xf32> -> vector<256x8xf32>
    %18 = arith.addf %14, %17 : vector<256x8xf32>
    %c0_14 = arith.constant 0 : index
    %c0_15 = arith.constant 0 : index
    %19 = vector.load %arg7[%c0_14, %c0_15] : memref<1x8xf32, #tpu.memory_space<vmem>>, vector<1x8xf32>
    %20 = vector.broadcast %19 : vector<1x8xf32> to vector<256x8xf32>
    %21 = arith.addf %18, %20 : vector<256x8xf32>
    %22 = arith.negf %21 : vector<256x8xf32>
    %23 = math.exp %22 : vector<256x8xf32>
    %cst_16 = arith.constant 1.000000e+00 : f32
    %24 = vector.broadcast %cst_16 : f32 to vector<256x8xf32>
    %25 = arith.addf %24, %23 : vector<256x8xf32>
    %26 = arith.divf %24, %25 : vector<256x8xf32>
    %27 = arith.mulf %21, %26 : vector<256x8xf32>
    %c0_17 = arith.constant 0 : index
    %c0_18 = arith.constant 0 : index
    %28 = vector.load %arg8[%c0_17, %c0_18] : memref<256x8xf32, #tpu.memory_space<vmem>>, vector<256x8xf32>
    tpu.vector_store %arg8[%c0_17, %c0_18], %27 {strides = array<i32>} : memref<256x8xf32, #tpu.memory_space<vmem>>, vector<256x8xf32>,
    return
  }
  func.func @transform_0(%arg0: i32) -> (i32, i32) {
    %c0_i32 = arith.constant 0 : i32
    %c0_i32_0 = arith.constant 0 : i32
    return %arg0, %c0_i32 : i32, i32
  }
  func.func @transform_1(%arg0: i32) -> (i32, i32) {
    %c0_i32 = arith.constant 0 : i32
    %c0_i32_0 = arith.constant 0 : i32
    return %arg0, %c0_i32 : i32, i32
  }
  func.func @transform_2(%arg0: i32) -> (i32, i32) {
    %c0_i32 = arith.constant 0 : i32
    %c0_i32_0 = arith.constant 0 : i32
    %c0_i32_1 = arith.constant 0 : i32
    return %c0_i32, %c0_i32_0 : i32, i32
  }
  func.func @transform_3(%arg0: i32) -> (i32, i32) {
    %c0_i32 = arith.constant 0 : i32
    %c0_i32_0 = arith.constant 0 : i32
    %c0_i32_1 = arith.constant 0 : i32
    return %c0_i32, %c0_i32_0 : i32, i32
  }
  func.func @transform_4(%arg0: i32) -> (i32, i32) {
    %c0_i32 = arith.constant 0 : i32
    %c0_i32_0 = arith.constant 0 : i32
    %c0_i32_1 = arith.constant 0 : i32
    return %c0_i32, %c0_i32_0 : i32, i32
  }
  func.func @transform_5(%arg0: i32) -> (i32, i32) {
    %c0_i32 = arith.constant 0 : i32
    %c0_i32_0 = arith.constant 0 : i32
    %c0_i32_1 = arith.constant 0 : i32
    return %c0_i32, %c0_i32_0 : i32, i32
  }
  func.func @transform_6(%arg0: i32) -> (i32, i32) {
    %c0_i32 = arith.constant 0 : i32
    %c0_i32_0 = arith.constant 0 : i32
    %c0_i32_1 = arith.constant 0 : i32
    return %c0_i32, %c0_i32_0 : i32, i32
  }
  func.func @transform_7(%arg0: i32) -> (i32, i32) {
    %c0_i32 = arith.constant 0 : i32
    %c0_i32_0 = arith.constant 0 : i32
    return %arg0, %c0_i32 : i32, i32
  }
}

module attributes {stable_mosaic.version = 11 : i64} {
  func.func @_bottleneck_kernel(%arg0: i32, %arg1: memref<1x256x4xbf16, #tpu.memory_space<vmem>>, %arg2: memref<4x4xbf16, #tpu.memory_space<vmem>>, %arg3: memref<1x4xf32, #tpu.memory_space<vmem>>, %arg4: memref<9x4x4xbf16, #tpu.memory_space<vmem>>, %arg5: memref<1x4xf32, #tpu.memory_space<vmem>>, %arg6: memref<1x256x4xbf16, #tpu.memory_space<vmem>>, %arg7: memref<288x4xbf16, #tpu.memory_space<vmem>>, %arg8: memref<288x4xbf16, #tpu.memory_space<vmem>>, %arg9: memref<288x4xbf16, #tpu.memory_space<vmem>>) attributes {dimension_semantics = [#tpu.dimension_semantics<parallel>], iteration_bounds = array<i64: 2>, scalar_prefetch = 0 : i64, scratch_operands = 3 : i64, tpu.core_type = #tpu.core_type<tc>, window_params = [{transform_indices = @transform_0, window_bounds = array<i64: 1, 256, 4>}, {pipeline_mode = #tpu.pipeline_mode<synchronous>, transform_indices = @transform_1, window_bounds = array<i64: 4, 4>}, {pipeline_mode = #tpu.pipeline_mode<synchronous>, transform_indices = @transform_2, window_bounds = array<i64: 1, 4>}, {pipeline_mode = #tpu.pipeline_mode<synchronous>, transform_indices = @transform_3, window_bounds = array<i64: 9, 4, 4>}, {pipeline_mode = #tpu.pipeline_mode<synchronous>, transform_indices = @transform_4, window_bounds = array<i64: 1, 4>}, {transform_indices = @transform_5, window_bounds = array<i64: 1, 256, 4>}]} {
    %c0 = arith.constant 0 : index
    %c0_0 = arith.constant 0 : index
    %c0_1 = arith.constant 0 : index
    %0 = vector.load %arg1[%c0, %c0_0, %c0_1] : memref<1x256x4xbf16, #tpu.memory_space<vmem>>, vector<1x256x4xbf16>
    %1 = vector.shape_cast %0 : vector<1x256x4xbf16> to vector<256x4xbf16>
    %c0_2 = arith.constant 0 : index
    %c0_3 = arith.constant 0 : index
    %2 = vector.load %arg2[%c0_2, %c0_3] : memref<4x4xbf16, #tpu.memory_space<vmem>>, vector<4x4xbf16>
    %cst = arith.constant dense<0.000000e+00> : vector<256x4xf32>
    %3 = tpu.matmul %1, %2, %cst {dimension_numbers = #tpu.dot_dimension_numbers<[1], [0], [0], [1], [0, 0, 1, 1], [], []>} : vector<256x4xbf16>, vector<4x4xbf16>, vector<256x4xf32> -> vector<256x4xf32>
    %c0_4 = arith.constant 0 : index
    %c0_5 = arith.constant 0 : index
    %4 = vector.load %arg3[%c0_4, %c0_5] : memref<1x4xf32, #tpu.memory_space<vmem>>, vector<1x4xf32>
    %5 = vector.broadcast %4 : vector<1x4xf32> to vector<256x4xf32>
    %6 = arith.addf %3, %5 : vector<256x4xf32>
    %7 = arith.negf %6 : vector<256x4xf32>
    %8 = math.exp %7 : vector<256x4xf32>
    %cst_6 = arith.constant 1.000000e+00 : f32
    %9 = vector.broadcast %cst_6 : f32 to vector<256x4xf32>
    %10 = arith.addf %9, %8 : vector<256x4xf32>
    %11 = arith.divf %9, %10 : vector<256x4xf32>
    %12 = arith.mulf %6, %11 : vector<256x4xf32>
    %13 = tpu.iota {dimensions = array<i32: 0>} : vector<256x1xi32>
    %c16_i32 = arith.constant 16 : i32
    %c0_i32 = arith.constant 0 : i32
    %14 = arith.cmpi eq, %c16_i32, %c0_i32 : i32
    %c1_i32 = arith.constant 1 : i32
    %15 = arith.select %14, %c1_i32, %c16_i32 : i32
    %16 = vector.broadcast %15 : i32 to vector<256x1xi32>
    %17 = arith.remsi %13, %16 : vector<256x1xi32>
    %c0_i32_7 = arith.constant 0 : i32
    %18 = vector.broadcast %c0_i32_7 : i32 to vector<256x1xi32>
    %19 = arith.cmpi ne, %17, %18 : vector<256x1xi32>
    %c0_i32_8 = arith.constant 0 : i32
    %20 = vector.broadcast %c0_i32_8 : i32 to vector<256x1xi32>
    %21 = arith.cmpi slt, %17, %20 : vector<256x1xi32>
    %c0_i32_9 = arith.constant 0 : i32
    %22 = arith.cmpi slt, %15, %c0_i32_9 : i32
    %23 = vector.broadcast %22 : i1 to vector<256x1xi1>
    %24 = vector.broadcast %23 : vector<256x1xi1> to vector<256x1xi1>
    %25 = arith.xori %21, %24 : vector<256x1xi1>
    %26 = arith.andi %25, %19 : vector<256x1xi1>
    %27 = vector.broadcast %15 : i32 to vector<256x1xi32>
    %28 = arith.addi %17, %27 : vector<256x1xi32>
    %29 = arith.select %26, %28, %17 : vector<256x1xi1>, vector<256x1xi32>
    %30 = arith.truncf %12 : vector<256x4xf32> to vector<256x4xbf16>
    %c0_i32_10 = arith.constant 0 : i32
    %31 = vector.broadcast %c0_i32_10 : i32 to vector<256x1xi32>
    %32 = arith.cmpi ne, %29, %31 : vector<256x1xi32>
    %c1_i32_11 = arith.constant 1 : i32
    %33 = tpu.dynamic_rotate %12 by %c1_i32_11 dim 0 : vector<256x4xf32>, i32 -> vector<256x4xf32>
    %cst_12 = arith.constant 0.000000e+00 : f32
    %34 = vector.shape_cast %32 : vector<256x1xi1> to vector<256x1xi1>
    %35 = vector.broadcast %34 : vector<256x1xi1> to vector<256x4xi1>
    %36 = vector.broadcast %cst_12 : f32 to vector<256x4xf32>
    %37 = arith.select %35, %33, %36 : vector<256x4xi1>, vector<256x4xf32>
    %38 = arith.truncf %37 : vector<256x4xf32> to vector<256x4xbf16>
    %c15_i32 = arith.constant 15 : i32
    %39 = vector.broadcast %c15_i32 : i32 to vector<256x1xi32>
    %40 = arith.cmpi ne, %29, %39 : vector<256x1xi32>
    %c255_i32 = arith.constant 255 : i32
    %41 = tpu.dynamic_rotate %12 by %c255_i32 dim 0 : vector<256x4xf32>, i32 -> vector<256x4xf32>
    %cst_13 = arith.constant 0.000000e+00 : f32
    %42 = vector.shape_cast %40 : vector<256x1xi1> to vector<256x1xi1>
    %43 = vector.broadcast %42 : vector<256x1xi1> to vector<256x4xi1>
    %44 = vector.broadcast %cst_13 : f32 to vector<256x4xf32>
    %45 = arith.select %43, %41, %44 : vector<256x4xi1>, vector<256x4xf32>
    %46 = arith.truncf %45 : vector<256x4xf32> to vector<256x4xbf16>
    %cst_14 = arith.constant 0.000000e+00 : bf16
    %47 = vector.broadcast %cst_14 : bf16 to vector<16x4xbf16>
    %c0_15 = arith.constant 0 : index
    %c0_16 = arith.constant 0 : index
    %48 = vector.load %arg7[%c0_15, %c0_16] : memref<288x4xbf16, #tpu.memory_space<vmem>>, vector<16x4xbf16>
    tpu.vector_store %arg7[%c0_15, %c0_16], %47 {strides = array<i32>} : memref<288x4xbf16, #tpu.memory_space<vmem>>, vector<16x4xbf16>,
    %c16 = arith.constant 16 : index
    %c0_17 = arith.constant 0 : index
    %49 = vector.load %arg7[%c16, %c0_17] : memref<288x4xbf16, #tpu.memory_space<vmem>>, vector<256x4xbf16>
    tpu.vector_store %arg7[%c16, %c0_17], %38 {strides = array<i32>} : memref<288x4xbf16, #tpu.memory_space<vmem>>, vector<256x4xbf16>,
    %c272 = arith.constant 272 : index
    %c0_18 = arith.constant 0 : index
    %50 = vector.load %arg7[%c272, %c0_18] : memref<288x4xbf16, #tpu.memory_space<vmem>>, vector<16x4xbf16>
    tpu.vector_store %arg7[%c272, %c0_18], %47 {strides = array<i32>} : memref<288x4xbf16, #tpu.memory_space<vmem>>, vector<16x4xbf16>,
    %c0_19 = arith.constant 0 : index
    %c0_20 = arith.constant 0 : index
    %51 = vector.load %arg8[%c0_19, %c0_20] : memref<288x4xbf16, #tpu.memory_space<vmem>>, vector<16x4xbf16>
    tpu.vector_store %arg8[%c0_19, %c0_20], %47 {strides = array<i32>} : memref<288x4xbf16, #tpu.memory_space<vmem>>, vector<16x4xbf16>,
    %c16_21 = arith.constant 16 : index
    %c0_22 = arith.constant 0 : index
    %52 = vector.load %arg8[%c16_21, %c0_22] : memref<288x4xbf16, #tpu.memory_space<vmem>>, vector<256x4xbf16>
    tpu.vector_store %arg8[%c16_21, %c0_22], %30 {strides = array<i32>} : memref<288x4xbf16, #tpu.memory_space<vmem>>, vector<256x4xbf16>,
    %c272_23 = arith.constant 272 : index
    %c0_24 = arith.constant 0 : index
    %53 = vector.load %arg8[%c272_23, %c0_24] : memref<288x4xbf16, #tpu.memory_space<vmem>>, vector<16x4xbf16>
    tpu.vector_store %arg8[%c272_23, %c0_24], %47 {strides = array<i32>} : memref<288x4xbf16, #tpu.memory_space<vmem>>, vector<16x4xbf16>,
    %c0_25 = arith.constant 0 : index
    %c0_26 = arith.constant 0 : index
    %54 = vector.load %arg9[%c0_25, %c0_26] : memref<288x4xbf16, #tpu.memory_space<vmem>>, vector<16x4xbf16>
    tpu.vector_store %arg9[%c0_25, %c0_26], %47 {strides = array<i32>} : memref<288x4xbf16, #tpu.memory_space<vmem>>, vector<16x4xbf16>,
    %c16_27 = arith.constant 16 : index
    %c0_28 = arith.constant 0 : index
    %55 = vector.load %arg9[%c16_27, %c0_28] : memref<288x4xbf16, #tpu.memory_space<vmem>>, vector<256x4xbf16>
    tpu.vector_store %arg9[%c16_27, %c0_28], %46 {strides = array<i32>} : memref<288x4xbf16, #tpu.memory_space<vmem>>, vector<256x4xbf16>,
    %c272_29 = arith.constant 272 : index
    %c0_30 = arith.constant 0 : index
    %56 = vector.load %arg9[%c272_29, %c0_30] : memref<288x4xbf16, #tpu.memory_space<vmem>>, vector<16x4xbf16>
    tpu.vector_store %arg9[%c272_29, %c0_30], %47 {strides = array<i32>} : memref<288x4xbf16, #tpu.memory_space<vmem>>, vector<16x4xbf16>,
    %cst_31 = arith.constant 0.000000e+00 : f32
    %57 = vector.broadcast %cst_31 : f32 to vector<256x4xf32>
    %c0_32 = arith.constant 0 : index
    %c0_33 = arith.constant 0 : index
    %58 = vector.load %arg7[%c0_32, %c0_33] : memref<288x4xbf16, #tpu.memory_space<vmem>>, vector<256x4xbf16>
    %c0_34 = arith.constant 0 : index
    %c0_35 = arith.constant 0 : index
    %c0_36 = arith.constant 0 : index
    %59 = vector.load %arg4[%c0_34, %c0_35, %c0_36] : memref<9x4x4xbf16, #tpu.memory_space<vmem>>, vector<1x4x4xbf16>
    %60 = vector.shape_cast %59 : vector<1x4x4xbf16> to vector<4x4xbf16>
    %cst_37 = arith.constant dense<0.000000e+00> : vector<256x4xf32>
    %61 = tpu.matmul %58, %60, %cst_37 {dimension_numbers = #tpu.dot_dimension_numbers<[1], [0], [0], [1], [0, 0, 1, 1], [], []>} : vector<256x4xbf16>, vector<4x4xbf16>, vector<256x4xf32> -> vector<256x4xf32>
    %62 = arith.addf %57, %61 : vector<256x4xf32>
    %c0_38 = arith.constant 0 : index
    %c0_39 = arith.constant 0 : index
    %63 = vector.load %arg8[%c0_38, %c0_39] : memref<288x4xbf16, #tpu.memory_space<vmem>>, vector<256x4xbf16>
    %c1 = arith.constant 1 : index
    %c0_40 = arith.constant 0 : index
    %c0_41 = arith.constant 0 : index
    %64 = vector.load %arg4[%c1, %c0_40, %c0_41] : memref<9x4x4xbf16, #tpu.memory_space<vmem>>, vector<1x4x4xbf16>
    %65 = vector.shape_cast %64 : vector<1x4x4xbf16> to vector<4x4xbf16>
    %cst_42 = arith.constant dense<0.000000e+00> : vector<256x4xf32>
    %66 = tpu.matmul %63, %65, %cst_42 {dimension_numbers = #tpu.dot_dimension_numbers<[1], [0], [0], [1], [0, 0, 1, 1], [], []>} : vector<256x4xbf16>, vector<4x4xbf16>, vector<256x4xf32> -> vector<256x4xf32>
    %67 = arith.addf %62, %66 : vector<256x4xf32>
    %c0_43 = arith.constant 0 : index
    %c0_44 = arith.constant 0 : index
    %68 = vector.load %arg9[%c0_43, %c0_44] : memref<288x4xbf16, #tpu.memory_space<vmem>>, vector<256x4xbf16>
    %c2 = arith.constant 2 : index
    %c0_45 = arith.constant 0 : index
    %c0_46 = arith.constant 0 : index
    %69 = vector.load %arg4[%c2, %c0_45, %c0_46] : memref<9x4x4xbf16, #tpu.memory_space<vmem>>, vector<1x4x4xbf16>
    %70 = vector.shape_cast %69 : vector<1x4x4xbf16> to vector<4x4xbf16>
    %cst_47 = arith.constant dense<0.000000e+00> : vector<256x4xf32>
    %71 = tpu.matmul %68, %70, %cst_47 {dimension_numbers = #tpu.dot_dimension_numbers<[1], [0], [0], [1], [0, 0, 1, 1], [], []>} : vector<256x4xbf16>, vector<4x4xbf16>, vector<256x4xf32> -> vector<256x4xf32>
    %72 = arith.addf %67, %71 : vector<256x4xf32>
    %c16_48 = arith.constant 16 : index
    %c0_49 = arith.constant 0 : index
    %73 = vector.load %arg7[%c16_48, %c0_49] : memref<288x4xbf16, #tpu.memory_space<vmem>>, vector<256x4xbf16>
    %c3 = arith.constant 3 : index
    %c0_50 = arith.constant 0 : index
    %c0_51 = arith.constant 0 : index
    %74 = vector.load %arg4[%c3, %c0_50, %c0_51] : memref<9x4x4xbf16, #tpu.memory_space<vmem>>, vector<1x4x4xbf16>
    %75 = vector.shape_cast %74 : vector<1x4x4xbf16> to vector<4x4xbf16>
    %cst_52 = arith.constant dense<0.000000e+00> : vector<256x4xf32>
    %76 = tpu.matmul %73, %75, %cst_52 {dimension_numbers = #tpu.dot_dimension_numbers<[1], [0], [0], [1], [0, 0, 1, 1], [], []>} : vector<256x4xbf16>, vector<4x4xbf16>, vector<256x4xf32> -> vector<256x4xf32>
    %77 = arith.addf %72, %76 : vector<256x4xf32>
    %c16_53 = arith.constant 16 : index
    %c0_54 = arith.constant 0 : index
    %78 = vector.load %arg8[%c16_53, %c0_54] : memref<288x4xbf16, #tpu.memory_space<vmem>>, vector<256x4xbf16>
    %c4 = arith.constant 4 : index
    %c0_55 = arith.constant 0 : index
    %c0_56 = arith.constant 0 : index
    %79 = vector.load %arg4[%c4, %c0_55, %c0_56] : memref<9x4x4xbf16, #tpu.memory_space<vmem>>, vector<1x4x4xbf16>
    %80 = vector.shape_cast %79 : vector<1x4x4xbf16> to vector<4x4xbf16>
    %cst_57 = arith.constant dense<0.000000e+00> : vector<256x4xf32>
    %81 = tpu.matmul %78, %80, %cst_57 {dimension_numbers = #tpu.dot_dimension_numbers<[1], [0], [0], [1], [0, 0, 1, 1], [], []>} : vector<256x4xbf16>, vector<4x4xbf16>, vector<256x4xf32> -> vector<256x4xf32>
    %82 = arith.addf %77, %81 : vector<256x4xf32>
    %c16_58 = arith.constant 16 : index
    %c0_59 = arith.constant 0 : index
    %83 = vector.load %arg9[%c16_58, %c0_59] : memref<288x4xbf16, #tpu.memory_space<vmem>>, vector<256x4xbf16>
    %c5 = arith.constant 5 : index
    %c0_60 = arith.constant 0 : index
    %c0_61 = arith.constant 0 : index
    %84 = vector.load %arg4[%c5, %c0_60, %c0_61] : memref<9x4x4xbf16, #tpu.memory_space<vmem>>, vector<1x4x4xbf16>
    %85 = vector.shape_cast %84 : vector<1x4x4xbf16> to vector<4x4xbf16>
    %cst_62 = arith.constant dense<0.000000e+00> : vector<256x4xf32>
    %86 = tpu.matmul %83, %85, %cst_62 {dimension_numbers = #tpu.dot_dimension_numbers<[1], [0], [0], [1], [0, 0, 1, 1], [], []>} : vector<256x4xbf16>, vector<4x4xbf16>, vector<256x4xf32> -> vector<256x4xf32>
    %87 = arith.addf %82, %86 : vector<256x4xf32>
    %c32 = arith.constant 32 : index
    %c0_63 = arith.constant 0 : index
    %88 = vector.load %arg7[%c32, %c0_63] : memref<288x4xbf16, #tpu.memory_space<vmem>>, vector<256x4xbf16>
    %c6 = arith.constant 6 : index
    %c0_64 = arith.constant 0 : index
    %c0_65 = arith.constant 0 : index
    %89 = vector.load %arg4[%c6, %c0_64, %c0_65] : memref<9x4x4xbf16, #tpu.memory_space<vmem>>, vector<1x4x4xbf16>
    %90 = vector.shape_cast %89 : vector<1x4x4xbf16> to vector<4x4xbf16>
    %cst_66 = arith.constant dense<0.000000e+00> : vector<256x4xf32>
    %91 = tpu.matmul %88, %90, %cst_66 {dimension_numbers = #tpu.dot_dimension_numbers<[1], [0], [0], [1], [0, 0, 1, 1], [], []>} : vector<256x4xbf16>, vector<4x4xbf16>, vector<256x4xf32> -> vector<256x4xf32>
    %92 = arith.addf %87, %91 : vector<256x4xf32>
    %c32_67 = arith.constant 32 : index
    %c0_68 = arith.constant 0 : index
    %93 = vector.load %arg8[%c32_67, %c0_68] : memref<288x4xbf16, #tpu.memory_space<vmem>>, vector<256x4xbf16>
    %c7 = arith.constant 7 : index
    %c0_69 = arith.constant 0 : index
    %c0_70 = arith.constant 0 : index
    %94 = vector.load %arg4[%c7, %c0_69, %c0_70] : memref<9x4x4xbf16, #tpu.memory_space<vmem>>, vector<1x4x4xbf16>
    %95 = vector.shape_cast %94 : vector<1x4x4xbf16> to vector<4x4xbf16>
    %cst_71 = arith.constant dense<0.000000e+00> : vector<256x4xf32>
    %96 = tpu.matmul %93, %95, %cst_71 {dimension_numbers = #tpu.dot_dimension_numbers<[1], [0], [0], [1], [0, 0, 1, 1], [], []>} : vector<256x4xbf16>, vector<4x4xbf16>, vector<256x4xf32> -> vector<256x4xf32>
    %97 = arith.addf %92, %96 : vector<256x4xf32>
    %c32_72 = arith.constant 32 : index
    %c0_73 = arith.constant 0 : index
    %98 = vector.load %arg9[%c32_72, %c0_73] : memref<288x4xbf16, #tpu.memory_space<vmem>>, vector<256x4xbf16>
    %c8 = arith.constant 8 : index
    %c0_74 = arith.constant 0 : index
    %c0_75 = arith.constant 0 : index
    %99 = vector.load %arg4[%c8, %c0_74, %c0_75] : memref<9x4x4xbf16, #tpu.memory_space<vmem>>, vector<1x4x4xbf16>
    %100 = vector.shape_cast %99 : vector<1x4x4xbf16> to vector<4x4xbf16>
    %cst_76 = arith.constant dense<0.000000e+00> : vector<256x4xf32>
    %101 = tpu.matmul %98, %100, %cst_76 {dimension_numbers = #tpu.dot_dimension_numbers<[1], [0], [0], [1], [0, 0, 1, 1], [], []>} : vector<256x4xbf16>, vector<4x4xbf16>, vector<256x4xf32> -> vector<256x4xf32>
    %102 = arith.addf %97, %101 : vector<256x4xf32>
    %c0_77 = arith.constant 0 : index
    %c0_78 = arith.constant 0 : index
    %103 = vector.load %arg5[%c0_77, %c0_78] : memref<1x4xf32, #tpu.memory_space<vmem>>, vector<1x4xf32>
    %104 = vector.broadcast %103 : vector<1x4xf32> to vector<256x4xf32>
    %105 = arith.addf %102, %104 : vector<256x4xf32>
    %106 = arith.negf %105 : vector<256x4xf32>
    %107 = math.exp %106 : vector<256x4xf32>
    %cst_79 = arith.constant 1.000000e+00 : f32
    %108 = vector.broadcast %cst_79 : f32 to vector<256x4xf32>
    %109 = arith.addf %108, %107 : vector<256x4xf32>
    %110 = arith.divf %108, %109 : vector<256x4xf32>
    %111 = arith.mulf %105, %110 : vector<256x4xf32>
    %112 = arith.extf %1 : vector<256x4xbf16> to vector<256x4xf32>
    %113 = arith.addf %112, %111 : vector<256x4xf32>
    %114 = arith.truncf %113 : vector<256x4xf32> to vector<256x4xbf16>
    %c0_80 = arith.constant 0 : index
    %c0_81 = arith.constant 0 : index
    %c0_82 = arith.constant 0 : index
    %115 = vector.load %arg6[%c0_80, %c0_81, %c0_82] : memref<1x256x4xbf16, #tpu.memory_space<vmem>>, vector<1x256x4xbf16>
    %116 = vector.shape_cast %115 : vector<1x256x4xbf16> to vector<256x4xbf16>
    %117 = vector.shape_cast %114 : vector<256x4xbf16> to vector<1x256x4xbf16>
    tpu.vector_store %arg6[%c0_80, %c0_81, %c0_82], %117 {strides = array<i32>} : memref<1x256x4xbf16, #tpu.memory_space<vmem>>, vector<1x256x4xbf16>,
    return
  }
  func.func @transform_0(%arg0: i32) -> (i32, i32, i32) {
    %c0_i32 = arith.constant 0 : i32
    %c0_i32_0 = arith.constant 0 : i32
    %c0_i32_1 = arith.constant 0 : i32
    return %arg0, %c0_i32, %c0_i32_0 : i32, i32, i32
  }
  func.func @transform_1(%arg0: i32) -> (i32, i32) {
    %c0_i32 = arith.constant 0 : i32
    %c0_i32_0 = arith.constant 0 : i32
    %c0_i32_1 = arith.constant 0 : i32
    return %c0_i32, %c0_i32_0 : i32, i32
  }
  func.func @transform_2(%arg0: i32) -> (i32, i32) {
    %c0_i32 = arith.constant 0 : i32
    %c0_i32_0 = arith.constant 0 : i32
    %c0_i32_1 = arith.constant 0 : i32
    return %c0_i32, %c0_i32_0 : i32, i32
  }
  func.func @transform_3(%arg0: i32) -> (i32, i32, i32) {
    %c0_i32 = arith.constant 0 : i32
    %c0_i32_0 = arith.constant 0 : i32
    %c0_i32_1 = arith.constant 0 : i32
    %c0_i32_2 = arith.constant 0 : i32
    return %c0_i32, %c0_i32_0, %c0_i32_1 : i32, i32, i32
  }
  func.func @transform_4(%arg0: i32) -> (i32, i32) {
    %c0_i32 = arith.constant 0 : i32
    %c0_i32_0 = arith.constant 0 : i32
    %c0_i32_1 = arith.constant 0 : i32
    return %c0_i32, %c0_i32_0 : i32, i32
  }
  func.func @transform_5(%arg0: i32) -> (i32, i32, i32) {
    %c0_i32 = arith.constant 0 : i32
    %c0_i32_0 = arith.constant 0 : i32
    %c0_i32_1 = arith.constant 0 : i32
    return %arg0, %c0_i32, %c0_i32_0 : i32, i32, i32
  }
}

</mosaic_0001>

<llo_original>
// kernel: c3_forward.4
$region0: #{c3_forward.4}
  #allocation0 [shape = 'u32[]', space=smem, size = 0x4, offset = 0x4, fixed_abs, tag = 'smem constant byte address 0x4 - core index']
  #allocation1 [shape = 'u32[144,128]{1,0:T(1,128)}', space=vmem, size = 0x12000, scoped, tag = 'internal scratch']
  %s0 = inlined_call_operand.vmem [shape: bf16[512,4], index: 0, kind: input, shape index: {}]
  %s1 = inlined_call_operand.vmem [shape: bf16[4,4], index: 1, kind: input, shape index: {}]
  %s2 = inlined_call_operand.vmem [shape: f32[1,4], index: 2, kind: input, shape index: {}]
  %s3 = inlined_call_operand.vmem [shape: bf16[512,4], index: 3, kind: output, shape index: {}]
  %s4 = sld [smem:[#allocation0]]
  $region45: #{c3_forward.4} parent=0
    _
  %s6 = ssub.s32 1, %s4
  %s7 = scalar_select 0, %s6, %s4
  loop: start=0, step=1, limit=4
  $region2: #{c3_forward.4} parent=0 // loop_pre_header
    _
  $region3: #{c3_forward.4} parent=0 // loop_header
    %s9 = sphi 0, %s13
    %p10 = scmp.ge.s32.totalorder %s9, 4
    %s19 = sphi 0, %s21
    %s22 = sphi 0, %s19
    %s23 = sphi 0, %s22
    %s39 = sphi 0, %s23
    %s43 = sphi 0, %s43
    %s45 = sphi 0, %s43
    %s46 = sphi 0, %s45
    %s60 = sphi 0, %s46
    %s64 = sphi 0, %s64
    %s66 = sphi 0, %s64
    %s67 = sphi 0, %s66
    %s81 = sphi 0, %s67
    %s87 = sphi 0, %s89
    %s90 = sphi 0, %s87
    %s91 = sphi 0, %s90
    %s107 = sphi 0, %s91
  $region4: #{c3_forward.4} parent=0 // loop_header_branch
    %12 = sbr.rel (%p10) target = $region8
  $region5: #{c3_forward.4} parent=0 // loop_body
    %s14 = ssub.s32 %s9, 1
    %s15 = ssub.s32 %s9, 2
    %s16 = sadd.s32 %s9, 1
    %s17 = ssub.s32 %s9, %s16
    %p18 = scmp.eq.s32.totalorder %s17, 0
    %s20 = sadd.s32 %s19, 1
    %s21 = scalar_select %p18, %s19, %s20
    %p24 = pneg %p18
    %p25 = scmp.eq.s32.totalorder %s9, 1
    %p26 = por %p24, %p25
    %p27 = scmp.ne.s32.totalorder %s19, %s22
    %p28 = scmp.eq.s32.totalorder %s9, 0
    %p29 = por %p27, %p28
    %p30 = scmp.ne.s32.totalorder %s19, %s22
    %p31 = scmp.eq.s32.totalorder %s14, 1
    %p32 = por %p30, %p31
    %p33 = scmp.ne.s32.totalorder %s22, %s23
    %p34 = scmp.eq.s32.totalorder %s14, 0
    %p35 = por %p33, %p34
    %p36 = scmp.ne.s32.totalorder %s22, %s23
    %p37 = scmp.eq.s32.totalorder %s15, 1
    %p38 = por %p36, %p37
    %p40 = scmp.ne.s32.totalorder %s23, %s39
    %p41 = scmp.eq.s32.totalorder %s15, 0
    %p42 = por %p40, %p41
    %s44 = sadd.s32 %s43, 1
    %p47 = scmp.eq.s32.totalorder %s9, 1
    %p48 = scmp.ne.s32.totalorder %s43, %s45
    %p49 = scmp.eq.s32.totalorder %s9, 0
    %p50 = por %p48, %p49
    %p51 = scmp.ne.s32.totalorder %s43, %s45
    %p52 = scmp.eq.s32.totalorder %s14, 1
    %p53 = por %p51, %p52
    %p54 = scmp.ne.s32.totalorder %s45, %s46
    %p55 = scmp.eq.s32.totalorder %s14, 0
    %p56 = por %p54, %p55
    %p57 = scmp.ne.s32.totalorder %s45, %s46
    %p58 = scmp.eq.s32.totalorder %s15, 1
    %p59 = por %p57, %p58
    %p61 = scmp.ne.s32.totalorder %s46, %s60
    %p62 = scmp.eq.s32.totalorder %s15, 0
    %p63 = por %p61, %p62
    %s65 = sadd.s32 %s64, 1
    %p68 = scmp.eq.s32.totalorder %s9, 1
    %p69 = scmp.ne.s32.totalorder %s64, %s66
    %p70 = scmp.eq.s32.totalorder %s9, 0
    %p71 = por %p69, %p70
    %p72 = scmp.ne.s32.totalorder %s64, %s66
    %p73 = scmp.eq.s32.totalorder %s14, 1
    %p74 = por %p72, %p73
    %p75 = scmp.ne.s32.totalorder %s66, %s67
    %p76 = scmp.eq.s32.totalorder %s14, 0
    %p77 = por %p75, %p76
    %p78 = scmp.ne.s32.totalorder %s66, %s67
    %p79 = scmp.eq.s32.totalorder %s15, 1
    %p80 = por %p78, %p79
    %p82 = scmp.ne.s32.totalorder %s67, %s81
    %p83 = scmp.eq.s32.totalorder %s15, 0
    %p84 = por %p82, %p83
    %s85 = ssub.s32 %s9, %s16
    %p86 = scmp.eq.s32.totalorder %s85, 0
    %s88 = sadd.s32 %s87, 1
    %s89 = scalar_select %p86, %s87, %s88
    %p92 = pneg %p86
    %p93 = scmp.eq.s32.totalorder %s9, 1
    %p94 = por %p92, %p93
    %p95 = scmp.ne.s32.totalorder %s87, %s90
    %p96 = scmp.eq.s32.totalorder %s9, 0
    %p97 = por %p95, %p96
    %p98 = scmp.ne.s32.totalorder %s87, %s90
    %p99 = scmp.eq.s32.totalorder %s14, 1
    %p100 = por %p98, %p99
    %p101 = scmp.ne.s32.totalorder %s90, %s91
    %p102 = scmp.eq.s32.totalorder %s14, 0
    %p103 = por %p101, %p102
    %p104 = scmp.ne.s32.totalorder %s90, %s91
    %p105 = scmp.eq.s32.totalorder %s15, 1
    %p106 = por %p104, %p105
    %p108 = scmp.ne.s32.totalorder %s91, %s107
    %p109 = scmp.eq.s32.totalorder %s15, 0
    %p110 = por %p108, %p109
    %p111 = scmp.le.s32.totalorder 1, %s9
    %p112 = scmp.lt.s32.totalorder %s9, 3
    %p113 = pnand %p111, %p112
    %p114 = pneg %p113
    // Predicated region
    $region9: #{c3_forward.4} parent=5 // pred_check
      _
    $region10: #{c3_forward.4} parent=5 // pred_check_branch
      %116 = sbr.rel (%p113) target = $region12
    $region11: #{c3_forward.4} parent=5 // pred_region
      %s117 = ssub.s32 %s9, 1
      // Predicated region
      $region13: #{c3_forward.4} parent=11 // pred_check
        %p118 = pneg %p56
      $region14: #{c3_forward.4} parent=11 // pred_check_branch
        %120 = sbr.rel (%p118) target = $region16
      $region15: #{c3_forward.4} parent=11 // pred_region
        _
      $region16: #{c3_forward.4} parent=11 // pred_fallthru
        _
      // Predicated region
      $region17: #{c3_forward.4} parent=11 // pred_check
        %p121 = pneg %p77
      $region18: #{c3_forward.4} parent=11 // pred_check_branch
        %123 = sbr.rel (%p121) target = $region20
      $region19: #{c3_forward.4} parent=11 // pred_region
        _
      $region20: #{c3_forward.4} parent=11 // pred_fallthru
        _
    $region12: #{c3_forward.4} parent=5 // pred_fallthru
      _
    %p124 = scmp.lt.s32.totalorder %s9, 2
    // Predicated region
    $region21: #{c3_forward.4} parent=5 // pred_check
      %p125 = pneg %p124
    $region22: #{c3_forward.4} parent=5 // pred_check_branch
      %127 = sbr.rel (%p125) target = $region24
    $region23: #{c3_forward.4} parent=5 // pred_region
      // Predicated region
      $region25: #{c3_forward.4} parent=23 // pred_check
        %p128 = pneg %p29
      $region26: #{c3_forward.4} parent=23 // pred_check_branch
        %130 = sbr.rel (%p128) target = $region28
      $region27: #{c3_forward.4} parent=23 // pred_region
        %s131 = smul.u32 32, %s9
        %p132 = scmp.lt.s32.totalorder %s131, 63
        %s133 = scalar_select %p132, %s131, 63
        %s134 = smul.addr %s133, 4
        %s135 = scalar_lea.vmem %s0, %s134
        %s136 = smul.u32 32, %s9
      $region28: #{c3_forward.4} parent=23 // pred_fallthru
        _
    $region24: #{c3_forward.4} parent=5 // pred_fallthru
      _
    %p137 = scmp.le.s32.totalorder 1, %s9
    %p138 = scmp.lt.s32.totalorder %s9, 3
    %p139 = pnand %p137, %p138
    %p140 = pneg %p139
    // Predicated region
    $region29: #{c3_forward.4} parent=5 // pred_check
      _
    $region30: #{c3_forward.4} parent=5 // pred_check_branch
      %142 = sbr.rel (%p139) target = $region32
    $region31: #{c3_forward.4} parent=5 // pred_region
      %s143 = ssub.s32 %s9, 1
      %s144 = smul.u32 32, %s14
      %p145 = scmp.lt.s32.totalorder %s144, 63
      %s146 = scalar_select %p145, %s144, 63
      %s147 = smul.addr %s146, 4
      %s148 = scalar_lea.vmem %s0, %s147
      %p149 = pneg %p35
      %p150 = pneg %p32
      %p151 = pneg %p56
      %p152 = pneg %p53
      %p153 = pneg %p77
      %p154 = pneg %p74
      %p155 = pneg %p103
      %p156 = pneg %p100
      %s157 = smul.u32 32, %s14
      %p158 = scmp.lt.s32.totalorder %s157, 63
      %s159 = scalar_select %p158, %s157, 63
      %s160 = smul.addr %s159, 4
      %s161 = scalar_lea.vmem %s3, %s160
      %s162 = smul.u32 32, %s14
      %p163 = scmp.lt.s32.totalorder %s162, 63
      %s164 = scalar_select %p163, %s162, 63
      %s165 = smul.addr %s164, 4
      %s166 = scalar_lea.vmem %s0, %s165
      %s167 = smul.u32 32, %s14
      %s168 = smul.u32 32, %s14
      %p169 = scmp.lt.s32.totalorder %s168, 63
      %s170 = scalar_select %p169, %s168, 63
      %s171 = smul.addr %s170, 4
      %s172 = scalar_lea.vmem %s3, %s171
      %s173 = smul.u32 32, %s14
      %v175 = vld [vmem:[%s166] sm:$0xf]
      %v176 = vld [vmem:[%s166 + $0x4] sm:$0xf]
      %v177 = vld [vmem:[%s166 + $0x8] sm:$0xf]
      %v178 = vld [vmem:[%s166 + $0xc] sm:$0xf]
      %v179 = vld [vmem:[%s166 + $0x10] sm:$0xf]
      %v180 = vld [vmem:[%s166 + $0x14] sm:$0xf]
      %v181 = vld [vmem:[%s166 + $0x18] sm:$0xf]
      %v182 = vld [vmem:[%s166 + $0x1c] sm:$0xf]
      %v183 = vld [vmem:[%s166 + $0x20] sm:$0xf]
      %v184 = vld [vmem:[%s166 + $0x24] sm:$0xf]
      %v185 = vld [vmem:[%s166 + $0x28] sm:$0xf]
      %v186 = vld [vmem:[%s166 + $0x2c] sm:$0xf]
      %v187 = vld [vmem:[%s166 + $0x30] sm:$0xf]
      %v188 = vld [vmem:[%s166 + $0x34] sm:$0xf]
      %v189 = vld [vmem:[%s166 + $0x38] sm:$0xf]
      %v190 = vld [vmem:[%s166 + $0x3c] sm:$0xf]
      %v191 = vld [vmem:[%s166 + $0x40] sm:$0xf]
      %v192 = vld [vmem:[%s166 + $0x44] sm:$0xf]
      %v193 = vld [vmem:[%s166 + $0x48] sm:$0xf]
      %v194 = vld [vmem:[%s166 + $0x4c] sm:$0xf]
      %v195 = vld [vmem:[%s166 + $0x50] sm:$0xf]
      %v196 = vld [vmem:[%s166 + $0x54] sm:$0xf]
      %v197 = vld [vmem:[%s166 + $0x58] sm:$0xf]
      %v198 = vld [vmem:[%s166 + $0x5c] sm:$0xf]
      %v199 = vld [vmem:[%s166 + $0x60] sm:$0xf]
      %v200 = vld [vmem:[%s166 + $0x64] sm:$0xf]
      %v201 = vld [vmem:[%s166 + $0x68] sm:$0xf]
      %v202 = vld [vmem:[%s166 + $0x6c] sm:$0xf]
      %v203 = vld [vmem:[%s166 + $0x70] sm:$0xf]
      %v204 = vld [vmem:[%s166 + $0x74] sm:$0xf]
      %v205 = vld [vmem:[%s166 + $0x78] sm:$0xf]
      %v206 = vld [vmem:[%s166 + $0x7c] sm:$0xf]
      %v207 = vld [vmem:[%s1] sm:$0x3]
      %v208 = vld [vmem:[%s2] sm:$0x1]
      %v210 = vlaneseq
      %v211 = vshrl.u32 %v210, 7
      %v212 = vsub.s32 0, %v211
      %v213 = vrot.slane %v208, %v212
      %v247 = vunpack.c.l.b16 %v175
      %v248 = vunpack.c.l.b16 %v176
      %v249 = vunpack.c.l.b16 %v177
      %v250 = vunpack.c.l.b16 %v178
      %v251 = vunpack.c.l.b16 %v179
      %v252 = vunpack.c.l.b16 %v180
      %v253 = vunpack.c.l.b16 %v181
      %v254 = vunpack.c.l.b16 %v182
      %v255 = vunpack.c.l.b16 %v183
      %v256 = vunpack.c.l.b16 %v184
      %v257 = vunpack.c.l.b16 %v185
      %v258 = vunpack.c.l.b16 %v186
      %v259 = vunpack.c.l.b16 %v187
      %v260 = vunpack.c.l.b16 %v188
      %v261 = vunpack.c.l.b16 %v189
      %v262 = vunpack.c.l.b16 %v190
      %v263 = vunpack.c.l.b16 %v191
      %v264 = vunpack.c.l.b16 %v192
      %v265 = vunpack.c.l.b16 %v193
      %v266 = vunpack.c.l.b16 %v194
      %v267 = vunpack.c.l.b16 %v195
      %v268 = vunpack.c.l.b16 %v196
      %v269 = vunpack.c.l.b16 %v197
      %v270 = vunpack.c.l.b16 %v198
      %v271 = vunpack.c.l.b16 %v199
      %v272 = vunpack.c.l.b16 %v200
      %v273 = vunpack.c.l.b16 %v201
      %v274 = vunpack.c.l.b16 %v202
      %v275 = vunpack.c.l.b16 %v203
      %v276 = vunpack.c.l.b16 %v204
      %v277 = vunpack.c.l.b16 %v205
      %v278 = vunpack.c.l.b16 %v206
      %v279 = vpack.c.b16 %v248, %v247
      %v280 = vpack.c.b16 %v250, %v249
      %v281 = vpack.c.b16 %v252, %v251
      %v282 = vpack.c.b16 %v254, %v253
      %v283 = vpack.c.b16 %v256, %v255
      %v284 = vpack.c.b16 %v258, %v257
      %v285 = vpack.c.b16 %v260, %v259
      %v286 = vpack.c.b16 %v262, %v261
      %v287 = vpack.c.b16 %v264, %v263
      %v288 = vpack.c.b16 %v266, %v265
      %v289 = vpack.c.b16 %v268, %v267
      %v290 = vpack.c.b16 %v270, %v269
      %v291 = vpack.c.b16 %v272, %v271
      %v292 = vpack.c.b16 %v274, %v273
      %v293 = vpack.c.b16 %v276, %v275
      %v294 = vpack.c.b16 %v278, %v277
      %vm295 = vcmask 31744
      %v297 = vsel %vm295, %v279, 0
      %v300 = vsel %vm295, %v280, 0
      %v303 = vsel %vm295, %v281, 0
      %v306 = vsel %vm295, %v282, 0
      %v309 = vsel %vm295, %v283, 0
      %v312 = vsel %vm295, %v284, 0
      %v315 = vsel %vm295, %v285, 0
      %v318 = vsel %vm295, %v286, 0
      %v321 = vsel %vm295, %v287, 0
      %v324 = vsel %vm295, %v288, 0
      %v327 = vsel %vm295, %v289, 0
      %v330 = vsel %vm295, %v290, 0
      %v333 = vsel %vm295, %v291, 0
      %v336 = vsel %vm295, %v292, 0
      %v339 = vsel %vm295, %v293, 0
      %v342 = vsel %vm295, %v294, 0
      %vm344 = vcmask 1041408
      %v346 = vsel %vm344, %v207, 0
      %348 = vmatprep.subr.bf16.mxu0 0
      %349 = vmatpush1.bf16.msra.mxu0 %v346
      %350 = vmatprep.subr.bf16.mxu0 0
      %351 = vmatpush1.bf16.msra.mxu0 0
      %352 = vmatprep.subr.bf16.mxu0 0
      %353 = vmatpush1.bf16.msra.mxu0 0
      %354 = vmatprep.subr.bf16.mxu0 0
      %355 = vmatpush1.bf16.msra.mxu0 0
      %356 = vmatprep.subr.bf16.mxu0 0
      %357 = vmatpush1.bf16.msra.mxu0 0
      %358 = vmatprep.subr.bf16.mxu0 0
      %359 = vmatpush1.bf16.msra.mxu0 0
      %360 = vmatprep.subr.bf16.mxu0 0
      %361 = vmatpush1.bf16.msra.mxu0 0
      %362 = vmatprep.subr.bf16.mxu0 0
      %363 = vmatpush1.bf16.msra.mxu0 0
      %364 = vmatprep.subr.bf16.mxu0 0
      %365 = vmatpush1.bf16.msra.mxu0 0
      %366 = vmatprep.subr.bf16.mxu0 0
      %367 = vmatpush1.bf16.msra.mxu0 0
      %368 = vmatprep.subr.bf16.mxu0 0
      %369 = vmatpush1.bf16.msra.mxu0 0
      %370 = vmatprep.subr.bf16.mxu0 0
      %371 = vmatpush1.bf16.msra.mxu0 0
      %372 = vmatprep.subr.bf16.mxu0 0
      %373 = vmatpush1.bf16.msra.mxu0 0
      %374 = vmatprep.subr.bf16.mxu0 0
      %375 = vmatpush1.bf16.msra.mxu0 0
      %376 = vmatprep.subr.bf16.mxu0 0
      %377 = vmatpush1.bf16.msra.mxu0 0
      %378 = vmatprep.subr.bf16.mxu0 0
      %379 = vmatpush1.bf16.msra.mxu0 0
      %380 = vmatprep.mubr.bf16.mxu0 0
      %381 = vmatmul.mubr.bf16.gmra.mrb[0].mxu0 %v297
      %v382 = vpop.f32.mrb[0].mxu0
      %v383 = vadd.f32 %v213, %v382
      %v384 = vpop.f32.mrb[0].mxu0
      %v385 = vpop.f32.mrb[0].mxu0
      %v386 = vadd.f32 %v213, %v385
      %v387 = vpop.f32.mrb[0].mxu0
      %388 = vmatprep.mubr.bf16.mxu0 0
      %389 = vmatmul.mubr.bf16.gmra.mrb[0].mxu0 %v300
      %v390 = vpop.f32.mrb[0].mxu0
      %v391 = vadd.f32 %v213, %v390
      %v392 = vpop.f32.mrb[0].mxu0
      %v393 = vpop.f32.mrb[0].mxu0
      %v394 = vadd.f32 %v213, %v393
      %v395 = vpop.f32.mrb[0].mxu0
      %396 = vmatprep.mubr.bf16.mxu0 0
      %397 = vmatmul.mubr.bf16.gmra.mrb[0].mxu0 %v303
      %v398 = vpop.f32.mrb[0].mxu0
      %v399 = vadd.f32 %v213, %v398
      %v400 = vpop.f32.mrb[0].mxu0
      %v401 = vpop.f32.mrb[0].mxu0
      %v402 = vadd.f32 %v213, %v401
      %v403 = vpop.f32.mrb[0].mxu0
      %404 = vmatprep.mubr.bf16.mxu0 0
      %405 = vmatmul.mubr.bf16.gmra.mrb[0].mxu0 %v306
      %v406 = vpop.f32.mrb[0].mxu0
      %v407 = vadd.f32 %v213, %v406
      %v408 = vpop.f32.mrb[0].mxu0
      %v409 = vpop.f32.mrb[0].mxu0
      %v410 = vadd.f32 %v213, %v409
      %v411 = vpop.f32.mrb[0].mxu0
      %412 = vmatprep.mubr.bf16.mxu0 0
      %413 = vmatmul.mubr.bf16.gmra.mrb[0].mxu0 %v309
      %v414 = vpop.f32.mrb[0].mxu0
      %v415 = vadd.f32 %v213, %v414
      %v416 = vpop.f32.mrb[0].mxu0
      %v417 = vpop.f32.mrb[0].mxu0
      %v418 = vadd.f32 %v213, %v417
      %v419 = vpop.f32.mrb[0].mxu0
      %420 = vmatprep.mubr.bf16.mxu0 0
      %421 = vmatmul.mubr.bf16.gmra.mrb[0].mxu0 %v312
      %v422 = vpop.f32.mrb[0].mxu0
      %v423 = vadd.f32 %v213, %v422
      %v424 = vpop.f32.mrb[0].mxu0
      %v425 = vpop.f32.mrb[0].mxu0
      %v426 = vadd.f32 %v213, %v425
      %v427 = vpop.f32.mrb[0].mxu0
      %428 = vmatprep.mubr.bf16.mxu0 0
      %429 = vmatmul.mubr.bf16.gmra.mrb[0].mxu0 %v315
      %v430 = vpop.f32.mrb[0].mxu0
      %v431 = vadd.f32 %v213, %v430
      %v432 = vpop.f32.mrb[0].mxu0
      %v433 = vpop.f32.mrb[0].mxu0
      %v434 = vadd.f32 %v213, %v433
      %v435 = vpop.f32.mrb[0].mxu0
      %436 = vmatprep.mubr.bf16.mxu0 0
      %437 = vmatmul.mubr.bf16.gmra.mrb[0].mxu0 %v318
      %v438 = vpop.f32.mrb[0].mxu0
      %v439 = vadd.f32 %v213, %v438
      %v440 = vpop.f32.mrb[0].mxu0
      %v441 = vpop.f32.mrb[0].mxu0
      %v442 = vadd.f32 %v213, %v441
      %v443 = vpop.f32.mrb[0].mxu0
      %444 = vmatprep.mubr.bf16.mxu0 0
      %445 = vmatmul.mubr.bf16.gmra.mrb[0].mxu0 %v321
      %v446 = vpop.f32.mrb[0].mxu0
      %v447 = vadd.f32 %v213, %v446
      %v448 = vpop.f32.mrb[0].mxu0
      %v449 = vpop.f32.mrb[0].mxu0
      %v450 = vadd.f32 %v213, %v449
      %v451 = vpop.f32.mrb[0].mxu0
      %452 = vmatprep.mubr.bf16.mxu0 0
      %453 = vmatmul.mubr.bf16.gmra.mrb[0].mxu0 %v324
      %v454 = vpop.f32.mrb[0].mxu0
      %v455 = vadd.f32 %v213, %v454
      %v456 = vpop.f32.mrb[0].mxu0
      %v457 = vpop.f32.mrb[0].mxu0
      %v458 = vadd.f32 %v213, %v457
      %v459 = vpop.f32.mrb[0].mxu0
      %460 = vmatprep.mubr.bf16.mxu0 0
      %461 = vmatmul.mubr.bf16.gmra.mrb[0].mxu0 %v327
      %v462 = vpop.f32.mrb[0].mxu0
      %v463 = vadd.f32 %v213, %v462
      %v464 = vpop.f32.mrb[0].mxu0
      %v465 = vpop.f32.mrb[0].mxu0
      %v466 = vadd.f32 %v213, %v465
      %v467 = vpop.f32.mrb[0].mxu0
      %468 = vmatprep.mubr.bf16.mxu0 0
      %469 = vmatmul.mubr.bf16.gmra.mrb[0].mxu0 %v330
      %v470 = vpop.f32.mrb[0].mxu0
      %v471 = vadd.f32 %v213, %v470
      %v472 = vpop.f32.mrb[0].mxu0
      %v473 = vpop.f32.mrb[0].mxu0
      %v474 = vadd.f32 %v213, %v473
      %v475 = vpop.f32.mrb[0].mxu0
      %476 = vmatprep.mubr.bf16.mxu0 0
      %477 = vmatmul.mubr.bf16.gmra.mrb[0].mxu0 %v333
      %v478 = vpop.f32.mrb[0].mxu0
      %v479 = vadd.f32 %v213, %v478
      %v480 = vpop.f32.mrb[0].mxu0
      %v481 = vpop.f32.mrb[0].mxu0
      %v482 = vadd.f32 %v213, %v481
      %v483 = vpop.f32.mrb[0].mxu0
      %484 = vmatprep.mubr.bf16.mxu0 0
      %485 = vmatmul.mubr.bf16.gmra.mrb[0].mxu0 %v336
      %v486 = vpop.f32.mrb[0].mxu0
      %v487 = vadd.f32 %v213, %v486
      %v488 = vpop.f32.mrb[0].mxu0
      %v489 = vpop.f32.mrb[0].mxu0
      %v490 = vadd.f32 %v213, %v489
      %v491 = vpop.f32.mrb[0].mxu0
      %492 = vmatprep.mubr.bf16.mxu0 0
      %493 = vmatmul.mubr.bf16.gmra.mrb[0].mxu0 %v339
      %v494 = vpop.f32.mrb[0].mxu0
      %v495 = vadd.f32 %v213, %v494
      %v496 = vpop.f32.mrb[0].mxu0
      %v497 = vpop.f32.mrb[0].mxu0
      %v498 = vadd.f32 %v213, %v497
      %v499 = vpop.f32.mrb[0].mxu0
      %500 = vmatprep.mubr.bf16.mxu0 0
      %501 = vmatmul.mubr.bf16.gmra.mrb[0].mxu0 %v342
      %v502 = vpop.f32.mrb[0].mxu0
      %v503 = vadd.f32 %v213, %v502
      %v504 = vpop.f32.mrb[0].mxu0
      %v505 = vpop.f32.mrb[0].mxu0
      %v506 = vadd.f32 %v213, %v505
      %v507 = vpop.f32.mrb[0].mxu0
      %508 = vdwg.mxu0
      %v509 = vxor.u32 %v383, 2147483648
      %v510 = vxor.u32 %v386, 2147483648
      %v511 = vxor.u32 %v391, 2147483648
      %v512 = vxor.u32 %v394, 2147483648
      %v513 = vxor.u32 %v399, 2147483648
      %v514 = vxor.u32 %v402, 2147483648
      %v515 = vxor.u32 %v407, 2147483648
      %v516 = vxor.u32 %v410, 2147483648
      %v517 = vxor.u32 %v415, 2147483648
      %v518 = vxor.u32 %v418, 2147483648
      %v519 = vxor.u32 %v423, 2147483648
      %v520 = vxor.u32 %v426, 2147483648
      %v521 = vxor.u32 %v431, 2147483648
      %v522 = vxor.u32 %v434, 2147483648
      %v523 = vxor.u32 %v439, 2147483648
      %v524 = vxor.u32 %v442, 2147483648
      %v525 = vxor.u32 %v447, 2147483648
      %v526 = vxor.u32 %v450, 2147483648
      %v527 = vxor.u32 %v455, 2147483648
      %v528 = vxor.u32 %v458, 2147483648
      %v529 = vxor.u32 %v463, 2147483648
      %v530 = vxor.u32 %v466, 2147483648
      %v531 = vxor.u32 %v471, 2147483648
      %v532 = vxor.u32 %v474, 2147483648
      %v533 = vxor.u32 %v479, 2147483648
      %v534 = vxor.u32 %v482, 2147483648
      %v535 = vxor.u32 %v487, 2147483648
      %v536 = vxor.u32 %v490, 2147483648
      %v537 = vxor.u32 %v495, 2147483648
      %v538 = vxor.u32 %v498, 2147483648
      %v539 = vxor.u32 %v503, 2147483648
      %v540 = vxor.u32 %v506, 2147483648
      %v541 = vmul.f32 %v509, 1.442695
      %v542 = vpow.pop %v541
      %v543 = vmul.f32 %v510, 1.442695
      %v544 = vpow.pop %v543
      %v545 = vmul.f32 %v511, 1.442695
      %v546 = vpow.pop %v545
      %v547 = vmul.f32 %v512, 1.442695
      %v548 = vpow.pop %v547
      %v549 = vmul.f32 %v513, 1.442695
      %v550 = vpow.pop %v549
      %v551 = vmul.f32 %v514, 1.442695
      %v552 = vpow.pop %v551
      %v553 = vmul.f32 %v515, 1.442695
      %v554 = vpow.pop %v553
      %v555 = vmul.f32 %v516, 1.442695
      %v556 = vpow.pop %v555
      %v557 = vmul.f32 %v517, 1.442695
      %v558 = vpow.pop %v557
      %v559 = vmul.f32 %v518, 1.442695
      %v560 = vpow.pop %v559
      %v561 = vmul.f32 %v519, 1.442695
      %v562 = vpow.pop %v561
      %v563 = vmul.f32 %v520, 1.442695
      %v564 = vpow.pop %v563
      %v565 = vmul.f32 %v521, 1.442695
      %v566 = vpow.pop %v565
      %v567 = vmul.f32 %v522, 1.442695
      %v568 = vpow.pop %v567
      %v569 = vmul.f32 %v523, 1.442695
      %v570 = vpow.pop %v569
      %v571 = vmul.f32 %v524, 1.442695
      %v572 = vpow.pop %v571
      %v573 = vmul.f32 %v525, 1.442695
      %v574 = vpow.pop %v573
      %v575 = vmul.f32 %v526, 1.442695
      %v576 = vpow.pop %v575
      %v577 = vmul.f32 %v527, 1.442695
      %v578 = vpow.pop %v577
      %v579 = vmul.f32 %v528, 1.442695
      %v580 = vpow.pop %v579
      %v581 = vmul.f32 %v529, 1.442695
      %v582 = vpow.pop %v581
      %v583 = vmul.f32 %v530, 1.442695
      %v584 = vpow.pop %v583
      %v585 = vmul.f32 %v531, 1.442695
      %v586 = vpow.pop %v585
      %v587 = vmul.f32 %v532, 1.442695
      %v588 = vpow.pop %v587
      %v589 = vmul.f32 %v533, 1.442695
      %v590 = vpow.pop %v589
      %v591 = vmul.f32 %v534, 1.442695
      %v592 = vpow.pop %v591
      %v593 = vmul.f32 %v535, 1.442695
      %v594 = vpow.pop %v593
      %v595 = vmul.f32 %v536, 1.442695
      %v596 = vpow.pop %v595
      %v597 = vmul.f32 %v537, 1.442695
      %v598 = vpow.pop %v597
      %v599 = vmul.f32 %v538, 1.442695
      %v600 = vpow.pop %v599
      %v601 = vmul.f32 %v539, 1.442695
      %v602 = vpow.pop %v601
      %v603 = vmul.f32 %v540, 1.442695
      %v604 = vpow.pop %v603
      %v605 = vadd.f32 %v542, 1.0
      %v606 = vadd.f32 %v544, 1.0
      %v607 = vadd.f32 %v546, 1.0
      %v608 = vadd.f32 %v548, 1.0
      %v609 = vadd.f32 %v550, 1.0
      %v610 = vadd.f32 %v552, 1.0
      %v611 = vadd.f32 %v554, 1.0
      %v612 = vadd.f32 %v556, 1.0
      %v613 = vadd.f32 %v558, 1.0
      %v614 = vadd.f32 %v560, 1.0
      %v615 = vadd.f32 %v562, 1.0
      %v616 = vadd.f32 %v564, 1.0
      %v617 = vadd.f32 %v566, 1.0
      %v618 = vadd.f32 %v568, 1.0
      %v619 = vadd.f32 %v570, 1.0
      %v620 = vadd.f32 %v572, 1.0
      %v621 = vadd.f32 %v574, 1.0
      %v622 = vadd.f32 %v576, 1.0
      %v623 = vadd.f32 %v578, 1.0
      %v624 = vadd.f32 %v580, 1.0
      %v625 = vadd.f32 %v582, 1.0
      %v626 = vadd.f32 %v584, 1.0
      %v627 = vadd.f32 %v586, 1.0
      %v628 = vadd.f32 %v588, 1.0
      %v629 = vadd.f32 %v590, 1.0
      %v630 = vadd.f32 %v592, 1.0
      %v631 = vadd.f32 %v594, 1.0
      %v632 = vadd.f32 %v596, 1.0
      %v633 = vadd.f32 %v598, 1.0
      %v634 = vadd.f32 %v600, 1.0
      %v635 = vadd.f32 %v602, 1.0
      %v636 = vadd.f32 %v604, 1.0
      %v637 = vrcp.pop %v605
      %v638 = vmul.f32 1.0, %v637
      %v639 = vrcp.pop %v606
      %v640 = vmul.f32 1.0, %v639
      %v641 = vrcp.pop %v607
      %v642 = vmul.f32 1.0, %v641
      %v643 = vrcp.pop %v608
      %v644 = vmul.f32 1.0, %v643
      %v645 = vrcp.pop %v609
      %v646 = vmul.f32 1.0, %v645
      %v647 = vrcp.pop %v610
      %v648 = vmul.f32 1.0, %v647
      %v649 = vrcp.pop %v611
      %v650 = vmul.f32 1.0, %v649
      %v651 = vrcp.pop %v612
      %v652 = vmul.f32 1.0, %v651
      %v653 = vrcp.pop %v613
      %v654 = vmul.f32 1.0, %v653
      %v655 = vrcp.pop %v614
      %v656 = vmul.f32 1.0, %v655
      %v657 = vrcp.pop %v615
      %v658 = vmul.f32 1.0, %v657
      %v659 = vrcp.pop %v616
      %v660 = vmul.f32 1.0, %v659
      %v661 = vrcp.pop %v617
      %v662 = vmul.f32 1.0, %v661
      %v663 = vrcp.pop %v618
      %v664 = vmul.f32 1.0, %v663
      %v665 = vrcp.pop %v619
      %v666 = vmul.f32 1.0, %v665
      %v667 = vrcp.pop %v620
      %v668 = vmul.f32 1.0, %v667
      %v669 = vrcp.pop %v621
      %v670 = vmul.f32 1.0, %v669
      %v671 = vrcp.pop %v622
      %v672 = vmul.f32 1.0, %v671
      %v673 = vrcp.pop %v623
      %v674 = vmul.f32 1.0, %v673
      %v675 = vrcp.pop %v624
      %v676 = vmul.f32 1.0, %v675
      %v677 = vrcp.pop %v625
      %v678 = vmul.f32 1.0, %v677
      %v679 = vrcp.pop %v626
      %v680 = vmul.f32 1.0, %v679
      %v681 = vrcp.pop %v627
      %v682 = vmul.f32 1.0, %v681
      %v683 = vrcp.pop %v628
      %v684 = vmul.f32 1.0, %v683
      %v685 = vrcp.pop %v629
      %v686 = vmul.f32 1.0, %v685
      %v687 = vrcp.pop %v630
      %v688 = vmul.f32 1.0, %v687
      %v689 = vrcp.pop %v631
      %v690 = vmul.f32 1.0, %v689
      %v691 = vrcp.pop %v632
      %v692 = vmul.f32 1.0, %v691
      %v693 = vrcp.pop %v633
      %v694 = vmul.f32 1.0, %v693
      %v695 = vrcp.pop %v634
      %v696 = vmul.f32 1.0, %v695
      %v697 = vrcp.pop %v635
      %v698 = vmul.f32 1.0, %v697
      %v699 = vrcp.pop %v636
      %v700 = vmul.f32 1.0, %v699
      %v701 = vmul.f32 %v383, %v638
      %v702 = vmul.f32 %v386, %v640
      %v703 = vmul.f32 %v391, %v642
      %v704 = vmul.f32 %v394, %v644
      %v705 = vmul.f32 %v399, %v646
      %v706 = vmul.f32 %v402, %v648
      %v707 = vmul.f32 %v407, %v650
      %v708 = vmul.f32 %v410, %v652
      %v709 = vmul.f32 %v415, %v654
      %v710 = vmul.f32 %v418, %v656
      %v711 = vmul.f32 %v423, %v658
      %v712 = vmul.f32 %v426, %v660
      %v713 = vmul.f32 %v431, %v662
      %v714 = vmul.f32 %v434, %v664
      %v715 = vmul.f32 %v439, %v666
      %v716 = vmul.f32 %v442, %v668
      %v717 = vmul.f32 %v447, %v670
      %v718 = vmul.f32 %v450, %v672
      %v719 = vmul.f32 %v455, %v674
      %v720 = vmul.f32 %v458, %v676
      %v721 = vmul.f32 %v463, %v678
      %v722 = vmul.f32 %v466, %v680
      %v723 = vmul.f32 %v471, %v682
      %v724 = vmul.f32 %v474, %v684
      %v725 = vmul.f32 %v479, %v686
      %v726 = vmul.f32 %v482, %v688
      %v727 = vmul.f32 %v487, %v690
      %v728 = vmul.f32 %v490, %v692
      %v729 = vmul.f32 %v495, %v694
      %v730 = vmul.f32 %v498, %v696
      %v731 = vmul.f32 %v503, %v698
      %v732 = vmul.f32 %v506, %v700
      %v733 = vpack.c.bf16 %v702, %v701
      %v734 = vpack.c.bf16 %v704, %v703
      %v735 = vpack.c.bf16 %v706, %v705
      %v736 = vpack.c.bf16 %v708, %v707
      %v737 = vpack.c.bf16 %v710, %v709
      %v738 = vpack.c.bf16 %v712, %v711
      %v739 = vpack.c.bf16 %v714, %v713
      %v740 = vpack.c.bf16 %v716, %v715
      %v741 = vpack.c.bf16 %v718, %v717
      %v742 = vpack.c.bf16 %v720, %v719
      %v743 = vpack.c.bf16 %v722, %v721
      %v744 = vpack.c.bf16 %v724, %v723
      %v745 = vpack.c.bf16 %v726, %v725
      %v746 = vpack.c.bf16 %v728, %v727
      %v747 = vpack.c.bf16 %v730, %v729
      %v748 = vpack.c.bf16 %v732, %v731
      %v765 = vunpack.c.l.b16 %v733
      %v766 = vunpack.c.h.b16 %v733
      %v767 = vunpack.c.l.b16 %v734
      %v768 = vunpack.c.h.b16 %v734
      %v769 = vunpack.c.l.b16 %v735
      %v770 = vunpack.c.h.b16 %v735
      %v771 = vunpack.c.l.b16 %v736
      %v772 = vunpack.c.h.b16 %v736
      %v773 = vunpack.c.l.b16 %v737
      %v774 = vunpack.c.h.b16 %v737
      %v775 = vunpack.c.l.b16 %v738
      %v776 = vunpack.c.h.b16 %v738
      %v777 = vunpack.c.l.b16 %v739
      %v778 = vunpack.c.h.b16 %v739
      %v779 = vunpack.c.l.b16 %v740
      %v780 = vunpack.c.h.b16 %v740
      %v781 = vunpack.c.l.b16 %v741
      %v782 = vunpack.c.h.b16 %v741
      %v783 = vunpack.c.l.b16 %v742
      %v784 = vunpack.c.h.b16 %v742
      %v785 = vunpack.c.l.b16 %v743
      %v786 = vunpack.c.h.b16 %v743
      %v787 = vunpack.c.l.b16 %v744
      %v788 = vunpack.c.h.b16 %v744
      %v789 = vunpack.c.l.b16 %v745
      %v790 = vunpack.c.h.b16 %v745
      %v791 = vunpack.c.l.b16 %v746
      %v792 = vunpack.c.h.b16 %v746
      %v793 = vunpack.c.l.b16 %v747
      %v794 = vunpack.c.h.b16 %v747
      %v795 = vunpack.c.l.b16 %v748
      %v796 = vunpack.c.h.b16 %v748
      %v797 = vpack.c.b16 %v765, %v765
      %v798 = vpack.c.b16 %v766, %v766
      %v799 = vpack.c.b16 %v767, %v767
      %v800 = vpack.c.b16 %v768, %v768
      %v801 = vpack.c.b16 %v769, %v769
      %v802 = vpack.c.b16 %v770, %v770
      %v803 = vpack.c.b16 %v771, %v771
      %v804 = vpack.c.b16 %v772, %v772
      %v805 = vpack.c.b16 %v773, %v773
      %v806 = vpack.c.b16 %v774, %v774
      %v807 = vpack.c.b16 %v775, %v775
      %v808 = vpack.c.b16 %v776, %v776
      %v809 = vpack.c.b16 %v777, %v777
      %v810 = vpack.c.b16 %v778, %v778
      %v811 = vpack.c.b16 %v779, %v779
      %v812 = vpack.c.b16 %v780, %v780
      %v813 = vpack.c.b16 %v781, %v781
      %v814 = vpack.c.b16 %v782, %v782
      %v815 = vpack.c.b16 %v783, %v783
      %v816 = vpack.c.b16 %v784, %v784
      %v817 = vpack.c.b16 %v785, %v785
      %v818 = vpack.c.b16 %v786, %v786
      %v819 = vpack.c.b16 %v787, %v787
      %v820 = vpack.c.b16 %v788, %v788
      %v821 = vpack.c.b16 %v789, %v789
      %v822 = vpack.c.b16 %v790, %v790
      %v823 = vpack.c.b16 %v791, %v791
      %v824 = vpack.c.b16 %v792, %v792
      %v825 = vpack.c.b16 %v793, %v793
      %v826 = vpack.c.b16 %v794, %v794
      %v827 = vpack.c.b16 %v795, %v795
      %v828 = vpack.c.b16 %v796, %v796
      %vm861 = vcmask 27648
      %862 = vst.msk [vmem:[%s172] sm:$0xf] %vm861, %v797
      %863 = vst.msk [vmem:[%s172 + $0x4] sm:$0xf] %vm861, %v798
      %864 = vst.msk [vmem:[%s172 + $0x8] sm:$0xf] %vm861, %v799
      %865 = vst.msk [vmem:[%s172 + $0xc] sm:$0xf] %vm861, %v800
      %866 = vst.msk [vmem:[%s172 + $0x10] sm:$0xf] %vm861, %v801
      %867 = vst.msk [vmem:[%s172 + $0x14] sm:$0xf] %vm861, %v802
      %868 = vst.msk [vmem:[%s172 + $0x18] sm:$0xf] %vm861, %v803
      %869 = vst.msk [vmem:[%s172 + $0x1c] sm:$0xf] %vm861, %v804
      %870 = vst.msk [vmem:[%s172 + $0x20] sm:$0xf] %vm861, %v805
      %871 = vst.msk [vmem:[%s172 + $0x24] sm:$0xf] %vm861, %v806
      %872 = vst.msk [vmem:[%s172 + $0x28] sm:$0xf] %vm861, %v807
      %873 = vst.msk [vmem:[%s172 + $0x2c] sm:$0xf] %vm861, %v808
      %874 = vst.msk [vmem:[%s172 + $0x30] sm:$0xf] %vm861, %v809
      %875 = vst.msk [vmem:[%s172 + $0x34] sm:$0xf] %vm861, %v810
      %876 = vst.msk [vmem:[%s172 + $0x38] sm:$0xf] %vm861, %v811
      %877 = vst.msk [vmem:[%s172 + $0x3c] sm:$0xf] %vm861, %v812
      %878 = vst.msk [vmem:[%s172 + $0x40] sm:$0xf] %vm861, %v813
      %879 = vst.msk [vmem:[%s172 + $0x44] sm:$0xf] %vm861, %v814
      %880 = vst.msk [vmem:[%s172 + $0x48] sm:$0xf] %vm861, %v815
      %881 = vst.msk [vmem:[%s172 + $0x4c] sm:$0xf] %vm861, %v816
      %882 = vst.msk [vmem:[%s172 + $0x50] sm:$0xf] %vm861, %v817
      %883 = vst.msk [vmem:[%s172 + $0x54] sm:$0xf] %vm861, %v818
      %884 = vst.msk [vmem:[%s172 + $0x58] sm:$0xf] %vm861, %v819
      %885 = vst.msk [vmem:[%s172 + $0x5c] sm:$0xf] %vm861, %v820
      %886 = vst.msk [vmem:[%s172 + $0x60] sm:$0xf] %vm861, %v821
      %887 = vst.msk [vmem:[%s172 + $0x64] sm:$0xf] %vm861, %v822
      %888 = vst.msk [vmem:[%s172 + $0x68] sm:$0xf] %vm861, %v823
      %889 = vst.msk [vmem:[%s172 + $0x6c] sm:$0xf] %vm861, %v824
      %890 = vst.msk [vmem:[%s172 + $0x70] sm:$0xf] %vm861, %v825
      %891 = vst.msk [vmem:[%s172 + $0x74] sm:$0xf] %vm861, %v826
      %892 = vst.msk [vmem:[%s172 + $0x78] sm:$0xf] %vm861, %v827
      %893 = vst.msk [vmem:[%s172 + $0x7c] sm:$0xf] %vm861, %v828
      %s894 = smul.u32 32, %s14
      %p895 = scmp.lt.s32.totalorder %s894, 63
      %s896 = scalar_select %p895, %s894, 63
      %s897 = smul.addr %s896, 4
      %s898 = scalar_lea.vmem %s3, %s897
      // Predicated region
      $region33: #{c3_forward.4} parent=31 // pred_check
        %p899 = pneg %p100
      $region34: #{c3_forward.4} parent=31 // pred_check_branch
        %901 = sbr.rel (%p899) target = $region36
      $region35: #{c3_forward.4} parent=31 // pred_region
        %s902 = smul.u32 32, %s14
      $region36: #{c3_forward.4} parent=31 // pred_fallthru
        _
    $region32: #{c3_forward.4} parent=5 // pred_fallthru
      _
    %p903 = scmp.le.s32.totalorder 2, %s9
    // Predicated region
    $region37: #{c3_forward.4} parent=5 // pred_check
      %p904 = pneg %p903
    $region38: #{c3_forward.4} parent=5 // pred_check_branch
      %906 = sbr.rel (%p904) target = $region40
    $region39: #{c3_forward.4} parent=5 // pred_region
      %s907 = ssub.s32 %s9, 2
      // Predicated region
      $region41: #{c3_forward.4} parent=39 // pred_check
        %p908 = pneg %p106
      $region42: #{c3_forward.4} parent=39 // pred_check_branch
        %910 = sbr.rel (%p908) target = $region44
      $region43: #{c3_forward.4} parent=39 // pred_region
        %s911 = smul.u32 32, %s15
        %p912 = scmp.lt.s32.totalorder %s911, 63
        %s913 = scalar_select %p912, %s911, 63
        %s914 = smul.addr %s913, 4
        %s915 = scalar_lea.vmem %s3, %s914
      $region44: #{c3_forward.4} parent=39 // pred_fallthru
        _
    $region40: #{c3_forward.4} parent=5 // pred_fallthru
      _
  $region6: #{c3_forward.4} parent=0 // loop_footer
    %s13 = sadd.s32 1, %s9
  $region7: #{c3_forward.4} parent=0 // loop_footer_branch
    %8 = sbr.rel target = $region3
  $region8: #{c3_forward.4} parent=0 // loop_exit
    _

// kernel: c3_forward.7
$region0: #{c3_forward.7}
  #allocation0 [shape = 'u32[]', space=smem, size = 0x4, offset = 0x4, fixed_abs, tag = 'smem constant byte address 0x4 - core index']
  #allocation1 [shape = 'u32[144,128]{1,0:T(1,128)}', space=vmem, size = 0x12000, scoped, tag = 'internal scratch']
  %s0 = inlined_call_operand.vmem [shape: bf16[512,4], index: 0, kind: input, shape index: {}]
  %s1 = inlined_call_operand.vmem [shape: bf16[512,4], index: 1, kind: input, shape index: {}]
  %s2 = inlined_call_operand.vmem [shape: bf16[4,4], index: 2, kind: input, shape index: {}]
  %s3 = inlined_call_operand.vmem [shape: f32[1,4], index: 3, kind: input, shape index: {}]
  %s4 = inlined_call_operand.vmem [shape: bf16[4,8], index: 4, kind: input, shape index: {}]
  %s5 = inlined_call_operand.vmem [shape: bf16[4,8], index: 5, kind: input, shape index: {}]
  %s6 = inlined_call_operand.vmem [shape: f32[1,8], index: 6, kind: input, shape index: {}]
  %s7 = inlined_call_operand.vmem [shape: f32[512,8], index: 7, kind: output, shape index: {}]
  %s8 = sld [smem:[#allocation0]]
  $region61: #{c3_forward.7} parent=0
    _
  %s10 = ssub.s32 1, %s8
  %s11 = scalar_select 0, %s10, %s8
  loop: start=0, step=1, limit=4
  $region2: #{c3_forward.7} parent=0 // loop_pre_header
    _
  $region3: #{c3_forward.7} parent=0 // loop_header
    %s13 = sphi 0, %s17
    %p14 = scmp.ge.s32.totalorder %s13, 4
    %s23 = sphi 0, %s25
    %s26 = sphi 0, %s23
    %s27 = sphi 0, %s26
    %s43 = sphi 0, %s27
    %s49 = sphi 0, %s51
    %s52 = sphi 0, %s49
    %s53 = sphi 0, %s52
    %s69 = sphi 0, %s53
    %s73 = sphi 0, %s73
    %s75 = sphi 0, %s73
    %s76 = sphi 0, %s75
    %s90 = sphi 0, %s76
    %s94 = sphi 0, %s94
    %s96 = sphi 0, %s94
    %s97 = sphi 0, %s96
    %s111 = sphi 0, %s97
    %s115 = sphi 0, %s115
    %s117 = sphi 0, %s115
    %s118 = sphi 0, %s117
    %s132 = sphi 0, %s118
    %s136 = sphi 0, %s136
    %s138 = sphi 0, %s136
    %s139 = sphi 0, %s138
    %s153 = sphi 0, %s139
    %s157 = sphi 0, %s157
    %s159 = sphi 0, %s157
    %s160 = sphi 0, %s159
    %s174 = sphi 0, %s160
    %s180 = sphi 0, %s182
    %s183 = sphi 0, %s180
    %s184 = sphi 0, %s183
    %s200 = sphi 0, %s184
  $region4: #{c3_forward.7} parent=0 // loop_header_branch
    %16 = sbr.rel (%p14) target = $region8
  $region5: #{c3_forward.7} parent=0 // loop_body
    %s18 = ssub.s32 %s13, 1
    %s19 = ssub.s32 %s13, 2
    %s20 = sadd.s32 %s13, 1
    %s21 = ssub.s32 %s13, %s20
    %p22 = scmp.eq.s32.totalorder %s21, 0
    %s24 = sadd.s32 %s23, 1
    %s25 = scalar_select %p22, %s23, %s24
    %p28 = pneg %p22
    %p29 = scmp.eq.s32.totalorder %s13, 1
    %p30 = por %p28, %p29
    %p31 = scmp.ne.s32.totalorder %s23, %s26
    %p32 = scmp.eq.s32.totalorder %s13, 0
    %p33 = por %p31, %p32
    %p34 = scmp.ne.s32.totalorder %s23, %s26
    %p35 = scmp.eq.s32.totalorder %s18, 1
    %p36 = por %p34, %p35
    %p37 = scmp.ne.s32.totalorder %s26, %s27
    %p38 = scmp.eq.s32.totalorder %s18, 0
    %p39 = por %p37, %p38
    %p40 = scmp.ne.s32.totalorder %s26, %s27
    %p41 = scmp.eq.s32.totalorder %s19, 1
    %p42 = por %p40, %p41
    %p44 = scmp.ne.s32.totalorder %s27, %s43
    %p45 = scmp.eq.s32.totalorder %s19, 0
    %p46 = por %p44, %p45
    %s47 = ssub.s32 %s13, %s20
    %p48 = scmp.eq.s32.totalorder %s47, 0
    %s50 = sadd.s32 %s49, 1
    %s51 = scalar_select %p48, %s49, %s50
    %p54 = pneg %p48
    %p55 = scmp.eq.s32.totalorder %s13, 1
    %p56 = por %p54, %p55
    %p57 = scmp.ne.s32.totalorder %s49, %s52
    %p58 = scmp.eq.s32.totalorder %s13, 0
    %p59 = por %p57, %p58
    %p60 = scmp.ne.s32.totalorder %s49, %s52
    %p61 = scmp.eq.s32.totalorder %s18, 1
    %p62 = por %p60, %p61
    %p63 = scmp.ne.s32.totalorder %s52, %s53
    %p64 = scmp.eq.s32.totalorder %s18, 0
    %p65 = por %p63, %p64
    %p66 = scmp.ne.s32.totalorder %s52, %s53
    %p67 = scmp.eq.s32.totalorder %s19, 1
    %p68 = por %p66, %p67
    %p70 = scmp.ne.s32.totalorder %s53, %s69
    %p71 = scmp.eq.s32.totalorder %s19, 0
    %p72 = por %p70, %p71
    %s74 = sadd.s32 %s73, 1
    %p77 = scmp.eq.s32.totalorder %s13, 1
    %p78 = scmp.ne.s32.totalorder %s73, %s75
    %p79 = scmp.eq.s32.totalorder %s13, 0
    %p80 = por %p78, %p79
    %p81 = scmp.ne.s32.totalorder %s73, %s75
    %p82 = scmp.eq.s32.totalorder %s18, 1
    %p83 = por %p81, %p82
    %p84 = scmp.ne.s32.totalorder %s75, %s76
    %p85 = scmp.eq.s32.totalorder %s18, 0
    %p86 = por %p84, %p85
    %p87 = scmp.ne.s32.totalorder %s75, %s76
    %p88 = scmp.eq.s32.totalorder %s19, 1
    %p89 = por %p87, %p88
    %p91 = scmp.ne.s32.totalorder %s76, %s90
    %p92 = scmp.eq.s32.totalorder %s19, 0
    %p93 = por %p91, %p92
    %s95 = sadd.s32 %s94, 1
    %p98 = scmp.eq.s32.totalorder %s13, 1
    %p99 = scmp.ne.s32.totalorder %s94, %s96
    %p100 = scmp.eq.s32.totalorder %s13, 0
    %p101 = por %p99, %p100
    %p102 = scmp.ne.s32.totalorder %s94, %s96
    %p103 = scmp.eq.s32.totalorder %s18, 1
    %p104 = por %p102, %p103
    %p105 = scmp.ne.s32.totalorder %s96, %s97
    %p106 = scmp.eq.s32.totalorder %s18, 0
    %p107 = por %p105, %p106
    %p108 = scmp.ne.s32.totalorder %s96, %s97
    %p109 = scmp.eq.s32.totalorder %s19, 1
    %p110 = por %p108, %p109
    %p112 = scmp.ne.s32.totalorder %s97, %s111
    %p113 = scmp.eq.s32.totalorder %s19, 0
    %p114 = por %p112, %p113
    %s116 = sadd.s32 %s115, 1
    %p119 = scmp.eq.s32.totalorder %s13, 1
    %p120 = scmp.ne.s32.totalorder %s115, %s117
    %p121 = scmp.eq.s32.totalorder %s13, 0
    %p122 = por %p120, %p121
    %p123 = scmp.ne.s32.totalorder %s115, %s117
    %p124 = scmp.eq.s32.totalorder %s18, 1
    %p125 = por %p123, %p124
    %p126 = scmp.ne.s32.totalorder %s117, %s118
    %p127 = scmp.eq.s32.totalorder %s18, 0
    %p128 = por %p126, %p127
    %p129 = scmp.ne.s32.totalorder %s117, %s118
    %p130 = scmp.eq.s32.totalorder %s19, 1
    %p131 = por %p129, %p130
    %p133 = scmp.ne.s32.totalorder %s118, %s132
    %p134 = scmp.eq.s32.totalorder %s19, 0
    %p135 = por %p133, %p134
    %s137 = sadd.s32 %s136, 1
    %p140 = scmp.eq.s32.totalorder %s13, 1
    %p141 = scmp.ne.s32.totalorder %s136, %s138
    %p142 = scmp.eq.s32.totalorder %s13, 0
    %p143 = por %p141, %p142
    %p144 = scmp.ne.s32.totalorder %s136, %s138
    %p145 = scmp.eq.s32.totalorder %s18, 1
    %p146 = por %p144, %p145
    %p147 = scmp.ne.s32.totalorder %s138, %s139
    %p148 = scmp.eq.s32.totalorder %s18, 0
    %p149 = por %p147, %p148
    %p150 = scmp.ne.s32.totalorder %s138, %s139
    %p151 = scmp.eq.s32.totalorder %s19, 1
    %p152 = por %p150, %p151
    %p154 = scmp.ne.s32.totalorder %s139, %s153
    %p155 = scmp.eq.s32.totalorder %s19, 0
    %p156 = por %p154, %p155
    %s158 = sadd.s32 %s157, 1
    %p161 = scmp.eq.s32.totalorder %s13, 1
    %p162 = scmp.ne.s32.totalorder %s157, %s159
    %p163 = scmp.eq.s32.totalorder %s13, 0
    %p164 = por %p162, %p163
    %p165 = scmp.ne.s32.totalorder %s157, %s159
    %p166 = scmp.eq.s32.totalorder %s18, 1
    %p167 = por %p165, %p166
    %p168 = scmp.ne.s32.totalorder %s159, %s160
    %p169 = scmp.eq.s32.totalorder %s18, 0
    %p170 = por %p168, %p169
    %p171 = scmp.ne.s32.totalorder %s159, %s160
    %p172 = scmp.eq.s32.totalorder %s19, 1
    %p173 = por %p171, %p172
    %p175 = scmp.ne.s32.totalorder %s160, %s174
    %p176 = scmp.eq.s32.totalorder %s19, 0
    %p177 = por %p175, %p176
    %s178 = ssub.s32 %s13, %s20
    %p179 = scmp.eq.s32.totalorder %s178, 0
    %s181 = sadd.s32 %s180, 1
    %s182 = scalar_select %p179, %s180, %s181
    %p185 = pneg %p179
    %p186 = scmp.eq.s32.totalorder %s13, 1
    %p187 = por %p185, %p186
    %p188 = scmp.ne.s32.totalorder %s180, %s183
    %p189 = scmp.eq.s32.totalorder %s13, 0
    %p190 = por %p188, %p189
    %p191 = scmp.ne.s32.totalorder %s180, %s183
    %p192 = scmp.eq.s32.totalorder %s18, 1
    %p193 = por %p191, %p192
    %p194 = scmp.ne.s32.totalorder %s183, %s184
    %p195 = scmp.eq.s32.totalorder %s18, 0
    %p196 = por %p194, %p195
    %p197 = scmp.ne.s32.totalorder %s183, %s184
    %p198 = scmp.eq.s32.totalorder %s19, 1
    %p199 = por %p197, %p198
    %p201 = scmp.ne.s32.totalorder %s184, %s200
    %p202 = scmp.eq.s32.totalorder %s19, 0
    %p203 = por %p201, %p202
    %p204 = scmp.le.s32.totalorder 1, %s13
    %p205 = scmp.lt.s32.totalorder %s13, 3
    %p206 = pnand %p204, %p205
    %p207 = pneg %p206
    // Predicated region
    $region9: #{c3_forward.7} parent=5 // pred_check
      _
    $region10: #{c3_forward.7} parent=5 // pred_check_branch
      %209 = sbr.rel (%p206) target = $region12
    $region11: #{c3_forward.7} parent=5 // pred_region
      %s210 = ssub.s32 %s13, 1
      // Predicated region
      $region13: #{c3_forward.7} parent=11 // pred_check
        %p211 = pneg %p86
      $region14: #{c3_forward.7} parent=11 // pred_check_branch
        %213 = sbr.rel (%p211) target = $region16
      $region15: #{c3_forward.7} parent=11 // pred_region
        _
      $region16: #{c3_forward.7} parent=11 // pred_fallthru
        _
      // Predicated region
      $region17: #{c3_forward.7} parent=11 // pred_check
        %p214 = pneg %p107
      $region18: #{c3_forward.7} parent=11 // pred_check_branch
        %216 = sbr.rel (%p214) target = $region20
      $region19: #{c3_forward.7} parent=11 // pred_region
        _
      $region20: #{c3_forward.7} parent=11 // pred_fallthru
        _
      // Predicated region
      $region21: #{c3_forward.7} parent=11 // pred_check
        %p217 = pneg %p128
      $region22: #{c3_forward.7} parent=11 // pred_check_branch
        %219 = sbr.rel (%p217) target = $region24
      $region23: #{c3_forward.7} parent=11 // pred_region
        _
      $region24: #{c3_forward.7} parent=11 // pred_fallthru
        _
      // Predicated region
      $region25: #{c3_forward.7} parent=11 // pred_check
        %p220 = pneg %p149
      $region26: #{c3_forward.7} parent=11 // pred_check_branch
        %222 = sbr.rel (%p220) target = $region28
      $region27: #{c3_forward.7} parent=11 // pred_region
        _
      $region28: #{c3_forward.7} parent=11 // pred_fallthru
        _
      // Predicated region
      $region29: #{c3_forward.7} parent=11 // pred_check
        %p223 = pneg %p170
      $region30: #{c3_forward.7} parent=11 // pred_check_branch
        %225 = sbr.rel (%p223) target = $region32
      $region31: #{c3_forward.7} parent=11 // pred_region
        _
      $region32: #{c3_forward.7} parent=11 // pred_fallthru
        _
    $region12: #{c3_forward.7} parent=5 // pred_fallthru
      _
    %p226 = scmp.lt.s32.totalorder %s13, 2
    // Predicated region
    $region33: #{c3_forward.7} parent=5 // pred_check
      %p227 = pneg %p226
    $region34: #{c3_forward.7} parent=5 // pred_check_branch
      %229 = sbr.rel (%p227) target = $region36
    $region35: #{c3_forward.7} parent=5 // pred_region
      // Predicated region
      $region37: #{c3_forward.7} parent=35 // pred_check
        %p230 = pneg %p33
      $region38: #{c3_forward.7} parent=35 // pred_check_branch
        %232 = sbr.rel (%p230) target = $region40
      $region39: #{c3_forward.7} parent=35 // pred_region
        %s233 = smul.u32 32, %s13
        %p234 = scmp.lt.s32.totalorder %s233, 63
        %s235 = scalar_select %p234, %s233, 63
        %s236 = smul.addr %s235, 4
        %s237 = scalar_lea.vmem %s0, %s236
        %s238 = smul.u32 32, %s13
      $region40: #{c3_forward.7} parent=35 // pred_fallthru
        _
      // Predicated region
      $region41: #{c3_forward.7} parent=35 // pred_check
        %p239 = pneg %p59
      $region42: #{c3_forward.7} parent=35 // pred_check_branch
        %241 = sbr.rel (%p239) target = $region44
      $region43: #{c3_forward.7} parent=35 // pred_region
        %s242 = smul.u32 32, %s13
        %p243 = scmp.lt.s32.totalorder %s242, 63
        %s244 = scalar_select %p243, %s242, 63
        %s245 = smul.addr %s244, 4
        %s246 = scalar_lea.vmem %s1, %s245
        %s247 = smul.u32 32, %s13
      $region44: #{c3_forward.7} parent=35 // pred_fallthru
        _
    $region36: #{c3_forward.7} parent=5 // pred_fallthru
      _
    %p248 = scmp.le.s32.totalorder 1, %s13
    %p249 = scmp.lt.s32.totalorder %s13, 3
    %p250 = pnand %p248, %p249
    %p251 = pneg %p250
    // Predicated region
    $region45: #{c3_forward.7} parent=5 // pred_check
      _
    $region46: #{c3_forward.7} parent=5 // pred_check_branch
      %253 = sbr.rel (%p250) target = $region48
    $region47: #{c3_forward.7} parent=5 // pred_region
      %s254 = ssub.s32 %s13, 1
      %s255 = smul.u32 32, %s18
      %p256 = scmp.lt.s32.totalorder %s255, 63
      %s257 = scalar_select %p256, %s255, 63
      %s258 = smul.addr %s257, 4
      %s259 = scalar_lea.vmem %s0, %s258
      %p260 = pneg %p39
      %p261 = pneg %p36
      %s262 = smul.u32 32, %s18
      %p263 = scmp.lt.s32.totalorder %s262, 63
      %s264 = scalar_select %p263, %s262, 63
      %s265 = smul.addr %s264, 4
      %s266 = scalar_lea.vmem %s1, %s265
      %p267 = pneg %p65
      %p268 = pneg %p62
      %p269 = pneg %p86
      %p270 = pneg %p83
      %p271 = pneg %p107
      %p272 = pneg %p104
      %p273 = pneg %p128
      %p274 = pneg %p125
      %p275 = pneg %p149
      %p276 = pneg %p146
      %p277 = pneg %p170
      %p278 = pneg %p167
      %p279 = pneg %p196
      %p280 = pneg %p193
      %s281 = smul.u32 32, %s18
      %p282 = scmp.lt.s32.totalorder %s281, 63
      %s283 = scalar_select %p282, %s281, 63
      %s284 = smul.addr %s283, 8
      %s285 = scalar_lea.vmem %s7, %s284
      %s286 = smul.u32 32, %s18
      %p287 = scmp.lt.s32.totalorder %s286, 63
      %s288 = scalar_select %p287, %s286, 63
      %s289 = smul.addr %s288, 4
      %s290 = scalar_lea.vmem %s0, %s289
      %s291 = smul.u32 32, %s18
      %s292 = smul.u32 32, %s18
      %p293 = scmp.lt.s32.totalorder %s292, 63
      %s294 = scalar_select %p293, %s292, 63
      %s295 = smul.addr %s294, 4
      %s296 = scalar_lea.vmem %s1, %s295
      %s297 = smul.u32 32, %s18
      %s298 = smul.u32 32, %s18
      %p299 = scmp.lt.s32.totalorder %s298, 63
      %s300 = scalar_select %p299, %s298, 63
      %s301 = smul.addr %s300, 8
      %s302 = scalar_lea.vmem %s7, %s301
      %s303 = smul.u32 32, %s18
      %v305 = vld [vmem:[%s296] sm:$0xf]
      %v306 = vld [vmem:[%s296 + $0x4] sm:$0xf]
      %v307 = vld [vmem:[%s296 + $0x8] sm:$0xf]
      %v308 = vld [vmem:[%s296 + $0xc] sm:$0xf]
      %v309 = vld [vmem:[%s296 + $0x10] sm:$0xf]
      %v310 = vld [vmem:[%s296 + $0x14] sm:$0xf]
      %v311 = vld [vmem:[%s296 + $0x18] sm:$0xf]
      %v312 = vld [vmem:[%s296 + $0x1c] sm:$0xf]
      %v313 = vld [vmem:[%s296 + $0x20] sm:$0xf]
      %v314 = vld [vmem:[%s296 + $0x24] sm:$0xf]
      %v315 = vld [vmem:[%s296 + $0x28] sm:$0xf]
      %v316 = vld [vmem:[%s296 + $0x2c] sm:$0xf]
      %v317 = vld [vmem:[%s296 + $0x30] sm:$0xf]
      %v318 = vld [vmem:[%s296 + $0x34] sm:$0xf]
      %v319 = vld [vmem:[%s296 + $0x38] sm:$0xf]
      %v320 = vld [vmem:[%s296 + $0x3c] sm:$0xf]
      %v321 = vld [vmem:[%s296 + $0x40] sm:$0xf]
      %v322 = vld [vmem:[%s296 + $0x44] sm:$0xf]
      %v323 = vld [vmem:[%s296 + $0x48] sm:$0xf]
      %v324 = vld [vmem:[%s296 + $0x4c] sm:$0xf]
      %v325 = vld [vmem:[%s296 + $0x50] sm:$0xf]
      %v326 = vld [vmem:[%s296 + $0x54] sm:$0xf]
      %v327 = vld [vmem:[%s296 + $0x58] sm:$0xf]
      %v328 = vld [vmem:[%s296 + $0x5c] sm:$0xf]
      %v329 = vld [vmem:[%s296 + $0x60] sm:$0xf]
      %v330 = vld [vmem:[%s296 + $0x64] sm:$0xf]
      %v331 = vld [vmem:[%s296 + $0x68] sm:$0xf]
      %v332 = vld [vmem:[%s296 + $0x6c] sm:$0xf]
      %v333 = vld [vmem:[%s296 + $0x70] sm:$0xf]
      %v334 = vld [vmem:[%s296 + $0x74] sm:$0xf]
      %v335 = vld [vmem:[%s296 + $0x78] sm:$0xf]
      %v336 = vld [vmem:[%s296 + $0x7c] sm:$0xf]
      %v337 = vld [vmem:[%s2] sm:$0x3]
      %v338 = vld [vmem:[%s3] sm:$0x1]
      %v340 = vlaneseq
      %v341 = vshrl.u32 %v340, 7
      %v342 = vsub.s32 0, %v341
      %v343 = vrot.slane %v338, %v342
      %v377 = vunpack.c.l.b16 %v305
      %v378 = vunpack.c.l.b16 %v306
      %v379 = vunpack.c.l.b16 %v307
      %v380 = vunpack.c.l.b16 %v308
      %v381 = vunpack.c.l.b16 %v309
      %v382 = vunpack.c.l.b16 %v310
      %v383 = vunpack.c.l.b16 %v311
      %v384 = vunpack.c.l.b16 %v312
      %v385 = vunpack.c.l.b16 %v313
      %v386 = vunpack.c.l.b16 %v314
      %v387 = vunpack.c.l.b16 %v315
      %v388 = vunpack.c.l.b16 %v316
      %v389 = vunpack.c.l.b16 %v317
      %v390 = vunpack.c.l.b16 %v318
      %v391 = vunpack.c.l.b16 %v319
      %v392 = vunpack.c.l.b16 %v320
      %v393 = vunpack.c.l.b16 %v321
      %v394 = vunpack.c.l.b16 %v322
      %v395 = vunpack.c.l.b16 %v323
      %v396 = vunpack.c.l.b16 %v324
      %v397 = vunpack.c.l.b16 %v325
      %v398 = vunpack.c.l.b16 %v326
      %v399 = vunpack.c.l.b16 %v327
      %v400 = vunpack.c.l.b16 %v328
      %v401 = vunpack.c.l.b16 %v329
      %v402 = vunpack.c.l.b16 %v330
      %v403 = vunpack.c.l.b16 %v331
      %v404 = vunpack.c.l.b16 %v332
      %v405 = vunpack.c.l.b16 %v333
      %v406 = vunpack.c.l.b16 %v334
      %v407 = vunpack.c.l.b16 %v335
      %v408 = vunpack.c.l.b16 %v336
      %v409 = vpack.c.b16 %v378, %v377
      %v410 = vpack.c.b16 %v380, %v379
      %v411 = vpack.c.b16 %v382, %v381
      %v412 = vpack.c.b16 %v384, %v383
      %v413 = vpack.c.b16 %v386, %v385
      %v414 = vpack.c.b16 %v388, %v387
      %v415 = vpack.c.b16 %v390, %v389
      %v416 = vpack.c.b16 %v392, %v391
      %v417 = vpack.c.b16 %v394, %v393
      %v418 = vpack.c.b16 %v396, %v395
      %v419 = vpack.c.b16 %v398, %v397
      %v420 = vpack.c.b16 %v400, %v399
      %v421 = vpack.c.b16 %v402, %v401
      %v422 = vpack.c.b16 %v404, %v403
      %v423 = vpack.c.b16 %v406, %v405
      %v424 = vpack.c.b16 %v408, %v407
      %vm425 = vcmask 31744
      %v427 = vsel %vm425, %v409, 0
      %v430 = vsel %vm425, %v410, 0
      %v433 = vsel %vm425, %v411, 0
      %v436 = vsel %vm425, %v412, 0
      %v439 = vsel %vm425, %v413, 0
      %v442 = vsel %vm425, %v414, 0
      %v445 = vsel %vm425, %v415, 0
      %v448 = vsel %vm425, %v416, 0
      %v451 = vsel %vm425, %v417, 0
      %v454 = vsel %vm425, %v418, 0
      %v457 = vsel %vm425, %v419, 0
      %v460 = vsel %vm425, %v420, 0
      %v463 = vsel %vm425, %v421, 0
      %v466 = vsel %vm425, %v422, 0
      %v469 = vsel %vm425, %v423, 0
      %v472 = vsel %vm425, %v424, 0
      %vm474 = vcmask 1041408
      %v476 = vsel %vm474, %v337, 0
      %478 = vmatprep.subr.bf16.mxu0 0
      %479 = vmatpush1.bf16.msra.mxu0 %v476
      %480 = vmatprep.subr.bf16.mxu0 0
      %481 = vmatpush1.bf16.msra.mxu0 0
      %482 = vmatprep.subr.bf16.mxu0 0
      %483 = vmatpush1.bf16.msra.mxu0 0
      %484 = vmatprep.subr.bf16.mxu0 0
      %485 = vmatpush1.bf16.msra.mxu0 0
      %486 = vmatprep.subr.bf16.mxu0 0
      %487 = vmatpush1.bf16.msra.mxu0 0
      %488 = vmatprep.subr.bf16.mxu0 0
      %489 = vmatpush1.bf16.msra.mxu0 0
      %490 = vmatprep.subr.bf16.mxu0 0
      %491 = vmatpush1.bf16.msra.mxu0 0
      %492 = vmatprep.subr.bf16.mxu0 0
      %493 = vmatpush1.bf16.msra.mxu0 0
      %494 = vmatprep.subr.bf16.mxu0 0
      %495 = vmatpush1.bf16.msra.mxu0 0
      %496 = vmatprep.subr.bf16.mxu0 0
      %497 = vmatpush1.bf16.msra.mxu0 0
      %498 = vmatprep.subr.bf16.mxu0 0
      %499 = vmatpush1.bf16.msra.mxu0 0
      %500 = vmatprep.subr.bf16.mxu0 0
      %501 = vmatpush1.bf16.msra.mxu0 0
      %502 = vmatprep.subr.bf16.mxu0 0
      %503 = vmatpush1.bf16.msra.mxu0 0
      %504 = vmatprep.subr.bf16.mxu0 0
      %505 = vmatpush1.bf16.msra.mxu0 0
      %506 = vmatprep.subr.bf16.mxu0 0
      %507 = vmatpush1.bf16.msra.mxu0 0
      %508 = vmatprep.subr.bf16.mxu0 0
      %509 = vmatpush1.bf16.msra.mxu0 0
      %510 = vmatprep.mubr.bf16.mxu0 0
      %511 = vmatmul.mubr.bf16.gmra.mrb[0].mxu0 %v427
      %v512 = vpop.f32.mrb[0].mxu0
      %v513 = vadd.f32 %v343, %v512
      %v514 = vpop.f32.mrb[0].mxu0
      %v515 = vpop.f32.mrb[0].mxu0
      %v516 = vadd.f32 %v343, %v515
      %v517 = vpop.f32.mrb[0].mxu0
      %518 = vmatprep.mubr.bf16.mxu0 0
      %519 = vmatmul.mubr.bf16.gmra.mrb[0].mxu0 %v430
      %v520 = vpop.f32.mrb[0].mxu0
      %v521 = vadd.f32 %v343, %v520
      %v522 = vpop.f32.mrb[0].mxu0
      %v523 = vpop.f32.mrb[0].mxu0
      %v524 = vadd.f32 %v343, %v523
      %v525 = vpop.f32.mrb[0].mxu0
      %526 = vmatprep.mubr.bf16.mxu0 0
      %527 = vmatmul.mubr.bf16.gmra.mrb[0].mxu0 %v433
      %v528 = vpop.f32.mrb[0].mxu0
      %v529 = vadd.f32 %v343, %v528
      %v530 = vpop.f32.mrb[0].mxu0
      %v531 = vpop.f32.mrb[0].mxu0
      %v532 = vadd.f32 %v343, %v531
      %v533 = vpop.f32.mrb[0].mxu0
      %534 = vmatprep.mubr.bf16.mxu0 0
      %535 = vmatmul.mubr.bf16.gmra.mrb[0].mxu0 %v436
      %v536 = vpop.f32.mrb[0].mxu0
      %v537 = vadd.f32 %v343, %v536
      %v538 = vpop.f32.mrb[0].mxu0
      %v539 = vpop.f32.mrb[0].mxu0
      %v540 = vadd.f32 %v343, %v539
      %v541 = vpop.f32.mrb[0].mxu0
      %542 = vmatprep.mubr.bf16.mxu0 0
      %543 = vmatmul.mubr.bf16.gmra.mrb[0].mxu0 %v439
      %v544 = vpop.f32.mrb[0].mxu0
      %v545 = vadd.f32 %v343, %v544
      %v546 = vpop.f32.mrb[0].mxu0
      %v547 = vpop.f32.mrb[0].mxu0
      %v548 = vadd.f32 %v343, %v547
      %v549 = vpop.f32.mrb[0].mxu0
      %550 = vmatprep.mubr.bf16.mxu0 0
      %551 = vmatmul.mubr.bf16.gmra.mrb[0].mxu0 %v442
      %v552 = vpop.f32.mrb[0].mxu0
      %v553 = vadd.f32 %v343, %v552
      %v554 = vpop.f32.mrb[0].mxu0
      %v555 = vpop.f32.mrb[0].mxu0
      %v556 = vadd.f32 %v343, %v555
      %v557 = vpop.f32.mrb[0].mxu0
      %558 = vmatprep.mubr.bf16.mxu0 0
      %559 = vmatmul.mubr.bf16.gmra.mrb[0].mxu0 %v445
      %v560 = vpop.f32.mrb[0].mxu0
      %v561 = vadd.f32 %v343, %v560
      %v562 = vpop.f32.mrb[0].mxu0
      %v563 = vpop.f32.mrb[0].mxu0
      %v564 = vadd.f32 %v343, %v563
      %v565 = vpop.f32.mrb[0].mxu0
      %566 = vmatprep.mubr.bf16.mxu0 0
      %567 = vmatmul.mubr.bf16.gmra.mrb[0].mxu0 %v448
      %v568 = vpop.f32.mrb[0].mxu0
      %v569 = vadd.f32 %v343, %v568
      %v570 = vpop.f32.mrb[0].mxu0
      %v571 = vpop.f32.mrb[0].mxu0
      %v572 = vadd.f32 %v343, %v571
      %v573 = vpop.f32.mrb[0].mxu0
      %574 = vmatprep.mubr.bf16.mxu0 0
      %575 = vmatmul.mubr.bf16.gmra.mrb[0].mxu0 %v451
      %v576 = vpop.f32.mrb[0].mxu0
      %v577 = vadd.f32 %v343, %v576
      %v578 = vpop.f32.mrb[0].mxu0
      %v579 = vpop.f32.mrb[0].mxu0
      %v580 = vadd.f32 %v343, %v579
      %v581 = vpop.f32.mrb[0].mxu0
      %582 = vmatprep.mubr.bf16.mxu0 0
      %583 = vmatmul.mubr.bf16.gmra.mrb[0].mxu0 %v454
      %v584 = vpop.f32.mrb[0].mxu0
      %v585 = vadd.f32 %v343, %v584
      %v586 = vpop.f32.mrb[0].mxu0
      %v587 = vpop.f32.mrb[0].mxu0
      %v588 = vadd.f32 %v343, %v587
      %v589 = vpop.f32.mrb[0].mxu0
      %590 = vmatprep.mubr.bf16.mxu0 0
      %591 = vmatmul.mubr.bf16.gmra.mrb[0].mxu0 %v457
      %v592 = vpop.f32.mrb[0].mxu0
      %v593 = vadd.f32 %v343, %v592
      %v594 = vpop.f32.mrb[0].mxu0
      %v595 = vpop.f32.mrb[0].mxu0
      %v596 = vadd.f32 %v343, %v595
      %v597 = vpop.f32.mrb[0].mxu0
      %598 = vmatprep.mubr.bf16.mxu0 0
      %599 = vmatmul.mubr.bf16.gmra.mrb[0].mxu0 %v460
      %v600 = vpop.f32.mrb[0].mxu0
      %v601 = vadd.f32 %v343, %v600
      %v602 = vpop.f32.mrb[0].mxu0
      %v603 = vpop.f32.mrb[0].mxu0
      %v604 = vadd.f32 %v343, %v603
      %v605 = vpop.f32.mrb[0].mxu0
      %606 = vmatprep.mubr.bf16.mxu0 0
      %607 = vmatmul.mubr.bf16.gmra.mrb[0].mxu0 %v463
      %v608 = vpop.f32.mrb[0].mxu0
      %v609 = vadd.f32 %v343, %v608
      %v610 = vpop.f32.mrb[0].mxu0
      %v611 = vpop.f32.mrb[0].mxu0
      %v612 = vadd.f32 %v343, %v611
      %v613 = vpop.f32.mrb[0].mxu0
      %614 = vmatprep.mubr.bf16.mxu0 0
      %615 = vmatmul.mubr.bf16.gmra.mrb[0].mxu0 %v466
      %v616 = vpop.f32.mrb[0].mxu0
      %v617 = vadd.f32 %v343, %v616
      %v618 = vpop.f32.mrb[0].mxu0
      %v619 = vpop.f32.mrb[0].mxu0
      %v620 = vadd.f32 %v343, %v619
      %v621 = vpop.f32.mrb[0].mxu0
      %622 = vmatprep.mubr.bf16.mxu0 0
      %623 = vmatmul.mubr.bf16.gmra.mrb[0].mxu0 %v469
      %v624 = vpop.f32.mrb[0].mxu0
      %v625 = vadd.f32 %v343, %v624
      %v626 = vpop.f32.mrb[0].mxu0
      %v627 = vpop.f32.mrb[0].mxu0
      %v628 = vadd.f32 %v343, %v627
      %v629 = vpop.f32.mrb[0].mxu0
      %630 = vmatprep.mubr.bf16.mxu0 0
      %631 = vmatmul.mubr.bf16.gmra.mrb[0].mxu0 %v472
      %v632 = vpop.f32.mrb[0].mxu0
      %v633 = vadd.f32 %v343, %v632
      %v634 = vpop.f32.mrb[0].mxu0
      %v635 = vpop.f32.mrb[0].mxu0
      %v636 = vadd.f32 %v343, %v635
      %v637 = vpop.f32.mrb[0].mxu0
      %638 = vdwg.mxu0
      %v639 = vxor.u32 %v513, 2147483648
      %v640 = vxor.u32 %v516, 2147483648
      %v641 = vxor.u32 %v521, 2147483648
      %v642 = vxor.u32 %v524, 2147483648
      %v643 = vxor.u32 %v529, 2147483648
      %v644 = vxor.u32 %v532, 2147483648
      %v645 = vxor.u32 %v537, 2147483648
      %v646 = vxor.u32 %v540, 2147483648
      %v647 = vxor.u32 %v545, 2147483648
      %v648 = vxor.u32 %v548, 2147483648
      %v649 = vxor.u32 %v553, 2147483648
      %v650 = vxor.u32 %v556, 2147483648
      %v651 = vxor.u32 %v561, 2147483648
      %v652 = vxor.u32 %v564, 2147483648
      %v653 = vxor.u32 %v569, 2147483648
      %v654 = vxor.u32 %v572, 2147483648
      %v655 = vxor.u32 %v577, 2147483648
      %v656 = vxor.u32 %v580, 2147483648
      %v657 = vxor.u32 %v585, 2147483648
      %v658 = vxor.u32 %v588, 2147483648
      %v659 = vxor.u32 %v593, 2147483648
      %v660 = vxor.u32 %v596, 2147483648
      %v661 = vxor.u32 %v601, 2147483648
      %v662 = vxor.u32 %v604, 2147483648
      %v663 = vxor.u32 %v609, 2147483648
      %v664 = vxor.u32 %v612, 2147483648
      %v665 = vxor.u32 %v617, 2147483648
      %v666 = vxor.u32 %v620, 2147483648
      %v667 = vxor.u32 %v625, 2147483648
      %v668 = vxor.u32 %v628, 2147483648
      %v669 = vxor.u32 %v633, 2147483648
      %v670 = vxor.u32 %v636, 2147483648
      %v671 = vmul.f32 %v639, 1.442695
      %v672 = vpow.pop %v671
      %v673 = vmul.f32 %v640, 1.442695
      %v674 = vpow.pop %v673
      %v675 = vmul.f32 %v641, 1.442695
      %v676 = vpow.pop %v675
      %v677 = vmul.f32 %v642, 1.442695
      %v678 = vpow.pop %v677
      %v679 = vmul.f32 %v643, 1.442695
      %v680 = vpow.pop %v679
      %v681 = vmul.f32 %v644, 1.442695
      %v682 = vpow.pop %v681
      %v683 = vmul.f32 %v645, 1.442695
      %v684 = vpow.pop %v683
      %v685 = vmul.f32 %v646, 1.442695
      %v686 = vpow.pop %v685
      %v687 = vmul.f32 %v647, 1.442695
      %v688 = vpow.pop %v687
      %v689 = vmul.f32 %v648, 1.442695
      %v690 = vpow.pop %v689
      %v691 = vmul.f32 %v649, 1.442695
      %v692 = vpow.pop %v691
      %v693 = vmul.f32 %v650, 1.442695
      %v694 = vpow.pop %v693
      %v695 = vmul.f32 %v651, 1.442695
      %v696 = vpow.pop %v695
      %v697 = vmul.f32 %v652, 1.442695
      %v698 = vpow.pop %v697
      %v699 = vmul.f32 %v653, 1.442695
      %v700 = vpow.pop %v699
      %v701 = vmul.f32 %v654, 1.442695
      %v702 = vpow.pop %v701
      %v703 = vmul.f32 %v655, 1.442695
      %v704 = vpow.pop %v703
      %v705 = vmul.f32 %v656, 1.442695
      %v706 = vpow.pop %v705
      %v707 = vmul.f32 %v657, 1.442695
      %v708 = vpow.pop %v707
      %v709 = vmul.f32 %v658, 1.442695
      %v710 = vpow.pop %v709
      %v711 = vmul.f32 %v659, 1.442695
      %v712 = vpow.pop %v711
      %v713 = vmul.f32 %v660, 1.442695
      %v714 = vpow.pop %v713
      %v715 = vmul.f32 %v661, 1.442695
      %v716 = vpow.pop %v715
      %v717 = vmul.f32 %v662, 1.442695
      %v718 = vpow.pop %v717
      %v719 = vmul.f32 %v663, 1.442695
      %v720 = vpow.pop %v719
      %v721 = vmul.f32 %v664, 1.442695
      %v722 = vpow.pop %v721
      %v723 = vmul.f32 %v665, 1.442695
      %v724 = vpow.pop %v723
      %v725 = vmul.f32 %v666, 1.442695
      %v726 = vpow.pop %v725
      %v727 = vmul.f32 %v667, 1.442695
      %v728 = vpow.pop %v727
      %v729 = vmul.f32 %v668, 1.442695
      %v730 = vpow.pop %v729
      %v731 = vmul.f32 %v669, 1.442695
      %v732 = vpow.pop %v731
      %v733 = vmul.f32 %v670, 1.442695
      %v734 = vpow.pop %v733
      %v735 = vadd.f32 %v672, 1.0
      %v736 = vadd.f32 %v674, 1.0
      %v737 = vadd.f32 %v676, 1.0
      %v738 = vadd.f32 %v678, 1.0
      %v739 = vadd.f32 %v680, 1.0
      %v740 = vadd.f32 %v682, 1.0
      %v741 = vadd.f32 %v684, 1.0
      %v742 = vadd.f32 %v686, 1.0
      %v743 = vadd.f32 %v688, 1.0
      %v744 = vadd.f32 %v690, 1.0
      %v745 = vadd.f32 %v692, 1.0
      %v746 = vadd.f32 %v694, 1.0
      %v747 = vadd.f32 %v696, 1.0
      %v748 = vadd.f32 %v698, 1.0
      %v749 = vadd.f32 %v700, 1.0
      %v750 = vadd.f32 %v702, 1.0
      %v751 = vadd.f32 %v704, 1.0
      %v752 = vadd.f32 %v706, 1.0
      %v753 = vadd.f32 %v708, 1.0
      %v754 = vadd.f32 %v710, 1.0
      %v755 = vadd.f32 %v712, 1.0
      %v756 = vadd.f32 %v714, 1.0
      %v757 = vadd.f32 %v716, 1.0
      %v758 = vadd.f32 %v718, 1.0
      %v759 = vadd.f32 %v720, 1.0
      %v760 = vadd.f32 %v722, 1.0
      %v761 = vadd.f32 %v724, 1.0
      %v762 = vadd.f32 %v726, 1.0
      %v763 = vadd.f32 %v728, 1.0
      %v764 = vadd.f32 %v730, 1.0
      %v765 = vadd.f32 %v732, 1.0
      %v766 = vadd.f32 %v734, 1.0
      %v767 = vrcp.pop %v735
      %v768 = vmul.f32 1.0, %v767
      %v769 = vrcp.pop %v736
      %v770 = vmul.f32 1.0, %v769
      %v771 = vrcp.pop %v737
      %v772 = vmul.f32 1.0, %v771
      %v773 = vrcp.pop %v738
      %v774 = vmul.f32 1.0, %v773
      %v775 = vrcp.pop %v739
      %v776 = vmul.f32 1.0, %v775
      %v777 = vrcp.pop %v740
      %v778 = vmul.f32 1.0, %v777
      %v779 = vrcp.pop %v741
      %v780 = vmul.f32 1.0, %v779
      %v781 = vrcp.pop %v742
      %v782 = vmul.f32 1.0, %v781
      %v783 = vrcp.pop %v743
      %v784 = vmul.f32 1.0, %v783
      %v785 = vrcp.pop %v744
      %v786 = vmul.f32 1.0, %v785
      %v787 = vrcp.pop %v745
      %v788 = vmul.f32 1.0, %v787
      %v789 = vrcp.pop %v746
      %v790 = vmul.f32 1.0, %v789
      %v791 = vrcp.pop %v747
      %v792 = vmul.f32 1.0, %v791
      %v793 = vrcp.pop %v748
      %v794 = vmul.f32 1.0, %v793
      %v795 = vrcp.pop %v749
      %v796 = vmul.f32 1.0, %v795
      %v797 = vrcp.pop %v750
      %v798 = vmul.f32 1.0, %v797
      %v799 = vrcp.pop %v751
      %v800 = vmul.f32 1.0, %v799
      %v801 = vrcp.pop %v752
      %v802 = vmul.f32 1.0, %v801
      %v803 = vrcp.pop %v753
      %v804 = vmul.f32 1.0, %v803
      %v805 = vrcp.pop %v754
      %v806 = vmul.f32 1.0, %v805
      %v807 = vrcp.pop %v755
      %v808 = vmul.f32 1.0, %v807
      %v809 = vrcp.pop %v756
      %v810 = vmul.f32 1.0, %v809
      %v811 = vrcp.pop %v757
      %v812 = vmul.f32 1.0, %v811
      %v813 = vrcp.pop %v758
      %v814 = vmul.f32 1.0, %v813
      %v815 = vrcp.pop %v759
      %v816 = vmul.f32 1.0, %v815
      %v817 = vrcp.pop %v760
      %v818 = vmul.f32 1.0, %v817
      %v819 = vrcp.pop %v761
      %v820 = vmul.f32 1.0, %v819
      %v821 = vrcp.pop %v762
      %v822 = vmul.f32 1.0, %v821
      %v823 = vrcp.pop %v763
      %v824 = vmul.f32 1.0, %v823
      %v825 = vrcp.pop %v764
      %v826 = vmul.f32 1.0, %v825
      %v827 = vrcp.pop %v765
      %v828 = vmul.f32 1.0, %v827
      %v829 = vrcp.pop %v766
      %v830 = vmul.f32 1.0, %v829
      %v831 = vmul.f32 %v513, %v768
      %v832 = vmul.f32 %v516, %v770
      %v833 = vmul.f32 %v521, %v772
      %v834 = vmul.f32 %v524, %v774
      %v835 = vmul.f32 %v529, %v776
      %v836 = vmul.f32 %v532, %v778
      %v837 = vmul.f32 %v537, %v780
      %v838 = vmul.f32 %v540, %v782
      %v839 = vmul.f32 %v545, %v784
      %v840 = vmul.f32 %v548, %v786
      %v841 = vmul.f32 %v553, %v788
      %v842 = vmul.f32 %v556, %v790
      %v843 = vmul.f32 %v561, %v792
      %v844 = vmul.f32 %v564, %v794
      %v845 = vmul.f32 %v569, %v796
      %v846 = vmul.f32 %v572, %v798
      %v847 = vmul.f32 %v577, %v800
      %v848 = vmul.f32 %v580, %v802
      %v849 = vmul.f32 %v585, %v804
      %v850 = vmul.f32 %v588, %v806
      %v851 = vmul.f32 %v593, %v808
      %v852 = vmul.f32 %v596, %v810
      %v853 = vmul.f32 %v601, %v812
      %v854 = vmul.f32 %v604, %v814
      %v855 = vmul.f32 %v609, %v816
      %v856 = vmul.f32 %v612, %v818
      %v857 = vmul.f32 %v617, %v820
      %v858 = vmul.f32 %v620, %v822
      %v859 = vmul.f32 %v625, %v824
      %v860 = vmul.f32 %v628, %v826
      %v861 = vmul.f32 %v633, %v828
      %v862 = vmul.f32 %v636, %v830
      %v863 = vld [vmem:[%s290] sm:$0xf]
      %v864 = vld [vmem:[%s290 + $0x4] sm:$0xf]
      %v865 = vld [vmem:[%s290 + $0x8] sm:$0xf]
      %v866 = vld [vmem:[%s290 + $0xc] sm:$0xf]
      %v867 = vld [vmem:[%s290 + $0x10] sm:$0xf]
      %v868 = vld [vmem:[%s290 + $0x14] sm:$0xf]
      %v869 = vld [vmem:[%s290 + $0x18] sm:$0xf]
      %v870 = vld [vmem:[%s290 + $0x1c] sm:$0xf]
      %v871 = vld [vmem:[%s290 + $0x20] sm:$0xf]
      %v872 = vld [vmem:[%s290 + $0x24] sm:$0xf]
      %v873 = vld [vmem:[%s290 + $0x28] sm:$0xf]
      %v874 = vld [vmem:[%s290 + $0x2c] sm:$0xf]
      %v875 = vld [vmem:[%s290 + $0x30] sm:$0xf]
      %v876 = vld [vmem:[%s290 + $0x34] sm:$0xf]
      %v877 = vld [vmem:[%s290 + $0x38] sm:$0xf]
      %v878 = vld [vmem:[%s290 + $0x3c] sm:$0xf]
      %v879 = vld [vmem:[%s290 + $0x40] sm:$0xf]
      %v880 = vld [vmem:[%s290 + $0x44] sm:$0xf]
      %v881 = vld [vmem:[%s290 + $0x48] sm:$0xf]
      %v882 = vld [vmem:[%s290 + $0x4c] sm:$0xf]
      %v883 = vld [vmem:[%s290 + $0x50] sm:$0xf]
      %v884 = vld [vmem:[%s290 + $0x54] sm:$0xf]
      %v885 = vld [vmem:[%s290 + $0x58] sm:$0xf]
      %v886 = vld [vmem:[%s290 + $0x5c] sm:$0xf]
      %v887 = vld [vmem:[%s290 + $0x60] sm:$0xf]
      %v888 = vld [vmem:[%s290 + $0x64] sm:$0xf]
      %v889 = vld [vmem:[%s290 + $0x68] sm:$0xf]
      %v890 = vld [vmem:[%s290 + $0x6c] sm:$0xf]
      %v891 = vld [vmem:[%s290 + $0x70] sm:$0xf]
      %v892 = vld [vmem:[%s290 + $0x74] sm:$0xf]
      %v893 = vld [vmem:[%s290 + $0x78] sm:$0xf]
      %v894 = vld [vmem:[%s290 + $0x7c] sm:$0xf]
      %v895 = vld [vmem:[%s4] sm:$0x3]
      %v896 = vpack.c.bf16 %v832, %v831
      %v897 = vpack.c.bf16 %v834, %v833
      %v898 = vpack.c.bf16 %v836, %v835
      %v899 = vpack.c.bf16 %v838, %v837
      %v900 = vpack.c.bf16 %v840, %v839
      %v901 = vpack.c.bf16 %v842, %v841
      %v902 = vpack.c.bf16 %v844, %v843
      %v903 = vpack.c.bf16 %v846, %v845
      %v904 = vpack.c.bf16 %v848, %v847
      %v905 = vpack.c.bf16 %v850, %v849
      %v906 = vpack.c.bf16 %v852, %v851
      %v907 = vpack.c.bf16 %v854, %v853
      %v908 = vpack.c.bf16 %v856, %v855
      %v909 = vpack.c.bf16 %v858, %v857
      %v910 = vpack.c.bf16 %v860, %v859
      %v911 = vpack.c.bf16 %v862, %v861
      %v912 = vld [vmem:[%s5] sm:$0x3]
      %v914 = vsel %vm425, %v896, 0
      %v917 = vsel %vm425, %v897, 0
      %v920 = vsel %vm425, %v898, 0
      %v923 = vsel %vm425, %v899, 0
      %v926 = vsel %vm425, %v900, 0
      %v929 = vsel %vm425, %v901, 0
      %v932 = vsel %vm425, %v902, 0
      %v935 = vsel %vm425, %v903, 0
      %v938 = vsel %vm425, %v904, 0
      %v941 = vsel %vm425, %v905, 0
      %v944 = vsel %vm425, %v906, 0
      %v947 = vsel %vm425, %v907, 0
      %v950 = vsel %vm425, %v908, 0
      %v953 = vsel %vm425, %v909, 0
      %v956 = vsel %vm425, %v910, 0
      %v959 = vsel %vm425, %v911, 0
      %v962 = vsel %vm474, %v912, 0
      %964 = vmatprep.subr.bf16.mxu0 0
      %965 = vmatpush1.bf16.msra.mxu0 %v962
      %966 = vmatprep.subr.bf16.mxu0 0
      %967 = vmatpush1.bf16.msra.mxu0 0
      %968 = vmatprep.subr.bf16.mxu0 0
      %969 = vmatpush1.bf16.msra.mxu0 0
      %970 = vmatprep.subr.bf16.mxu0 0
      %971 = vmatpush1.bf16.msra.mxu0 0
      %972 = vmatprep.subr.bf16.mxu0 0
      %973 = vmatpush1.bf16.msra.mxu0 0
      %974 = vmatprep.subr.bf16.mxu0 0
      %975 = vmatpush1.bf16.msra.mxu0 0
      %976 = vmatprep.subr.bf16.mxu0 0
      %977 = vmatpush1.bf16.msra.mxu0 0
      %978 = vmatprep.subr.bf16.mxu0 0
      %979 = vmatpush1.bf16.msra.mxu0 0
      %980 = vmatprep.subr.bf16.mxu0 0
      %981 = vmatpush1.bf16.msra.mxu0 0
      %982 = vmatprep.subr.bf16.mxu0 0
      %983 = vmatpush1.bf16.msra.mxu0 0
      %984 = vmatprep.subr.bf16.mxu0 0
      %985 = vmatpush1.bf16.msra.mxu0 0
      %986 = vmatprep.subr.bf16.mxu0 0
      %987 = vmatpush1.bf16.msra.mxu0 0
      %988 = vmatprep.subr.bf16.mxu0 0
      %989 = vmatpush1.bf16.msra.mxu0 0
      %990 = vmatprep.subr.bf16.mxu0 0
      %991 = vmatpush1.bf16.msra.mxu0 0
      %992 = vmatprep.subr.bf16.mxu0 0
      %993 = vmatpush1.bf16.msra.mxu0 0
      %994 = vmatprep.subr.bf16.mxu0 0
      %995 = vmatpush1.bf16.msra.mxu0 0
      %996 = vmatprep.mubr.bf16.mxu0 0
      %997 = vmatmul.mubr.bf16.gmra.mrb[0].mxu0 %v914
      %v998 = vpop.f32.mrb[0].mxu0
      %v999 = vadd.f32 0.0, %v998
      %v1000 = vpop.f32.mrb[0].mxu0
      %v1001 = vpop.f32.mrb[0].mxu0
      %v1002 = vadd.f32 0.0, %v1001
      %v1003 = vpop.f32.mrb[0].mxu0
      %1004 = vmatprep.mubr.bf16.mxu0 0
      %1005 = vmatmul.mubr.bf16.gmra.mrb[0].mxu0 %v917
      %v1006 = vpop.f32.mrb[0].mxu0
      %v1007 = vadd.f32 0.0, %v1006
      %v1008 = vpop.f32.mrb[0].mxu0
      %v1009 = vpop.f32.mrb[0].mxu0
      %v1010 = vadd.f32 0.0, %v1009
      %v1011 = vpop.f32.mrb[0].mxu0
      %1012 = vmatprep.mubr.bf16.mxu0 0
      %1013 = vmatmul.mubr.bf16.gmra.mrb[0].mxu0 %v920
      %v1014 = vpop.f32.mrb[0].mxu0
      %v1015 = vadd.f32 0.0, %v1014
      %v1016 = vpop.f32.mrb[0].mxu0
      %v1017 = vpop.f32.mrb[0].mxu0
      %v1018 = vadd.f32 0.0, %v1017
      %v1019 = vpop.f32.mrb[0].mxu0
      %1020 = vmatprep.mubr.bf16.mxu0 0
      %1021 = vmatmul.mubr.bf16.gmra.mrb[0].mxu0 %v923
      %v1022 = vpop.f32.mrb[0].mxu0
      %v1023 = vadd.f32 0.0, %v1022
      %v1024 = vpop.f32.mrb[0].mxu0
      %v1025 = vpop.f32.mrb[0].mxu0
      %v1026 = vadd.f32 0.0, %v1025
      %v1027 = vpop.f32.mrb[0].mxu0
      %1028 = vmatprep.mubr.bf16.mxu0 0
      %1029 = vmatmul.mubr.bf16.gmra.mrb[0].mxu0 %v926
      %v1030 = vpop.f32.mrb[0].mxu0
      %v1031 = vadd.f32 0.0, %v1030
      %v1032 = vpop.f32.mrb[0].mxu0
      %v1033 = vpop.f32.mrb[0].mxu0
      %v1034 = vadd.f32 0.0, %v1033
      %v1035 = vpop.f32.mrb[0].mxu0
      %1036 = vmatprep.mubr.bf16.mxu0 0
      %1037 = vmatmul.mubr.bf16.gmra.mrb[0].mxu0 %v929
      %v1038 = vpop.f32.mrb[0].mxu0
      %v1039 = vadd.f32 0.0, %v1038
      %v1040 = vpop.f32.mrb[0].mxu0
      %v1041 = vpop.f32.mrb[0].mxu0
      %v1042 = vadd.f32 0.0, %v1041
      %v1043 = vpop.f32.mrb[0].mxu0
      %1044 = vmatprep.mubr.bf16.mxu0 0
      %1045 = vmatmul.mubr.bf16.gmra.mrb[0].mxu0 %v932
      %v1046 = vpop.f32.mrb[0].mxu0
      %v1047 = vadd.f32 0.0, %v1046
      %v1048 = vpop.f32.mrb[0].mxu0
      %v1049 = vpop.f32.mrb[0].mxu0
      %v1050 = vadd.f32 0.0, %v1049
      %v1051 = vpop.f32.mrb[0].mxu0
      %1052 = vmatprep.mubr.bf16.mxu0 0
      %1053 = vmatmul.mubr.bf16.gmra.mrb[0].mxu0 %v935
      %v1054 = vpop.f32.mrb[0].mxu0
      %v1055 = vadd.f32 0.0, %v1054
      %v1056 = vpop.f32.mrb[0].mxu0
      %v1057 = vpop.f32.mrb[0].mxu0
      %v1058 = vadd.f32 0.0, %v1057
      %v1059 = vpop.f32.mrb[0].mxu0
      %1060 = vmatprep.mubr.bf16.mxu0 0
      %1061 = vmatmul.mubr.bf16.gmra.mrb[0].mxu0 %v938
      %v1062 = vpop.f32.mrb[0].mxu0
      %v1063 = vadd.f32 0.0, %v1062
      %v1064 = vpop.f32.mrb[0].mxu0
      %v1065 = vpop.f32.mrb[0].mxu0
      %v1066 = vadd.f32 0.0, %v1065
      %v1067 = vpop.f32.mrb[0].mxu0
      %1068 = vmatprep.mubr.bf16.mxu0 0
      %1069 = vmatmul.mubr.bf16.gmra.mrb[0].mxu0 %v941
      %v1070 = vpop.f32.mrb[0].mxu0
      %v1071 = vadd.f32 0.0, %v1070
      %v1072 = vpop.f32.mrb[0].mxu0
      %v1073 = vpop.f32.mrb[0].mxu0
      %v1074 = vadd.f32 0.0, %v1073
      %v1075 = vpop.f32.mrb[0].mxu0
      %1076 = vmatprep.mubr.bf16.mxu0 0
      %1077 = vmatmul.mubr.bf16.gmra.mrb[0].mxu0 %v944
      %v1078 = vpop.f32.mrb[0].mxu0
      %v1079 = vadd.f32 0.0, %v1078
      %v1080 = vpop.f32.mrb[0].mxu0
      %v1081 = vpop.f32.mrb[0].mxu0
      %v1082 = vadd.f32 0.0, %v1081
      %v1083 = vpop.f32.mrb[0].mxu0
      %1084 = vmatprep.mubr.bf16.mxu0 0
      %1085 = vmatmul.mubr.bf16.gmra.mrb[0].mxu0 %v947
      %v1086 = vpop.f32.mrb[0].mxu0
      %v1087 = vadd.f32 0.0, %v1086
      %v1088 = vpop.f32.mrb[0].mxu0
      %v1089 = vpop.f32.mrb[0].mxu0
      %v1090 = vadd.f32 0.0, %v1089
      %v1091 = vpop.f32.mrb[0].mxu0
      %1092 = vmatprep.mubr.bf16.mxu0 0
      %1093 = vmatmul.mubr.bf16.gmra.mrb[0].mxu0 %v950
      %v1094 = vpop.f32.mrb[0].mxu0
      %v1095 = vadd.f32 0.0, %v1094
      %v1096 = vpop.f32.mrb[0].mxu0
      %v1097 = vpop.f32.mrb[0].mxu0
      %v1098 = vadd.f32 0.0, %v1097
      %v1099 = vpop.f32.mrb[0].mxu0
      %1100 = vmatprep.mubr.bf16.mxu0 0
      %1101 = vmatmul.mubr.bf16.gmra.mrb[0].mxu0 %v953
      %v1102 = vpop.f32.mrb[0].mxu0
      %v1103 = vadd.f32 0.0, %v1102
      %v1104 = vpop.f32.mrb[0].mxu0
      %v1105 = vpop.f32.mrb[0].mxu0
      %v1106 = vadd.f32 0.0, %v1105
      %v1107 = vpop.f32.mrb[0].mxu0
      %1108 = vmatprep.mubr.bf16.mxu0 0
      %1109 = vmatmul.mubr.bf16.gmra.mrb[0].mxu0 %v956
      %v1110 = vpop.f32.mrb[0].mxu0
      %v1111 = vadd.f32 0.0, %v1110
      %v1112 = vpop.f32.mrb[0].mxu0
      %v1113 = vpop.f32.mrb[0].mxu0
      %v1114 = vadd.f32 0.0, %v1113
      %v1115 = vpop.f32.mrb[0].mxu0
      %1116 = vmatprep.mubr.bf16.mxu0 0
      %1117 = vmatmul.mubr.bf16.gmra.mrb[0].mxu0 %v959
      %v1118 = vpop.f32.mrb[0].mxu0
      %v1119 = vadd.f32 0.0, %v1118
      %v1120 = vpop.f32.mrb[0].mxu0
      %v1121 = vpop.f32.mrb[0].mxu0
      %v1122 = vadd.f32 0.0, %v1121
      %v1123 = vpop.f32.mrb[0].mxu0
      %1124 = vdwg.mxu0
      %v1157 = vunpack.c.l.b16 %v863
      %v1158 = vunpack.c.l.b16 %v864
      %v1159 = vunpack.c.l.b16 %v865
      %v1160 = vunpack.c.l.b16 %v866
      %v1161 = vunpack.c.l.b16 %v867
      %v1162 = vunpack.c.l.b16 %v868
      %v1163 = vunpack.c.l.b16 %v869
      %v1164 = vunpack.c.l.b16 %v870
      %v1165 = vunpack.c.l.b16 %v871
      %v1166 = vunpack.c.l.b16 %v872
      %v1167 = vunpack.c.l.b16 %v873
      %v1168 = vunpack.c.l.b16 %v874
      %v1169 = vunpack.c.l.b16 %v875
      %v1170 = vunpack.c.l.b16 %v876
      %v1171 = vunpack.c.l.b16 %v877
      %v1172 = vunpack.c.l.b16 %v878
      %v1173 = vunpack.c.l.b16 %v879
      %v1174 = vunpack.c.l.b16 %v880
      %v1175 = vunpack.c.l.b16 %v881
      %v1176 = vunpack.c.l.b16 %v882
      %v1177 = vunpack.c.l.b16 %v883
      %v1178 = vunpack.c.l.b16 %v884
      %v1179 = vunpack.c.l.b16 %v885
      %v1180 = vunpack.c.l.b16 %v886
      %v1181 = vunpack.c.l.b16 %v887
      %v1182 = vunpack.c.l.b16 %v888
      %v1183 = vunpack.c.l.b16 %v889
      %v1184 = vunpack.c.l.b16 %v890
      %v1185 = vunpack.c.l.b16 %v891
      %v1186 = vunpack.c.l.b16 %v892
      %v1187 = vunpack.c.l.b16 %v893
      %v1188 = vunpack.c.l.b16 %v894
      %v1189 = vpack.c.b16 %v1158, %v1157
      %v1190 = vpack.c.b16 %v1160, %v1159
      %v1191 = vpack.c.b16 %v1162, %v1161
      %v1192 = vpack.c.b16 %v1164, %v1163
      %v1193 = vpack.c.b16 %v1166, %v1165
      %v1194 = vpack.c.b16 %v1168, %v1167
      %v1195 = vpack.c.b16 %v1170, %v1169
      %v1196 = vpack.c.b16 %v1172, %v1171
      %v1197 = vpack.c.b16 %v1174, %v1173
      %v1198 = vpack.c.b16 %v1176, %v1175
      %v1199 = vpack.c.b16 %v1178, %v1177
      %v1200 = vpack.c.b16 %v1180, %v1179
      %v1201 = vpack.c.b16 %v1182, %v1181
      %v1202 = vpack.c.b16 %v1184, %v1183
      %v1203 = vpack.c.b16 %v1186, %v1185
      %v1204 = vpack.c.b16 %v1188, %v1187
      %v1206 = vsel %vm425, %v1189, 0
      %v1209 = vsel %vm425, %v1190, 0
      %v1212 = vsel %vm425, %v1191, 0
      %v1215 = vsel %vm425, %v1192, 0
      %v1218 = vsel %vm425, %v1193, 0
      %v1221 = vsel %vm425, %v1194, 0
      %v1224 = vsel %vm425, %v1195, 0
      %v1227 = vsel %vm425, %v1196, 0
      %v1230 = vsel %vm425, %v1197, 0
      %v1233 = vsel %vm425, %v1198, 0
      %v1236 = vsel %vm425, %v1199, 0
      %v1239 = vsel %vm425, %v1200, 0
      %v1242 = vsel %vm425, %v1201, 0
      %v1245 = vsel %vm425, %v1202, 0
      %v1248 = vsel %vm425, %v1203, 0
      %v1251 = vsel %vm425, %v1204, 0
      %v1254 = vsel %vm474, %v895, 0
      %1256 = vmatprep.subr.bf16.mxu0 0
      %1257 = vmatpush1.bf16.msra.mxu0 %v1254
      %1258 = vmatprep.subr.bf16.mxu0 0
      %1259 = vmatpush1.bf16.msra.mxu0 0
      %1260 = vmatprep.subr.bf16.mxu0 0
      %1261 = vmatpush1.bf16.msra.mxu0 0
      %1262 = vmatprep.subr.bf16.mxu0 0
      %1263 = vmatpush1.bf16.msra.mxu0 0
      %1264 = vmatprep.subr.bf16.mxu0 0
      %1265 = vmatpush1.bf16.msra.mxu0 0
      %1266 = vmatprep.subr.bf16.mxu0 0
      %1267 = vmatpush1.bf16.msra.mxu0 0
      %1268 = vmatprep.subr.bf16.mxu0 0
      %1269 = vmatpush1.bf16.msra.mxu0 0
      %1270 = vmatprep.subr.bf16.mxu0 0
      %1271 = vmatpush1.bf16.msra.mxu0 0
      %1272 = vmatprep.subr.bf16.mxu0 0
      %1273 = vmatpush1.bf16.msra.mxu0 0
      %1274 = vmatprep.subr.bf16.mxu0 0
      %1275 = vmatpush1.bf16.msra.mxu0 0
      %1276 = vmatprep.subr.bf16.mxu0 0
      %1277 = vmatpush1.bf16.msra.mxu0 0
      %1278 = vmatprep.subr.bf16.mxu0 0
      %1279 = vmatpush1.bf16.msra.mxu0 0
      %1280 = vmatprep.subr.bf16.mxu0 0
      %1281 = vmatpush1.bf16.msra.mxu0 0
      %1282 = vmatprep.subr.bf16.mxu0 0
      %1283 = vmatpush1.bf16.msra.mxu0 0
      %1284 = vmatprep.subr.bf16.mxu0 0
      %1285 = vmatpush1.bf16.msra.mxu0 0
      %1286 = vmatprep.subr.bf16.mxu0 0
      %1287 = vmatpush1.bf16.msra.mxu0 0
      %1288 = vmatprep.mubr.bf16.mxu0 0
      %1289 = vmatmul.mubr.bf16.gmra.mrb[0].mxu0 %v1206
      %v1290 = vpop.f32.mrb[0].mxu0
      %v1291 = vadd.f32 %v999, %v1290
      %v1292 = vpop.f32.mrb[0].mxu0
      %v1293 = vpop.f32.mrb[0].mxu0
      %v1294 = vadd.f32 %v1002, %v1293
      %v1295 = vpop.f32.mrb[0].mxu0
      %1296 = vmatprep.mubr.bf16.mxu0 0
      %1297 = vmatmul.mubr.bf16.gmra.mrb[0].mxu0 %v1209
      %v1298 = vpop.f32.mrb[0].mxu0
      %v1299 = vadd.f32 %v1007, %v1298
      %v1300 = vpop.f32.mrb[0].mxu0
      %v1301 = vpop.f32.mrb[0].mxu0
      %v1302 = vadd.f32 %v1010, %v1301
      %v1303 = vpop.f32.mrb[0].mxu0
      %1304 = vmatprep.mubr.bf16.mxu0 0
      %1305 = vmatmul.mubr.bf16.gmra.mrb[0].mxu0 %v1212
      %v1306 = vpop.f32.mrb[0].mxu0
      %v1307 = vadd.f32 %v1015, %v1306
      %v1308 = vpop.f32.mrb[0].mxu0
      %v1309 = vpop.f32.mrb[0].mxu0
      %v1310 = vadd.f32 %v1018, %v1309
      %v1311 = vpop.f32.mrb[0].mxu0
      %1312 = vmatprep.mubr.bf16.mxu0 0
      %1313 = vmatmul.mubr.bf16.gmra.mrb[0].mxu0 %v1215
      %v1314 = vpop.f32.mrb[0].mxu0
      %v1315 = vadd.f32 %v1023, %v1314
      %v1316 = vpop.f32.mrb[0].mxu0
      %v1317 = vpop.f32.mrb[0].mxu0
      %v1318 = vadd.f32 %v1026, %v1317
      %v1319 = vpop.f32.mrb[0].mxu0
      %1320 = vmatprep.mubr.bf16.mxu0 0
      %1321 = vmatmul.mubr.bf16.gmra.mrb[0].mxu0 %v1218
      %v1322 = vpop.f32.mrb[0].mxu0
      %v1323 = vadd.f32 %v1031, %v1322
      %v1324 = vpop.f32.mrb[0].mxu0
      %v1325 = vpop.f32.mrb[0].mxu0
      %v1326 = vadd.f32 %v1034, %v1325
      %v1327 = vpop.f32.mrb[0].mxu0
      %1328 = vmatprep.mubr.bf16.mxu0 0
      %1329 = vmatmul.mubr.bf16.gmra.mrb[0].mxu0 %v1221
      %v1330 = vpop.f32.mrb[0].mxu0
      %v1331 = vadd.f32 %v1039, %v1330
      %v1332 = vpop.f32.mrb[0].mxu0
      %v1333 = vpop.f32.mrb[0].mxu0
      %v1334 = vadd.f32 %v1042, %v1333
      %v1335 = vpop.f32.mrb[0].mxu0
      %1336 = vmatprep.mubr.bf16.mxu0 0
      %1337 = vmatmul.mubr.bf16.gmra.mrb[0].mxu0 %v1224
      %v1338 = vpop.f32.mrb[0].mxu0
      %v1339 = vadd.f32 %v1047, %v1338
      %v1340 = vpop.f32.mrb[0].mxu0
      %v1341 = vpop.f32.mrb[0].mxu0
      %v1342 = vadd.f32 %v1050, %v1341
      %v1343 = vpop.f32.mrb[0].mxu0
      %1344 = vmatprep.mubr.bf16.mxu0 0
      %1345 = vmatmul.mubr.bf16.gmra.mrb[0].mxu0 %v1227
      %v1346 = vpop.f32.mrb[0].mxu0
      %v1347 = vadd.f32 %v1055, %v1346
      %v1348 = vpop.f32.mrb[0].mxu0
      %v1349 = vpop.f32.mrb[0].mxu0
      %v1350 = vadd.f32 %v1058, %v1349
      %v1351 = vpop.f32.mrb[0].mxu0
      %1352 = vmatprep.mubr.bf16.mxu0 0
      %1353 = vmatmul.mubr.bf16.gmra.mrb[0].mxu0 %v1230
      %v1354 = vpop.f32.mrb[0].mxu0
      %v1355 = vadd.f32 %v1063, %v1354
      %v1356 = vpop.f32.mrb[0].mxu0
      %v1357 = vpop.f32.mrb[0].mxu0
      %v1358 = vadd.f32 %v1066, %v1357
      %v1359 = vpop.f32.mrb[0].mxu0
      %1360 = vmatprep.mubr.bf16.mxu0 0
      %1361 = vmatmul.mubr.bf16.gmra.mrb[0].mxu0 %v1233
      %v1362 = vpop.f32.mrb[0].mxu0
      %v1363 = vadd.f32 %v1071, %v1362
      %v1364 = vpop.f32.mrb[0].mxu0
      %v1365 = vpop.f32.mrb[0].mxu0
      %v1366 = vadd.f32 %v1074, %v1365
      %v1367 = vpop.f32.mrb[0].mxu0
      %1368 = vmatprep.mubr.bf16.mxu0 0
      %1369 = vmatmul.mubr.bf16.gmra.mrb[0].mxu0 %v1236
      %v1370 = vpop.f32.mrb[0].mxu0
      %v1371 = vadd.f32 %v1079, %v1370
      %v1372 = vpop.f32.mrb[0].mxu0
      %v1373 = vpop.f32.mrb[0].mxu0
      %v1374 = vadd.f32 %v1082, %v1373
      %v1375 = vpop.f32.mrb[0].mxu0
      %1376 = vmatprep.mubr.bf16.mxu0 0
      %1377 = vmatmul.mubr.bf16.gmra.mrb[0].mxu0 %v1239
      %v1378 = vpop.f32.mrb[0].mxu0
      %v1379 = vadd.f32 %v1087, %v1378
      %v1380 = vpop.f32.mrb[0].mxu0
      %v1381 = vpop.f32.mrb[0].mxu0
      %v1382 = vadd.f32 %v1090, %v1381
      %v1383 = vpop.f32.mrb[0].mxu0
      %1384 = vmatprep.mubr.bf16.mxu0 0
      %1385 = vmatmul.mubr.bf16.gmra.mrb[0].mxu0 %v1242
      %v1386 = vpop.f32.mrb[0].mxu0
      %v1387 = vadd.f32 %v1095, %v1386
      %v1388 = vpop.f32.mrb[0].mxu0
      %v1389 = vpop.f32.mrb[0].mxu0
      %v1390 = vadd.f32 %v1098, %v1389
      %v1391 = vpop.f32.mrb[0].mxu0
      %1392 = vmatprep.mubr.bf16.mxu0 0
      %1393 = vmatmul.mubr.bf16.gmra.mrb[0].mxu0 %v1245
      %v1394 = vpop.f32.mrb[0].mxu0
      %v1395 = vadd.f32 %v1103, %v1394
      %v1396 = vpop.f32.mrb[0].mxu0
      %v1397 = vpop.f32.mrb[0].mxu0
      %v1398 = vadd.f32 %v1106, %v1397
      %v1399 = vpop.f32.mrb[0].mxu0
      %1400 = vmatprep.mubr.bf16.mxu0 0
      %1401 = vmatmul.mubr.bf16.gmra.mrb[0].mxu0 %v1248
      %v1402 = vpop.f32.mrb[0].mxu0
      %v1403 = vadd.f32 %v1111, %v1402
      %v1404 = vpop.f32.mrb[0].mxu0
      %v1405 = vpop.f32.mrb[0].mxu0
      %v1406 = vadd.f32 %v1114, %v1405
      %v1407 = vpop.f32.mrb[0].mxu0
      %1408 = vmatprep.mubr.bf16.mxu0 0
      %1409 = vmatmul.mubr.bf16.gmra.mrb[0].mxu0 %v1251
      %v1410 = vpop.f32.mrb[0].mxu0
      %v1411 = vadd.f32 %v1119, %v1410
      %v1412 = vpop.f32.mrb[0].mxu0
      %v1413 = vpop.f32.mrb[0].mxu0
      %v1414 = vadd.f32 %v1122, %v1413
      %v1415 = vpop.f32.mrb[0].mxu0
      %1416 = vdwg.mxu0
      %v1417 = vld [vmem:[%s6] sm:$0x1]
      %v1419 = vlaneseq
      %v1420 = vshrl.u32 %v1419, 7
      %v1421 = vsub.s32 0, %v1420
      %v1422 = vrot.slane %v1417, %v1421
      %v1424 = vadd.f32 %v1291, %v1422
      %v1425 = vadd.f32 %v1294, %v1422
      %v1426 = vadd.f32 %v1299, %v1422
      %v1427 = vadd.f32 %v1302, %v1422
      %v1428 = vadd.f32 %v1307, %v1422
      %v1429 = vadd.f32 %v1310, %v1422
      %v1430 = vadd.f32 %v1315, %v1422
      %v1431 = vadd.f32 %v1318, %v1422
      %v1432 = vadd.f32 %v1323, %v1422
      %v1433 = vadd.f32 %v1326, %v1422
      %v1434 = vadd.f32 %v1331, %v1422
      %v1435 = vadd.f32 %v1334, %v1422
      %v1436 = vadd.f32 %v1339, %v1422
      %v1437 = vadd.f32 %v1342, %v1422
      %v1438 = vadd.f32 %v1347, %v1422
      %v1439 = vadd.f32 %v1350, %v1422
      %v1440 = vadd.f32 %v1355, %v1422
      %v1441 = vadd.f32 %v1358, %v1422
      %v1442 = vadd.f32 %v1363, %v1422
      %v1443 = vadd.f32 %v1366, %v1422
      %v1444 = vadd.f32 %v1371, %v1422
      %v1445 = vadd.f32 %v1374, %v1422
      %v1446 = vadd.f32 %v1379, %v1422
      %v1447 = vadd.f32 %v1382, %v1422
      %v1448 = vadd.f32 %v1387, %v1422
      %v1449 = vadd.f32 %v1390, %v1422
      %v1450 = vadd.f32 %v1395, %v1422
      %v1451 = vadd.f32 %v1398, %v1422
      %v1452 = vadd.f32 %v1403, %v1422
      %v1453 = vadd.f32 %v1406, %v1422
      %v1454 = vadd.f32 %v1411, %v1422
      %v1455 = vadd.f32 %v1414, %v1422
      %v1456 = vxor.u32 %v1424, 2147483648
      %v1457 = vxor.u32 %v1425, 2147483648
      %v1458 = vxor.u32 %v1426, 2147483648
      %v1459 = vxor.u32 %v1427, 2147483648
      %v1460 = vxor.u32 %v1428, 2147483648
      %v1461 = vxor.u32 %v1429, 2147483648
      %v1462 = vxor.u32 %v1430, 2147483648
      %v1463 = vxor.u32 %v1431, 2147483648
      %v1464 = vxor.u32 %v1432, 2147483648
      %v1465 = vxor.u32 %v1433, 2147483648
      %v1466 = vxor.u32 %v1434, 2147483648
      %v1467 = vxor.u32 %v1435, 2147483648
      %v1468 = vxor.u32 %v1436, 2147483648
      %v1469 = vxor.u32 %v1437, 2147483648
      %v1470 = vxor.u32 %v1438, 2147483648
      %v1471 = vxor.u32 %v1439, 2147483648
      %v1472 = vxor.u32 %v1440, 2147483648
      %v1473 = vxor.u32 %v1441, 2147483648
      %v1474 = vxor.u32 %v1442, 2147483648
      %v1475 = vxor.u32 %v1443, 2147483648
      %v1476 = vxor.u32 %v1444, 2147483648
      %v1477 = vxor.u32 %v1445, 2147483648
      %v1478 = vxor.u32 %v1446, 2147483648
      %v1479 = vxor.u32 %v1447, 2147483648
      %v1480 = vxor.u32 %v1448, 2147483648
      %v1481 = vxor.u32 %v1449, 2147483648
      %v1482 = vxor.u32 %v1450, 2147483648
      %v1483 = vxor.u32 %v1451, 2147483648
      %v1484 = vxor.u32 %v1452, 2147483648
      %v1485 = vxor.u32 %v1453, 2147483648
      %v1486 = vxor.u32 %v1454, 2147483648
      %v1487 = vxor.u32 %v1455, 2147483648
      %v1488 = vmul.f32 %v1456, 1.442695
      %v1489 = vpow.pop %v1488
      %v1490 = vmul.f32 %v1457, 1.442695
      %v1491 = vpow.pop %v1490
      %v1492 = vmul.f32 %v1458, 1.442695
      %v1493 = vpow.pop %v1492
      %v1494 = vmul.f32 %v1459, 1.442695
      %v1495 = vpow.pop %v1494
      %v1496 = vmul.f32 %v1460, 1.442695
      %v1497 = vpow.pop %v1496
      %v1498 = vmul.f32 %v1461, 1.442695
      %v1499 = vpow.pop %v1498
      %v1500 = vmul.f32 %v1462, 1.442695
      %v1501 = vpow.pop %v1500
      %v1502 = vmul.f32 %v1463, 1.442695
      %v1503 = vpow.pop %v1502
      %v1504 = vmul.f32 %v1464, 1.442695
      %v1505 = vpow.pop %v1504
      %v1506 = vmul.f32 %v1465, 1.442695
      %v1507 = vpow.pop %v1506
      %v1508 = vmul.f32 %v1466, 1.442695
      %v1509 = vpow.pop %v1508
      %v1510 = vmul.f32 %v1467, 1.442695
      %v1511 = vpow.pop %v1510
      %v1512 = vmul.f32 %v1468, 1.442695
      %v1513 = vpow.pop %v1512
      %v1514 = vmul.f32 %v1469, 1.442695
      %v1515 = vpow.pop %v1514
      %v1516 = vmul.f32 %v1470, 1.442695
      %v1517 = vpow.pop %v1516
      %v1518 = vmul.f32 %v1471, 1.442695
      %v1519 = vpow.pop %v1518
      %v1520 = vmul.f32 %v1472, 1.442695
      %v1521 = vpow.pop %v1520
      %v1522 = vmul.f32 %v1473, 1.442695
      %v1523 = vpow.pop %v1522
      %v1524 = vmul.f32 %v1474, 1.442695
      %v1525 = vpow.pop %v1524
      %v1526 = vmul.f32 %v1475, 1.442695
      %v1527 = vpow.pop %v1526
      %v1528 = vmul.f32 %v1476, 1.442695
      %v1529 = vpow.pop %v1528
      %v1530 = vmul.f32 %v1477, 1.442695
      %v1531 = vpow.pop %v1530
      %v1532 = vmul.f32 %v1478, 1.442695
      %v1533 = vpow.pop %v1532
      %v1534 = vmul.f32 %v1479, 1.442695
      %v1535 = vpow.pop %v1534
      %v1536 = vmul.f32 %v1480, 1.442695
      %v1537 = vpow.pop %v1536
      %v1538 = vmul.f32 %v1481, 1.442695
      %v1539 = vpow.pop %v1538
      %v1540 = vmul.f32 %v1482, 1.442695
      %v1541 = vpow.pop %v1540
      %v1542 = vmul.f32 %v1483, 1.442695
      %v1543 = vpow.pop %v1542
      %v1544 = vmul.f32 %v1484, 1.442695
      %v1545 = vpow.pop %v1544
      %v1546 = vmul.f32 %v1485, 1.442695
      %v1547 = vpow.pop %v1546
      %v1548 = vmul.f32 %v1486, 1.442695
      %v1549 = vpow.pop %v1548
      %v1550 = vmul.f32 %v1487, 1.442695
      %v1551 = vpow.pop %v1550
      %v1552 = vadd.f32 %v1489, 1.0
      %v1553 = vadd.f32 %v1491, 1.0
      %v1554 = vadd.f32 %v1493, 1.0
      %v1555 = vadd.f32 %v1495, 1.0
      %v1556 = vadd.f32 %v1497, 1.0
      %v1557 = vadd.f32 %v1499, 1.0
      %v1558 = vadd.f32 %v1501, 1.0
      %v1559 = vadd.f32 %v1503, 1.0
      %v1560 = vadd.f32 %v1505, 1.0
      %v1561 = vadd.f32 %v1507, 1.0
      %v1562 = vadd.f32 %v1509, 1.0
      %v1563 = vadd.f32 %v1511, 1.0
      %v1564 = vadd.f32 %v1513, 1.0
      %v1565 = vadd.f32 %v1515, 1.0
      %v1566 = vadd.f32 %v1517, 1.0
      %v1567 = vadd.f32 %v1519, 1.0
      %v1568 = vadd.f32 %v1521, 1.0
      %v1569 = vadd.f32 %v1523, 1.0
      %v1570 = vadd.f32 %v1525, 1.0
      %v1571 = vadd.f32 %v1527, 1.0
      %v1572 = vadd.f32 %v1529, 1.0
      %v1573 = vadd.f32 %v1531, 1.0
      %v1574 = vadd.f32 %v1533, 1.0
      %v1575 = vadd.f32 %v1535, 1.0
      %v1576 = vadd.f32 %v1537, 1.0
      %v1577 = vadd.f32 %v1539, 1.0
      %v1578 = vadd.f32 %v1541, 1.0
      %v1579 = vadd.f32 %v1543, 1.0
      %v1580 = vadd.f32 %v1545, 1.0
      %v1581 = vadd.f32 %v1547, 1.0
      %v1582 = vadd.f32 %v1549, 1.0
      %v1583 = vadd.f32 %v1551, 1.0
      %v1584 = vrcp.pop %v1552
      %v1585 = vmul.f32 1.0, %v1584
      %v1586 = vrcp.pop %v1553
      %v1587 = vmul.f32 1.0, %v1586
      %v1588 = vrcp.pop %v1554
      %v1589 = vmul.f32 1.0, %v1588
      %v1590 = vrcp.pop %v1555
      %v1591 = vmul.f32 1.0, %v1590
      %v1592 = vrcp.pop %v1556
      %v1593 = vmul.f32 1.0, %v1592
      %v1594 = vrcp.pop %v1557
      %v1595 = vmul.f32 1.0, %v1594
      %v1596 = vrcp.pop %v1558
      %v1597 = vmul.f32 1.0, %v1596
      %v1598 = vrcp.pop %v1559
      %v1599 = vmul.f32 1.0, %v1598
      %v1600 = vrcp.pop %v1560
      %v1601 = vmul.f32 1.0, %v1600
      %v1602 = vrcp.pop %v1561
      %v1603 = vmul.f32 1.0, %v1602
      %v1604 = vrcp.pop %v1562
      %v1605 = vmul.f32 1.0, %v1604
      %v1606 = vrcp.pop %v1563
      %v1607 = vmul.f32 1.0, %v1606
      %v1608 = vrcp.pop %v1564
      %v1609 = vmul.f32 1.0, %v1608
      %v1610 = vrcp.pop %v1565
      %v1611 = vmul.f32 1.0, %v1610
      %v1612 = vrcp.pop %v1566
      %v1613 = vmul.f32 1.0, %v1612
      %v1614 = vrcp.pop %v1567
      %v1615 = vmul.f32 1.0, %v1614
      %v1616 = vrcp.pop %v1568
      %v1617 = vmul.f32 1.0, %v1616
      %v1618 = vrcp.pop %v1569
      %v1619 = vmul.f32 1.0, %v1618
      %v1620 = vrcp.pop %v1570
      %v1621 = vmul.f32 1.0, %v1620
      %v1622 = vrcp.pop %v1571
      %v1623 = vmul.f32 1.0, %v1622
      %v1624 = vrcp.pop %v1572
      %v1625 = vmul.f32 1.0, %v1624
      %v1626 = vrcp.pop %v1573
      %v1627 = vmul.f32 1.0, %v1626
      %v1628 = vrcp.pop %v1574
      %v1629 = vmul.f32 1.0, %v1628
      %v1630 = vrcp.pop %v1575
      %v1631 = vmul.f32 1.0, %v1630
      %v1632 = vrcp.pop %v1576
      %v1633 = vmul.f32 1.0, %v1632
      %v1634 = vrcp.pop %v1577
      %v1635 = vmul.f32 1.0, %v1634
      %v1636 = vrcp.pop %v1578
      %v1637 = vmul.f32 1.0, %v1636
      %v1638 = vrcp.pop %v1579
      %v1639 = vmul.f32 1.0, %v1638
      %v1640 = vrcp.pop %v1580
      %v1641 = vmul.f32 1.0, %v1640
      %v1642 = vrcp.pop %v1581
      %v1643 = vmul.f32 1.0, %v1642
      %v1644 = vrcp.pop %v1582
      %v1645 = vmul.f32 1.0, %v1644
      %v1646 = vrcp.pop %v1583
      %v1647 = vmul.f32 1.0, %v1646
      %v1648 = vmul.f32 %v1424, %v1585
      %v1649 = vmul.f32 %v1425, %v1587
      %v1650 = vmul.f32 %v1426, %v1589
      %v1651 = vmul.f32 %v1427, %v1591
      %v1652 = vmul.f32 %v1428, %v1593
      %v1653 = vmul.f32 %v1429, %v1595
      %v1654 = vmul.f32 %v1430, %v1597
      %v1655 = vmul.f32 %v1431, %v1599
      %v1656 = vmul.f32 %v1432, %v1601
      %v1657 = vmul.f32 %v1433, %v1603
      %v1658 = vmul.f32 %v1434, %v1605
      %v1659 = vmul.f32 %v1435, %v1607
      %v1660 = vmul.f32 %v1436, %v1609
      %v1661 = vmul.f32 %v1437, %v1611
      %v1662 = vmul.f32 %v1438, %v1613
      %v1663 = vmul.f32 %v1439, %v1615
      %v1664 = vmul.f32 %v1440, %v1617
      %v1665 = vmul.f32 %v1441, %v1619
      %v1666 = vmul.f32 %v1442, %v1621
      %v1667 = vmul.f32 %v1443, %v1623
      %v1668 = vmul.f32 %v1444, %v1625
      %v1669 = vmul.f32 %v1445, %v1627
      %v1670 = vmul.f32 %v1446, %v1629
      %v1671 = vmul.f32 %v1447, %v1631
      %v1672 = vmul.f32 %v1448, %v1633
      %v1673 = vmul.f32 %v1449, %v1635
      %v1674 = vmul.f32 %v1450, %v1637
      %v1675 = vmul.f32 %v1451, %v1639
      %v1676 = vmul.f32 %v1452, %v1641
      %v1677 = vmul.f32 %v1453, %v1643
      %v1678 = vmul.f32 %v1454, %v1645
      %v1679 = vmul.f32 %v1455, %v1647
      %vm1680 = vcmask 64512
      %1681 = vst.msk [vmem:[%s302] sm:$0xff] %vm1680, %v1648
      %1682 = vst.msk [vmem:[%s302 + $0x8] sm:$0xff] %vm1680, %v1649
      %1683 = vst.msk [vmem:[%s302 + $0x10] sm:$0xff] %vm1680, %v1650
      %1684 = vst.msk [vmem:[%s302 + $0x18] sm:$0xff] %vm1680, %v1651
      %1685 = vst.msk [vmem:[%s302 + $0x20] sm:$0xff] %vm1680, %v1652
      %1686 = vst.msk [vmem:[%s302 + $0x28] sm:$0xff] %vm1680, %v1653
      %1687 = vst.msk [vmem:[%s302 + $0x30] sm:$0xff] %vm1680, %v1654
      %1688 = vst.msk [vmem:[%s302 + $0x38] sm:$0xff] %vm1680, %v1655
      %1689 = vst.msk [vmem:[%s302 + $0x40] sm:$0xff] %vm1680, %v1656
      %1690 = vst.msk [vmem:[%s302 + $0x48] sm:$0xff] %vm1680, %v1657
      %1691 = vst.msk [vmem:[%s302 + $0x50] sm:$0xff] %vm1680, %v1658
      %1692 = vst.msk [vmem:[%s302 + $0x58] sm:$0xff] %vm1680, %v1659
      %1693 = vst.msk [vmem:[%s302 + $0x60] sm:$0xff] %vm1680, %v1660
      %1694 = vst.msk [vmem:[%s302 + $0x68] sm:$0xff] %vm1680, %v1661
      %1695 = vst.msk [vmem:[%s302 + $0x70] sm:$0xff] %vm1680, %v1662
      %1696 = vst.msk [vmem:[%s302 + $0x78] sm:$0xff] %vm1680, %v1663
      %1697 = vst.msk [vmem:[%s302 + $0x80] sm:$0xff] %vm1680, %v1664
      %1698 = vst.msk [vmem:[%s302 + $0x88] sm:$0xff] %vm1680, %v1665
      %1699 = vst.msk [vmem:[%s302 + $0x90] sm:$0xff] %vm1680, %v1666
      %1700 = vst.msk [vmem:[%s302 + $0x98] sm:$0xff] %vm1680, %v1667
      %1701 = vst.msk [vmem:[%s302 + $0xa0] sm:$0xff] %vm1680, %v1668
      %1702 = vst.msk [vmem:[%s302 + $0xa8] sm:$0xff] %vm1680, %v1669
      %1703 = vst.msk [vmem:[%s302 + $0xb0] sm:$0xff] %vm1680, %v1670
      %1704 = vst.msk [vmem:[%s302 + $0xb8] sm:$0xff] %vm1680, %v1671
      %1705 = vst.msk [vmem:[%s302 + $0xc0] sm:$0xff] %vm1680, %v1672
      %1706 = vst.msk [vmem:[%s302 + $0xc8] sm:$0xff] %vm1680, %v1673
      %1707 = vst.msk [vmem:[%s302 + $0xd0] sm:$0xff] %vm1680, %v1674
      %1708 = vst.msk [vmem:[%s302 + $0xd8] sm:$0xff] %vm1680, %v1675
      %1709 = vst.msk [vmem:[%s302 + $0xe0] sm:$0xff] %vm1680, %v1676
      %1710 = vst.msk [vmem:[%s302 + $0xe8] sm:$0xff] %vm1680, %v1677
      %1711 = vst.msk [vmem:[%s302 + $0xf0] sm:$0xff] %vm1680, %v1678
      %1712 = vst.msk [vmem:[%s302 + $0xf8] sm:$0xff] %vm1680, %v1679
      %s1713 = smul.u32 32, %s18
      %p1714 = scmp.lt.s32.totalorder %s1713, 63
      %s1715 = scalar_select %p1714, %s1713, 63
      %s1716 = smul.addr %s1715, 8
      %s1717 = scalar_lea.vmem %s7, %s1716
      // Predicated region
      $region49: #{c3_forward.7} parent=47 // pred_check
        %p1718 = pneg %p193
      $region50: #{c3_forward.7} parent=47 // pred_check_branch
        %1720 = sbr.rel (%p1718) target = $region52
      $region51: #{c3_forward.7} parent=47 // pred_region
        %s1721 = smul.u32 32, %s18
      $region52: #{c3_forward.7} parent=47 // pred_fallthru
        _
    $region48: #{c3_forward.7} parent=5 // pred_fallthru
      _
    %p1722 = scmp.le.s32.totalorder 2, %s13
    // Predicated region
    $region53: #{c3_forward.7} parent=5 // pred_check
      %p1723 = pneg %p1722
    $region54: #{c3_forward.7} parent=5 // pred_check_branch
      %1725 = sbr.rel (%p1723) target = $region56
    $region55: #{c3_forward.7} parent=5 // pred_region
      %s1726 = ssub.s32 %s13, 2
      // Predicated region
      $region57: #{c3_forward.7} parent=55 // pred_check
        %p1727 = pneg %p199
      $region58: #{c3_forward.7} parent=55 // pred_check_branch
        %1729 = sbr.rel (%p1727) target = $region60
      $region59: #{c3_forward.7} parent=55 // pred_region
        %s1730 = smul.u32 32, %s19
        %p1731 = scmp.lt.s32.totalorder %s1730, 63
        %s1732 = scalar_select %p1731, %s1730, 63
        %s1733 = smul.addr %s1732, 8
        %s1734 = scalar_lea.vmem %s7, %s1733
      $region60: #{c3_forward.7} parent=55 // pred_fallthru
        _
    $region56: #{c3_forward.7} parent=5 // pred_fallthru
      _
  $region6: #{c3_forward.7} parent=0 // loop_footer
    %s17 = sadd.s32 1, %s13
  $region7: #{c3_forward.7} parent=0 // loop_footer_branch
    %12 = sbr.rel target = $region3
  $region8: #{c3_forward.7} parent=0 // loop_exit
    _

// kernel: c3_forward.5
$region0: #{c3_forward.5}
  #allocation0 [shape = 'u32[]', space=smem, size = 0x4, offset = 0x4, fixed_abs, tag = 'smem constant byte address 0x4 - core index']
  #allocation1 [shape = 'u32[144,128]{1,0:T(1,128)}', space=vmem, size = 0x12000, scoped, tag = 'internal scratch']
  #allocation2 [shape = 'bf16[288,4]{1,0:T(16,128)(2,1)}', space=vmem, size = 0x12000, scoped, tag = 'scratch operand']
  #allocation3 [shape = 'bf16[288,4]{1,0:T(16,128)(2,1)}', space=vmem, size = 0x12000, scoped, tag = 'scratch operand']
  #allocation4 [shape = 'bf16[288,4]{1,0:T(16,128)(2,1)}', space=vmem, size = 0x12000, scoped, tag = 'scratch operand']
  %s0 = inlined_call_operand.vmem [shape: bf16[2,256,4], index: 0, kind: input, shape index: {}]
  %s1 = inlined_call_operand.vmem [shape: bf16[4,4], index: 1, kind: input, shape index: {}]
  %s2 = inlined_call_operand.vmem [shape: f32[1,4], index: 2, kind: input, shape index: {}]
  %s3 = inlined_call_operand.vmem [shape: bf16[9,4,4], index: 3, kind: input, shape index: {}]
  %s4 = inlined_call_operand.vmem [shape: f32[1,4], index: 4, kind: input, shape index: {}]
  %s5 = inlined_call_operand.vmem [shape: bf16[2,256,4], index: 5, kind: output, shape index: {}]
  %s6 = sld [smem:[#allocation0]]
  $region53: #{c3_forward.5} parent=0
    _
  %s8 = ssub.s32 1, %s6
  %s9 = scalar_select 0, %s8, %s6
  loop: start=0, step=1, limit=4
  $region2: #{c3_forward.5} parent=0 // loop_pre_header
    _
  $region3: #{c3_forward.5} parent=0 // loop_header
    %s11 = sphi 0, %s15
    %p12 = scmp.ge.s32.totalorder %s11, 4
    %s21 = sphi 0, %s23
    %s24 = sphi 0, %s21
    %s25 = sphi 0, %s24
    %s41 = sphi 0, %s25
    %s45 = sphi 0, %s45
    %s47 = sphi 0, %s45
    %s48 = sphi 0, %s47
    %s62 = sphi 0, %s48
    %s66 = sphi 0, %s66
    %s68 = sphi 0, %s66
    %s69 = sphi 0, %s68
    %s83 = sphi 0, %s69
    %s87 = sphi 0, %s87
    %s89 = sphi 0, %s87
    %s90 = sphi 0, %s89
    %s104 = sphi 0, %s90
    %s108 = sphi 0, %s108
    %s110 = sphi 0, %s108
    %s111 = sphi 0, %s110
    %s125 = sphi 0, %s111
    %s131 = sphi 0, %s133
    %s134 = sphi 0, %s131
    %s135 = sphi 0, %s134
    %s151 = sphi 0, %s135
  $region4: #{c3_forward.5} parent=0 // loop_header_branch
    %14 = sbr.rel (%p12) target = $region8
  $region5: #{c3_forward.5} parent=0 // loop_body
    %s16 = ssub.s32 %s11, 1
    %s17 = ssub.s32 %s11, 2
    %s18 = sadd.s32 %s11, 1
    %s19 = ssub.s32 %s11, %s18
    %p20 = scmp.eq.s32.totalorder %s19, 0
    %s22 = sadd.s32 %s21, 1
    %s23 = scalar_select %p20, %s21, %s22
    %p26 = pneg %p20
    %p27 = scmp.eq.s32.totalorder %s11, 1
    %p28 = por %p26, %p27
    %p29 = scmp.ne.s32.totalorder %s21, %s24
    %p30 = scmp.eq.s32.totalorder %s11, 0
    %p31 = por %p29, %p30
    %p32 = scmp.ne.s32.totalorder %s21, %s24
    %p33 = scmp.eq.s32.totalorder %s16, 1
    %p34 = por %p32, %p33
    %p35 = scmp.ne.s32.totalorder %s24, %s25
    %p36 = scmp.eq.s32.totalorder %s16, 0
    %p37 = por %p35, %p36
    %p38 = scmp.ne.s32.totalorder %s24, %s25
    %p39 = scmp.eq.s32.totalorder %s17, 1
    %p40 = por %p38, %p39
    %p42 = scmp.ne.s32.totalorder %s25, %s41
    %p43 = scmp.eq.s32.totalorder %s17, 0
    %p44 = por %p42, %p43
    %s46 = sadd.s32 %s45, 1
    %p49 = scmp.eq.s32.totalorder %s11, 1
    %p50 = scmp.ne.s32.totalorder %s45, %s47
    %p51 = scmp.eq.s32.totalorder %s11, 0
    %p52 = por %p50, %p51
    %p53 = scmp.ne.s32.totalorder %s45, %s47
    %p54 = scmp.eq.s32.totalorder %s16, 1
    %p55 = por %p53, %p54
    %p56 = scmp.ne.s32.totalorder %s47, %s48
    %p57 = scmp.eq.s32.totalorder %s16, 0
    %p58 = por %p56, %p57
    %p59 = scmp.ne.s32.totalorder %s47, %s48
    %p60 = scmp.eq.s32.totalorder %s17, 1
    %p61 = por %p59, %p60
    %p63 = scmp.ne.s32.totalorder %s48, %s62
    %p64 = scmp.eq.s32.totalorder %s17, 0
    %p65 = por %p63, %p64
    %s67 = sadd.s32 %s66, 1
    %p70 = scmp.eq.s32.totalorder %s11, 1
    %p71 = scmp.ne.s32.totalorder %s66, %s68
    %p72 = scmp.eq.s32.totalorder %s11, 0
    %p73 = por %p71, %p72
    %p74 = scmp.ne.s32.totalorder %s66, %s68
    %p75 = scmp.eq.s32.totalorder %s16, 1
    %p76 = por %p74, %p75
    %p77 = scmp.ne.s32.totalorder %s68, %s69
    %p78 = scmp.eq.s32.totalorder %s16, 0
    %p79 = por %p77, %p78
    %p80 = scmp.ne.s32.totalorder %s68, %s69
    %p81 = scmp.eq.s32.totalorder %s17, 1
    %p82 = por %p80, %p81
    %p84 = scmp.ne.s32.totalorder %s69, %s83
    %p85 = scmp.eq.s32.totalorder %s17, 0
    %p86 = por %p84, %p85
    %s88 = sadd.s32 %s87, 1
    %p91 = scmp.eq.s32.totalorder %s11, 1
    %p92 = scmp.ne.s32.totalorder %s87, %s89
    %p93 = scmp.eq.s32.totalorder %s11, 0
    %p94 = por %p92, %p93
    %p95 = scmp.ne.s32.totalorder %s87, %s89
    %p96 = scmp.eq.s32.totalorder %s16, 1
    %p97 = por %p95, %p96
    %p98 = scmp.ne.s32.totalorder %s89, %s90
    %p99 = scmp.eq.s32.totalorder %s16, 0
    %p100 = por %p98, %p99
    %p101 = scmp.ne.s32.totalorder %s89, %s90
    %p102 = scmp.eq.s32.totalorder %s17, 1
    %p103 = por %p101, %p102
    %p105 = scmp.ne.s32.totalorder %s90, %s104
    %p106 = scmp.eq.s32.totalorder %s17, 0
    %p107 = por %p105, %p106
    %s109 = sadd.s32 %s108, 1
    %p112 = scmp.eq.s32.totalorder %s11, 1
    %p113 = scmp.ne.s32.totalorder %s108, %s110
    %p114 = scmp.eq.s32.totalorder %s11, 0
    %p115 = por %p113, %p114
    %p116 = scmp.ne.s32.totalorder %s108, %s110
    %p117 = scmp.eq.s32.totalorder %s16, 1
    %p118 = por %p116, %p117
    %p119 = scmp.ne.s32.totalorder %s110, %s111
    %p120 = scmp.eq.s32.totalorder %s16, 0
    %p121 = por %p119, %p120
    %p122 = scmp.ne.s32.totalorder %s110, %s111
    %p123 = scmp.eq.s32.totalorder %s17, 1
    %p124 = por %p122, %p123
    %p126 = scmp.ne.s32.totalorder %s111, %s125
    %p127 = scmp.eq.s32.totalorder %s17, 0
    %p128 = por %p126, %p127
    %s129 = ssub.s32 %s11, %s18
    %p130 = scmp.eq.s32.totalorder %s129, 0
    %s132 = sadd.s32 %s131, 1
    %s133 = scalar_select %p130, %s131, %s132
    %p136 = pneg %p130
    %p137 = scmp.eq.s32.totalorder %s11, 1
    %p138 = por %p136, %p137
    %p139 = scmp.ne.s32.totalorder %s131, %s134
    %p140 = scmp.eq.s32.totalorder %s11, 0
    %p141 = por %p139, %p140
    %p142 = scmp.ne.s32.totalorder %s131, %s134
    %p143 = scmp.eq.s32.totalorder %s16, 1
    %p144 = por %p142, %p143
    %p145 = scmp.ne.s32.totalorder %s134, %s135
    %p146 = scmp.eq.s32.totalorder %s16, 0
    %p147 = por %p145, %p146
    %p148 = scmp.ne.s32.totalorder %s134, %s135
    %p149 = scmp.eq.s32.totalorder %s17, 1
    %p150 = por %p148, %p149
    %p152 = scmp.ne.s32.totalorder %s135, %s151
    %p153 = scmp.eq.s32.totalorder %s17, 0
    %p154 = por %p152, %p153
    %p155 = scmp.le.s32.totalorder 1, %s11
    %p156 = scmp.lt.s32.totalorder %s11, 3
    %p157 = pnand %p155, %p156
    %p158 = pneg %p157
    // Predicated region
    $region9: #{c3_forward.5} parent=5 // pred_check
      _
    $region10: #{c3_forward.5} parent=5 // pred_check_branch
      %160 = sbr.rel (%p157) target = $region12
    $region11: #{c3_forward.5} parent=5 // pred_region
      %s161 = ssub.s32 %s11, 1
      // Predicated region
      $region13: #{c3_forward.5} parent=11 // pred_check
        %p162 = pneg %p58
      $region14: #{c3_forward.5} parent=11 // pred_check_branch
        %164 = sbr.rel (%p162) target = $region16
      $region15: #{c3_forward.5} parent=11 // pred_region
        _
      $region16: #{c3_forward.5} parent=11 // pred_fallthru
        _
      // Predicated region
      $region17: #{c3_forward.5} parent=11 // pred_check
        %p165 = pneg %p79
      $region18: #{c3_forward.5} parent=11 // pred_check_branch
        %167 = sbr.rel (%p165) target = $region20
      $region19: #{c3_forward.5} parent=11 // pred_region
        _
      $region20: #{c3_forward.5} parent=11 // pred_fallthru
        _
      // Predicated region
      $region21: #{c3_forward.5} parent=11 // pred_check
        %p168 = pneg %p100
      $region22: #{c3_forward.5} parent=11 // pred_check_branch
        %170 = sbr.rel (%p168) target = $region24
      $region23: #{c3_forward.5} parent=11 // pred_region
        _
      $region24: #{c3_forward.5} parent=11 // pred_fallthru
        _
      // Predicated region
      $region25: #{c3_forward.5} parent=11 // pred_check
        %p171 = pneg %p121
      $region26: #{c3_forward.5} parent=11 // pred_check_branch
        %173 = sbr.rel (%p171) target = $region28
      $region27: #{c3_forward.5} parent=11 // pred_region
        _
      $region28: #{c3_forward.5} parent=11 // pred_fallthru
        _
    $region12: #{c3_forward.5} parent=5 // pred_fallthru
      _
    %p174 = scmp.lt.s32.totalorder %s11, 2
    // Predicated region
    $region29: #{c3_forward.5} parent=5 // pred_check
      %p175 = pneg %p174
    $region30: #{c3_forward.5} parent=5 // pred_check_branch
      %177 = sbr.rel (%p175) target = $region32
    $region31: #{c3_forward.5} parent=5 // pred_region
      // Predicated region
      $region33: #{c3_forward.5} parent=31 // pred_check
        %p178 = pneg %p31
      $region34: #{c3_forward.5} parent=31 // pred_check_branch
        %180 = sbr.rel (%p178) target = $region36
      $region35: #{c3_forward.5} parent=31 // pred_region
        %p181 = scmp.lt.s32.totalorder %s11, 1
        %s182 = scalar_select %p181, %s11, 1
        %s183 = smul.addr %s182, 32
        %s184 = smul.addr %s183, 4
        %s185 = scalar_lea.vmem %s0, %s184
      $region36: #{c3_forward.5} parent=31 // pred_fallthru
        _
    $region32: #{c3_forward.5} parent=5 // pred_fallthru
      _
    %p186 = scmp.le.s32.totalorder 1, %s11
    %p187 = scmp.lt.s32.totalorder %s11, 3
    %p188 = pnand %p186, %p187
    %p189 = pneg %p188
    // Predicated region
    $region37: #{c3_forward.5} parent=5 // pred_check
      _
    $region38: #{c3_forward.5} parent=5 // pred_check_branch
      %191 = sbr.rel (%p188) target = $region40
    $region39: #{c3_forward.5} parent=5 // pred_region
      %s192 = ssub.s32 %s11, 1
      %p193 = scmp.lt.s32.totalorder %s16, 1
      %s194 = scalar_select %p193, %s16, 1
      %s195 = smul.addr %s194, 32
      %s196 = smul.addr %s195, 4
      %s197 = scalar_lea.vmem %s0, %s196
      %p198 = pneg %p37
      %p199 = pneg %p34
      %p200 = pneg %p58
      %p201 = pneg %p55
      %p202 = pneg %p79
      %p203 = pneg %p76
      %p204 = pneg %p100
      %p205 = pneg %p97
      %p206 = pneg %p121
      %p207 = pneg %p118
      %p208 = pneg %p147
      %p209 = pneg %p144
      %p210 = scmp.lt.s32.totalorder %s16, 1
      %s211 = scalar_select %p210, %s16, 1
      %s212 = smul.addr %s211, 32
      %s213 = smul.addr %s212, 4
      %s214 = scalar_lea.vmem %s5, %s213
      %p215 = scmp.lt.s32.totalorder %s16, 1
      %s216 = scalar_select %p215, %s16, 1
      %s217 = smul.addr %s216, 32
      %s218 = smul.addr %s217, 4
      %s219 = scalar_lea.vmem %s0, %s218
      %p220 = scmp.lt.s32.totalorder %s16, 1
      %s221 = scalar_select %p220, %s16, 1
      %s222 = smul.addr %s221, 32
      %s223 = smul.addr %s222, 4
      %s224 = scalar_lea.vmem %s5, %s223
      %v226 = vld [vmem:[%s219] sm:$0xf]
      %v227 = vld [vmem:[%s219 + $0x4] sm:$0xf]
      %v228 = vld [vmem:[%s219 + $0x8] sm:$0xf]
      %v229 = vld [vmem:[%s219 + $0xc] sm:$0xf]
      %v230 = vld [vmem:[%s219 + $0x10] sm:$0xf]
      %v231 = vld [vmem:[%s219 + $0x14] sm:$0xf]
      %v232 = vld [vmem:[%s219 + $0x18] sm:$0xf]
      %v233 = vld [vmem:[%s219 + $0x1c] sm:$0xf]
      %v234 = vld [vmem:[%s219 + $0x20] sm:$0xf]
      %v235 = vld [vmem:[%s219 + $0x24] sm:$0xf]
      %v236 = vld [vmem:[%s219 + $0x28] sm:$0xf]
      %v237 = vld [vmem:[%s219 + $0x2c] sm:$0xf]
      %v238 = vld [vmem:[%s219 + $0x30] sm:$0xf]
      %v239 = vld [vmem:[%s219 + $0x34] sm:$0xf]
      %v240 = vld [vmem:[%s219 + $0x38] sm:$0xf]
      %v241 = vld [vmem:[%s219 + $0x3c] sm:$0xf]
      %v242 = vld [vmem:[%s219 + $0x40] sm:$0xf]
      %v243 = vld [vmem:[%s219 + $0x44] sm:$0xf]
      %v244 = vld [vmem:[%s219 + $0x48] sm:$0xf]
      %v245 = vld [vmem:[%s219 + $0x4c] sm:$0xf]
      %v246 = vld [vmem:[%s219 + $0x50] sm:$0xf]
      %v247 = vld [vmem:[%s219 + $0x54] sm:$0xf]
      %v248 = vld [vmem:[%s219 + $0x58] sm:$0xf]
      %v249 = vld [vmem:[%s219 + $0x5c] sm:$0xf]
      %v250 = vld [vmem:[%s219 + $0x60] sm:$0xf]
      %v251 = vld [vmem:[%s219 + $0x64] sm:$0xf]
      %v252 = vld [vmem:[%s219 + $0x68] sm:$0xf]
      %v253 = vld [vmem:[%s219 + $0x6c] sm:$0xf]
      %v254 = vld [vmem:[%s219 + $0x70] sm:$0xf]
      %v255 = vld [vmem:[%s219 + $0x74] sm:$0xf]
      %v256 = vld [vmem:[%s219 + $0x78] sm:$0xf]
      %v257 = vld [vmem:[%s219 + $0x7c] sm:$0xf]
      %v258 = vld [vmem:[%s1] sm:$0x3]
      %v259 = vld [vmem:[%s2] sm:$0x1]
      %v261 = vlaneseq
      %v262 = vshrl.u32 %v261, 7
      %v263 = vsub.s32 0, %v262
      %v264 = vrot.slane %v259, %v263
      %v298 = vunpack.c.l.b16 %v226
      %v299 = vunpack.c.l.b16 %v227
      %v300 = vunpack.c.l.b16 %v228
      %v301 = vunpack.c.l.b16 %v229
      %v302 = vunpack.c.l.b16 %v230
      %v303 = vunpack.c.l.b16 %v231
      %v304 = vunpack.c.l.b16 %v232
      %v305 = vunpack.c.l.b16 %v233
      %v306 = vunpack.c.l.b16 %v234
      %v307 = vunpack.c.l.b16 %v235
      %v308 = vunpack.c.l.b16 %v236
      %v309 = vunpack.c.l.b16 %v237
      %v310 = vunpack.c.l.b16 %v238
      %v311 = vunpack.c.l.b16 %v239
      %v312 = vunpack.c.l.b16 %v240
      %v313 = vunpack.c.l.b16 %v241
      %v314 = vunpack.c.l.b16 %v242
      %v315 = vunpack.c.l.b16 %v243
      %v316 = vunpack.c.l.b16 %v244
      %v317 = vunpack.c.l.b16 %v245
      %v318 = vunpack.c.l.b16 %v246
      %v319 = vunpack.c.l.b16 %v247
      %v320 = vunpack.c.l.b16 %v248
      %v321 = vunpack.c.l.b16 %v249
      %v322 = vunpack.c.l.b16 %v250
      %v323 = vunpack.c.l.b16 %v251
      %v324 = vunpack.c.l.b16 %v252
      %v325 = vunpack.c.l.b16 %v253
      %v326 = vunpack.c.l.b16 %v254
      %v327 = vunpack.c.l.b16 %v255
      %v328 = vunpack.c.l.b16 %v256
      %v329 = vunpack.c.l.b16 %v257
      %v330 = vpack.c.b16 %v299, %v298
      %v331 = vpack.c.b16 %v301, %v300
      %v332 = vpack.c.b16 %v303, %v302
      %v333 = vpack.c.b16 %v305, %v304
      %v334 = vpack.c.b16 %v307, %v306
      %v335 = vpack.c.b16 %v309, %v308
      %v336 = vpack.c.b16 %v311, %v310
      %v337 = vpack.c.b16 %v313, %v312
      %v338 = vpack.c.b16 %v315, %v314
      %v339 = vpack.c.b16 %v317, %v316
      %v340 = vpack.c.b16 %v319, %v318
      %v341 = vpack.c.b16 %v321, %v320
      %v342 = vpack.c.b16 %v323, %v322
      %v343 = vpack.c.b16 %v325, %v324
      %v344 = vpack.c.b16 %v327, %v326
      %v345 = vpack.c.b16 %v329, %v328
      %vm346 = vcmask 31744
      %v348 = vsel %vm346, %v330, 0
      %v351 = vsel %vm346, %v331, 0
      %v354 = vsel %vm346, %v332, 0
      %v357 = vsel %vm346, %v333, 0
      %v360 = vsel %vm346, %v334, 0
      %v363 = vsel %vm346, %v335, 0
      %v366 = vsel %vm346, %v336, 0
      %v369 = vsel %vm346, %v337, 0
      %v372 = vsel %vm346, %v338, 0
      %v375 = vsel %vm346, %v339, 0
      %v378 = vsel %vm346, %v340, 0
      %v381 = vsel %vm346, %v341, 0
      %v384 = vsel %vm346, %v342, 0
      %v387 = vsel %vm346, %v343, 0
      %v390 = vsel %vm346, %v344, 0
      %v393 = vsel %vm346, %v345, 0
      %vm395 = vcmask 1041408
      %v397 = vsel %vm395, %v258, 0
      %399 = vmatprep.subr.bf16.mxu0 0
      %400 = vmatpush1.bf16.msra.mxu0 %v397
      %401 = vmatprep.subr.bf16.mxu0 0
      %402 = vmatpush1.bf16.msra.mxu0 0
      %403 = vmatprep.subr.bf16.mxu0 0
      %404 = vmatpush1.bf16.msra.mxu0 0
      %405 = vmatprep.subr.bf16.mxu0 0
      %406 = vmatpush1.bf16.msra.mxu0 0
      %407 = vmatprep.subr.bf16.mxu0 0
      %408 = vmatpush1.bf16.msra.mxu0 0
      %409 = vmatprep.subr.bf16.mxu0 0
      %410 = vmatpush1.bf16.msra.mxu0 0
      %411 = vmatprep.subr.bf16.mxu0 0
      %412 = vmatpush1.bf16.msra.mxu0 0
      %413 = vmatprep.subr.bf16.mxu0 0
      %414 = vmatpush1.bf16.msra.mxu0 0
      %415 = vmatprep.subr.bf16.mxu0 0
      %416 = vmatpush1.bf16.msra.mxu0 0
      %417 = vmatprep.subr.bf16.mxu0 0
      %418 = vmatpush1.bf16.msra.mxu0 0
      %419 = vmatprep.subr.bf16.mxu0 0
      %420 = vmatpush1.bf16.msra.mxu0 0
      %421 = vmatprep.subr.bf16.mxu0 0
      %422 = vmatpush1.bf16.msra.mxu0 0
      %423 = vmatprep.subr.bf16.mxu0 0
      %424 = vmatpush1.bf16.msra.mxu0 0
      %425 = vmatprep.subr.bf16.mxu0 0
      %426 = vmatpush1.bf16.msra.mxu0 0
      %427 = vmatprep.subr.bf16.mxu0 0
      %428 = vmatpush1.bf16.msra.mxu0 0
      %429 = vmatprep.subr.bf16.mxu0 0
      %430 = vmatpush1.bf16.msra.mxu0 0
      %431 = vmatprep.mubr.bf16.mxu0 0
      %432 = vmatmul.mubr.bf16.gmra.mrb[0].mxu0 %v348
      %v433 = vpop.f32.mrb[0].mxu0
      %v434 = vadd.f32 %v264, %v433
      %v435 = vpop.f32.mrb[0].mxu0
      %v436 = vpop.f32.mrb[0].mxu0
      %v437 = vadd.f32 %v264, %v436
      %v438 = vpop.f32.mrb[0].mxu0
      %439 = vmatprep.mubr.bf16.mxu0 0
      %440 = vmatmul.mubr.bf16.gmra.mrb[0].mxu0 %v351
      %v441 = vpop.f32.mrb[0].mxu0
      %v442 = vadd.f32 %v264, %v441
      %v443 = vpop.f32.mrb[0].mxu0
      %v444 = vpop.f32.mrb[0].mxu0
      %v445 = vadd.f32 %v264, %v444
      %v446 = vpop.f32.mrb[0].mxu0
      %447 = vmatprep.mubr.bf16.mxu0 0
      %448 = vmatmul.mubr.bf16.gmra.mrb[0].mxu0 %v354
      %v449 = vpop.f32.mrb[0].mxu0
      %v450 = vadd.f32 %v264, %v449
      %v451 = vpop.f32.mrb[0].mxu0
      %v452 = vpop.f32.mrb[0].mxu0
      %v453 = vadd.f32 %v264, %v452
      %v454 = vpop.f32.mrb[0].mxu0
      %455 = vmatprep.mubr.bf16.mxu0 0
      %456 = vmatmul.mubr.bf16.gmra.mrb[0].mxu0 %v357
      %v457 = vpop.f32.mrb[0].mxu0
      %v458 = vadd.f32 %v264, %v457
      %v459 = vpop.f32.mrb[0].mxu0
      %v460 = vpop.f32.mrb[0].mxu0
      %v461 = vadd.f32 %v264, %v460
      %v462 = vpop.f32.mrb[0].mxu0
      %463 = vmatprep.mubr.bf16.mxu0 0
      %464 = vmatmul.mubr.bf16.gmra.mrb[0].mxu0 %v360
      %v465 = vpop.f32.mrb[0].mxu0
      %v466 = vadd.f32 %v264, %v465
      %v467 = vpop.f32.mrb[0].mxu0
      %v468 = vpop.f32.mrb[0].mxu0
      %v469 = vadd.f32 %v264, %v468
      %v470 = vpop.f32.mrb[0].mxu0
      %471 = vmatprep.mubr.bf16.mxu0 0
      %472 = vmatmul.mubr.bf16.gmra.mrb[0].mxu0 %v363
      %v473 = vpop.f32.mrb[0].mxu0
      %v474 = vadd.f32 %v264, %v473
      %v475 = vpop.f32.mrb[0].mxu0
      %v476 = vpop.f32.mrb[0].mxu0
      %v477 = vadd.f32 %v264, %v476
      %v478 = vpop.f32.mrb[0].mxu0
      %479 = vmatprep.mubr.bf16.mxu0 0
      %480 = vmatmul.mubr.bf16.gmra.mrb[0].mxu0 %v366
      %v481 = vpop.f32.mrb[0].mxu0
      %v482 = vadd.f32 %v264, %v481
      %v483 = vpop.f32.mrb[0].mxu0
      %v484 = vpop.f32.mrb[0].mxu0
      %v485 = vadd.f32 %v264, %v484
      %v486 = vpop.f32.mrb[0].mxu0
      %487 = vmatprep.mubr.bf16.mxu0 0
      %488 = vmatmul.mubr.bf16.gmra.mrb[0].mxu0 %v369
      %v489 = vpop.f32.mrb[0].mxu0
      %v490 = vadd.f32 %v264, %v489
      %v491 = vpop.f32.mrb[0].mxu0
      %v492 = vpop.f32.mrb[0].mxu0
      %v493 = vadd.f32 %v264, %v492
      %v494 = vpop.f32.mrb[0].mxu0
      %495 = vmatprep.mubr.bf16.mxu0 0
      %496 = vmatmul.mubr.bf16.gmra.mrb[0].mxu0 %v372
      %v497 = vpop.f32.mrb[0].mxu0
      %v498 = vadd.f32 %v264, %v497
      %v499 = vpop.f32.mrb[0].mxu0
      %v500 = vpop.f32.mrb[0].mxu0
      %v501 = vadd.f32 %v264, %v500
      %v502 = vpop.f32.mrb[0].mxu0
      %503 = vmatprep.mubr.bf16.mxu0 0
      %504 = vmatmul.mubr.bf16.gmra.mrb[0].mxu0 %v375
      %v505 = vpop.f32.mrb[0].mxu0
      %v506 = vadd.f32 %v264, %v505
      %v507 = vpop.f32.mrb[0].mxu0
      %v508 = vpop.f32.mrb[0].mxu0
      %v509 = vadd.f32 %v264, %v508
      %v510 = vpop.f32.mrb[0].mxu0
      %511 = vmatprep.mubr.bf16.mxu0 0
      %512 = vmatmul.mubr.bf16.gmra.mrb[0].mxu0 %v378
      %v513 = vpop.f32.mrb[0].mxu0
      %v514 = vadd.f32 %v264, %v513
      %v515 = vpop.f32.mrb[0].mxu0
      %v516 = vpop.f32.mrb[0].mxu0
      %v517 = vadd.f32 %v264, %v516
      %v518 = vpop.f32.mrb[0].mxu0
      %519 = vmatprep.mubr.bf16.mxu0 0
      %520 = vmatmul.mubr.bf16.gmra.mrb[0].mxu0 %v381
      %v521 = vpop.f32.mrb[0].mxu0
      %v522 = vadd.f32 %v264, %v521
      %v523 = vpop.f32.mrb[0].mxu0
      %v524 = vpop.f32.mrb[0].mxu0
      %v525 = vadd.f32 %v264, %v524
      %v526 = vpop.f32.mrb[0].mxu0
      %527 = vmatprep.mubr.bf16.mxu0 0
      %528 = vmatmul.mubr.bf16.gmra.mrb[0].mxu0 %v384
      %v529 = vpop.f32.mrb[0].mxu0
      %v530 = vadd.f32 %v264, %v529
      %v531 = vpop.f32.mrb[0].mxu0
      %v532 = vpop.f32.mrb[0].mxu0
      %v533 = vadd.f32 %v264, %v532
      %v534 = vpop.f32.mrb[0].mxu0
      %535 = vmatprep.mubr.bf16.mxu0 0
      %536 = vmatmul.mubr.bf16.gmra.mrb[0].mxu0 %v387
      %v537 = vpop.f32.mrb[0].mxu0
      %v538 = vadd.f32 %v264, %v537
      %v539 = vpop.f32.mrb[0].mxu0
      %v540 = vpop.f32.mrb[0].mxu0
      %v541 = vadd.f32 %v264, %v540
      %v542 = vpop.f32.mrb[0].mxu0
      %543 = vmatprep.mubr.bf16.mxu0 0
      %544 = vmatmul.mubr.bf16.gmra.mrb[0].mxu0 %v390
      %v545 = vpop.f32.mrb[0].mxu0
      %v546 = vadd.f32 %v264, %v545
      %v547 = vpop.f32.mrb[0].mxu0
      %v548 = vpop.f32.mrb[0].mxu0
      %v549 = vadd.f32 %v264, %v548
      %v550 = vpop.f32.mrb[0].mxu0
      %551 = vmatprep.mubr.bf16.mxu0 0
      %552 = vmatmul.mubr.bf16.gmra.mrb[0].mxu0 %v393
      %v553 = vpop.f32.mrb[0].mxu0
      %v554 = vadd.f32 %v264, %v553
      %v555 = vpop.f32.mrb[0].mxu0
      %v556 = vpop.f32.mrb[0].mxu0
      %v557 = vadd.f32 %v264, %v556
      %v558 = vpop.f32.mrb[0].mxu0
      %559 = vdwg.mxu0
      %v560 = vxor.u32 %v434, 2147483648
      %v561 = vxor.u32 %v437, 2147483648
      %v562 = vxor.u32 %v442, 2147483648
      %v563 = vxor.u32 %v445, 2147483648
      %v564 = vxor.u32 %v450, 2147483648
      %v565 = vxor.u32 %v453, 2147483648
      %v566 = vxor.u32 %v458, 2147483648
      %v567 = vxor.u32 %v461, 2147483648
      %v568 = vxor.u32 %v466, 2147483648
      %v569 = vxor.u32 %v469, 2147483648
      %v570 = vxor.u32 %v474, 2147483648
      %v571 = vxor.u32 %v477, 2147483648
      %v572 = vxor.u32 %v482, 2147483648
      %v573 = vxor.u32 %v485, 2147483648
      %v574 = vxor.u32 %v490, 2147483648
      %v575 = vxor.u32 %v493, 2147483648
      %v576 = vxor.u32 %v498, 2147483648
      %v577 = vxor.u32 %v501, 2147483648
      %v578 = vxor.u32 %v506, 2147483648
      %v579 = vxor.u32 %v509, 2147483648
      %v580 = vxor.u32 %v514, 2147483648
      %v581 = vxor.u32 %v517, 2147483648
      %v582 = vxor.u32 %v522, 2147483648
      %v583 = vxor.u32 %v525, 2147483648
      %v584 = vxor.u32 %v530, 2147483648
      %v585 = vxor.u32 %v533, 2147483648
      %v586 = vxor.u32 %v538, 2147483648
      %v587 = vxor.u32 %v541, 2147483648
      %v588 = vxor.u32 %v546, 2147483648
      %v589 = vxor.u32 %v549, 2147483648
      %v590 = vxor.u32 %v554, 2147483648
      %v591 = vxor.u32 %v557, 2147483648
      %v592 = vmul.f32 %v560, 1.442695
      %v593 = vpow.pop %v592
      %v594 = vmul.f32 %v561, 1.442695
      %v595 = vpow.pop %v594
      %v596 = vmul.f32 %v562, 1.442695
      %v597 = vpow.pop %v596
      %v598 = vmul.f32 %v563, 1.442695
      %v599 = vpow.pop %v598
      %v600 = vmul.f32 %v564, 1.442695
      %v601 = vpow.pop %v600
      %v602 = vmul.f32 %v565, 1.442695
      %v603 = vpow.pop %v602
      %v604 = vmul.f32 %v566, 1.442695
      %v605 = vpow.pop %v604
      %v606 = vmul.f32 %v567, 1.442695
      %v607 = vpow.pop %v606
      %v608 = vmul.f32 %v568, 1.442695
      %v609 = vpow.pop %v608
      %v610 = vmul.f32 %v569, 1.442695
      %v611 = vpow.pop %v610
      %v612 = vmul.f32 %v570, 1.442695
      %v613 = vpow.pop %v612
      %v614 = vmul.f32 %v571, 1.442695
      %v615 = vpow.pop %v614
      %v616 = vmul.f32 %v572, 1.442695
      %v617 = vpow.pop %v616
      %v618 = vmul.f32 %v573, 1.442695
      %v619 = vpow.pop %v618
      %v620 = vmul.f32 %v574, 1.442695
      %v621 = vpow.pop %v620
      %v622 = vmul.f32 %v575, 1.442695
      %v623 = vpow.pop %v622
      %v624 = vmul.f32 %v576, 1.442695
      %v625 = vpow.pop %v624
      %v626 = vmul.f32 %v577, 1.442695
      %v627 = vpow.pop %v626
      %v628 = vmul.f32 %v578, 1.442695
      %v629 = vpow.pop %v628
      %v630 = vmul.f32 %v579, 1.442695
      %v631 = vpow.pop %v630
      %v632 = vmul.f32 %v580, 1.442695
      %v633 = vpow.pop %v632
      %v634 = vmul.f32 %v581, 1.442695
      %v635 = vpow.pop %v634
      %v636 = vmul.f32 %v582, 1.442695
      %v637 = vpow.pop %v636
      %v638 = vmul.f32 %v583, 1.442695
      %v639 = vpow.pop %v638
      %v640 = vmul.f32 %v584, 1.442695
      %v641 = vpow.pop %v640
      %v642 = vmul.f32 %v585, 1.442695
      %v643 = vpow.pop %v642
      %v644 = vmul.f32 %v586, 1.442695
      %v645 = vpow.pop %v644
      %v646 = vmul.f32 %v587, 1.442695
      %v647 = vpow.pop %v646
      %v648 = vmul.f32 %v588, 1.442695
      %v649 = vpow.pop %v648
      %v650 = vmul.f32 %v589, 1.442695
      %v651 = vpow.pop %v650
      %v652 = vmul.f32 %v590, 1.442695
      %v653 = vpow.pop %v652
      %v654 = vmul.f32 %v591, 1.442695
      %v655 = vpow.pop %v654
      %v656 = vadd.f32 %v593, 1.0
      %v657 = vadd.f32 %v595, 1.0
      %v658 = vadd.f32 %v597, 1.0
      %v659 = vadd.f32 %v599, 1.0
      %v660 = vadd.f32 %v601, 1.0
      %v661 = vadd.f32 %v603, 1.0
      %v662 = vadd.f32 %v605, 1.0
      %v663 = vadd.f32 %v607, 1.0
      %v664 = vadd.f32 %v609, 1.0
      %v665 = vadd.f32 %v611, 1.0
      %v666 = vadd.f32 %v613, 1.0
      %v667 = vadd.f32 %v615, 1.0
      %v668 = vadd.f32 %v617, 1.0
      %v669 = vadd.f32 %v619, 1.0
      %v670 = vadd.f32 %v621, 1.0
      %v671 = vadd.f32 %v623, 1.0
      %v672 = vadd.f32 %v625, 1.0
      %v673 = vadd.f32 %v627, 1.0
      %v674 = vadd.f32 %v629, 1.0
      %v675 = vadd.f32 %v631, 1.0
      %v676 = vadd.f32 %v633, 1.0
      %v677 = vadd.f32 %v635, 1.0
      %v678 = vadd.f32 %v637, 1.0
      %v679 = vadd.f32 %v639, 1.0
      %v680 = vadd.f32 %v641, 1.0
      %v681 = vadd.f32 %v643, 1.0
      %v682 = vadd.f32 %v645, 1.0
      %v683 = vadd.f32 %v647, 1.0
      %v684 = vadd.f32 %v649, 1.0
      %v685 = vadd.f32 %v651, 1.0
      %v686 = vadd.f32 %v653, 1.0
      %v687 = vadd.f32 %v655, 1.0
      %v688 = vrcp.pop %v656
      %v689 = vmul.f32 1.0, %v688
      %v690 = vrcp.pop %v657
      %v691 = vmul.f32 1.0, %v690
      %v692 = vrcp.pop %v658
      %v693 = vmul.f32 1.0, %v692
      %v694 = vrcp.pop %v659
      %v695 = vmul.f32 1.0, %v694
      %v696 = vrcp.pop %v660
      %v697 = vmul.f32 1.0, %v696
      %v698 = vrcp.pop %v661
      %v699 = vmul.f32 1.0, %v698
      %v700 = vrcp.pop %v662
      %v701 = vmul.f32 1.0, %v700
      %v702 = vrcp.pop %v663
      %v703 = vmul.f32 1.0, %v702
      %v704 = vrcp.pop %v664
      %v705 = vmul.f32 1.0, %v704
      %v706 = vrcp.pop %v665
      %v707 = vmul.f32 1.0, %v706
      %v708 = vrcp.pop %v666
      %v709 = vmul.f32 1.0, %v708
      %v710 = vrcp.pop %v667
      %v711 = vmul.f32 1.0, %v710
      %v712 = vrcp.pop %v668
      %v713 = vmul.f32 1.0, %v712
      %v714 = vrcp.pop %v669
      %v715 = vmul.f32 1.0, %v714
      %v716 = vrcp.pop %v670
      %v717 = vmul.f32 1.0, %v716
      %v718 = vrcp.pop %v671
      %v719 = vmul.f32 1.0, %v718
      %v720 = vrcp.pop %v672
      %v721 = vmul.f32 1.0, %v720
      %v722 = vrcp.pop %v673
      %v723 = vmul.f32 1.0, %v722
      %v724 = vrcp.pop %v674
      %v725 = vmul.f32 1.0, %v724
      %v726 = vrcp.pop %v675
      %v727 = vmul.f32 1.0, %v726
      %v728 = vrcp.pop %v676
      %v729 = vmul.f32 1.0, %v728
      %v730 = vrcp.pop %v677
      %v731 = vmul.f32 1.0, %v730
      %v732 = vrcp.pop %v678
      %v733 = vmul.f32 1.0, %v732
      %v734 = vrcp.pop %v679
      %v735 = vmul.f32 1.0, %v734
      %v736 = vrcp.pop %v680
      %v737 = vmul.f32 1.0, %v736
      %v738 = vrcp.pop %v681
      %v739 = vmul.f32 1.0, %v738
      %v740 = vrcp.pop %v682
      %v741 = vmul.f32 1.0, %v740
      %v742 = vrcp.pop %v683
      %v743 = vmul.f32 1.0, %v742
      %v744 = vrcp.pop %v684
      %v745 = vmul.f32 1.0, %v744
      %v746 = vrcp.pop %v685
      %v747 = vmul.f32 1.0, %v746
      %v748 = vrcp.pop %v686
      %v749 = vmul.f32 1.0, %v748
      %v750 = vrcp.pop %v687
      %v751 = vmul.f32 1.0, %v750
      %v752 = vmul.f32 %v434, %v689
      %v753 = vmul.f32 %v437, %v691
      %v754 = vmul.f32 %v442, %v693
      %v755 = vmul.f32 %v445, %v695
      %v756 = vmul.f32 %v450, %v697
      %v757 = vmul.f32 %v453, %v699
      %v758 = vmul.f32 %v458, %v701
      %v759 = vmul.f32 %v461, %v703
      %v760 = vmul.f32 %v466, %v705
      %v761 = vmul.f32 %v469, %v707
      %v762 = vmul.f32 %v474, %v709
      %v763 = vmul.f32 %v477, %v711
      %v764 = vmul.f32 %v482, %v713
      %v765 = vmul.f32 %v485, %v715
      %v766 = vmul.f32 %v490, %v717
      %v767 = vmul.f32 %v493, %v719
      %v768 = vmul.f32 %v498, %v721
      %v769 = vmul.f32 %v501, %v723
      %v770 = vmul.f32 %v506, %v725
      %v771 = vmul.f32 %v509, %v727
      %v772 = vmul.f32 %v514, %v729
      %v773 = vmul.f32 %v517, %v731
      %v774 = vmul.f32 %v522, %v733
      %v775 = vmul.f32 %v525, %v735
      %v776 = vmul.f32 %v530, %v737
      %v777 = vmul.f32 %v533, %v739
      %v778 = vmul.f32 %v538, %v741
      %v779 = vmul.f32 %v541, %v743
      %v780 = vmul.f32 %v546, %v745
      %v781 = vmul.f32 %v549, %v747
      %v782 = vmul.f32 %v554, %v749
      %v783 = vmul.f32 %v557, %v751
      %v784 = vlaneseq
      %v785 = vshrl.u32 %v784, 7
      %v786 = vadd.s32 %v785, 8
      %v787 = vadd.s32 %v785, 16
      %v788 = vadd.s32 %v785, 24
      %v789 = vadd.s32 %v785, 32
      %v790 = vadd.s32 %v785, 40
      %v791 = vadd.s32 %v785, 48
      %v792 = vadd.s32 %v785, 56
      %v793 = vadd.s32 %v785, 64
      %v794 = vadd.s32 %v785, 72
      %v795 = vadd.s32 %v785, 80
      %v796 = vadd.s32 %v785, 88
      %v797 = vadd.s32 %v785, 96
      %v798 = vadd.s32 %v785, 104
      %v799 = vadd.s32 %v785, 112
      %v800 = vadd.s32 %v785, 120
      %v801 = vadd.s32 %v785, 128
      %v802 = vadd.s32 %v785, 136
      %v803 = vadd.s32 %v785, 144
      %v804 = vadd.s32 %v785, 152
      %v805 = vadd.s32 %v785, 160
      %v806 = vadd.s32 %v785, 168
      %v807 = vadd.s32 %v785, 176
      %v808 = vadd.s32 %v785, 184
      %v809 = vadd.s32 %v785, 192
      %v810 = vadd.s32 %v785, 200
      %v811 = vadd.s32 %v785, 208
      %v812 = vadd.s32 %v785, 216
      %v813 = vadd.s32 %v785, 224
      %v814 = vadd.s32 %v785, 232
      %v815 = vadd.s32 %v785, 240
      %v816 = vadd.s32 %v785, 248
      %vm817 = vcmp.lt.s32.totalorder %v785, 0
      %v818 = vsub.s32 0, %v785
      %v819 = vsel %vm817, %v818, %v785
      %v820 = vshrl.u32 %v819, 4
      %v821 = vand.u32 %v819, 15
      %v822 = vsub.s32 0, %v821
      %v823 = vsel %vm817, %v822, %v821
      %vm824 = vcmp.lt.s32.totalorder %v786, 0
      %v825 = vsub.s32 0, %v786
      %v826 = vsel %vm824, %v825, %v786
      %v827 = vshrl.u32 %v826, 4
      %v828 = vand.u32 %v826, 15
      %v829 = vsub.s32 0, %v828
      %v830 = vsel %vm824, %v829, %v828
      %vm831 = vcmp.lt.s32.totalorder %v787, 0
      %v832 = vsub.s32 0, %v787
      %v833 = vsel %vm831, %v832, %v787
      %v834 = vshrl.u32 %v833, 4
      %v835 = vand.u32 %v833, 15
      %v836 = vsub.s32 0, %v835
      %v837 = vsel %vm831, %v836, %v835
      %vm838 = vcmp.lt.s32.totalorder %v788, 0
      %v839 = vsub.s32 0, %v788
      %v840 = vsel %vm838, %v839, %v788
      %v841 = vshrl.u32 %v840, 4
      %v842 = vand.u32 %v840, 15
      %v843 = vsub.s32 0, %v842
      %v844 = vsel %vm838, %v843, %v842
      %vm845 = vcmp.lt.s32.totalorder %v789, 0
      %v846 = vsub.s32 0, %v789
      %v847 = vsel %vm845, %v846, %v789
      %v848 = vshrl.u32 %v847, 4
      %v849 = vand.u32 %v847, 15
      %v850 = vsub.s32 0, %v849
      %v851 = vsel %vm845, %v850, %v849
      %vm852 = vcmp.lt.s32.totalorder %v790, 0
      %v853 = vsub.s32 0, %v790
      %v854 = vsel %vm852, %v853, %v790
      %v855 = vshrl.u32 %v854, 4
      %v856 = vand.u32 %v854, 15
      %v857 = vsub.s32 0, %v856
      %v858 = vsel %vm852, %v857, %v856
      %vm859 = vcmp.lt.s32.totalorder %v791, 0
      %v860 = vsub.s32 0, %v791
      %v861 = vsel %vm859, %v860, %v791
      %v862 = vshrl.u32 %v861, 4
      %v863 = vand.u32 %v861, 15
      %v864 = vsub.s32 0, %v863
      %v865 = vsel %vm859, %v864, %v863
      %vm866 = vcmp.lt.s32.totalorder %v792, 0
      %v867 = vsub.s32 0, %v792
      %v868 = vsel %vm866, %v867, %v792
      %v869 = vshrl.u32 %v868, 4
      %v870 = vand.u32 %v868, 15
      %v871 = vsub.s32 0, %v870
      %v872 = vsel %vm866, %v871, %v870
      %vm873 = vcmp.lt.s32.totalorder %v793, 0
      %v874 = vsub.s32 0, %v793
      %v875 = vsel %vm873, %v874, %v793
      %v876 = vshrl.u32 %v875, 4
      %v877 = vand.u32 %v875, 15
      %v878 = vsub.s32 0, %v877
      %v879 = vsel %vm873, %v878, %v877
      %vm880 = vcmp.lt.s32.totalorder %v794, 0
      %v881 = vsub.s32 0, %v794
      %v882 = vsel %vm880, %v881, %v794
      %v883 = vshrl.u32 %v882, 4
      %v884 = vand.u32 %v882, 15
      %v885 = vsub.s32 0, %v884
      %v886 = vsel %vm880, %v885, %v884
      %vm887 = vcmp.lt.s32.totalorder %v795, 0
      %v888 = vsub.s32 0, %v795
      %v889 = vsel %vm887, %v888, %v795
      %v890 = vshrl.u32 %v889, 4
      %v891 = vand.u32 %v889, 15
      %v892 = vsub.s32 0, %v891
      %v893 = vsel %vm887, %v892, %v891
      %vm894 = vcmp.lt.s32.totalorder %v796, 0
      %v895 = vsub.s32 0, %v796
      %v896 = vsel %vm894, %v895, %v796
      %v897 = vshrl.u32 %v896, 4
      %v898 = vand.u32 %v896, 15
      %v899 = vsub.s32 0, %v898
      %v900 = vsel %vm894, %v899, %v898
      %vm901 = vcmp.lt.s32.totalorder %v797, 0
      %v902 = vsub.s32 0, %v797
      %v903 = vsel %vm901, %v902, %v797
      %v904 = vshrl.u32 %v903, 4
      %v905 = vand.u32 %v903, 15
      %v906 = vsub.s32 0, %v905
      %v907 = vsel %vm901, %v906, %v905
      %vm908 = vcmp.lt.s32.totalorder %v798, 0
      %v909 = vsub.s32 0, %v798
      %v910 = vsel %vm908, %v909, %v798
      %v911 = vshrl.u32 %v910, 4
      %v912 = vand.u32 %v910, 15
      %v913 = vsub.s32 0, %v912
      %v914 = vsel %vm908, %v913, %v912
      %vm915 = vcmp.lt.s32.totalorder %v799, 0
      %v916 = vsub.s32 0, %v799
      %v917 = vsel %vm915, %v916, %v799
      %v918 = vshrl.u32 %v917, 4
      %v919 = vand.u32 %v917, 15
      %v920 = vsub.s32 0, %v919
      %v921 = vsel %vm915, %v920, %v919
      %vm922 = vcmp.lt.s32.totalorder %v800, 0
      %v923 = vsub.s32 0, %v800
      %v924 = vsel %vm922, %v923, %v800
      %v925 = vshrl.u32 %v924, 4
      %v926 = vand.u32 %v924, 15
      %v927 = vsub.s32 0, %v926
      %v928 = vsel %vm922, %v927, %v926
      %vm929 = vcmp.lt.s32.totalorder %v801, 0
      %v930 = vsub.s32 0, %v801
      %v931 = vsel %vm929, %v930, %v801
      %v932 = vshrl.u32 %v931, 4
      %v933 = vand.u32 %v931, 15
      %v934 = vsub.s32 0, %v933
      %v935 = vsel %vm929, %v934, %v933
      %vm936 = vcmp.lt.s32.totalorder %v802, 0
      %v937 = vsub.s32 0, %v802
      %v938 = vsel %vm936, %v937, %v802
      %v939 = vshrl.u32 %v938, 4
      %v940 = vand.u32 %v938, 15
      %v941 = vsub.s32 0, %v940
      %v942 = vsel %vm936, %v941, %v940
      %vm943 = vcmp.lt.s32.totalorder %v803, 0
      %v944 = vsub.s32 0, %v803
      %v945 = vsel %vm943, %v944, %v803
      %v946 = vshrl.u32 %v945, 4
      %v947 = vand.u32 %v945, 15
      %v948 = vsub.s32 0, %v947
      %v949 = vsel %vm943, %v948, %v947
      %vm950 = vcmp.lt.s32.totalorder %v804, 0
      %v951 = vsub.s32 0, %v804
      %v952 = vsel %vm950, %v951, %v804
      %v953 = vshrl.u32 %v952, 4
      %v954 = vand.u32 %v952, 15
      %v955 = vsub.s32 0, %v954
      %v956 = vsel %vm950, %v955, %v954
      %vm957 = vcmp.lt.s32.totalorder %v805, 0
      %v958 = vsub.s32 0, %v805
      %v959 = vsel %vm957, %v958, %v805
      %v960 = vshrl.u32 %v959, 4
      %v961 = vand.u32 %v959, 15
      %v962 = vsub.s32 0, %v961
      %v963 = vsel %vm957, %v962, %v961
      %vm964 = vcmp.lt.s32.totalorder %v806, 0
      %v965 = vsub.s32 0, %v806
      %v966 = vsel %vm964, %v965, %v806
      %v967 = vshrl.u32 %v966, 4
      %v968 = vand.u32 %v966, 15
      %v969 = vsub.s32 0, %v968
      %v970 = vsel %vm964, %v969, %v968
      %vm971 = vcmp.lt.s32.totalorder %v807, 0
      %v972 = vsub.s32 0, %v807
      %v973 = vsel %vm971, %v972, %v807
      %v974 = vshrl.u32 %v973, 4
      %v975 = vand.u32 %v973, 15
      %v976 = vsub.s32 0, %v975
      %v977 = vsel %vm971, %v976, %v975
      %vm978 = vcmp.lt.s32.totalorder %v808, 0
      %v979 = vsub.s32 0, %v808
      %v980 = vsel %vm978, %v979, %v808
      %v981 = vshrl.u32 %v980, 4
      %v982 = vand.u32 %v980, 15
      %v983 = vsub.s32 0, %v982
      %v984 = vsel %vm978, %v983, %v982
      %vm985 = vcmp.lt.s32.totalorder %v809, 0
      %v986 = vsub.s32 0, %v809
      %v987 = vsel %vm985, %v986, %v809
      %v988 = vshrl.u32 %v987, 4
      %v989 = vand.u32 %v987, 15
      %v990 = vsub.s32 0, %v989
      %v991 = vsel %vm985, %v990, %v989
      %vm992 = vcmp.lt.s32.totalorder %v810, 0
      %v993 = vsub.s32 0, %v810
      %v994 = vsel %vm992, %v993, %v810
      %v995 = vshrl.u32 %v994, 4
      %v996 = vand.u32 %v994, 15
      %v997 = vsub.s32 0, %v996
      %v998 = vsel %vm992, %v997, %v996
      %vm999 = vcmp.lt.s32.totalorder %v811, 0
      %v1000 = vsub.s32 0, %v811
      %v1001 = vsel %vm999, %v1000, %v811
      %v1002 = vshrl.u32 %v1001, 4
      %v1003 = vand.u32 %v1001, 15
      %v1004 = vsub.s32 0, %v1003
      %v1005 = vsel %vm999, %v1004, %v1003
      %vm1006 = vcmp.lt.s32.totalorder %v812, 0
      %v1007 = vsub.s32 0, %v812
      %v1008 = vsel %vm1006, %v1007, %v812
      %v1009 = vshrl.u32 %v1008, 4
      %v1010 = vand.u32 %v1008, 15
      %v1011 = vsub.s32 0, %v1010
      %v1012 = vsel %vm1006, %v1011, %v1010
      %vm1013 = vcmp.lt.s32.totalorder %v813, 0
      %v1014 = vsub.s32 0, %v813
      %v1015 = vsel %vm1013, %v1014, %v813
      %v1016 = vshrl.u32 %v1015, 4
      %v1017 = vand.u32 %v1015, 15
      %v1018 = vsub.s32 0, %v1017
      %v1019 = vsel %vm1013, %v1018, %v1017
      %vm1020 = vcmp.lt.s32.totalorder %v814, 0
      %v1021 = vsub.s32 0, %v814
      %v1022 = vsel %vm1020, %v1021, %v814
      %v1023 = vshrl.u32 %v1022, 4
      %v1024 = vand.u32 %v1022, 15
      %v1025 = vsub.s32 0, %v1024
      %v1026 = vsel %vm1020, %v1025, %v1024
      %vm1027 = vcmp.lt.s32.totalorder %v815, 0
      %v1028 = vsub.s32 0, %v815
      %v1029 = vsel %vm1027, %v1028, %v815
      %v1030 = vshrl.u32 %v1029, 4
      %v1031 = vand.u32 %v1029, 15
      %v1032 = vsub.s32 0, %v1031
      %v1033 = vsel %vm1027, %v1032, %v1031
      %vm1034 = vcmp.lt.s32.totalorder %v816, 0
      %v1035 = vsub.s32 0, %v816
      %v1036 = vsel %vm1034, %v1035, %v816
      %v1037 = vshrl.u32 %v1036, 4
      %v1038 = vand.u32 %v1036, 15
      %v1039 = vsub.s32 0, %v1038
      %v1040 = vsel %vm1034, %v1039, %v1038
      %vm1041 = vcmp.ne.s32.totalorder %v823, 0
      %vm1042 = vcmp.ne.s32.totalorder %v830, 0
      %vm1043 = vcmp.ne.s32.totalorder %v837, 0
      %vm1044 = vcmp.ne.s32.totalorder %v844, 0
      %vm1045 = vcmp.ne.s32.totalorder %v851, 0
      %vm1046 = vcmp.ne.s32.totalorder %v858, 0
      %vm1047 = vcmp.ne.s32.totalorder %v865, 0
      %vm1048 = vcmp.ne.s32.totalorder %v872, 0
      %vm1049 = vcmp.ne.s32.totalorder %v879, 0
      %vm1050 = vcmp.ne.s32.totalorder %v886, 0
      %vm1051 = vcmp.ne.s32.totalorder %v893, 0
      %vm1052 = vcmp.ne.s32.totalorder %v900, 0
      %vm1053 = vcmp.ne.s32.totalorder %v907, 0
      %vm1054 = vcmp.ne.s32.totalorder %v914, 0
      %vm1055 = vcmp.ne.s32.totalorder %v921, 0
      %vm1056 = vcmp.ne.s32.totalorder %v928, 0
      %vm1057 = vcmp.ne.s32.totalorder %v935, 0
      %vm1058 = vcmp.ne.s32.totalorder %v942, 0
      %vm1059 = vcmp.ne.s32.totalorder %v949, 0
      %vm1060 = vcmp.ne.s32.totalorder %v956, 0
      %vm1061 = vcmp.ne.s32.totalorder %v963, 0
      %vm1062 = vcmp.ne.s32.totalorder %v970, 0
      %vm1063 = vcmp.ne.s32.totalorder %v977, 0
      %vm1064 = vcmp.ne.s32.totalorder %v984, 0
      %vm1065 = vcmp.ne.s32.totalorder %v991, 0
      %vm1066 = vcmp.ne.s32.totalorder %v998, 0
      %vm1067 = vcmp.ne.s32.totalorder %v1005, 0
      %vm1068 = vcmp.ne.s32.totalorder %v1012, 0
      %vm1069 = vcmp.ne.s32.totalorder %v1019, 0
      %vm1070 = vcmp.ne.s32.totalorder %v1026, 0
      %vm1071 = vcmp.ne.s32.totalorder %v1033, 0
      %vm1072 = vcmp.ne.s32.totalorder %v1040, 0
      %vm1073 = vcmp.lt.s32.totalorder %v823, 0
      %vm1074 = vcmp.lt.s32.totalorder %v830, 0
      %vm1075 = vcmp.lt.s32.totalorder %v837, 0
      %vm1076 = vcmp.lt.s32.totalorder %v844, 0
      %vm1077 = vcmp.lt.s32.totalorder %v851, 0
      %vm1078 = vcmp.lt.s32.totalorder %v858, 0
      %vm1079 = vcmp.lt.s32.totalorder %v865, 0
      %vm1080 = vcmp.lt.s32.totalorder %v872, 0
      %vm1081 = vcmp.lt.s32.totalorder %v879, 0
      %vm1082 = vcmp.lt.s32.totalorder %v886, 0
      %vm1083 = vcmp.lt.s32.totalorder %v893, 0
      %vm1084 = vcmp.lt.s32.totalorder %v900, 0
      %vm1085 = vcmp.lt.s32.totalorder %v907, 0
      %vm1086 = vcmp.lt.s32.totalorder %v914, 0
      %vm1087 = vcmp.lt.s32.totalorder %v921, 0
      %vm1088 = vcmp.lt.s32.totalorder %v928, 0
      %vm1089 = vcmp.lt.s32.totalorder %v935, 0
      %vm1090 = vcmp.lt.s32.totalorder %v942, 0
      %vm1091 = vcmp.lt.s32.totalorder %v949, 0
      %vm1092 = vcmp.lt.s32.totalorder %v956, 0
      %vm1093 = vcmp.lt.s32.totalorder %v963, 0
      %vm1094 = vcmp.lt.s32.totalorder %v970, 0
      %vm1095 = vcmp.lt.s32.totalorder %v977, 0
      %vm1096 = vcmp.lt.s32.totalorder %v984, 0
      %vm1097 = vcmp.lt.s32.totalorder %v991, 0
      %vm1098 = vcmp.lt.s32.totalorder %v998, 0
      %vm1099 = vcmp.lt.s32.totalorder %v1005, 0
      %vm1100 = vcmp.lt.s32.totalorder %v1012, 0
      %vm1101 = vcmp.lt.s32.totalorder %v1019, 0
      %vm1102 = vcmp.lt.s32.totalorder %v1026, 0
      %vm1103 = vcmp.lt.s32.totalorder %v1033, 0
      %vm1104 = vcmp.lt.s32.totalorder %v1040, 0
      %vm1105 = vmand %vm1073, %vm1041
      %vm1106 = vmand %vm1074, %vm1042
      %vm1107 = vmand %vm1075, %vm1043
      %vm1108 = vmand %vm1076, %vm1044
      %vm1109 = vmand %vm1077, %vm1045
      %vm1110 = vmand %vm1078, %vm1046
      %vm1111 = vmand %vm1079, %vm1047
      %vm1112 = vmand %vm1080, %vm1048
      %vm1113 = vmand %vm1081, %vm1049
      %vm1114 = vmand %vm1082, %vm1050
      %vm1115 = vmand %vm1083, %vm1051
      %vm1116 = vmand %vm1084, %vm1052
      %vm1117 = vmand %vm1085, %vm1053
      %vm1118 = vmand %vm1086, %vm1054
      %vm1119 = vmand %vm1087, %vm1055
      %vm1120 = vmand %vm1088, %vm1056
      %vm1121 = vmand %vm1089, %vm1057
      %vm1122 = vmand %vm1090, %vm1058
      %vm1123 = vmand %vm1091, %vm1059
      %vm1124 = vmand %vm1092, %vm1060
      %vm1125 = vmand %vm1093, %vm1061
      %vm1126 = vmand %vm1094, %vm1062
      %vm1127 = vmand %vm1095, %vm1063
      %vm1128 = vmand %vm1096, %vm1064
      %vm1129 = vmand %vm1097, %vm1065
      %vm1130 = vmand %vm1098, %vm1066
      %vm1131 = vmand %vm1099, %vm1067
      %vm1132 = vmand %vm1100, %vm1068
      %vm1133 = vmand %vm1101, %vm1069
      %vm1134 = vmand %vm1102, %vm1070
      %vm1135 = vmand %vm1103, %vm1071
      %vm1136 = vmand %vm1104, %vm1072
      %v1137 = vadd.s32 %v823, 16
      %v1138 = vadd.s32 %v830, 16
      %v1139 = vadd.s32 %v837, 16
      %v1140 = vadd.s32 %v844, 16
      %v1141 = vadd.s32 %v851, 16
      %v1142 = vadd.s32 %v858, 16
      %v1143 = vadd.s32 %v865, 16
      %v1144 = vadd.s32 %v872, 16
      %v1145 = vadd.s32 %v879, 16
      %v1146 = vadd.s32 %v886, 16
      %v1147 = vadd.s32 %v893, 16
      %v1148 = vadd.s32 %v900, 16
      %v1149 = vadd.s32 %v907, 16
      %v1150 = vadd.s32 %v914, 16
      %v1151 = vadd.s32 %v921, 16
      %v1152 = vadd.s32 %v928, 16
      %v1153 = vadd.s32 %v935, 16
      %v1154 = vadd.s32 %v942, 16
      %v1155 = vadd.s32 %v949, 16
      %v1156 = vadd.s32 %v956, 16
      %v1157 = vadd.s32 %v963, 16
      %v1158 = vadd.s32 %v970, 16
      %v1159 = vadd.s32 %v977, 16
      %v1160 = vadd.s32 %v984, 16
      %v1161 = vadd.s32 %v991, 16
      %v1162 = vadd.s32 %v998, 16
      %v1163 = vadd.s32 %v1005, 16
      %v1164 = vadd.s32 %v1012, 16
      %v1165 = vadd.s32 %v1019, 16
      %v1166 = vadd.s32 %v1026, 16
      %v1167 = vadd.s32 %v1033, 16
      %v1168 = vadd.s32 %v1040, 16
      %v1169 = vsel %vm1105, %v1137, %v823
      %v1170 = vsel %vm1106, %v1138, %v830
      %v1171 = vsel %vm1107, %v1139, %v837
      %v1172 = vsel %vm1108, %v1140, %v844
      %v1173 = vsel %vm1109, %v1141, %v851
      %v1174 = vsel %vm1110, %v1142, %v858
      %v1175 = vsel %vm1111, %v1143, %v865
      %v1176 = vsel %vm1112, %v1144, %v872
      %v1177 = vsel %vm1113, %v1145, %v879
      %v1178 = vsel %vm1114, %v1146, %v886
      %v1179 = vsel %vm1115, %v1147, %v893
      %v1180 = vsel %vm1116, %v1148, %v900
      %v1181 = vsel %vm1117, %v1149, %v907
      %v1182 = vsel %vm1118, %v1150, %v914
      %v1183 = vsel %vm1119, %v1151, %v921
      %v1184 = vsel %vm1120, %v1152, %v928
      %v1185 = vsel %vm1121, %v1153, %v935
      %v1186 = vsel %vm1122, %v1154, %v942
      %v1187 = vsel %vm1123, %v1155, %v949
      %v1188 = vsel %vm1124, %v1156, %v956
      %v1189 = vsel %vm1125, %v1157, %v963
      %v1190 = vsel %vm1126, %v1158, %v970
      %v1191 = vsel %vm1127, %v1159, %v977
      %v1192 = vsel %vm1128, %v1160, %v984
      %v1193 = vsel %vm1129, %v1161, %v991
      %v1194 = vsel %vm1130, %v1162, %v998
      %v1195 = vsel %vm1131, %v1163, %v1005
      %v1196 = vsel %vm1132, %v1164, %v1012
      %v1197 = vsel %vm1133, %v1165, %v1019
      %v1198 = vsel %vm1134, %v1166, %v1026
      %v1199 = vsel %vm1135, %v1167, %v1033
      %v1200 = vsel %vm1136, %v1168, %v1040
      %v1201 = vpack.c.bf16 %v753, %v752
      %v1202 = vpack.c.bf16 %v755, %v754
      %v1203 = vpack.c.bf16 %v757, %v756
      %v1204 = vpack.c.bf16 %v759, %v758
      %v1205 = vpack.c.bf16 %v761, %v760
      %v1206 = vpack.c.bf16 %v763, %v762
      %v1207 = vpack.c.bf16 %v765, %v764
      %v1208 = vpack.c.bf16 %v767, %v766
      %v1209 = vpack.c.bf16 %v769, %v768
      %v1210 = vpack.c.bf16 %v771, %v770
      %v1211 = vpack.c.bf16 %v773, %v772
      %v1212 = vpack.c.bf16 %v775, %v774
      %v1213 = vpack.c.bf16 %v777, %v776
      %v1214 = vpack.c.bf16 %v779, %v778
      %v1215 = vpack.c.bf16 %v781, %v780
      %v1216 = vpack.c.bf16 %v783, %v782
      %vm1217 = vcmp.ne.s32.totalorder %v1169, 0
      %vm1218 = vcmp.ne.s32.totalorder %v1170, 0
      %vm1219 = vcmp.ne.s32.totalorder %v1171, 0
      %vm1220 = vcmp.ne.s32.totalorder %v1172, 0
      %vm1221 = vcmp.ne.s32.totalorder %v1173, 0
      %vm1222 = vcmp.ne.s32.totalorder %v1174, 0
      %vm1223 = vcmp.ne.s32.totalorder %v1175, 0
      %vm1224 = vcmp.ne.s32.totalorder %v1176, 0
      %vm1225 = vcmp.ne.s32.totalorder %v1177, 0
      %vm1226 = vcmp.ne.s32.totalorder %v1178, 0
      %vm1227 = vcmp.ne.s32.totalorder %v1179, 0
      %vm1228 = vcmp.ne.s32.totalorder %v1180, 0
      %vm1229 = vcmp.ne.s32.totalorder %v1181, 0
      %vm1230 = vcmp.ne.s32.totalorder %v1182, 0
      %vm1231 = vcmp.ne.s32.totalorder %v1183, 0
      %vm1232 = vcmp.ne.s32.totalorder %v1184, 0
      %vm1233 = vcmp.ne.s32.totalorder %v1185, 0
      %vm1234 = vcmp.ne.s32.totalorder %v1186, 0
      %vm1235 = vcmp.ne.s32.totalorder %v1187, 0
      %vm1236 = vcmp.ne.s32.totalorder %v1188, 0
      %vm1237 = vcmp.ne.s32.totalorder %v1189, 0
      %vm1238 = vcmp.ne.s32.totalorder %v1190, 0
      %vm1239 = vcmp.ne.s32.totalorder %v1191, 0
      %vm1240 = vcmp.ne.s32.totalorder %v1192, 0
      %vm1241 = vcmp.ne.s32.totalorder %v1193, 0
      %vm1242 = vcmp.ne.s32.totalorder %v1194, 0
      %vm1243 = vcmp.ne.s32.totalorder %v1195, 0
      %vm1244 = vcmp.ne.s32.totalorder %v1196, 0
      %vm1245 = vcmp.ne.s32.totalorder %v1197, 0
      %vm1246 = vcmp.ne.s32.totalorder %v1198, 0
      %vm1247 = vcmp.ne.s32.totalorder %v1199, 0
      %vm1248 = vcmp.ne.s32.totalorder %v1200, 0
      %v1249 = vrot.slane %v752, 7
      %v1250 = vrot.slane %v753, 7
      %v1251 = vrot.slane %v754, 7
      %v1252 = vrot.slane %v755, 7
      %v1253 = vrot.slane %v756, 7
      %v1254 = vrot.slane %v757, 7
      %v1255 = vrot.slane %v758, 7
      %v1256 = vrot.slane %v759, 7
      %v1257 = vrot.slane %v760, 7
      %v1258 = vrot.slane %v761, 7
      %v1259 = vrot.slane %v762, 7
      %v1260 = vrot.slane %v763, 7
      %v1261 = vrot.slane %v764, 7
      %v1262 = vrot.slane %v765, 7
      %v1263 = vrot.slane %v766, 7
      %v1264 = vrot.slane %v767, 7
      %v1265 = vrot.slane %v768, 7
      %v1266 = vrot.slane %v769, 7
      %v1267 = vrot.slane %v770, 7
      %v1268 = vrot.slane %v771, 7
      %v1269 = vrot.slane %v772, 7
      %v1270 = vrot.slane %v773, 7
      %v1271 = vrot.slane %v774, 7
      %v1272 = vrot.slane %v775, 7
      %v1273 = vrot.slane %v776, 7
      %v1274 = vrot.slane %v777, 7
      %v1275 = vrot.slane %v778, 7
      %v1276 = vrot.slane %v779, 7
      %v1277 = vrot.slane %v780, 7
      %v1278 = vrot.slane %v781, 7
      %v1279 = vrot.slane %v782, 7
      %v1280 = vrot.slane %v783, 7
      %vm1281 = vcmp.lt.s32.totalorder %v785, 1
      %v1282 = vsel %vm1281, %v1279, %v1280
      %v1283 = vsel %vm1281, %v1278, %v1279
      %v1284 = vsel %vm1281, %v1277, %v1278
      %v1285 = vsel %vm1281, %v1276, %v1277
      %v1286 = vsel %vm1281, %v1275, %v1276
      %v1287 = vsel %vm1281, %v1274, %v1275
      %v1288 = vsel %vm1281, %v1273, %v1274
      %v1289 = vsel %vm1281, %v1272, %v1273
      %v1290 = vsel %vm1281, %v1271, %v1272
      %v1291 = vsel %vm1281, %v1270, %v1271
      %v1292 = vsel %vm1281, %v1269, %v1270
      %v1293 = vsel %vm1281, %v1268, %v1269
      %v1294 = vsel %vm1281, %v1267, %v1268
      %v1295 = vsel %vm1281, %v1266, %v1267
      %v1296 = vsel %vm1281, %v1265, %v1266
      %v1297 = vsel %vm1281, %v1264, %v1265
      %v1298 = vsel %vm1281, %v1263, %v1264
      %v1299 = vsel %vm1281, %v1262, %v1263
      %v1300 = vsel %vm1281, %v1261, %v1262
      %v1301 = vsel %vm1281, %v1260, %v1261
      %v1302 = vsel %vm1281, %v1259, %v1260
      %v1303 = vsel %vm1281, %v1258, %v1259
      %v1304 = vsel %vm1281, %v1257, %v1258
      %v1305 = vsel %vm1281, %v1256, %v1257
      %v1306 = vsel %vm1281, %v1255, %v1256
      %v1307 = vsel %vm1281, %v1254, %v1255
      %v1308 = vsel %vm1281, %v1253, %v1254
      %v1309 = vsel %vm1281, %v1252, %v1253
      %v1310 = vsel %vm1281, %v1251, %v1252
      %v1311 = vsel %vm1281, %v1250, %v1251
      %v1312 = vsel %vm1281, %v1249, %v1250
      %v1313 = vsel %vm1281, %v1280, %v1249
      %v1314 = vsel %vm1217, 1, 0
      %v1315 = vsel %vm1218, 1, 0
      %v1316 = vsel %vm1219, 1, 0
      %v1317 = vsel %vm1220, 1, 0
      %v1318 = vsel %vm1221, 1, 0
      %v1319 = vsel %vm1222, 1, 0
      %v1320 = vsel %vm1223, 1, 0
      %v1321 = vsel %vm1224, 1, 0
      %v1322 = vsel %vm1225, 1, 0
      %v1323 = vsel %vm1226, 1, 0
      %v1324 = vsel %vm1227, 1, 0
      %v1325 = vsel %vm1228, 1, 0
      %v1326 = vsel %vm1229, 1, 0
      %v1327 = vsel %vm1230, 1, 0
      %v1328 = vsel %vm1231, 1, 0
      %v1329 = vsel %vm1232, 1, 0
      %v1330 = vsel %vm1233, 1, 0
      %v1331 = vsel %vm1234, 1, 0
      %v1332 = vsel %vm1235, 1, 0
      %v1333 = vsel %vm1236, 1, 0
      %v1334 = vsel %vm1237, 1, 0
      %v1335 = vsel %vm1238, 1, 0
      %v1336 = vsel %vm1239, 1, 0
      %v1337 = vsel %vm1240, 1, 0
      %v1338 = vsel %vm1241, 1, 0
      %v1339 = vsel %vm1242, 1, 0
      %v1340 = vsel %vm1243, 1, 0
      %v1341 = vsel %vm1244, 1, 0
      %v1342 = vsel %vm1245, 1, 0
      %v1343 = vsel %vm1246, 1, 0
      %v1344 = vsel %vm1247, 1, 0
      %v1345 = vsel %vm1248, 1, 0
      %vm1346 = vcmp.eq.s32.totalorder %v1314, 1
      %vm1347 = vcmp.eq.s32.totalorder %v1315, 1
      %vm1348 = vcmp.eq.s32.totalorder %v1316, 1
      %vm1349 = vcmp.eq.s32.totalorder %v1317, 1
      %vm1350 = vcmp.eq.s32.totalorder %v1318, 1
      %vm1351 = vcmp.eq.s32.totalorder %v1319, 1
      %vm1352 = vcmp.eq.s32.totalorder %v1320, 1
      %vm1353 = vcmp.eq.s32.totalorder %v1321, 1
      %vm1354 = vcmp.eq.s32.totalorder %v1322, 1
      %vm1355 = vcmp.eq.s32.totalorder %v1323, 1
      %vm1356 = vcmp.eq.s32.totalorder %v1324, 1
      %vm1357 = vcmp.eq.s32.totalorder %v1325, 1
      %vm1358 = vcmp.eq.s32.totalorder %v1326, 1
      %vm1359 = vcmp.eq.s32.totalorder %v1327, 1
      %vm1360 = vcmp.eq.s32.totalorder %v1328, 1
      %vm1361 = vcmp.eq.s32.totalorder %v1329, 1
      %vm1362 = vcmp.eq.s32.totalorder %v1330, 1
      %vm1363 = vcmp.eq.s32.totalorder %v1331, 1
      %vm1364 = vcmp.eq.s32.totalorder %v1332, 1
      %vm1365 = vcmp.eq.s32.totalorder %v1333, 1
      %vm1366 = vcmp.eq.s32.totalorder %v1334, 1
      %vm1367 = vcmp.eq.s32.totalorder %v1335, 1
      %vm1368 = vcmp.eq.s32.totalorder %v1336, 1
      %vm1369 = vcmp.eq.s32.totalorder %v1337, 1
      %vm1370 = vcmp.eq.s32.totalorder %v1338, 1
      %vm1371 = vcmp.eq.s32.totalorder %v1339, 1
      %vm1372 = vcmp.eq.s32.totalorder %v1340, 1
      %vm1373 = vcmp.eq.s32.totalorder %v1341, 1
      %vm1374 = vcmp.eq.s32.totalorder %v1342, 1
      %vm1375 = vcmp.eq.s32.totalorder %v1343, 1
      %vm1376 = vcmp.eq.s32.totalorder %v1344, 1
      %vm1377 = vcmp.eq.s32.totalorder %v1345, 1
      %v1378 = vsel %vm1346, %v1313, 0.0
      %v1379 = vsel %vm1347, %v1312, 0.0
      %v1380 = vsel %vm1348, %v1311, 0.0
      %v1381 = vsel %vm1349, %v1310, 0.0
      %v1382 = vsel %vm1350, %v1309, 0.0
      %v1383 = vsel %vm1351, %v1308, 0.0
      %v1384 = vsel %vm1352, %v1307, 0.0
      %v1385 = vsel %vm1353, %v1306, 0.0
      %v1386 = vsel %vm1354, %v1305, 0.0
      %v1387 = vsel %vm1355, %v1304, 0.0
      %v1388 = vsel %vm1356, %v1303, 0.0
      %v1389 = vsel %vm1357, %v1302, 0.0
      %v1390 = vsel %vm1358, %v1301, 0.0
      %v1391 = vsel %vm1359, %v1300, 0.0
      %v1392 = vsel %vm1360, %v1299, 0.0
      %v1393 = vsel %vm1361, %v1298, 0.0
      %v1394 = vsel %vm1362, %v1297, 0.0
      %v1395 = vsel %vm1363, %v1296, 0.0
      %v1396 = vsel %vm1364, %v1295, 0.0
      %v1397 = vsel %vm1365, %v1294, 0.0
      %v1398 = vsel %vm1366, %v1293, 0.0
      %v1399 = vsel %vm1367, %v1292, 0.0
      %v1400 = vsel %vm1368, %v1291, 0.0
      %v1401 = vsel %vm1369, %v1290, 0.0
      %v1402 = vsel %vm1370, %v1289, 0.0
      %v1403 = vsel %vm1371, %v1288, 0.0
      %v1404 = vsel %vm1372, %v1287, 0.0
      %v1405 = vsel %vm1373, %v1286, 0.0
      %v1406 = vsel %vm1374, %v1285, 0.0
      %v1407 = vsel %vm1375, %v1284, 0.0
      %v1408 = vsel %vm1376, %v1283, 0.0
      %v1409 = vsel %vm1377, %v1282, 0.0
      %v1410 = vpack.c.bf16 %v1379, %v1378
      %v1411 = vpack.c.bf16 %v1381, %v1380
      %v1412 = vpack.c.bf16 %v1383, %v1382
      %v1413 = vpack.c.bf16 %v1385, %v1384
      %v1414 = vpack.c.bf16 %v1387, %v1386
      %v1415 = vpack.c.bf16 %v1389, %v1388
      %v1416 = vpack.c.bf16 %v1391, %v1390
      %v1417 = vpack.c.bf16 %v1393, %v1392
      %v1418 = vpack.c.bf16 %v1395, %v1394
      %v1419 = vpack.c.bf16 %v1397, %v1396
      %v1420 = vpack.c.bf16 %v1399, %v1398
      %v1421 = vpack.c.bf16 %v1401, %v1400
      %v1422 = vpack.c.bf16 %v1403, %v1402
      %v1423 = vpack.c.bf16 %v1405, %v1404
      %v1424 = vpack.c.bf16 %v1407, %v1406
      %v1425 = vpack.c.bf16 %v1409, %v1408
      %vm1426 = vcmp.ne.s32.totalorder %v1169, 15
      %vm1427 = vcmp.ne.s32.totalorder %v1170, 15
      %vm1428 = vcmp.ne.s32.totalorder %v1171, 15
      %vm1429 = vcmp.ne.s32.totalorder %v1172, 15
      %vm1430 = vcmp.ne.s32.totalorder %v1173, 15
      %vm1431 = vcmp.ne.s32.totalorder %v1174, 15
      %vm1432 = vcmp.ne.s32.totalorder %v1175, 15
      %vm1433 = vcmp.ne.s32.totalorder %v1176, 15
      %vm1434 = vcmp.ne.s32.totalorder %v1177, 15
      %vm1435 = vcmp.ne.s32.totalorder %v1178, 15
      %vm1436 = vcmp.ne.s32.totalorder %v1179, 15
      %vm1437 = vcmp.ne.s32.totalorder %v1180, 15
      %vm1438 = vcmp.ne.s32.totalorder %v1181, 15
      %vm1439 = vcmp.ne.s32.totalorder %v1182, 15
      %vm1440 = vcmp.ne.s32.totalorder %v1183, 15
      %vm1441 = vcmp.ne.s32.totalorder %v1184, 15
      %vm1442 = vcmp.ne.s32.totalorder %v1185, 15
      %vm1443 = vcmp.ne.s32.totalorder %v1186, 15
      %vm1444 = vcmp.ne.s32.totalorder %v1187, 15
      %vm1445 = vcmp.ne.s32.totalorder %v1188, 15
      %vm1446 = vcmp.ne.s32.totalorder %v1189, 15
      %vm1447 = vcmp.ne.s32.totalorder %v1190, 15
      %vm1448 = vcmp.ne.s32.totalorder %v1191, 15
      %vm1449 = vcmp.ne.s32.totalorder %v1192, 15
      %vm1450 = vcmp.ne.s32.totalorder %v1193, 15
      %vm1451 = vcmp.ne.s32.totalorder %v1194, 15
      %vm1452 = vcmp.ne.s32.totalorder %v1195, 15
      %vm1453 = vcmp.ne.s32.totalorder %v1196, 15
      %vm1454 = vcmp.ne.s32.totalorder %v1197, 15
      %vm1455 = vcmp.ne.s32.totalorder %v1198, 15
      %vm1456 = vcmp.ne.s32.totalorder %v1199, 15
      %vm1457 = vcmp.ne.s32.totalorder %v1200, 15
      %v1458 = vrot.slane %v752, 1
      %v1459 = vrot.slane %v753, 1
      %v1460 = vrot.slane %v754, 1
      %v1461 = vrot.slane %v755, 1
      %v1462 = vrot.slane %v756, 1
      %v1463 = vrot.slane %v757, 1
      %v1464 = vrot.slane %v758, 1
      %v1465 = vrot.slane %v759, 1
      %v1466 = vrot.slane %v760, 1
      %v1467 = vrot.slane %v761, 1
      %v1468 = vrot.slane %v762, 1
      %v1469 = vrot.slane %v763, 1
      %v1470 = vrot.slane %v764, 1
      %v1471 = vrot.slane %v765, 1
      %v1472 = vrot.slane %v766, 1
      %v1473 = vrot.slane %v767, 1
      %v1474 = vrot.slane %v768, 1
      %v1475 = vrot.slane %v769, 1
      %v1476 = vrot.slane %v770, 1
      %v1477 = vrot.slane %v771, 1
      %v1478 = vrot.slane %v772, 1
      %v1479 = vrot.slane %v773, 1
      %v1480 = vrot.slane %v774, 1
      %v1481 = vrot.slane %v775, 1
      %v1482 = vrot.slane %v776, 1
      %v1483 = vrot.slane %v777, 1
      %v1484 = vrot.slane %v778, 1
      %v1485 = vrot.slane %v779, 1
      %v1486 = vrot.slane %v780, 1
      %v1487 = vrot.slane %v781, 1
      %v1488 = vrot.slane %v782, 1
      %v1489 = vrot.slane %v783, 1
      %vm1490 = vcmp.lt.s32.totalorder %v785, 7
      %v1491 = vsel %vm1490, %v1488, %v1489
      %v1492 = vsel %vm1490, %v1487, %v1488
      %v1493 = vsel %vm1490, %v1486, %v1487
      %v1494 = vsel %vm1490, %v1485, %v1486
      %v1495 = vsel %vm1490, %v1484, %v1485
      %v1496 = vsel %vm1490, %v1483, %v1484
      %v1497 = vsel %vm1490, %v1482, %v1483
      %v1498 = vsel %vm1490, %v1481, %v1482
      %v1499 = vsel %vm1490, %v1480, %v1481
      %v1500 = vsel %vm1490, %v1479, %v1480
      %v1501 = vsel %vm1490, %v1478, %v1479
      %v1502 = vsel %vm1490, %v1477, %v1478
      %v1503 = vsel %vm1490, %v1476, %v1477
      %v1504 = vsel %vm1490, %v1475, %v1476
      %v1505 = vsel %vm1490, %v1474, %v1475
      %v1506 = vsel %vm1490, %v1473, %v1474
      %v1507 = vsel %vm1490, %v1472, %v1473
      %v1508 = vsel %vm1490, %v1471, %v1472
      %v1509 = vsel %vm1490, %v1470, %v1471
      %v1510 = vsel %vm1490, %v1469, %v1470
      %v1511 = vsel %vm1490, %v1468, %v1469
      %v1512 = vsel %vm1490, %v1467, %v1468
      %v1513 = vsel %vm1490, %v1466, %v1467
      %v1514 = vsel %vm1490, %v1465, %v1466
      %v1515 = vsel %vm1490, %v1464, %v1465
      %v1516 = vsel %vm1490, %v1463, %v1464
      %v1517 = vsel %vm1490, %v1462, %v1463
      %v1518 = vsel %vm1490, %v1461, %v1462
      %v1519 = vsel %vm1490, %v1460, %v1461
      %v1520 = vsel %vm1490, %v1459, %v1460
      %v1521 = vsel %vm1490, %v1458, %v1459
      %v1522 = vsel %vm1490, %v1489, %v1458
      %v1523 = vsel %vm1426, 1, 0
      %v1524 = vsel %vm1427, 1, 0
      %v1525 = vsel %vm1428, 1, 0
      %v1526 = vsel %vm1429, 1, 0
      %v1527 = vsel %vm1430, 1, 0
      %v1528 = vsel %vm1431, 1, 0
      %v1529 = vsel %vm1432, 1, 0
      %v1530 = vsel %vm1433, 1, 0
      %v1531 = vsel %vm1434, 1, 0
      %v1532 = vsel %vm1435, 1, 0
      %v1533 = vsel %vm1436, 1, 0
      %v1534 = vsel %vm1437, 1, 0
      %v1535 = vsel %vm1438, 1, 0
      %v1536 = vsel %vm1439, 1, 0
      %v1537 = vsel %vm1440, 1, 0
      %v1538 = vsel %vm1441, 1, 0
      %v1539 = vsel %vm1442, 1, 0
      %v1540 = vsel %vm1443, 1, 0
      %v1541 = vsel %vm1444, 1, 0
      %v1542 = vsel %vm1445, 1, 0
      %v1543 = vsel %vm1446, 1, 0
      %v1544 = vsel %vm1447, 1, 0
      %v1545 = vsel %vm1448, 1, 0
      %v1546 = vsel %vm1449, 1, 0
      %v1547 = vsel %vm1450, 1, 0
      %v1548 = vsel %vm1451, 1, 0
      %v1549 = vsel %vm1452, 1, 0
      %v1550 = vsel %vm1453, 1, 0
      %v1551 = vsel %vm1454, 1, 0
      %v1552 = vsel %vm1455, 1, 0
      %v1553 = vsel %vm1456, 1, 0
      %v1554 = vsel %vm1457, 1, 0
      %vm1555 = vcmp.eq.s32.totalorder %v1523, 1
      %vm1556 = vcmp.eq.s32.totalorder %v1524, 1
      %vm1557 = vcmp.eq.s32.totalorder %v1525, 1
      %vm1558 = vcmp.eq.s32.totalorder %v1526, 1
      %vm1559 = vcmp.eq.s32.totalorder %v1527, 1
      %vm1560 = vcmp.eq.s32.totalorder %v1528, 1
      %vm1561 = vcmp.eq.s32.totalorder %v1529, 1
      %vm1562 = vcmp.eq.s32.totalorder %v1530, 1
      %vm1563 = vcmp.eq.s32.totalorder %v1531, 1
      %vm1564 = vcmp.eq.s32.totalorder %v1532, 1
      %vm1565 = vcmp.eq.s32.totalorder %v1533, 1
      %vm1566 = vcmp.eq.s32.totalorder %v1534, 1
      %vm1567 = vcmp.eq.s32.totalorder %v1535, 1
      %vm1568 = vcmp.eq.s32.totalorder %v1536, 1
      %vm1569 = vcmp.eq.s32.totalorder %v1537, 1
      %vm1570 = vcmp.eq.s32.totalorder %v1538, 1
      %vm1571 = vcmp.eq.s32.totalorder %v1539, 1
      %vm1572 = vcmp.eq.s32.totalorder %v1540, 1
      %vm1573 = vcmp.eq.s32.totalorder %v1541, 1
      %vm1574 = vcmp.eq.s32.totalorder %v1542, 1
      %vm1575 = vcmp.eq.s32.totalorder %v1543, 1
      %vm1576 = vcmp.eq.s32.totalorder %v1544, 1
      %vm1577 = vcmp.eq.s32.totalorder %v1545, 1
      %vm1578 = vcmp.eq.s32.totalorder %v1546, 1
      %vm1579 = vcmp.eq.s32.totalorder %v1547, 1
      %vm1580 = vcmp.eq.s32.totalorder %v1548, 1
      %vm1581 = vcmp.eq.s32.totalorder %v1549, 1
      %vm1582 = vcmp.eq.s32.totalorder %v1550, 1
      %vm1583 = vcmp.eq.s32.totalorder %v1551, 1
      %vm1584 = vcmp.eq.s32.totalorder %v1552, 1
      %vm1585 = vcmp.eq.s32.totalorder %v1553, 1
      %vm1586 = vcmp.eq.s32.totalorder %v1554, 1
      %v1587 = vsel %vm1555, %v1521, 0.0
      %v1588 = vsel %vm1556, %v1520, 0.0
      %v1589 = vsel %vm1557, %v1519, 0.0
      %v1590 = vsel %vm1558, %v1518, 0.0
      %v1591 = vsel %vm1559, %v1517, 0.0
      %v1592 = vsel %vm1560, %v1516, 0.0
      %v1593 = vsel %vm1561, %v1515, 0.0
      %v1594 = vsel %vm1562, %v1514, 0.0
      %v1595 = vsel %vm1563, %v1513, 0.0
      %v1596 = vsel %vm1564, %v1512, 0.0
      %v1597 = vsel %vm1565, %v1511, 0.0
      %v1598 = vsel %vm1566, %v1510, 0.0
      %v1599 = vsel %vm1567, %v1509, 0.0
      %v1600 = vsel %vm1568, %v1508, 0.0
      %v1601 = vsel %vm1569, %v1507, 0.0
      %v1602 = vsel %vm1570, %v1506, 0.0
      %v1603 = vsel %vm1571, %v1505, 0.0
      %v1604 = vsel %vm1572, %v1504, 0.0
      %v1605 = vsel %vm1573, %v1503, 0.0
      %v1606 = vsel %vm1574, %v1502, 0.0
      %v1607 = vsel %vm1575, %v1501, 0.0
      %v1608 = vsel %vm1576, %v1500, 0.0
      %v1609 = vsel %vm1577, %v1499, 0.0
      %v1610 = vsel %vm1578, %v1498, 0.0
      %v1611 = vsel %vm1579, %v1497, 0.0
      %v1612 = vsel %vm1580, %v1496, 0.0
      %v1613 = vsel %vm1581, %v1495, 0.0
      %v1614 = vsel %vm1582, %v1494, 0.0
      %v1615 = vsel %vm1583, %v1493, 0.0
      %v1616 = vsel %vm1584, %v1492, 0.0
      %v1617 = vsel %vm1585, %v1491, 0.0
      %v1618 = vsel %vm1586, %v1522, 0.0
      %v1619 = vpack.c.bf16 %v1588, %v1587
      %v1620 = vpack.c.bf16 %v1590, %v1589
      %v1621 = vpack.c.bf16 %v1592, %v1591
      %v1622 = vpack.c.bf16 %v1594, %v1593
      %v1623 = vpack.c.bf16 %v1596, %v1595
      %v1624 = vpack.c.bf16 %v1598, %v1597
      %v1625 = vpack.c.bf16 %v1600, %v1599
      %v1626 = vpack.c.bf16 %v1602, %v1601
      %v1627 = vpack.c.bf16 %v1604, %v1603
      %v1628 = vpack.c.bf16 %v1606, %v1605
      %v1629 = vpack.c.bf16 %v1608, %v1607
      %v1630 = vpack.c.bf16 %v1610, %v1609
      %v1631 = vpack.c.bf16 %v1612, %v1611
      %v1632 = vpack.c.bf16 %v1614, %v1613
      %v1633 = vpack.c.bf16 %v1616, %v1615
      %v1634 = vpack.c.bf16 %v1618, %v1617
      %1635 = vst.msk [vmem:[#allocation2] sm:$0xff] %vm346, 0
      %1636 = vst.msk [vmem:[#allocation2 + $0x8] sm:$0xff] %vm346, %v1410
      %1637 = vst.msk [vmem:[#allocation2 + $0x10] sm:$0xff] %vm346, %v1411
      %1638 = vst.msk [vmem:[#allocation2 + $0x18] sm:$0xff] %vm346, %v1412
      %1639 = vst.msk [vmem:[#allocation2 + $0x20] sm:$0xff] %vm346, %v1413
      %1640 = vst.msk [vmem:[#allocation2 + $0x28] sm:$0xff] %vm346, %v1414
      %1641 = vst.msk [vmem:[#allocation2 + $0x30] sm:$0xff] %vm346, %v1415
      %1642 = vst.msk [vmem:[#allocation2 + $0x38] sm:$0xff] %vm346, %v1416
      %1643 = vst.msk [vmem:[#allocation2 + $0x40] sm:$0xff] %vm346, %v1417
      %1644 = vst.msk [vmem:[#allocation2 + $0x48] sm:$0xff] %vm346, %v1418
      %1645 = vst.msk [vmem:[#allocation2 + $0x50] sm:$0xff] %vm346, %v1419
      %1646 = vst.msk [vmem:[#allocation2 + $0x58] sm:$0xff] %vm346, %v1420
      %1647 = vst.msk [vmem:[#allocation2 + $0x60] sm:$0xff] %vm346, %v1421
      %1648 = vst.msk [vmem:[#allocation2 + $0x68] sm:$0xff] %vm346, %v1422
      %1649 = vst.msk [vmem:[#allocation2 + $0x70] sm:$0xff] %vm346, %v1423
      %1650 = vst.msk [vmem:[#allocation2 + $0x78] sm:$0xff] %vm346, %v1424
      %1651 = vst.msk [vmem:[#allocation2 + $0x80] sm:$0xff] %vm346, %v1425
      %1652 = vst.msk [vmem:[#allocation2 + $0x88] sm:$0xff] %vm346, 0
      %1653 = vst.msk [vmem:[#allocation3] sm:$0xff] %vm346, 0
      %1654 = vst.msk [vmem:[#allocation3 + $0x8] sm:$0xff] %vm346, %v1201
      %1655 = vst.msk [vmem:[#allocation3 + $0x10] sm:$0xff] %vm346, %v1202
      %1656 = vst.msk [vmem:[#allocation3 + $0x18] sm:$0xff] %vm346, %v1203
      %1657 = vst.msk [vmem:[#allocation3 + $0x20] sm:$0xff] %vm346, %v1204
      %1658 = vst.msk [vmem:[#allocation3 + $0x28] sm:$0xff] %vm346, %v1205
      %1659 = vst.msk [vmem:[#allocation3 + $0x30] sm:$0xff] %vm346, %v1206
      %1660 = vst.msk [vmem:[#allocation3 + $0x38] sm:$0xff] %vm346, %v1207
      %1661 = vst.msk [vmem:[#allocation3 + $0x40] sm:$0xff] %vm346, %v1208
      %1662 = vst.msk [vmem:[#allocation3 + $0x48] sm:$0xff] %vm346, %v1209
      %1663 = vst.msk [vmem:[#allocation3 + $0x50] sm:$0xff] %vm346, %v1210
      %1664 = vst.msk [vmem:[#allocation3 + $0x58] sm:$0xff] %vm346, %v1211
      %1665 = vst.msk [vmem:[#allocation3 + $0x60] sm:$0xff] %vm346, %v1212
      %1666 = vst.msk [vmem:[#allocation3 + $0x68] sm:$0xff] %vm346, %v1213
      %1667 = vst.msk [vmem:[#allocation3 + $0x70] sm:$0xff] %vm346, %v1214
      %1668 = vst.msk [vmem:[#allocation3 + $0x78] sm:$0xff] %vm346, %v1215
      %1669 = vst.msk [vmem:[#allocation3 + $0x80] sm:$0xff] %vm346, %v1216
      %1670 = vst.msk [vmem:[#allocation3 + $0x88] sm:$0xff] %vm346, 0
      %1671 = vst.msk [vmem:[#allocation4] sm:$0xff] %vm346, 0
      %1672 = vst.msk [vmem:[#allocation4 + $0x8] sm:$0xff] %vm346, %v1619
      %1673 = vst.msk [vmem:[#allocation4 + $0x10] sm:$0xff] %vm346, %v1620
      %1674 = vst.msk [vmem:[#allocation4 + $0x18] sm:$0xff] %vm346, %v1621
      %1675 = vst.msk [vmem:[#allocation4 + $0x20] sm:$0xff] %vm346, %v1622
      %1676 = vst.msk [vmem:[#allocation4 + $0x28] sm:$0xff] %vm346, %v1623
      %1677 = vst.msk [vmem:[#allocation4 + $0x30] sm:$0xff] %vm346, %v1624
      %1678 = vst.msk [vmem:[#allocation4 + $0x38] sm:$0xff] %vm346, %v1625
      %1679 = vst.msk [vmem:[#allocation4 + $0x40] sm:$0xff] %vm346, %v1626
      %1680 = vst.msk [vmem:[#allocation4 + $0x48] sm:$0xff] %vm346, %v1627
      %1681 = vst.msk [vmem:[#allocation4 + $0x50] sm:$0xff] %vm346, %v1628
      %1682 = vst.msk [vmem:[#allocation4 + $0x58] sm:$0xff] %vm346, %v1629
      %1683 = vst.msk [vmem:[#allocation4 + $0x60] sm:$0xff] %vm346, %v1630
      %1684 = vst.msk [vmem:[#allocation4 + $0x68] sm:$0xff] %vm346, %v1631
      %1685 = vst.msk [vmem:[#allocation4 + $0x70] sm:$0xff] %vm346, %v1632
      %1686 = vst.msk [vmem:[#allocation4 + $0x78] sm:$0xff] %vm346, %v1633
      %1687 = vst.msk [vmem:[#allocation4 + $0x80] sm:$0xff] %vm346, %v1634
      %1688 = vst.msk [vmem:[#allocation4 + $0x88] sm:$0xff] %vm346, 0
      %v1689 = vld [vmem:[#allocation2] sm:$0xff]
      %v1690 = vld [vmem:[#allocation2 + $0x8] sm:$0xff]
      %v1691 = vld [vmem:[#allocation2 + $0x10] sm:$0xff]
      %v1692 = vld [vmem:[#allocation2 + $0x18] sm:$0xff]
      %v1693 = vld [vmem:[#allocation2 + $0x20] sm:$0xff]
      %v1694 = vld [vmem:[#allocation2 + $0x28] sm:$0xff]
      %v1695 = vld [vmem:[#allocation2 + $0x30] sm:$0xff]
      %v1696 = vld [vmem:[#allocation2 + $0x38] sm:$0xff]
      %v1697 = vld [vmem:[#allocation2 + $0x40] sm:$0xff]
      %v1698 = vld [vmem:[#allocation2 + $0x48] sm:$0xff]
      %v1699 = vld [vmem:[#allocation2 + $0x50] sm:$0xff]
      %v1700 = vld [vmem:[#allocation2 + $0x58] sm:$0xff]
      %v1701 = vld [vmem:[#allocation2 + $0x60] sm:$0xff]
      %v1702 = vld [vmem:[#allocation2 + $0x68] sm:$0xff]
      %v1703 = vld [vmem:[#allocation2 + $0x70] sm:$0xff]
      %v1704 = vld [vmem:[#allocation2 + $0x78] sm:$0xff]
      %v1705 = vld [vmem:[%s3] sm:$0x3]
      %v1706 = vld [vmem:[#allocation3] sm:$0xff]
      %v1707 = vld [vmem:[#allocation3 + $0x8] sm:$0xff]
      %v1708 = vld [vmem:[#allocation3 + $0x10] sm:$0xff]
      %v1709 = vld [vmem:[#allocation3 + $0x18] sm:$0xff]
      %v1710 = vld [vmem:[#allocation3 + $0x20] sm:$0xff]
      %v1711 = vld [vmem:[#allocation3 + $0x28] sm:$0xff]
      %v1712 = vld [vmem:[#allocation3 + $0x30] sm:$0xff]
      %v1713 = vld [vmem:[#allocation3 + $0x38] sm:$0xff]
      %v1714 = vld [vmem:[#allocation3 + $0x40] sm:$0xff]
      %v1715 = vld [vmem:[#allocation3 + $0x48] sm:$0xff]
      %v1716 = vld [vmem:[#allocation3 + $0x50] sm:$0xff]
      %v1717 = vld [vmem:[#allocation3 + $0x58] sm:$0xff]
      %v1718 = vld [vmem:[#allocation3 + $0x60] sm:$0xff]
      %v1719 = vld [vmem:[#allocation3 + $0x68] sm:$0xff]
      %v1720 = vld [vmem:[#allocation3 + $0x70] sm:$0xff]
      %v1721 = vld [vmem:[#allocation3 + $0x78] sm:$0xff]
      %s1722 = scalar_lea.vmem %s3, 2
      %v1723 = vld [vmem:[%s1722] sm:$0x3]
      %v1725 = vsel %vm346, %v1706, 0
      %v1728 = vsel %vm346, %v1707, 0
      %v1731 = vsel %vm346, %v1708, 0
      %v1734 = vsel %vm346, %v1709, 0
      %v1737 = vsel %vm346, %v1710, 0
      %v1740 = vsel %vm346, %v1711, 0
      %v1743 = vsel %vm346, %v1712, 0
      %v1746 = vsel %vm346, %v1713, 0
      %v1749 = vsel %vm346, %v1714, 0
      %v1752 = vsel %vm346, %v1715, 0
      %v1755 = vsel %vm346, %v1716, 0
      %v1758 = vsel %vm346, %v1717, 0
      %v1761 = vsel %vm346, %v1718, 0
      %v1764 = vsel %vm346, %v1719, 0
      %v1767 = vsel %vm346, %v1720, 0
      %v1770 = vsel %vm346, %v1721, 0
      %v1773 = vsel %vm395, %v1723, 0
      %1775 = vmatprep.subr.bf16.mxu0 0
      %1776 = vmatpush1.bf16.msra.mxu0 %v1773
      %1777 = vmatprep.subr.bf16.mxu0 0
      %1778 = vmatpush1.bf16.msra.mxu0 0
      %1779 = vmatprep.subr.bf16.mxu0 0
      %1780 = vmatpush1.bf16.msra.mxu0 0
      %1781 = vmatprep.subr.bf16.mxu0 0
      %1782 = vmatpush1.bf16.msra.mxu0 0
      %1783 = vmatprep.subr.bf16.mxu0 0
      %1784 = vmatpush1.bf16.msra.mxu0 0
      %1785 = vmatprep.subr.bf16.mxu0 0
      %1786 = vmatpush1.bf16.msra.mxu0 0
      %1787 = vmatprep.subr.bf16.mxu0 0
      %1788 = vmatpush1.bf16.msra.mxu0 0
      %1789 = vmatprep.subr.bf16.mxu0 0
      %1790 = vmatpush1.bf16.msra.mxu0 0
      %1791 = vmatprep.subr.bf16.mxu0 0
      %1792 = vmatpush1.bf16.msra.mxu0 0
      %1793 = vmatprep.subr.bf16.mxu0 0
      %1794 = vmatpush1.bf16.msra.mxu0 0
      %1795 = vmatprep.subr.bf16.mxu0 0
      %1796 = vmatpush1.bf16.msra.mxu0 0
      %1797 = vmatprep.subr.bf16.mxu0 0
      %1798 = vmatpush1.bf16.msra.mxu0 0
      %1799 = vmatprep.subr.bf16.mxu0 0
      %1800 = vmatpush1.bf16.msra.mxu0 0
      %1801 = vmatprep.subr.bf16.mxu0 0
      %1802 = vmatpush1.bf16.msra.mxu0 0
      %1803 = vmatprep.subr.bf16.mxu0 0
      %1804 = vmatpush1.bf16.msra.mxu0 0
      %1805 = vmatprep.subr.bf16.mxu0 0
      %1806 = vmatpush1.bf16.msra.mxu0 0
      %1807 = vmatprep.mubr.bf16.mxu0 0
      %1808 = vmatmul.mubr.bf16.gmra.mrb[0].mxu0 %v1725
      %v1809 = vpop.f32.mrb[0].mxu0
      %v1810 = vadd.f32 0.0, %v1809
      %v1811 = vpop.f32.mrb[0].mxu0
      %v1812 = vpop.f32.mrb[0].mxu0
      %v1813 = vadd.f32 0.0, %v1812
      %v1814 = vpop.f32.mrb[0].mxu0
      %1815 = vmatprep.mubr.bf16.mxu0 0
      %1816 = vmatmul.mubr.bf16.gmra.mrb[0].mxu0 %v1728
      %v1817 = vpop.f32.mrb[0].mxu0
      %v1818 = vadd.f32 0.0, %v1817
      %v1819 = vpop.f32.mrb[0].mxu0
      %v1820 = vpop.f32.mrb[0].mxu0
      %v1821 = vadd.f32 0.0, %v1820
      %v1822 = vpop.f32.mrb[0].mxu0
      %1823 = vmatprep.mubr.bf16.mxu0 0
      %1824 = vmatmul.mubr.bf16.gmra.mrb[0].mxu0 %v1731
      %v1825 = vpop.f32.mrb[0].mxu0
      %v1826 = vadd.f32 0.0, %v1825
      %v1827 = vpop.f32.mrb[0].mxu0
      %v1828 = vpop.f32.mrb[0].mxu0
      %v1829 = vadd.f32 0.0, %v1828
      %v1830 = vpop.f32.mrb[0].mxu0
      %1831 = vmatprep.mubr.bf16.mxu0 0
      %1832 = vmatmul.mubr.bf16.gmra.mrb[0].mxu0 %v1734
      %v1833 = vpop.f32.mrb[0].mxu0
      %v1834 = vadd.f32 0.0, %v1833
      %v1835 = vpop.f32.mrb[0].mxu0
      %v1836 = vpop.f32.mrb[0].mxu0
      %v1837 = vadd.f32 0.0, %v1836
      %v1838 = vpop.f32.mrb[0].mxu0
      %1839 = vmatprep.mubr.bf16.mxu0 0
      %1840 = vmatmul.mubr.bf16.gmra.mrb[0].mxu0 %v1737
      %v1841 = vpop.f32.mrb[0].mxu0
      %v1842 = vadd.f32 0.0, %v1841
      %v1843 = vpop.f32.mrb[0].mxu0
      %v1844 = vpop.f32.mrb[0].mxu0
      %v1845 = vadd.f32 0.0, %v1844
      %v1846 = vpop.f32.mrb[0].mxu0
      %1847 = vmatprep.mubr.bf16.mxu0 0
      %1848 = vmatmul.mubr.bf16.gmra.mrb[0].mxu0 %v1740
      %v1849 = vpop.f32.mrb[0].mxu0
      %v1850 = vadd.f32 0.0, %v1849
      %v1851 = vpop.f32.mrb[0].mxu0
      %v1852 = vpop.f32.mrb[0].mxu0
      %v1853 = vadd.f32 0.0, %v1852
      %v1854 = vpop.f32.mrb[0].mxu0
      %1855 = vmatprep.mubr.bf16.mxu0 0
      %1856 = vmatmul.mubr.bf16.gmra.mrb[0].mxu0 %v1743
      %v1857 = vpop.f32.mrb[0].mxu0
      %v1858 = vadd.f32 0.0, %v1857
      %v1859 = vpop.f32.mrb[0].mxu0
      %v1860 = vpop.f32.mrb[0].mxu0
      %v1861 = vadd.f32 0.0, %v1860
      %v1862 = vpop.f32.mrb[0].mxu0
      %1863 = vmatprep.mubr.bf16.mxu0 0
      %1864 = vmatmul.mubr.bf16.gmra.mrb[0].mxu0 %v1746
      %v1865 = vpop.f32.mrb[0].mxu0
      %v1866 = vadd.f32 0.0, %v1865
      %v1867 = vpop.f32.mrb[0].mxu0
      %v1868 = vpop.f32.mrb[0].mxu0
      %v1869 = vadd.f32 0.0, %v1868
      %v1870 = vpop.f32.mrb[0].mxu0
      %1871 = vmatprep.mubr.bf16.mxu0 0
      %1872 = vmatmul.mubr.bf16.gmra.mrb[0].mxu0 %v1749
      %v1873 = vpop.f32.mrb[0].mxu0
      %v1874 = vadd.f32 0.0, %v1873
      %v1875 = vpop.f32.mrb[0].mxu0
      %v1876 = vpop.f32.mrb[0].mxu0
      %v1877 = vadd.f32 0.0, %v1876
      %v1878 = vpop.f32.mrb[0].mxu0
      %1879 = vmatprep.mubr.bf16.mxu0 0
      %1880 = vmatmul.mubr.bf16.gmra.mrb[0].mxu0 %v1752
      %v1881 = vpop.f32.mrb[0].mxu0
      %v1882 = vadd.f32 0.0, %v1881
      %v1883 = vpop.f32.mrb[0].mxu0
      %v1884 = vpop.f32.mrb[0].mxu0
      %v1885 = vadd.f32 0.0, %v1884
      %v1886 = vpop.f32.mrb[0].mxu0
      %1887 = vmatprep.mubr.bf16.mxu0 0
      %1888 = vmatmul.mubr.bf16.gmra.mrb[0].mxu0 %v1755
      %v1889 = vpop.f32.mrb[0].mxu0
      %v1890 = vadd.f32 0.0, %v1889
      %v1891 = vpop.f32.mrb[0].mxu0
      %v1892 = vpop.f32.mrb[0].mxu0
      %v1893 = vadd.f32 0.0, %v1892
      %v1894 = vpop.f32.mrb[0].mxu0
      %1895 = vmatprep.mubr.bf16.mxu0 0
      %1896 = vmatmul.mubr.bf16.gmra.mrb[0].mxu0 %v1758
      %v1897 = vpop.f32.mrb[0].mxu0
      %v1898 = vadd.f32 0.0, %v1897
      %v1899 = vpop.f32.mrb[0].mxu0
      %v1900 = vpop.f32.mrb[0].mxu0
      %v1901 = vadd.f32 0.0, %v1900
      %v1902 = vpop.f32.mrb[0].mxu0
      %1903 = vmatprep.mubr.bf16.mxu0 0
      %1904 = vmatmul.mubr.bf16.gmra.mrb[0].mxu0 %v1761
      %v1905 = vpop.f32.mrb[0].mxu0
      %v1906 = vadd.f32 0.0, %v1905
      %v1907 = vpop.f32.mrb[0].mxu0
      %v1908 = vpop.f32.mrb[0].mxu0
      %v1909 = vadd.f32 0.0, %v1908
      %v1910 = vpop.f32.mrb[0].mxu0
      %1911 = vmatprep.mubr.bf16.mxu0 0
      %1912 = vmatmul.mubr.bf16.gmra.mrb[0].mxu0 %v1764
      %v1913 = vpop.f32.mrb[0].mxu0
      %v1914 = vadd.f32 0.0, %v1913
      %v1915 = vpop.f32.mrb[0].mxu0
      %v1916 = vpop.f32.mrb[0].mxu0
      %v1917 = vadd.f32 0.0, %v1916
      %v1918 = vpop.f32.mrb[0].mxu0
      %1919 = vmatprep.mubr.bf16.mxu0 0
      %1920 = vmatmul.mubr.bf16.gmra.mrb[0].mxu0 %v1767
      %v1921 = vpop.f32.mrb[0].mxu0
      %v1922 = vadd.f32 0.0, %v1921
      %v1923 = vpop.f32.mrb[0].mxu0
      %v1924 = vpop.f32.mrb[0].mxu0
      %v1925 = vadd.f32 0.0, %v1924
      %v1926 = vpop.f32.mrb[0].mxu0
      %1927 = vmatprep.mubr.bf16.mxu0 0
      %1928 = vmatmul.mubr.bf16.gmra.mrb[0].mxu0 %v1770
      %v1929 = vpop.f32.mrb[0].mxu0
      %v1930 = vadd.f32 0.0, %v1929
      %v1931 = vpop.f32.mrb[0].mxu0
      %v1932 = vpop.f32.mrb[0].mxu0
      %v1933 = vadd.f32 0.0, %v1932
      %v1934 = vpop.f32.mrb[0].mxu0
      %1935 = vdwg.mxu0
      %v1937 = vsel %vm346, %v1689, 0
      %v1940 = vsel %vm346, %v1690, 0
      %v1943 = vsel %vm346, %v1691, 0
      %v1946 = vsel %vm346, %v1692, 0
      %v1949 = vsel %vm346, %v1693, 0
      %v1952 = vsel %vm346, %v1694, 0
      %v1955 = vsel %vm346, %v1695, 0
      %v1958 = vsel %vm346, %v1696, 0
      %v1961 = vsel %vm346, %v1697, 0
      %v1964 = vsel %vm346, %v1698, 0
      %v1967 = vsel %vm346, %v1699, 0
      %v1970 = vsel %vm346, %v1700, 0
      %v1973 = vsel %vm346, %v1701, 0
      %v1976 = vsel %vm346, %v1702, 0
      %v1979 = vsel %vm346, %v1703, 0
      %v1982 = vsel %vm346, %v1704, 0
      %v1985 = vsel %vm395, %v1705, 0
      %1987 = vmatprep.subr.bf16.mxu0 0
      %1988 = vmatpush1.bf16.msra.mxu0 %v1985
      %1989 = vmatprep.subr.bf16.mxu0 0
      %1990 = vmatpush1.bf16.msra.mxu0 0
      %1991 = vmatprep.subr.bf16.mxu0 0
      %1992 = vmatpush1.bf16.msra.mxu0 0
      %1993 = vmatprep.subr.bf16.mxu0 0
      %1994 = vmatpush1.bf16.msra.mxu0 0
      %1995 = vmatprep.subr.bf16.mxu0 0
      %1996 = vmatpush1.bf16.msra.mxu0 0
      %1997 = vmatprep.subr.bf16.mxu0 0
      %1998 = vmatpush1.bf16.msra.mxu0 0
      %1999 = vmatprep.subr.bf16.mxu0 0
      %2000 = vmatpush1.bf16.msra.mxu0 0
      %2001 = vmatprep.subr.bf16.mxu0 0
      %2002 = vmatpush1.bf16.msra.mxu0 0
      %2003 = vmatprep.subr.bf16.mxu0 0
      %2004 = vmatpush1.bf16.msra.mxu0 0
      %2005 = vmatprep.subr.bf16.mxu0 0
      %2006 = vmatpush1.bf16.msra.mxu0 0
      %2007 = vmatprep.subr.bf16.mxu0 0
      %2008 = vmatpush1.bf16.msra.mxu0 0
      %2009 = vmatprep.subr.bf16.mxu0 0
      %2010 = vmatpush1.bf16.msra.mxu0 0
      %2011 = vmatprep.subr.bf16.mxu0 0
      %2012 = vmatpush1.bf16.msra.mxu0 0
      %2013 = vmatprep.subr.bf16.mxu0 0
      %2014 = vmatpush1.bf16.msra.mxu0 0
      %2015 = vmatprep.subr.bf16.mxu0 0
      %2016 = vmatpush1.bf16.msra.mxu0 0
      %2017 = vmatprep.subr.bf16.mxu0 0
      %2018 = vmatpush1.bf16.msra.mxu0 0
      %2019 = vmatprep.mubr.bf16.mxu0 0
      %2020 = vmatmul.mubr.bf16.gmra.mrb[0].mxu0 %v1937
      %v2021 = vpop.f32.mrb[0].mxu0
      %v2022 = vadd.f32 %v1810, %v2021
      %v2023 = vpop.f32.mrb[0].mxu0
      %v2024 = vpop.f32.mrb[0].mxu0
      %v2025 = vadd.f32 %v1813, %v2024
      %v2026 = vpop.f32.mrb[0].mxu0
      %2027 = vmatprep.mubr.bf16.mxu0 0
      %2028 = vmatmul.mubr.bf16.gmra.mrb[0].mxu0 %v1940
      %v2029 = vpop.f32.mrb[0].mxu0
      %v2030 = vadd.f32 %v1818, %v2029
      %v2031 = vpop.f32.mrb[0].mxu0
      %v2032 = vpop.f32.mrb[0].mxu0
      %v2033 = vadd.f32 %v1821, %v2032
      %v2034 = vpop.f32.mrb[0].mxu0
      %2035 = vmatprep.mubr.bf16.mxu0 0
      %2036 = vmatmul.mubr.bf16.gmra.mrb[0].mxu0 %v1943
      %v2037 = vpop.f32.mrb[0].mxu0
      %v2038 = vadd.f32 %v1826, %v2037
      %v2039 = vpop.f32.mrb[0].mxu0
      %v2040 = vpop.f32.mrb[0].mxu0
      %v2041 = vadd.f32 %v1829, %v2040
      %v2042 = vpop.f32.mrb[0].mxu0
      %2043 = vmatprep.mubr.bf16.mxu0 0
      %2044 = vmatmul.mubr.bf16.gmra.mrb[0].mxu0 %v1946
      %v2045 = vpop.f32.mrb[0].mxu0
      %v2046 = vadd.f32 %v1834, %v2045
      %v2047 = vpop.f32.mrb[0].mxu0
      %v2048 = vpop.f32.mrb[0].mxu0
      %v2049 = vadd.f32 %v1837, %v2048
      %v2050 = vpop.f32.mrb[0].mxu0
      %2051 = vmatprep.mubr.bf16.mxu0 0
      %2052 = vmatmul.mubr.bf16.gmra.mrb[0].mxu0 %v1949
      %v2053 = vpop.f32.mrb[0].mxu0
      %v2054 = vadd.f32 %v1842, %v2053
      %v2055 = vpop.f32.mrb[0].mxu0
      %v2056 = vpop.f32.mrb[0].mxu0
      %v2057 = vadd.f32 %v1845, %v2056
      %v2058 = vpop.f32.mrb[0].mxu0
      %2059 = vmatprep.mubr.bf16.mxu0 0
      %2060 = vmatmul.mubr.bf16.gmra.mrb[0].mxu0 %v1952
      %v2061 = vpop.f32.mrb[0].mxu0
      %v2062 = vadd.f32 %v1850, %v2061
      %v2063 = vpop.f32.mrb[0].mxu0
      %v2064 = vpop.f32.mrb[0].mxu0
      %v2065 = vadd.f32 %v1853, %v2064
      %v2066 = vpop.f32.mrb[0].mxu0
      %2067 = vmatprep.mubr.bf16.mxu0 0
      %2068 = vmatmul.mubr.bf16.gmra.mrb[0].mxu0 %v1955
      %v2069 = vpop.f32.mrb[0].mxu0
      %v2070 = vadd.f32 %v1858, %v2069
      %v2071 = vpop.f32.mrb[0].mxu0
      %v2072 = vpop.f32.mrb[0].mxu0
      %v2073 = vadd.f32 %v1861, %v2072
      %v2074 = vpop.f32.mrb[0].mxu0
      %2075 = vmatprep.mubr.bf16.mxu0 0
      %2076 = vmatmul.mubr.bf16.gmra.mrb[0].mxu0 %v1958
      %v2077 = vpop.f32.mrb[0].mxu0
      %v2078 = vadd.f32 %v1866, %v2077
      %v2079 = vpop.f32.mrb[0].mxu0
      %v2080 = vpop.f32.mrb[0].mxu0
      %v2081 = vadd.f32 %v1869, %v2080
      %v2082 = vpop.f32.mrb[0].mxu0
      %2083 = vmatprep.mubr.bf16.mxu0 0
      %2084 = vmatmul.mubr.bf16.gmra.mrb[0].mxu0 %v1961
      %v2085 = vpop.f32.mrb[0].mxu0
      %v2086 = vadd.f32 %v1874, %v2085
      %v2087 = vpop.f32.mrb[0].mxu0
      %v2088 = vpop.f32.mrb[0].mxu0
      %v2089 = vadd.f32 %v1877, %v2088
      %v2090 = vpop.f32.mrb[0].mxu0
      %2091 = vmatprep.mubr.bf16.mxu0 0
      %2092 = vmatmul.mubr.bf16.gmra.mrb[0].mxu0 %v1964
      %v2093 = vpop.f32.mrb[0].mxu0
      %v2094 = vadd.f32 %v1882, %v2093
      %v2095 = vpop.f32.mrb[0].mxu0
      %v2096 = vpop.f32.mrb[0].mxu0
      %v2097 = vadd.f32 %v1885, %v2096
      %v2098 = vpop.f32.mrb[0].mxu0
      %2099 = vmatprep.mubr.bf16.mxu0 0
      %2100 = vmatmul.mubr.bf16.gmra.mrb[0].mxu0 %v1967
      %v2101 = vpop.f32.mrb[0].mxu0
      %v2102 = vadd.f32 %v1890, %v2101
      %v2103 = vpop.f32.mrb[0].mxu0
      %v2104 = vpop.f32.mrb[0].mxu0
      %v2105 = vadd.f32 %v1893, %v2104
      %v2106 = vpop.f32.mrb[0].mxu0
      %2107 = vmatprep.mubr.bf16.mxu0 0
      %2108 = vmatmul.mubr.bf16.gmra.mrb[0].mxu0 %v1970
      %v2109 = vpop.f32.mrb[0].mxu0
      %v2110 = vadd.f32 %v1898, %v2109
      %v2111 = vpop.f32.mrb[0].mxu0
      %v2112 = vpop.f32.mrb[0].mxu0
      %v2113 = vadd.f32 %v1901, %v2112
      %v2114 = vpop.f32.mrb[0].mxu0
      %2115 = vmatprep.mubr.bf16.mxu0 0
      %2116 = vmatmul.mubr.bf16.gmra.mrb[0].mxu0 %v1973
      %v2117 = vpop.f32.mrb[0].mxu0
      %v2118 = vadd.f32 %v1906, %v2117
      %v2119 = vpop.f32.mrb[0].mxu0
      %v2120 = vpop.f32.mrb[0].mxu0
      %v2121 = vadd.f32 %v1909, %v2120
      %v2122 = vpop.f32.mrb[0].mxu0
      %2123 = vmatprep.mubr.bf16.mxu0 0
      %2124 = vmatmul.mubr.bf16.gmra.mrb[0].mxu0 %v1976
      %v2125 = vpop.f32.mrb[0].mxu0
      %v2126 = vadd.f32 %v1914, %v2125
      %v2127 = vpop.f32.mrb[0].mxu0
      %v2128 = vpop.f32.mrb[0].mxu0
      %v2129 = vadd.f32 %v1917, %v2128
      %v2130 = vpop.f32.mrb[0].mxu0
      %2131 = vmatprep.mubr.bf16.mxu0 0
      %2132 = vmatmul.mubr.bf16.gmra.mrb[0].mxu0 %v1979
      %v2133 = vpop.f32.mrb[0].mxu0
      %v2134 = vadd.f32 %v1922, %v2133
      %v2135 = vpop.f32.mrb[0].mxu0
      %v2136 = vpop.f32.mrb[0].mxu0
      %v2137 = vadd.f32 %v1925, %v2136
      %v2138 = vpop.f32.mrb[0].mxu0
      %2139 = vmatprep.mubr.bf16.mxu0 0
      %2140 = vmatmul.mubr.bf16.gmra.mrb[0].mxu0 %v1982
      %v2141 = vpop.f32.mrb[0].mxu0
      %v2142 = vadd.f32 %v1930, %v2141
      %v2143 = vpop.f32.mrb[0].mxu0
      %v2144 = vpop.f32.mrb[0].mxu0
      %v2145 = vadd.f32 %v1933, %v2144
      %v2146 = vpop.f32.mrb[0].mxu0
      %2147 = vdwg.mxu0
      %v2148 = vld [vmem:[#allocation4] sm:$0xff]
      %v2149 = vld [vmem:[#allocation4 + $0x8] sm:$0xff]
      %v2150 = vld [vmem:[#allocation4 + $0x10] sm:$0xff]
      %v2151 = vld [vmem:[#allocation4 + $0x18] sm:$0xff]
      %v2152 = vld [vmem:[#allocation4 + $0x20] sm:$0xff]
      %v2153 = vld [vmem:[#allocation4 + $0x28] sm:$0xff]
      %v2154 = vld [vmem:[#allocation4 + $0x30] sm:$0xff]
      %v2155 = vld [vmem:[#allocation4 + $0x38] sm:$0xff]
      %v2156 = vld [vmem:[#allocation4 + $0x40] sm:$0xff]
      %v2157 = vld [vmem:[#allocation4 + $0x48] sm:$0xff]
      %v2158 = vld [vmem:[#allocation4 + $0x50] sm:$0xff]
      %v2159 = vld [vmem:[#allocation4 + $0x58] sm:$0xff]
      %v2160 = vld [vmem:[#allocation4 + $0x60] sm:$0xff]
      %v2161 = vld [vmem:[#allocation4 + $0x68] sm:$0xff]
      %v2162 = vld [vmem:[#allocation4 + $0x70] sm:$0xff]
      %v2163 = vld [vmem:[#allocation4 + $0x78] sm:$0xff]
      %s2164 = scalar_lea.vmem %s3, 4
      %v2165 = vld [vmem:[%s2164] sm:$0x3]
      %v2167 = vsel %vm346, %v2148, 0
      %v2170 = vsel %vm346, %v2149, 0
      %v2173 = vsel %vm346, %v2150, 0
      %v2176 = vsel %vm346, %v2151, 0
      %v2179 = vsel %vm346, %v2152, 0
      %v2182 = vsel %vm346, %v2153, 0
      %v2185 = vsel %vm346, %v2154, 0
      %v2188 = vsel %vm346, %v2155, 0
      %v2191 = vsel %vm346, %v2156, 0
      %v2194 = vsel %vm346, %v2157, 0
      %v2197 = vsel %vm346, %v2158, 0
      %v2200 = vsel %vm346, %v2159, 0
      %v2203 = vsel %vm346, %v2160, 0
      %v2206 = vsel %vm346, %v2161, 0
      %v2209 = vsel %vm346, %v2162, 0
      %v2212 = vsel %vm346, %v2163, 0
      %v2215 = vsel %vm395, %v2165, 0
      %2217 = vmatprep.subr.bf16.mxu0 0
      %2218 = vmatpush1.bf16.msra.mxu0 %v2215
      %2219 = vmatprep.subr.bf16.mxu0 0
      %2220 = vmatpush1.bf16.msra.mxu0 0
      %2221 = vmatprep.subr.bf16.mxu0 0
      %2222 = vmatpush1.bf16.msra.mxu0 0
      %2223 = vmatprep.subr.bf16.mxu0 0
      %2224 = vmatpush1.bf16.msra.mxu0 0
      %2225 = vmatprep.subr.bf16.mxu0 0
      %2226 = vmatpush1.bf16.msra.mxu0 0
      %2227 = vmatprep.subr.bf16.mxu0 0
      %2228 = vmatpush1.bf16.msra.mxu0 0
      %2229 = vmatprep.subr.bf16.mxu0 0
      %2230 = vmatpush1.bf16.msra.mxu0 0
      %2231 = vmatprep.subr.bf16.mxu0 0
      %2232 = vmatpush1.bf16.msra.mxu0 0
      %2233 = vmatprep.subr.bf16.mxu0 0
      %2234 = vmatpush1.bf16.msra.mxu0 0
      %2235 = vmatprep.subr.bf16.mxu0 0
      %2236 = vmatpush1.bf16.msra.mxu0 0
      %2237 = vmatprep.subr.bf16.mxu0 0
      %2238 = vmatpush1.bf16.msra.mxu0 0
      %2239 = vmatprep.subr.bf16.mxu0 0
      %2240 = vmatpush1.bf16.msra.mxu0 0
      %2241 = vmatprep.subr.bf16.mxu0 0
      %2242 = vmatpush1.bf16.msra.mxu0 0
      %2243 = vmatprep.subr.bf16.mxu0 0
      %2244 = vmatpush1.bf16.msra.mxu0 0
      %2245 = vmatprep.subr.bf16.mxu0 0
      %2246 = vmatpush1.bf16.msra.mxu0 0
      %2247 = vmatprep.subr.bf16.mxu0 0
      %2248 = vmatpush1.bf16.msra.mxu0 0
      %2249 = vmatprep.mubr.bf16.mxu0 0
      %2250 = vmatmul.mubr.bf16.gmra.mrb[0].mxu0 %v2167
      %v2251 = vpop.f32.mrb[0].mxu0
      %v2252 = vadd.f32 0.0, %v2251
      %v2253 = vpop.f32.mrb[0].mxu0
      %v2254 = vpop.f32.mrb[0].mxu0
      %v2255 = vadd.f32 0.0, %v2254
      %v2256 = vpop.f32.mrb[0].mxu0
      %2257 = vmatprep.mubr.bf16.mxu0 0
      %2258 = vmatmul.mubr.bf16.gmra.mrb[0].mxu0 %v2170
      %v2259 = vpop.f32.mrb[0].mxu0
      %v2260 = vadd.f32 0.0, %v2259
      %v2261 = vpop.f32.mrb[0].mxu0
      %v2262 = vpop.f32.mrb[0].mxu0
      %v2263 = vadd.f32 0.0, %v2262
      %v2264 = vpop.f32.mrb[0].mxu0
      %2265 = vmatprep.mubr.bf16.mxu0 0
      %2266 = vmatmul.mubr.bf16.gmra.mrb[0].mxu0 %v2173
      %v2267 = vpop.f32.mrb[0].mxu0
      %v2268 = vadd.f32 0.0, %v2267
      %v2269 = vpop.f32.mrb[0].mxu0
      %v2270 = vpop.f32.mrb[0].mxu0
      %v2271 = vadd.f32 0.0, %v2270
      %v2272 = vpop.f32.mrb[0].mxu0
      %2273 = vmatprep.mubr.bf16.mxu0 0
      %2274 = vmatmul.mubr.bf16.gmra.mrb[0].mxu0 %v2176
      %v2275 = vpop.f32.mrb[0].mxu0
      %v2276 = vadd.f32 0.0, %v2275
      %v2277 = vpop.f32.mrb[0].mxu0
      %v2278 = vpop.f32.mrb[0].mxu0
      %v2279 = vadd.f32 0.0, %v2278
      %v2280 = vpop.f32.mrb[0].mxu0
      %2281 = vmatprep.mubr.bf16.mxu0 0
      %2282 = vmatmul.mubr.bf16.gmra.mrb[0].mxu0 %v2179
      %v2283 = vpop.f32.mrb[0].mxu0
      %v2284 = vadd.f32 0.0, %v2283
      %v2285 = vpop.f32.mrb[0].mxu0
      %v2286 = vpop.f32.mrb[0].mxu0
      %v2287 = vadd.f32 0.0, %v2286
      %v2288 = vpop.f32.mrb[0].mxu0
      %2289 = vmatprep.mubr.bf16.mxu0 0
      %2290 = vmatmul.mubr.bf16.gmra.mrb[0].mxu0 %v2182
      %v2291 = vpop.f32.mrb[0].mxu0
      %v2292 = vadd.f32 0.0, %v2291
      %v2293 = vpop.f32.mrb[0].mxu0
      %v2294 = vpop.f32.mrb[0].mxu0
      %v2295 = vadd.f32 0.0, %v2294
      %v2296 = vpop.f32.mrb[0].mxu0
      %2297 = vmatprep.mubr.bf16.mxu0 0
      %2298 = vmatmul.mubr.bf16.gmra.mrb[0].mxu0 %v2185
      %v2299 = vpop.f32.mrb[0].mxu0
      %v2300 = vadd.f32 0.0, %v2299
      %v2301 = vpop.f32.mrb[0].mxu0
      %v2302 = vpop.f32.mrb[0].mxu0
      %v2303 = vadd.f32 0.0, %v2302
      %v2304 = vpop.f32.mrb[0].mxu0
      %2305 = vmatprep.mubr.bf16.mxu0 0
      %2306 = vmatmul.mubr.bf16.gmra.mrb[0].mxu0 %v2188
      %v2307 = vpop.f32.mrb[0].mxu0
      %v2308 = vadd.f32 0.0, %v2307
      %v2309 = vpop.f32.mrb[0].mxu0
      %v2310 = vpop.f32.mrb[0].mxu0
      %v2311 = vadd.f32 0.0, %v2310
      %v2312 = vpop.f32.mrb[0].mxu0
      %2313 = vmatprep.mubr.bf16.mxu0 0
      %2314 = vmatmul.mubr.bf16.gmra.mrb[0].mxu0 %v2191
      %v2315 = vpop.f32.mrb[0].mxu0
      %v2316 = vadd.f32 0.0, %v2315
      %v2317 = vpop.f32.mrb[0].mxu0
      %v2318 = vpop.f32.mrb[0].mxu0
      %v2319 = vadd.f32 0.0, %v2318
      %v2320 = vpop.f32.mrb[0].mxu0
      %2321 = vmatprep.mubr.bf16.mxu0 0
      %2322 = vmatmul.mubr.bf16.gmra.mrb[0].mxu0 %v2194
      %v2323 = vpop.f32.mrb[0].mxu0
      %v2324 = vadd.f32 0.0, %v2323
      %v2325 = vpop.f32.mrb[0].mxu0
      %v2326 = vpop.f32.mrb[0].mxu0
      %v2327 = vadd.f32 0.0, %v2326
      %v2328 = vpop.f32.mrb[0].mxu0
      %2329 = vmatprep.mubr.bf16.mxu0 0
      %2330 = vmatmul.mubr.bf16.gmra.mrb[0].mxu0 %v2197
      %v2331 = vpop.f32.mrb[0].mxu0
      %v2332 = vadd.f32 0.0, %v2331
      %v2333 = vpop.f32.mrb[0].mxu0
      %v2334 = vpop.f32.mrb[0].mxu0
      %v2335 = vadd.f32 0.0, %v2334
      %v2336 = vpop.f32.mrb[0].mxu0
      %2337 = vmatprep.mubr.bf16.mxu0 0
      %2338 = vmatmul.mubr.bf16.gmra.mrb[0].mxu0 %v2200
      %v2339 = vpop.f32.mrb[0].mxu0
      %v2340 = vadd.f32 0.0, %v2339
      %v2341 = vpop.f32.mrb[0].mxu0
      %v2342 = vpop.f32.mrb[0].mxu0
      %v2343 = vadd.f32 0.0, %v2342
      %v2344 = vpop.f32.mrb[0].mxu0
      %2345 = vmatprep.mubr.bf16.mxu0 0
      %2346 = vmatmul.mubr.bf16.gmra.mrb[0].mxu0 %v2203
      %v2347 = vpop.f32.mrb[0].mxu0
      %v2348 = vadd.f32 0.0, %v2347
      %v2349 = vpop.f32.mrb[0].mxu0
      %v2350 = vpop.f32.mrb[0].mxu0
      %v2351 = vadd.f32 0.0, %v2350
      %v2352 = vpop.f32.mrb[0].mxu0
      %2353 = vmatprep.mubr.bf16.mxu0 0
      %2354 = vmatmul.mubr.bf16.gmra.mrb[0].mxu0 %v2206
      %v2355 = vpop.f32.mrb[0].mxu0
      %v2356 = vadd.f32 0.0, %v2355
      %v2357 = vpop.f32.mrb[0].mxu0
      %v2358 = vpop.f32.mrb[0].mxu0
      %v2359 = vadd.f32 0.0, %v2358
      %v2360 = vpop.f32.mrb[0].mxu0
      %2361 = vmatprep.mubr.bf16.mxu0 0
      %2362 = vmatmul.mubr.bf16.gmra.mrb[0].mxu0 %v2209
      %v2363 = vpop.f32.mrb[0].mxu0
      %v2364 = vadd.f32 0.0, %v2363
      %v2365 = vpop.f32.mrb[0].mxu0
      %v2366 = vpop.f32.mrb[0].mxu0
      %v2367 = vadd.f32 0.0, %v2366
      %v2368 = vpop.f32.mrb[0].mxu0
      %2369 = vmatprep.mubr.bf16.mxu0 0
      %2370 = vmatmul.mubr.bf16.gmra.mrb[0].mxu0 %v2212
      %v2371 = vpop.f32.mrb[0].mxu0
      %v2372 = vadd.f32 0.0, %v2371
      %v2373 = vpop.f32.mrb[0].mxu0
      %v2374 = vpop.f32.mrb[0].mxu0
      %v2375 = vadd.f32 0.0, %v2374
      %v2376 = vpop.f32.mrb[0].mxu0
      %2377 = vdwg.mxu0
      %v2378 = vadd.f32 %v2022, %v2252
      %v2379 = vadd.f32 %v2025, %v2255
      %v2380 = vadd.f32 %v2030, %v2260
      %v2381 = vadd.f32 %v2033, %v2263
      %v2382 = vadd.f32 %v2038, %v2268
      %v2383 = vadd.f32 %v2041, %v2271
      %v2384 = vadd.f32 %v2046, %v2276
      %v2385 = vadd.f32 %v2049, %v2279
      %v2386 = vadd.f32 %v2054, %v2284
      %v2387 = vadd.f32 %v2057, %v2287
      %v2388 = vadd.f32 %v2062, %v2292
      %v2389 = vadd.f32 %v2065, %v2295
      %v2390 = vadd.f32 %v2070, %v2300
      %v2391 = vadd.f32 %v2073, %v2303
      %v2392 = vadd.f32 %v2078, %v2308
      %v2393 = vadd.f32 %v2081, %v2311
      %v2394 = vadd.f32 %v2086, %v2316
      %v2395 = vadd.f32 %v2089, %v2319
      %v2396 = vadd.f32 %v2094, %v2324
      %v2397 = vadd.f32 %v2097, %v2327
      %v2398 = vadd.f32 %v2102, %v2332
      %v2399 = vadd.f32 %v2105, %v2335
      %v2400 = vadd.f32 %v2110, %v2340
      %v2401 = vadd.f32 %v2113, %v2343
      %v2402 = vadd.f32 %v2118, %v2348
      %v2403 = vadd.f32 %v2121, %v2351
      %v2404 = vadd.f32 %v2126, %v2356
      %v2405 = vadd.f32 %v2129, %v2359
      %v2406 = vadd.f32 %v2134, %v2364
      %v2407 = vadd.f32 %v2137, %v2367
      %v2408 = vadd.f32 %v2142, %v2372
      %v2409 = vadd.f32 %v2145, %v2375
      %v2410 = vld [vmem:[#allocation2 + $0x8] sm:$0xff]
      %v2411 = vld [vmem:[#allocation2 + $0x10] sm:$0xff]
      %v2412 = vld [vmem:[#allocation2 + $0x18] sm:$0xff]
      %v2413 = vld [vmem:[#allocation2 + $0x20] sm:$0xff]
      %v2414 = vld [vmem:[#allocation2 + $0x28] sm:$0xff]
      %v2415 = vld [vmem:[#allocation2 + $0x30] sm:$0xff]
      %v2416 = vld [vmem:[#allocation2 + $0x38] sm:$0xff]
      %v2417 = vld [vmem:[#allocation2 + $0x40] sm:$0xff]
      %v2418 = vld [vmem:[#allocation2 + $0x48] sm:$0xff]
      %v2419 = vld [vmem:[#allocation2 + $0x50] sm:$0xff]
      %v2420 = vld [vmem:[#allocation2 + $0x58] sm:$0xff]
      %v2421 = vld [vmem:[#allocation2 + $0x60] sm:$0xff]
      %v2422 = vld [vmem:[#allocation2 + $0x68] sm:$0xff]
      %v2423 = vld [vmem:[#allocation2 + $0x70] sm:$0xff]
      %v2424 = vld [vmem:[#allocation2 + $0x78] sm:$0xff]
      %v2425 = vld [vmem:[#allocation2 + $0x80] sm:$0xff]
      %s2426 = scalar_lea.vmem %s3, 6
      %v2427 = vld [vmem:[%s2426] sm:$0x3]
      %v2429 = vsel %vm346, %v2410, 0
      %v2432 = vsel %vm346, %v2411, 0
      %v2435 = vsel %vm346, %v2412, 0
      %v2438 = vsel %vm346, %v2413, 0
      %v2441 = vsel %vm346, %v2414, 0
      %v2444 = vsel %vm346, %v2415, 0
      %v2447 = vsel %vm346, %v2416, 0
      %v2450 = vsel %vm346, %v2417, 0
      %v2453 = vsel %vm346, %v2418, 0
      %v2456 = vsel %vm346, %v2419, 0
      %v2459 = vsel %vm346, %v2420, 0
      %v2462 = vsel %vm346, %v2421, 0
      %v2465 = vsel %vm346, %v2422, 0
      %v2468 = vsel %vm346, %v2423, 0
      %v2471 = vsel %vm346, %v2424, 0
      %v2474 = vsel %vm346, %v2425, 0
      %v2477 = vsel %vm395, %v2427, 0
      %2479 = vmatprep.subr.bf16.mxu0 0
      %2480 = vmatpush1.bf16.msra.mxu0 %v2477
      %2481 = vmatprep.subr.bf16.mxu0 0
      %2482 = vmatpush1.bf16.msra.mxu0 0
      %2483 = vmatprep.subr.bf16.mxu0 0
      %2484 = vmatpush1.bf16.msra.mxu0 0
      %2485 = vmatprep.subr.bf16.mxu0 0
      %2486 = vmatpush1.bf16.msra.mxu0 0
      %2487 = vmatprep.subr.bf16.mxu0 0
      %2488 = vmatpush1.bf16.msra.mxu0 0
      %2489 = vmatprep.subr.bf16.mxu0 0
      %2490 = vmatpush1.bf16.msra.mxu0 0
      %2491 = vmatprep.subr.bf16.mxu0 0
      %2492 = vmatpush1.bf16.msra.mxu0 0
      %2493 = vmatprep.subr.bf16.mxu0 0
      %2494 = vmatpush1.bf16.msra.mxu0 0
      %2495 = vmatprep.subr.bf16.mxu0 0
      %2496 = vmatpush1.bf16.msra.mxu0 0
      %2497 = vmatprep.subr.bf16.mxu0 0
      %2498 = vmatpush1.bf16.msra.mxu0 0
      %2499 = vmatprep.subr.bf16.mxu0 0
      %2500 = vmatpush1.bf16.msra.mxu0 0
      %2501 = vmatprep.subr.bf16.mxu0 0
      %2502 = vmatpush1.bf16.msra.mxu0 0
      %2503 = vmatprep.subr.bf16.mxu0 0
      %2504 = vmatpush1.bf16.msra.mxu0 0
      %2505 = vmatprep.subr.bf16.mxu0 0
      %2506 = vmatpush1.bf16.msra.mxu0 0
      %2507 = vmatprep.subr.bf16.mxu0 0
      %2508 = vmatpush1.bf16.msra.mxu0 0
      %2509 = vmatprep.subr.bf16.mxu0 0
      %2510 = vmatpush1.bf16.msra.mxu0 0
      %2511 = vmatprep.mubr.bf16.mxu0 0
      %2512 = vmatmul.mubr.bf16.gmra.mrb[0].mxu0 %v2429
      %v2513 = vpop.f32.mrb[0].mxu0
      %v2514 = vadd.f32 0.0, %v2513
      %v2515 = vpop.f32.mrb[0].mxu0
      %v2516 = vpop.f32.mrb[0].mxu0
      %v2517 = vadd.f32 0.0, %v2516
      %v2518 = vpop.f32.mrb[0].mxu0
      %2519 = vmatprep.mubr.bf16.mxu0 0
      %2520 = vmatmul.mubr.bf16.gmra.mrb[0].mxu0 %v2432
      %v2521 = vpop.f32.mrb[0].mxu0
      %v2522 = vadd.f32 0.0, %v2521
      %v2523 = vpop.f32.mrb[0].mxu0
      %v2524 = vpop.f32.mrb[0].mxu0
      %v2525 = vadd.f32 0.0, %v2524
      %v2526 = vpop.f32.mrb[0].mxu0
      %2527 = vmatprep.mubr.bf16.mxu0 0
      %2528 = vmatmul.mubr.bf16.gmra.mrb[0].mxu0 %v2435
      %v2529 = vpop.f32.mrb[0].mxu0
      %v2530 = vadd.f32 0.0, %v2529
      %v2531 = vpop.f32.mrb[0].mxu0
      %v2532 = vpop.f32.mrb[0].mxu0
      %v2533 = vadd.f32 0.0, %v2532
      %v2534 = vpop.f32.mrb[0].mxu0
      %2535 = vmatprep.mubr.bf16.mxu0 0
      %2536 = vmatmul.mubr.bf16.gmra.mrb[0].mxu0 %v2438
      %v2537 = vpop.f32.mrb[0].mxu0
      %v2538 = vadd.f32 0.0, %v2537
      %v2539 = vpop.f32.mrb[0].mxu0
      %v2540 = vpop.f32.mrb[0].mxu0
      %v2541 = vadd.f32 0.0, %v2540
      %v2542 = vpop.f32.mrb[0].mxu0
      %2543 = vmatprep.mubr.bf16.mxu0 0
      %2544 = vmatmul.mubr.bf16.gmra.mrb[0].mxu0 %v2441
      %v2545 = vpop.f32.mrb[0].mxu0
      %v2546 = vadd.f32 0.0, %v2545
      %v2547 = vpop.f32.mrb[0].mxu0
      %v2548 = vpop.f32.mrb[0].mxu0
      %v2549 = vadd.f32 0.0, %v2548
      %v2550 = vpop.f32.mrb[0].mxu0
      %2551 = vmatprep.mubr.bf16.mxu0 0
      %2552 = vmatmul.mubr.bf16.gmra.mrb[0].mxu0 %v2444
      %v2553 = vpop.f32.mrb[0].mxu0
      %v2554 = vadd.f32 0.0, %v2553
      %v2555 = vpop.f32.mrb[0].mxu0
      %v2556 = vpop.f32.mrb[0].mxu0
      %v2557 = vadd.f32 0.0, %v2556
      %v2558 = vpop.f32.mrb[0].mxu0
      %2559 = vmatprep.mubr.bf16.mxu0 0
      %2560 = vmatmul.mubr.bf16.gmra.mrb[0].mxu0 %v2447
      %v2561 = vpop.f32.mrb[0].mxu0
      %v2562 = vadd.f32 0.0, %v2561
      %v2563 = vpop.f32.mrb[0].mxu0
      %v2564 = vpop.f32.mrb[0].mxu0
      %v2565 = vadd.f32 0.0, %v2564
      %v2566 = vpop.f32.mrb[0].mxu0
      %2567 = vmatprep.mubr.bf16.mxu0 0
      %2568 = vmatmul.mubr.bf16.gmra.mrb[0].mxu0 %v2450
      %v2569 = vpop.f32.mrb[0].mxu0
      %v2570 = vadd.f32 0.0, %v2569
      %v2571 = vpop.f32.mrb[0].mxu0
      %v2572 = vpop.f32.mrb[0].mxu0
      %v2573 = vadd.f32 0.0, %v2572
      %v2574 = vpop.f32.mrb[0].mxu0
      %2575 = vmatprep.mubr.bf16.mxu0 0
      %2576 = vmatmul.mubr.bf16.gmra.mrb[0].mxu0 %v2453
      %v2577 = vpop.f32.mrb[0].mxu0
      %v2578 = vadd.f32 0.0, %v2577
      %v2579 = vpop.f32.mrb[0].mxu0
      %v2580 = vpop.f32.mrb[0].mxu0
      %v2581 = vadd.f32 0.0, %v2580
      %v2582 = vpop.f32.mrb[0].mxu0
      %2583 = vmatprep.mubr.bf16.mxu0 0
      %2584 = vmatmul.mubr.bf16.gmra.mrb[0].mxu0 %v2456
      %v2585 = vpop.f32.mrb[0].mxu0
      %v2586 = vadd.f32 0.0, %v2585
      %v2587 = vpop.f32.mrb[0].mxu0
      %v2588 = vpop.f32.mrb[0].mxu0
      %v2589 = vadd.f32 0.0, %v2588
      %v2590 = vpop.f32.mrb[0].mxu0
      %2591 = vmatprep.mubr.bf16.mxu0 0
      %2592 = vmatmul.mubr.bf16.gmra.mrb[0].mxu0 %v2459
      %v2593 = vpop.f32.mrb[0].mxu0
      %v2594 = vadd.f32 0.0, %v2593
      %v2595 = vpop.f32.mrb[0].mxu0
      %v2596 = vpop.f32.mrb[0].mxu0
      %v2597 = vadd.f32 0.0, %v2596
      %v2598 = vpop.f32.mrb[0].mxu0
      %2599 = vmatprep.mubr.bf16.mxu0 0
      %2600 = vmatmul.mubr.bf16.gmra.mrb[0].mxu0 %v2462
      %v2601 = vpop.f32.mrb[0].mxu0
      %v2602 = vadd.f32 0.0, %v2601
      %v2603 = vpop.f32.mrb[0].mxu0
      %v2604 = vpop.f32.mrb[0].mxu0
      %v2605 = vadd.f32 0.0, %v2604
      %v2606 = vpop.f32.mrb[0].mxu0
      %2607 = vmatprep.mubr.bf16.mxu0 0
      %2608 = vmatmul.mubr.bf16.gmra.mrb[0].mxu0 %v2465
      %v2609 = vpop.f32.mrb[0].mxu0
      %v2610 = vadd.f32 0.0, %v2609
      %v2611 = vpop.f32.mrb[0].mxu0
      %v2612 = vpop.f32.mrb[0].mxu0
      %v2613 = vadd.f32 0.0, %v2612
      %v2614 = vpop.f32.mrb[0].mxu0
      %2615 = vmatprep.mubr.bf16.mxu0 0
      %2616 = vmatmul.mubr.bf16.gmra.mrb[0].mxu0 %v2468
      %v2617 = vpop.f32.mrb[0].mxu0
      %v2618 = vadd.f32 0.0, %v2617
      %v2619 = vpop.f32.mrb[0].mxu0
      %v2620 = vpop.f32.mrb[0].mxu0
      %v2621 = vadd.f32 0.0, %v2620
      %v2622 = vpop.f32.mrb[0].mxu0
      %2623 = vmatprep.mubr.bf16.mxu0 0
      %2624 = vmatmul.mubr.bf16.gmra.mrb[0].mxu0 %v2471
      %v2625 = vpop.f32.mrb[0].mxu0
      %v2626 = vadd.f32 0.0, %v2625
      %v2627 = vpop.f32.mrb[0].mxu0
      %v2628 = vpop.f32.mrb[0].mxu0
      %v2629 = vadd.f32 0.0, %v2628
      %v2630 = vpop.f32.mrb[0].mxu0
      %2631 = vmatprep.mubr.bf16.mxu0 0
      %2632 = vmatmul.mubr.bf16.gmra.mrb[0].mxu0 %v2474
      %v2633 = vpop.f32.mrb[0].mxu0
      %v2634 = vadd.f32 0.0, %v2633
      %v2635 = vpop.f32.mrb[0].mxu0
      %v2636 = vpop.f32.mrb[0].mxu0
      %v2637 = vadd.f32 0.0, %v2636
      %v2638 = vpop.f32.mrb[0].mxu0
      %2639 = vdwg.mxu0
      %v2640 = vadd.f32 %v2378, %v2514
      %v2641 = vadd.f32 %v2379, %v2517
      %v2642 = vadd.f32 %v2380, %v2522
      %v2643 = vadd.f32 %v2381, %v2525
      %v2644 = vadd.f32 %v2382, %v2530
      %v2645 = vadd.f32 %v2383, %v2533
      %v2646 = vadd.f32 %v2384, %v2538
      %v2647 = vadd.f32 %v2385, %v2541
      %v2648 = vadd.f32 %v2386, %v2546
      %v2649 = vadd.f32 %v2387, %v2549
      %v2650 = vadd.f32 %v2388, %v2554
      %v2651 = vadd.f32 %v2389, %v2557
      %v2652 = vadd.f32 %v2390, %v2562
      %v2653 = vadd.f32 %v2391, %v2565
      %v2654 = vadd.f32 %v2392, %v2570
      %v2655 = vadd.f32 %v2393, %v2573
      %v2656 = vadd.f32 %v2394, %v2578
      %v2657 = vadd.f32 %v2395, %v2581
      %v2658 = vadd.f32 %v2396, %v2586
      %v2659 = vadd.f32 %v2397, %v2589
      %v2660 = vadd.f32 %v2398, %v2594
      %v2661 = vadd.f32 %v2399, %v2597
      %v2662 = vadd.f32 %v2400, %v2602
      %v2663 = vadd.f32 %v2401, %v2605
      %v2664 = vadd.f32 %v2402, %v2610
      %v2665 = vadd.f32 %v2403, %v2613
      %v2666 = vadd.f32 %v2404, %v2618
      %v2667 = vadd.f32 %v2405, %v2621
      %v2668 = vadd.f32 %v2406, %v2626
      %v2669 = vadd.f32 %v2407, %v2629
      %v2670 = vadd.f32 %v2408, %v2634
      %v2671 = vadd.f32 %v2409, %v2637
      %v2672 = vld [vmem:[#allocation3 + $0x8] sm:$0xff]
      %v2673 = vld [vmem:[#allocation3 + $0x10] sm:$0xff]
      %v2674 = vld [vmem:[#allocation3 + $0x18] sm:$0xff]
      %v2675 = vld [vmem:[#allocation3 + $0x20] sm:$0xff]
      %v2676 = vld [vmem:[#allocation3 + $0x28] sm:$0xff]
      %v2677 = vld [vmem:[#allocation3 + $0x30] sm:$0xff]
      %v2678 = vld [vmem:[#allocation3 + $0x38] sm:$0xff]
      %v2679 = vld [vmem:[#allocation3 + $0x40] sm:$0xff]
      %v2680 = vld [vmem:[#allocation3 + $0x48] sm:$0xff]
      %v2681 = vld [vmem:[#allocation3 + $0x50] sm:$0xff]
      %v2682 = vld [vmem:[#allocation3 + $0x58] sm:$0xff]
      %v2683 = vld [vmem:[#allocation3 + $0x60] sm:$0xff]
      %v2684 = vld [vmem:[#allocation3 + $0x68] sm:$0xff]
      %v2685 = vld [vmem:[#allocation3 + $0x70] sm:$0xff]
      %v2686 = vld [vmem:[#allocation3 + $0x78] sm:$0xff]
      %v2687 = vld [vmem:[#allocation3 + $0x80] sm:$0xff]
      %s2688 = scalar_lea.vmem %s3, 8
      %v2689 = vld [vmem:[%s2688] sm:$0x3]
      %v2691 = vsel %vm346, %v2672, 0
      %v2694 = vsel %vm346, %v2673, 0
      %v2697 = vsel %vm346, %v2674, 0
      %v2700 = vsel %vm346, %v2675, 0
      %v2703 = vsel %vm346, %v2676, 0
      %v2706 = vsel %vm346, %v2677, 0
      %v2709 = vsel %vm346, %v2678, 0
      %v2712 = vsel %vm346, %v2679, 0
      %v2715 = vsel %vm346, %v2680, 0
      %v2718 = vsel %vm346, %v2681, 0
      %v2721 = vsel %vm346, %v2682, 0
      %v2724 = vsel %vm346, %v2683, 0
      %v2727 = vsel %vm346, %v2684, 0
      %v2730 = vsel %vm346, %v2685, 0
      %v2733 = vsel %vm346, %v2686, 0
      %v2736 = vsel %vm346, %v2687, 0
      %v2739 = vsel %vm395, %v2689, 0
      %2741 = vmatprep.subr.bf16.mxu0 0
      %2742 = vmatpush1.bf16.msra.mxu0 %v2739
      %2743 = vmatprep.subr.bf16.mxu0 0
      %2744 = vmatpush1.bf16.msra.mxu0 0
      %2745 = vmatprep.subr.bf16.mxu0 0
      %2746 = vmatpush1.bf16.msra.mxu0 0
      %2747 = vmatprep.subr.bf16.mxu0 0
      %2748 = vmatpush1.bf16.msra.mxu0 0
      %2749 = vmatprep.subr.bf16.mxu0 0
      %2750 = vmatpush1.bf16.msra.mxu0 0
      %2751 = vmatprep.subr.bf16.mxu0 0
      %2752 = vmatpush1.bf16.msra.mxu0 0
      %2753 = vmatprep.subr.bf16.mxu0 0
      %2754 = vmatpush1.bf16.msra.mxu0 0
      %2755 = vmatprep.subr.bf16.mxu0 0
      %2756 = vmatpush1.bf16.msra.mxu0 0
      %2757 = vmatprep.subr.bf16.mxu0 0
      %2758 = vmatpush1.bf16.msra.mxu0 0
      %2759 = vmatprep.subr.bf16.mxu0 0
      %2760 = vmatpush1.bf16.msra.mxu0 0
      %2761 = vmatprep.subr.bf16.mxu0 0
      %2762 = vmatpush1.bf16.msra.mxu0 0
      %2763 = vmatprep.subr.bf16.mxu0 0
      %2764 = vmatpush1.bf16.msra.mxu0 0
      %2765 = vmatprep.subr.bf16.mxu0 0
      %2766 = vmatpush1.bf16.msra.mxu0 0
      %2767 = vmatprep.subr.bf16.mxu0 0
      %2768 = vmatpush1.bf16.msra.mxu0 0
      %2769 = vmatprep.subr.bf16.mxu0 0
      %2770 = vmatpush1.bf16.msra.mxu0 0
      %2771 = vmatprep.subr.bf16.mxu0 0
      %2772 = vmatpush1.bf16.msra.mxu0 0
      %2773 = vmatprep.mubr.bf16.mxu0 0
      %2774 = vmatmul.mubr.bf16.gmra.mrb[0].mxu0 %v2691
      %v2775 = vpop.f32.mrb[0].mxu0
      %v2776 = vadd.f32 0.0, %v2775
      %v2777 = vpop.f32.mrb[0].mxu0
      %v2778 = vpop.f32.mrb[0].mxu0
      %v2779 = vadd.f32 0.0, %v2778
      %v2780 = vpop.f32.mrb[0].mxu0
      %2781 = vmatprep.mubr.bf16.mxu0 0
      %2782 = vmatmul.mubr.bf16.gmra.mrb[0].mxu0 %v2694
      %v2783 = vpop.f32.mrb[0].mxu0
      %v2784 = vadd.f32 0.0, %v2783
      %v2785 = vpop.f32.mrb[0].mxu0
      %v2786 = vpop.f32.mrb[0].mxu0
      %v2787 = vadd.f32 0.0, %v2786
      %v2788 = vpop.f32.mrb[0].mxu0
      %2789 = vmatprep.mubr.bf16.mxu0 0
      %2790 = vmatmul.mubr.bf16.gmra.mrb[0].mxu0 %v2697
      %v2791 = vpop.f32.mrb[0].mxu0
      %v2792 = vadd.f32 0.0, %v2791
      %v2793 = vpop.f32.mrb[0].mxu0
      %v2794 = vpop.f32.mrb[0].mxu0
      %v2795 = vadd.f32 0.0, %v2794
      %v2796 = vpop.f32.mrb[0].mxu0
      %2797 = vmatprep.mubr.bf16.mxu0 0
      %2798 = vmatmul.mubr.bf16.gmra.mrb[0].mxu0 %v2700
      %v2799 = vpop.f32.mrb[0].mxu0
      %v2800 = vadd.f32 0.0, %v2799
      %v2801 = vpop.f32.mrb[0].mxu0
      %v2802 = vpop.f32.mrb[0].mxu0
      %v2803 = vadd.f32 0.0, %v2802
      %v2804 = vpop.f32.mrb[0].mxu0
      %2805 = vmatprep.mubr.bf16.mxu0 0
      %2806 = vmatmul.mubr.bf16.gmra.mrb[0].mxu0 %v2703
      %v2807 = vpop.f32.mrb[0].mxu0
      %v2808 = vadd.f32 0.0, %v2807
      %v2809 = vpop.f32.mrb[0].mxu0
      %v2810 = vpop.f32.mrb[0].mxu0
      %v2811 = vadd.f32 0.0, %v2810
      %v2812 = vpop.f32.mrb[0].mxu0
      %2813 = vmatprep.mubr.bf16.mxu0 0
      %2814 = vmatmul.mubr.bf16.gmra.mrb[0].mxu0 %v2706
      %v2815 = vpop.f32.mrb[0].mxu0
      %v2816 = vadd.f32 0.0, %v2815
      %v2817 = vpop.f32.mrb[0].mxu0
      %v2818 = vpop.f32.mrb[0].mxu0
      %v2819 = vadd.f32 0.0, %v2818
      %v2820 = vpop.f32.mrb[0].mxu0
      %2821 = vmatprep.mubr.bf16.mxu0 0
      %2822 = vmatmul.mubr.bf16.gmra.mrb[0].mxu0 %v2709
      %v2823 = vpop.f32.mrb[0].mxu0
      %v2824 = vadd.f32 0.0, %v2823
      %v2825 = vpop.f32.mrb[0].mxu0
      %v2826 = vpop.f32.mrb[0].mxu0
      %v2827 = vadd.f32 0.0, %v2826
      %v2828 = vpop.f32.mrb[0].mxu0
      %2829 = vmatprep.mubr.bf16.mxu0 0
      %2830 = vmatmul.mubr.bf16.gmra.mrb[0].mxu0 %v2712
      %v2831 = vpop.f32.mrb[0].mxu0
      %v2832 = vadd.f32 0.0, %v2831
      %v2833 = vpop.f32.mrb[0].mxu0
      %v2834 = vpop.f32.mrb[0].mxu0
      %v2835 = vadd.f32 0.0, %v2834
      %v2836 = vpop.f32.mrb[0].mxu0
      %2837 = vmatprep.mubr.bf16.mxu0 0
      %2838 = vmatmul.mubr.bf16.gmra.mrb[0].mxu0 %v2715
      %v2839 = vpop.f32.mrb[0].mxu0
      %v2840 = vadd.f32 0.0, %v2839
      %v2841 = vpop.f32.mrb[0].mxu0
      %v2842 = vpop.f32.mrb[0].mxu0
      %v2843 = vadd.f32 0.0, %v2842
      %v2844 = vpop.f32.mrb[0].mxu0
      %2845 = vmatprep.mubr.bf16.mxu0 0
      %2846 = vmatmul.mubr.bf16.gmra.mrb[0].mxu0 %v2718
      %v2847 = vpop.f32.mrb[0].mxu0
      %v2848 = vadd.f32 0.0, %v2847
      %v2849 = vpop.f32.mrb[0].mxu0
      %v2850 = vpop.f32.mrb[0].mxu0
      %v2851 = vadd.f32 0.0, %v2850
      %v2852 = vpop.f32.mrb[0].mxu0
      %2853 = vmatprep.mubr.bf16.mxu0 0
      %2854 = vmatmul.mubr.bf16.gmra.mrb[0].mxu0 %v2721
      %v2855 = vpop.f32.mrb[0].mxu0
      %v2856 = vadd.f32 0.0, %v2855
      %v2857 = vpop.f32.mrb[0].mxu0
      %v2858 = vpop.f32.mrb[0].mxu0
      %v2859 = vadd.f32 0.0, %v2858
      %v2860 = vpop.f32.mrb[0].mxu0
      %2861 = vmatprep.mubr.bf16.mxu0 0
      %2862 = vmatmul.mubr.bf16.gmra.mrb[0].mxu0 %v2724
      %v2863 = vpop.f32.mrb[0].mxu0
      %v2864 = vadd.f32 0.0, %v2863
      %v2865 = vpop.f32.mrb[0].mxu0
      %v2866 = vpop.f32.mrb[0].mxu0
      %v2867 = vadd.f32 0.0, %v2866
      %v2868 = vpop.f32.mrb[0].mxu0
      %2869 = vmatprep.mubr.bf16.mxu0 0
      %2870 = vmatmul.mubr.bf16.gmra.mrb[0].mxu0 %v2727
      %v2871 = vpop.f32.mrb[0].mxu0
      %v2872 = vadd.f32 0.0, %v2871
      %v2873 = vpop.f32.mrb[0].mxu0
      %v2874 = vpop.f32.mrb[0].mxu0
      %v2875 = vadd.f32 0.0, %v2874
      %v2876 = vpop.f32.mrb[0].mxu0
      %2877 = vmatprep.mubr.bf16.mxu0 0
      %2878 = vmatmul.mubr.bf16.gmra.mrb[0].mxu0 %v2730
      %v2879 = vpop.f32.mrb[0].mxu0
      %v2880 = vadd.f32 0.0, %v2879
      %v2881 = vpop.f32.mrb[0].mxu0
      %v2882 = vpop.f32.mrb[0].mxu0
      %v2883 = vadd.f32 0.0, %v2882
      %v2884 = vpop.f32.mrb[0].mxu0
      %2885 = vmatprep.mubr.bf16.mxu0 0
      %2886 = vmatmul.mubr.bf16.gmra.mrb[0].mxu0 %v2733
      %v2887 = vpop.f32.mrb[0].mxu0
      %v2888 = vadd.f32 0.0, %v2887
      %v2889 = vpop.f32.mrb[0].mxu0
      %v2890 = vpop.f32.mrb[0].mxu0
      %v2891 = vadd.f32 0.0, %v2890
      %v2892 = vpop.f32.mrb[0].mxu0
      %2893 = vmatprep.mubr.bf16.mxu0 0
      %2894 = vmatmul.mubr.bf16.gmra.mrb[0].mxu0 %v2736
      %v2895 = vpop.f32.mrb[0].mxu0
      %v2896 = vadd.f32 0.0, %v2895
      %v2897 = vpop.f32.mrb[0].mxu0
      %v2898 = vpop.f32.mrb[0].mxu0
      %v2899 = vadd.f32 0.0, %v2898
      %v2900 = vpop.f32.mrb[0].mxu0
      %2901 = vdwg.mxu0
      %v2902 = vadd.f32 %v2640, %v2776
      %v2903 = vadd.f32 %v2641, %v2779
      %v2904 = vadd.f32 %v2642, %v2784
      %v2905 = vadd.f32 %v2643, %v2787
      %v2906 = vadd.f32 %v2644, %v2792
      %v2907 = vadd.f32 %v2645, %v2795
      %v2908 = vadd.f32 %v2646, %v2800
      %v2909 = vadd.f32 %v2647, %v2803
      %v2910 = vadd.f32 %v2648, %v2808
      %v2911 = vadd.f32 %v2649, %v2811
      %v2912 = vadd.f32 %v2650, %v2816
      %v2913 = vadd.f32 %v2651, %v2819
      %v2914 = vadd.f32 %v2652, %v2824
      %v2915 = vadd.f32 %v2653, %v2827
      %v2916 = vadd.f32 %v2654, %v2832
      %v2917 = vadd.f32 %v2655, %v2835
      %v2918 = vadd.f32 %v2656, %v2840
      %v2919 = vadd.f32 %v2657, %v2843
      %v2920 = vadd.f32 %v2658, %v2848
      %v2921 = vadd.f32 %v2659, %v2851
      %v2922 = vadd.f32 %v2660, %v2856
      %v2923 = vadd.f32 %v2661, %v2859
      %v2924 = vadd.f32 %v2662, %v2864
      %v2925 = vadd.f32 %v2663, %v2867
      %v2926 = vadd.f32 %v2664, %v2872
      %v2927 = vadd.f32 %v2665, %v2875
      %v2928 = vadd.f32 %v2666, %v2880
      %v2929 = vadd.f32 %v2667, %v2883
      %v2930 = vadd.f32 %v2668, %v2888
      %v2931 = vadd.f32 %v2669, %v2891
      %v2932 = vadd.f32 %v2670, %v2896
      %v2933 = vadd.f32 %v2671, %v2899
      %v2934 = vld [vmem:[#allocation4 + $0x8] sm:$0xff]
      %v2935 = vld [vmem:[#allocation4 + $0x10] sm:$0xff]
      %v2936 = vld [vmem:[#allocation4 + $0x18] sm:$0xff]
      %v2937 = vld [vmem:[#allocation4 + $0x20] sm:$0xff]
      %v2938 = vld [vmem:[#allocation4 + $0x28] sm:$0xff]
      %v2939 = vld [vmem:[#allocation4 + $0x30] sm:$0xff]
      %v2940 = vld [vmem:[#allocation4 + $0x38] sm:$0xff]
      %v2941 = vld [vmem:[#allocation4 + $0x40] sm:$0xff]
      %v2942 = vld [vmem:[#allocation4 + $0x48] sm:$0xff]
      %v2943 = vld [vmem:[#allocation4 + $0x50] sm:$0xff]
      %v2944 = vld [vmem:[#allocation4 + $0x58] sm:$0xff]
      %v2945 = vld [vmem:[#allocation4 + $0x60] sm:$0xff]
      %v2946 = vld [vmem:[#allocation4 + $0x68] sm:$0xff]
      %v2947 = vld [vmem:[#allocation4 + $0x70] sm:$0xff]
      %v2948 = vld [vmem:[#allocation4 + $0x78] sm:$0xff]
      %v2949 = vld [vmem:[#allocation4 + $0x80] sm:$0xff]
      %s2950 = scalar_lea.vmem %s3, 10
      %v2951 = vld [vmem:[%s2950] sm:$0x3]
      %v2953 = vsel %vm346, %v2934, 0
      %v2956 = vsel %vm346, %v2935, 0
      %v2959 = vsel %vm346, %v2936, 0
      %v2962 = vsel %vm346, %v2937, 0
      %v2965 = vsel %vm346, %v2938, 0
      %v2968 = vsel %vm346, %v2939, 0
      %v2971 = vsel %vm346, %v2940, 0
      %v2974 = vsel %vm346, %v2941, 0
      %v2977 = vsel %vm346, %v2942, 0
      %v2980 = vsel %vm346, %v2943, 0
      %v2983 = vsel %vm346, %v2944, 0
      %v2986 = vsel %vm346, %v2945, 0
      %v2989 = vsel %vm346, %v2946, 0
      %v2992 = vsel %vm346, %v2947, 0
      %v2995 = vsel %vm346, %v2948, 0
      %v2998 = vsel %vm346, %v2949, 0
      %v3001 = vsel %vm395, %v2951, 0
      %3003 = vmatprep.subr.bf16.mxu0 0
      %3004 = vmatpush1.bf16.msra.mxu0 %v3001
      %3005 = vmatprep.subr.bf16.mxu0 0
      %3006 = vmatpush1.bf16.msra.mxu0 0
      %3007 = vmatprep.subr.bf16.mxu0 0
      %3008 = vmatpush1.bf16.msra.mxu0 0
      %3009 = vmatprep.subr.bf16.mxu0 0
      %3010 = vmatpush1.bf16.msra.mxu0 0
      %3011 = vmatprep.subr.bf16.mxu0 0
      %3012 = vmatpush1.bf16.msra.mxu0 0
      %3013 = vmatprep.subr.bf16.mxu0 0
      %3014 = vmatpush1.bf16.msra.mxu0 0
      %3015 = vmatprep.subr.bf16.mxu0 0
      %3016 = vmatpush1.bf16.msra.mxu0 0
      %3017 = vmatprep.subr.bf16.mxu0 0
      %3018 = vmatpush1.bf16.msra.mxu0 0
      %3019 = vmatprep.subr.bf16.mxu0 0
      %3020 = vmatpush1.bf16.msra.mxu0 0
      %3021 = vmatprep.subr.bf16.mxu0 0
      %3022 = vmatpush1.bf16.msra.mxu0 0
      %3023 = vmatprep.subr.bf16.mxu0 0
      %3024 = vmatpush1.bf16.msra.mxu0 0
      %3025 = vmatprep.subr.bf16.mxu0 0
      %3026 = vmatpush1.bf16.msra.mxu0 0
      %3027 = vmatprep.subr.bf16.mxu0 0
      %3028 = vmatpush1.bf16.msra.mxu0 0
      %3029 = vmatprep.subr.bf16.mxu0 0
      %3030 = vmatpush1.bf16.msra.mxu0 0
      %3031 = vmatprep.subr.bf16.mxu0 0
      %3032 = vmatpush1.bf16.msra.mxu0 0
      %3033 = vmatprep.subr.bf16.mxu0 0
      %3034 = vmatpush1.bf16.msra.mxu0 0
      %3035 = vmatprep.mubr.bf16.mxu0 0
      %3036 = vmatmul.mubr.bf16.gmra.mrb[0].mxu0 %v2953
      %v3037 = vpop.f32.mrb[0].mxu0
      %v3038 = vadd.f32 0.0, %v3037
      %v3039 = vpop.f32.mrb[0].mxu0
      %v3040 = vpop.f32.mrb[0].mxu0
      %v3041 = vadd.f32 0.0, %v3040
      %v3042 = vpop.f32.mrb[0].mxu0
      %3043 = vmatprep.mubr.bf16.mxu0 0
      %3044 = vmatmul.mubr.bf16.gmra.mrb[0].mxu0 %v2956
      %v3045 = vpop.f32.mrb[0].mxu0
      %v3046 = vadd.f32 0.0, %v3045
      %v3047 = vpop.f32.mrb[0].mxu0
      %v3048 = vpop.f32.mrb[0].mxu0
      %v3049 = vadd.f32 0.0, %v3048
      %v3050 = vpop.f32.mrb[0].mxu0
      %3051 = vmatprep.mubr.bf16.mxu0 0
      %3052 = vmatmul.mubr.bf16.gmra.mrb[0].mxu0 %v2959
      %v3053 = vpop.f32.mrb[0].mxu0
      %v3054 = vadd.f32 0.0, %v3053
      %v3055 = vpop.f32.mrb[0].mxu0
      %v3056 = vpop.f32.mrb[0].mxu0
      %v3057 = vadd.f32 0.0, %v3056
      %v3058 = vpop.f32.mrb[0].mxu0
      %3059 = vmatprep.mubr.bf16.mxu0 0
      %3060 = vmatmul.mubr.bf16.gmra.mrb[0].mxu0 %v2962
      %v3061 = vpop.f32.mrb[0].mxu0
      %v3062 = vadd.f32 0.0, %v3061
      %v3063 = vpop.f32.mrb[0].mxu0
      %v3064 = vpop.f32.mrb[0].mxu0
      %v3065 = vadd.f32 0.0, %v3064
      %v3066 = vpop.f32.mrb[0].mxu0
      %3067 = vmatprep.mubr.bf16.mxu0 0
      %3068 = vmatmul.mubr.bf16.gmra.mrb[0].mxu0 %v2965
      %v3069 = vpop.f32.mrb[0].mxu0
      %v3070 = vadd.f32 0.0, %v3069
      %v3071 = vpop.f32.mrb[0].mxu0
      %v3072 = vpop.f32.mrb[0].mxu0
      %v3073 = vadd.f32 0.0, %v3072
      %v3074 = vpop.f32.mrb[0].mxu0
      %3075 = vmatprep.mubr.bf16.mxu0 0
      %3076 = vmatmul.mubr.bf16.gmra.mrb[0].mxu0 %v2968
      %v3077 = vpop.f32.mrb[0].mxu0
      %v3078 = vadd.f32 0.0, %v3077
      %v3079 = vpop.f32.mrb[0].mxu0
      %v3080 = vpop.f32.mrb[0].mxu0
      %v3081 = vadd.f32 0.0, %v3080
      %v3082 = vpop.f32.mrb[0].mxu0
      %3083 = vmatprep.mubr.bf16.mxu0 0
      %3084 = vmatmul.mubr.bf16.gmra.mrb[0].mxu0 %v2971
      %v3085 = vpop.f32.mrb[0].mxu0
      %v3086 = vadd.f32 0.0, %v3085
      %v3087 = vpop.f32.mrb[0].mxu0
      %v3088 = vpop.f32.mrb[0].mxu0
      %v3089 = vadd.f32 0.0, %v3088
      %v3090 = vpop.f32.mrb[0].mxu0
      %3091 = vmatprep.mubr.bf16.mxu0 0
      %3092 = vmatmul.mubr.bf16.gmra.mrb[0].mxu0 %v2974
      %v3093 = vpop.f32.mrb[0].mxu0
      %v3094 = vadd.f32 0.0, %v3093
      %v3095 = vpop.f32.mrb[0].mxu0
      %v3096 = vpop.f32.mrb[0].mxu0
      %v3097 = vadd.f32 0.0, %v3096
      %v3098 = vpop.f32.mrb[0].mxu0
      %3099 = vmatprep.mubr.bf16.mxu0 0
      %3100 = vmatmul.mubr.bf16.gmra.mrb[0].mxu0 %v2977
      %v3101 = vpop.f32.mrb[0].mxu0
      %v3102 = vadd.f32 0.0, %v3101
      %v3103 = vpop.f32.mrb[0].mxu0
      %v3104 = vpop.f32.mrb[0].mxu0
      %v3105 = vadd.f32 0.0, %v3104
      %v3106 = vpop.f32.mrb[0].mxu0
      %3107 = vmatprep.mubr.bf16.mxu0 0
      %3108 = vmatmul.mubr.bf16.gmra.mrb[0].mxu0 %v2980
      %v3109 = vpop.f32.mrb[0].mxu0
      %v3110 = vadd.f32 0.0, %v3109
      %v3111 = vpop.f32.mrb[0].mxu0
      %v3112 = vpop.f32.mrb[0].mxu0
      %v3113 = vadd.f32 0.0, %v3112
      %v3114 = vpop.f32.mrb[0].mxu0
      %3115 = vmatprep.mubr.bf16.mxu0 0
      %3116 = vmatmul.mubr.bf16.gmra.mrb[0].mxu0 %v2983
      %v3117 = vpop.f32.mrb[0].mxu0
      %v3118 = vadd.f32 0.0, %v3117
      %v3119 = vpop.f32.mrb[0].mxu0
      %v3120 = vpop.f32.mrb[0].mxu0
      %v3121 = vadd.f32 0.0, %v3120
      %v3122 = vpop.f32.mrb[0].mxu0
      %3123 = vmatprep.mubr.bf16.mxu0 0
      %3124 = vmatmul.mubr.bf16.gmra.mrb[0].mxu0 %v2986
      %v3125 = vpop.f32.mrb[0].mxu0
      %v3126 = vadd.f32 0.0, %v3125
      %v3127 = vpop.f32.mrb[0].mxu0
      %v3128 = vpop.f32.mrb[0].mxu0
      %v3129 = vadd.f32 0.0, %v3128
      %v3130 = vpop.f32.mrb[0].mxu0
      %3131 = vmatprep.mubr.bf16.mxu0 0
      %3132 = vmatmul.mubr.bf16.gmra.mrb[0].mxu0 %v2989
      %v3133 = vpop.f32.mrb[0].mxu0
      %v3134 = vadd.f32 0.0, %v3133
      %v3135 = vpop.f32.mrb[0].mxu0
      %v3136 = vpop.f32.mrb[0].mxu0
      %v3137 = vadd.f32 0.0, %v3136
      %v3138 = vpop.f32.mrb[0].mxu0
      %3139 = vmatprep.mubr.bf16.mxu0 0
      %3140 = vmatmul.mubr.bf16.gmra.mrb[0].mxu0 %v2992
      %v3141 = vpop.f32.mrb[0].mxu0
      %v3142 = vadd.f32 0.0, %v3141
      %v3143 = vpop.f32.mrb[0].mxu0
      %v3144 = vpop.f32.mrb[0].mxu0
      %v3145 = vadd.f32 0.0, %v3144
      %v3146 = vpop.f32.mrb[0].mxu0
      %3147 = vmatprep.mubr.bf16.mxu0 0
      %3148 = vmatmul.mubr.bf16.gmra.mrb[0].mxu0 %v2995
      %v3149 = vpop.f32.mrb[0].mxu0
      %v3150 = vadd.f32 0.0, %v3149
      %v3151 = vpop.f32.mrb[0].mxu0
      %v3152 = vpop.f32.mrb[0].mxu0
      %v3153 = vadd.f32 0.0, %v3152
      %v3154 = vpop.f32.mrb[0].mxu0
      %3155 = vmatprep.mubr.bf16.mxu0 0
      %3156 = vmatmul.mubr.bf16.gmra.mrb[0].mxu0 %v2998
      %v3157 = vpop.f32.mrb[0].mxu0
      %v3158 = vadd.f32 0.0, %v3157
      %v3159 = vpop.f32.mrb[0].mxu0
      %v3160 = vpop.f32.mrb[0].mxu0
      %v3161 = vadd.f32 0.0, %v3160
      %v3162 = vpop.f32.mrb[0].mxu0
      %3163 = vdwg.mxu0
      %v3164 = vadd.f32 %v2902, %v3038
      %v3165 = vadd.f32 %v2903, %v3041
      %v3166 = vadd.f32 %v2904, %v3046
      %v3167 = vadd.f32 %v2905, %v3049
      %v3168 = vadd.f32 %v2906, %v3054
      %v3169 = vadd.f32 %v2907, %v3057
      %v3170 = vadd.f32 %v2908, %v3062
      %v3171 = vadd.f32 %v2909, %v3065
      %v3172 = vadd.f32 %v2910, %v3070
      %v3173 = vadd.f32 %v2911, %v3073
      %v3174 = vadd.f32 %v2912, %v3078
      %v3175 = vadd.f32 %v2913, %v3081
      %v3176 = vadd.f32 %v2914, %v3086
      %v3177 = vadd.f32 %v2915, %v3089
      %v3178 = vadd.f32 %v2916, %v3094
      %v3179 = vadd.f32 %v2917, %v3097
      %v3180 = vadd.f32 %v2918, %v3102
      %v3181 = vadd.f32 %v2919, %v3105
      %v3182 = vadd.f32 %v2920, %v3110
      %v3183 = vadd.f32 %v2921, %v3113
      %v3184 = vadd.f32 %v2922, %v3118
      %v3185 = vadd.f32 %v2923, %v3121
      %v3186 = vadd.f32 %v2924, %v3126
      %v3187 = vadd.f32 %v2925, %v3129
      %v3188 = vadd.f32 %v2926, %v3134
      %v3189 = vadd.f32 %v2927, %v3137
      %v3190 = vadd.f32 %v2928, %v3142
      %v3191 = vadd.f32 %v2929, %v3145
      %v3192 = vadd.f32 %v2930, %v3150
      %v3193 = vadd.f32 %v2931, %v3153
      %v3194 = vadd.f32 %v2932, %v3158
      %v3195 = vadd.f32 %v2933, %v3161
      %v3196 = vld [vmem:[#allocation2 + $0x10] sm:$0xff]
      %v3197 = vld [vmem:[#allocation2 + $0x18] sm:$0xff]
      %v3198 = vld [vmem:[#allocation2 + $0x20] sm:$0xff]
      %v3199 = vld [vmem:[#allocation2 + $0x28] sm:$0xff]
      %v3200 = vld [vmem:[#allocation2 + $0x30] sm:$0xff]
      %v3201 = vld [vmem:[#allocation2 + $0x38] sm:$0xff]
      %v3202 = vld [vmem:[#allocation2 + $0x40] sm:$0xff]
      %v3203 = vld [vmem:[#allocation2 + $0x48] sm:$0xff]
      %v3204 = vld [vmem:[#allocation2 + $0x50] sm:$0xff]
      %v3205 = vld [vmem:[#allocation2 + $0x58] sm:$0xff]
      %v3206 = vld [vmem:[#allocation2 + $0x60] sm:$0xff]
      %v3207 = vld [vmem:[#allocation2 + $0x68] sm:$0xff]
      %v3208 = vld [vmem:[#allocation2 + $0x70] sm:$0xff]
      %v3209 = vld [vmem:[#allocation2 + $0x78] sm:$0xff]
      %v3210 = vld [vmem:[#allocation2 + $0x80] sm:$0xff]
      %v3211 = vld [vmem:[#allocation2 + $0x88] sm:$0xff]
      %s3212 = scalar_lea.vmem %s3, 12
      %v3213 = vld [vmem:[%s3212] sm:$0x3]
      %v3215 = vsel %vm346, %v3196, 0
      %v3218 = vsel %vm346, %v3197, 0
      %v3221 = vsel %vm346, %v3198, 0
      %v3224 = vsel %vm346, %v3199, 0
      %v3227 = vsel %vm346, %v3200, 0
      %v3230 = vsel %vm346, %v3201, 0
      %v3233 = vsel %vm346, %v3202, 0
      %v3236 = vsel %vm346, %v3203, 0
      %v3239 = vsel %vm346, %v3204, 0
      %v3242 = vsel %vm346, %v3205, 0
      %v3245 = vsel %vm346, %v3206, 0
      %v3248 = vsel %vm346, %v3207, 0
      %v3251 = vsel %vm346, %v3208, 0
      %v3254 = vsel %vm346, %v3209, 0
      %v3257 = vsel %vm346, %v3210, 0
      %v3260 = vsel %vm346, %v3211, 0
      %v3263 = vsel %vm395, %v3213, 0
      %3265 = vmatprep.subr.bf16.mxu0 0
      %3266 = vmatpush1.bf16.msra.mxu0 %v3263
      %3267 = vmatprep.subr.bf16.mxu0 0
      %3268 = vmatpush1.bf16.msra.mxu0 0
      %3269 = vmatprep.subr.bf16.mxu0 0
      %3270 = vmatpush1.bf16.msra.mxu0 0
      %3271 = vmatprep.subr.bf16.mxu0 0
      %3272 = vmatpush1.bf16.msra.mxu0 0
      %3273 = vmatprep.subr.bf16.mxu0 0
      %3274 = vmatpush1.bf16.msra.mxu0 0
      %3275 = vmatprep.subr.bf16.mxu0 0
      %3276 = vmatpush1.bf16.msra.mxu0 0
      %3277 = vmatprep.subr.bf16.mxu0 0
      %3278 = vmatpush1.bf16.msra.mxu0 0
      %3279 = vmatprep.subr.bf16.mxu0 0
      %3280 = vmatpush1.bf16.msra.mxu0 0
      %3281 = vmatprep.subr.bf16.mxu0 0
      %3282 = vmatpush1.bf16.msra.mxu0 0
      %3283 = vmatprep.subr.bf16.mxu0 0
      %3284 = vmatpush1.bf16.msra.mxu0 0
      %3285 = vmatprep.subr.bf16.mxu0 0
      %3286 = vmatpush1.bf16.msra.mxu0 0
      %3287 = vmatprep.subr.bf16.mxu0 0
      %3288 = vmatpush1.bf16.msra.mxu0 0
      %3289 = vmatprep.subr.bf16.mxu0 0
      %3290 = vmatpush1.bf16.msra.mxu0 0
      %3291 = vmatprep.subr.bf16.mxu0 0
      %3292 = vmatpush1.bf16.msra.mxu0 0
      %3293 = vmatprep.subr.bf16.mxu0 0
      %3294 = vmatpush1.bf16.msra.mxu0 0
      %3295 = vmatprep.subr.bf16.mxu0 0
      %3296 = vmatpush1.bf16.msra.mxu0 0
      %3297 = vmatprep.mubr.bf16.mxu0 0
      %3298 = vmatmul.mubr.bf16.gmra.mrb[0].mxu0 %v3215
      %v3299 = vpop.f32.mrb[0].mxu0
      %v3300 = vadd.f32 0.0, %v3299
      %v3301 = vpop.f32.mrb[0].mxu0
      %v3302 = vpop.f32.mrb[0].mxu0
      %v3303 = vadd.f32 0.0, %v3302
      %v3304 = vpop.f32.mrb[0].mxu0
      %3305 = vmatprep.mubr.bf16.mxu0 0
      %3306 = vmatmul.mubr.bf16.gmra.mrb[0].mxu0 %v3218
      %v3307 = vpop.f32.mrb[0].mxu0
      %v3308 = vadd.f32 0.0, %v3307
      %v3309 = vpop.f32.mrb[0].mxu0
      %v3310 = vpop.f32.mrb[0].mxu0
      %v3311 = vadd.f32 0.0, %v3310
      %v3312 = vpop.f32.mrb[0].mxu0
      %3313 = vmatprep.mubr.bf16.mxu0 0
      %3314 = vmatmul.mubr.bf16.gmra.mrb[0].mxu0 %v3221
      %v3315 = vpop.f32.mrb[0].mxu0
      %v3316 = vadd.f32 0.0, %v3315
      %v3317 = vpop.f32.mrb[0].mxu0
      %v3318 = vpop.f32.mrb[0].mxu0
      %v3319 = vadd.f32 0.0, %v3318
      %v3320 = vpop.f32.mrb[0].mxu0
      %3321 = vmatprep.mubr.bf16.mxu0 0
      %3322 = vmatmul.mubr.bf16.gmra.mrb[0].mxu0 %v3224
      %v3323 = vpop.f32.mrb[0].mxu0
      %v3324 = vadd.f32 0.0, %v3323
      %v3325 = vpop.f32.mrb[0].mxu0
      %v3326 = vpop.f32.mrb[0].mxu0
      %v3327 = vadd.f32 0.0, %v3326
      %v3328 = vpop.f32.mrb[0].mxu0
      %3329 = vmatprep.mubr.bf16.mxu0 0
      %3330 = vmatmul.mubr.bf16.gmra.mrb[0].mxu0 %v3227
      %v3331 = vpop.f32.mrb[0].mxu0
      %v3332 = vadd.f32 0.0, %v3331
      %v3333 = vpop.f32.mrb[0].mxu0
      %v3334 = vpop.f32.mrb[0].mxu0
      %v3335 = vadd.f32 0.0, %v3334
      %v3336 = vpop.f32.mrb[0].mxu0
      %3337 = vmatprep.mubr.bf16.mxu0 0
      %3338 = vmatmul.mubr.bf16.gmra.mrb[0].mxu0 %v3230
      %v3339 = vpop.f32.mrb[0].mxu0
      %v3340 = vadd.f32 0.0, %v3339
      %v3341 = vpop.f32.mrb[0].mxu0
      %v3342 = vpop.f32.mrb[0].mxu0
      %v3343 = vadd.f32 0.0, %v3342
      %v3344 = vpop.f32.mrb[0].mxu0
      %3345 = vmatprep.mubr.bf16.mxu0 0
      %3346 = vmatmul.mubr.bf16.gmra.mrb[0].mxu0 %v3233
      %v3347 = vpop.f32.mrb[0].mxu0
      %v3348 = vadd.f32 0.0, %v3347
      %v3349 = vpop.f32.mrb[0].mxu0
      %v3350 = vpop.f32.mrb[0].mxu0
      %v3351 = vadd.f32 0.0, %v3350
      %v3352 = vpop.f32.mrb[0].mxu0
      %3353 = vmatprep.mubr.bf16.mxu0 0
      %3354 = vmatmul.mubr.bf16.gmra.mrb[0].mxu0 %v3236
      %v3355 = vpop.f32.mrb[0].mxu0
      %v3356 = vadd.f32 0.0, %v3355
      %v3357 = vpop.f32.mrb[0].mxu0
      %v3358 = vpop.f32.mrb[0].mxu0
      %v3359 = vadd.f32 0.0, %v3358
      %v3360 = vpop.f32.mrb[0].mxu0
      %3361 = vmatprep.mubr.bf16.mxu0 0
      %3362 = vmatmul.mubr.bf16.gmra.mrb[0].mxu0 %v3239
      %v3363 = vpop.f32.mrb[0].mxu0
      %v3364 = vadd.f32 0.0, %v3363
      %v3365 = vpop.f32.mrb[0].mxu0
      %v3366 = vpop.f32.mrb[0].mxu0
      %v3367 = vadd.f32 0.0, %v3366
      %v3368 = vpop.f32.mrb[0].mxu0
      %3369 = vmatprep.mubr.bf16.mxu0 0
      %3370 = vmatmul.mubr.bf16.gmra.mrb[0].mxu0 %v3242
      %v3371 = vpop.f32.mrb[0].mxu0
      %v3372 = vadd.f32 0.0, %v3371
      %v3373 = vpop.f32.mrb[0].mxu0
      %v3374 = vpop.f32.mrb[0].mxu0
      %v3375 = vadd.f32 0.0, %v3374
      %v3376 = vpop.f32.mrb[0].mxu0
      %3377 = vmatprep.mubr.bf16.mxu0 0
      %3378 = vmatmul.mubr.bf16.gmra.mrb[0].mxu0 %v3245
      %v3379 = vpop.f32.mrb[0].mxu0
      %v3380 = vadd.f32 0.0, %v3379
      %v3381 = vpop.f32.mrb[0].mxu0
      %v3382 = vpop.f32.mrb[0].mxu0
      %v3383 = vadd.f32 0.0, %v3382
      %v3384 = vpop.f32.mrb[0].mxu0
      %3385 = vmatprep.mubr.bf16.mxu0 0
      %3386 = vmatmul.mubr.bf16.gmra.mrb[0].mxu0 %v3248
      %v3387 = vpop.f32.mrb[0].mxu0
      %v3388 = vadd.f32 0.0, %v3387
      %v3389 = vpop.f32.mrb[0].mxu0
      %v3390 = vpop.f32.mrb[0].mxu0
      %v3391 = vadd.f32 0.0, %v3390
      %v3392 = vpop.f32.mrb[0].mxu0
      %3393 = vmatprep.mubr.bf16.mxu0 0
      %3394 = vmatmul.mubr.bf16.gmra.mrb[0].mxu0 %v3251
      %v3395 = vpop.f32.mrb[0].mxu0
      %v3396 = vadd.f32 0.0, %v3395
      %v3397 = vpop.f32.mrb[0].mxu0
      %v3398 = vpop.f32.mrb[0].mxu0
      %v3399 = vadd.f32 0.0, %v3398
      %v3400 = vpop.f32.mrb[0].mxu0
      %3401 = vmatprep.mubr.bf16.mxu0 0
      %3402 = vmatmul.mubr.bf16.gmra.mrb[0].mxu0 %v3254
      %v3403 = vpop.f32.mrb[0].mxu0
      %v3404 = vadd.f32 0.0, %v3403
      %v3405 = vpop.f32.mrb[0].mxu0
      %v3406 = vpop.f32.mrb[0].mxu0
      %v3407 = vadd.f32 0.0, %v3406
      %v3408 = vpop.f32.mrb[0].mxu0
      %3409 = vmatprep.mubr.bf16.mxu0 0
      %3410 = vmatmul.mubr.bf16.gmra.mrb[0].mxu0 %v3257
      %v3411 = vpop.f32.mrb[0].mxu0
      %v3412 = vadd.f32 0.0, %v3411
      %v3413 = vpop.f32.mrb[0].mxu0
      %v3414 = vpop.f32.mrb[0].mxu0
      %v3415 = vadd.f32 0.0, %v3414
      %v3416 = vpop.f32.mrb[0].mxu0
      %3417 = vmatprep.mubr.bf16.mxu0 0
      %3418 = vmatmul.mubr.bf16.gmra.mrb[0].mxu0 %v3260
      %v3419 = vpop.f32.mrb[0].mxu0
      %v3420 = vadd.f32 0.0, %v3419
      %v3421 = vpop.f32.mrb[0].mxu0
      %v3422 = vpop.f32.mrb[0].mxu0
      %v3423 = vadd.f32 0.0, %v3422
      %v3424 = vpop.f32.mrb[0].mxu0
      %3425 = vdwg.mxu0
      %v3426 = vadd.f32 %v3164, %v3300
      %v3427 = vadd.f32 %v3165, %v3303
      %v3428 = vadd.f32 %v3166, %v3308
      %v3429 = vadd.f32 %v3167, %v3311
      %v3430 = vadd.f32 %v3168, %v3316
      %v3431 = vadd.f32 %v3169, %v3319
      %v3432 = vadd.f32 %v3170, %v3324
      %v3433 = vadd.f32 %v3171, %v3327
      %v3434 = vadd.f32 %v3172, %v3332
      %v3435 = vadd.f32 %v3173, %v3335
      %v3436 = vadd.f32 %v3174, %v3340
      %v3437 = vadd.f32 %v3175, %v3343
      %v3438 = vadd.f32 %v3176, %v3348
      %v3439 = vadd.f32 %v3177, %v3351
      %v3440 = vadd.f32 %v3178, %v3356
      %v3441 = vadd.f32 %v3179, %v3359
      %v3442 = vadd.f32 %v3180, %v3364
      %v3443 = vadd.f32 %v3181, %v3367
      %v3444 = vadd.f32 %v3182, %v3372
      %v3445 = vadd.f32 %v3183, %v3375
      %v3446 = vadd.f32 %v3184, %v3380
      %v3447 = vadd.f32 %v3185, %v3383
      %v3448 = vadd.f32 %v3186, %v3388
      %v3449 = vadd.f32 %v3187, %v3391
      %v3450 = vadd.f32 %v3188, %v3396
      %v3451 = vadd.f32 %v3189, %v3399
      %v3452 = vadd.f32 %v3190, %v3404
      %v3453 = vadd.f32 %v3191, %v3407
      %v3454 = vadd.f32 %v3192, %v3412
      %v3455 = vadd.f32 %v3193, %v3415
      %v3456 = vadd.f32 %v3194, %v3420
      %v3457 = vadd.f32 %v3195, %v3423
      %v3458 = vld [vmem:[#allocation3 + $0x10] sm:$0xff]
      %v3459 = vld [vmem:[#allocation3 + $0x18] sm:$0xff]
      %v3460 = vld [vmem:[#allocation3 + $0x20] sm:$0xff]
      %v3461 = vld [vmem:[#allocation3 + $0x28] sm:$0xff]
      %v3462 = vld [vmem:[#allocation3 + $0x30] sm:$0xff]
      %v3463 = vld [vmem:[#allocation3 + $0x38] sm:$0xff]
      %v3464 = vld [vmem:[#allocation3 + $0x40] sm:$0xff]
      %v3465 = vld [vmem:[#allocation3 + $0x48] sm:$0xff]
      %v3466 = vld [vmem:[#allocation3 + $0x50] sm:$0xff]
      %v3467 = vld [vmem:[#allocation3 + $0x58] sm:$0xff]
      %v3468 = vld [vmem:[#allocation3 + $0x60] sm:$0xff]
      %v3469 = vld [vmem:[#allocation3 + $0x68] sm:$0xff]
      %v3470 = vld [vmem:[#allocation3 + $0x70] sm:$0xff]
      %v3471 = vld [vmem:[#allocation3 + $0x78] sm:$0xff]
      %v3472 = vld [vmem:[#allocation3 + $0x80] sm:$0xff]
      %v3473 = vld [vmem:[#allocation3 + $0x88] sm:$0xff]
      %s3474 = scalar_lea.vmem %s3, 14
      %v3475 = vld [vmem:[%s3474] sm:$0x3]
      %v3477 = vsel %vm346, %v3458, 0
      %v3480 = vsel %vm346, %v3459, 0
      %v3483 = vsel %vm346, %v3460, 0
      %v3486 = vsel %vm346, %v3461, 0
      %v3489 = vsel %vm346, %v3462, 0
      %v3492 = vsel %vm346, %v3463, 0
      %v3495 = vsel %vm346, %v3464, 0
      %v3498 = vsel %vm346, %v3465, 0
      %v3501 = vsel %vm346, %v3466, 0
      %v3504 = vsel %vm346, %v3467, 0
      %v3507 = vsel %vm346, %v3468, 0
      %v3510 = vsel %vm346, %v3469, 0
      %v3513 = vsel %vm346, %v3470, 0
      %v3516 = vsel %vm346, %v3471, 0
      %v3519 = vsel %vm346, %v3472, 0
      %v3522 = vsel %vm346, %v3473, 0
      %v3525 = vsel %vm395, %v3475, 0
      %3527 = vmatprep.subr.bf16.mxu0 0
      %3528 = vmatpush1.bf16.msra.mxu0 %v3525
      %3529 = vmatprep.subr.bf16.mxu0 0
      %3530 = vmatpush1.bf16.msra.mxu0 0
      %3531 = vmatprep.subr.bf16.mxu0 0
      %3532 = vmatpush1.bf16.msra.mxu0 0
      %3533 = vmatprep.subr.bf16.mxu0 0
      %3534 = vmatpush1.bf16.msra.mxu0 0
      %3535 = vmatprep.subr.bf16.mxu0 0
      %3536 = vmatpush1.bf16.msra.mxu0 0
      %3537 = vmatprep.subr.bf16.mxu0 0
      %3538 = vmatpush1.bf16.msra.mxu0 0
      %3539 = vmatprep.subr.bf16.mxu0 0
      %3540 = vmatpush1.bf16.msra.mxu0 0
      %3541 = vmatprep.subr.bf16.mxu0 0
      %3542 = vmatpush1.bf16.msra.mxu0 0
      %3543 = vmatprep.subr.bf16.mxu0 0
      %3544 = vmatpush1.bf16.msra.mxu0 0
      %3545 = vmatprep.subr.bf16.mxu0 0
      %3546 = vmatpush1.bf16.msra.mxu0 0
      %3547 = vmatprep.subr.bf16.mxu0 0
      %3548 = vmatpush1.bf16.msra.mxu0 0
      %3549 = vmatprep.subr.bf16.mxu0 0
      %3550 = vmatpush1.bf16.msra.mxu0 0
      %3551 = vmatprep.subr.bf16.mxu0 0
      %3552 = vmatpush1.bf16.msra.mxu0 0
      %3553 = vmatprep.subr.bf16.mxu0 0
      %3554 = vmatpush1.bf16.msra.mxu0 0
      %3555 = vmatprep.subr.bf16.mxu0 0
      %3556 = vmatpush1.bf16.msra.mxu0 0
      %3557 = vmatprep.subr.bf16.mxu0 0
      %3558 = vmatpush1.bf16.msra.mxu0 0
      %3559 = vmatprep.mubr.bf16.mxu0 0
      %3560 = vmatmul.mubr.bf16.gmra.mrb[0].mxu0 %v3477
      %v3561 = vpop.f32.mrb[0].mxu0
      %v3562 = vadd.f32 0.0, %v3561
      %v3563 = vpop.f32.mrb[0].mxu0
      %v3564 = vpop.f32.mrb[0].mxu0
      %v3565 = vadd.f32 0.0, %v3564
      %v3566 = vpop.f32.mrb[0].mxu0
      %3567 = vmatprep.mubr.bf16.mxu0 0
      %3568 = vmatmul.mubr.bf16.gmra.mrb[0].mxu0 %v3480
      %v3569 = vpop.f32.mrb[0].mxu0
      %v3570 = vadd.f32 0.0, %v3569
      %v3571 = vpop.f32.mrb[0].mxu0
      %v3572 = vpop.f32.mrb[0].mxu0
      %v3573 = vadd.f32 0.0, %v3572
      %v3574 = vpop.f32.mrb[0].mxu0
      %3575 = vmatprep.mubr.bf16.mxu0 0
      %3576 = vmatmul.mubr.bf16.gmra.mrb[0].mxu0 %v3483
      %v3577 = vpop.f32.mrb[0].mxu0
      %v3578 = vadd.f32 0.0, %v3577
      %v3579 = vpop.f32.mrb[0].mxu0
      %v3580 = vpop.f32.mrb[0].mxu0
      %v3581 = vadd.f32 0.0, %v3580
      %v3582 = vpop.f32.mrb[0].mxu0
      %3583 = vmatprep.mubr.bf16.mxu0 0
      %3584 = vmatmul.mubr.bf16.gmra.mrb[0].mxu0 %v3486
      %v3585 = vpop.f32.mrb[0].mxu0
      %v3586 = vadd.f32 0.0, %v3585
      %v3587 = vpop.f32.mrb[0].mxu0
      %v3588 = vpop.f32.mrb[0].mxu0
      %v3589 = vadd.f32 0.0, %v3588
      %v3590 = vpop.f32.mrb[0].mxu0
      %3591 = vmatprep.mubr.bf16.mxu0 0
      %3592 = vmatmul.mubr.bf16.gmra.mrb[0].mxu0 %v3489
      %v3593 = vpop.f32.mrb[0].mxu0
      %v3594 = vadd.f32 0.0, %v3593
      %v3595 = vpop.f32.mrb[0].mxu0
      %v3596 = vpop.f32.mrb[0].mxu0
      %v3597 = vadd.f32 0.0, %v3596
      %v3598 = vpop.f32.mrb[0].mxu0
      %3599 = vmatprep.mubr.bf16.mxu0 0
      %3600 = vmatmul.mubr.bf16.gmra.mrb[0].mxu0 %v3492
      %v3601 = vpop.f32.mrb[0].mxu0
      %v3602 = vadd.f32 0.0, %v3601
      %v3603 = vpop.f32.mrb[0].mxu0
      %v3604 = vpop.f32.mrb[0].mxu0
      %v3605 = vadd.f32 0.0, %v3604
      %v3606 = vpop.f32.mrb[0].mxu0
      %3607 = vmatprep.mubr.bf16.mxu0 0
      %3608 = vmatmul.mubr.bf16.gmra.mrb[0].mxu0 %v3495
      %v3609 = vpop.f32.mrb[0].mxu0
      %v3610 = vadd.f32 0.0, %v3609
      %v3611 = vpop.f32.mrb[0].mxu0
      %v3612 = vpop.f32.mrb[0].mxu0
      %v3613 = vadd.f32 0.0, %v3612
      %v3614 = vpop.f32.mrb[0].mxu0
      %3615 = vmatprep.mubr.bf16.mxu0 0
      %3616 = vmatmul.mubr.bf16.gmra.mrb[0].mxu0 %v3498
      %v3617 = vpop.f32.mrb[0].mxu0
      %v3618 = vadd.f32 0.0, %v3617
      %v3619 = vpop.f32.mrb[0].mxu0
      %v3620 = vpop.f32.mrb[0].mxu0
      %v3621 = vadd.f32 0.0, %v3620
      %v3622 = vpop.f32.mrb[0].mxu0
      %3623 = vmatprep.mubr.bf16.mxu0 0
      %3624 = vmatmul.mubr.bf16.gmra.mrb[0].mxu0 %v3501
      %v3625 = vpop.f32.mrb[0].mxu0
      %v3626 = vadd.f32 0.0, %v3625
      %v3627 = vpop.f32.mrb[0].mxu0
      %v3628 = vpop.f32.mrb[0].mxu0
      %v3629 = vadd.f32 0.0, %v3628
      %v3630 = vpop.f32.mrb[0].mxu0
      %3631 = vmatprep.mubr.bf16.mxu0 0
      %3632 = vmatmul.mubr.bf16.gmra.mrb[0].mxu0 %v3504
      %v3633 = vpop.f32.mrb[0].mxu0
      %v3634 = vadd.f32 0.0, %v3633
      %v3635 = vpop.f32.mrb[0].mxu0
      %v3636 = vpop.f32.mrb[0].mxu0
      %v3637 = vadd.f32 0.0, %v3636
      %v3638 = vpop.f32.mrb[0].mxu0
      %3639 = vmatprep.mubr.bf16.mxu0 0
      %3640 = vmatmul.mubr.bf16.gmra.mrb[0].mxu0 %v3507
      %v3641 = vpop.f32.mrb[0].mxu0
      %v3642 = vadd.f32 0.0, %v3641
      %v3643 = vpop.f32.mrb[0].mxu0
      %v3644 = vpop.f32.mrb[0].mxu0
      %v3645 = vadd.f32 0.0, %v3644
      %v3646 = vpop.f32.mrb[0].mxu0
      %3647 = vmatprep.mubr.bf16.mxu0 0
      %3648 = vmatmul.mubr.bf16.gmra.mrb[0].mxu0 %v3510
      %v3649 = vpop.f32.mrb[0].mxu0
      %v3650 = vadd.f32 0.0, %v3649
      %v3651 = vpop.f32.mrb[0].mxu0
      %v3652 = vpop.f32.mrb[0].mxu0
      %v3653 = vadd.f32 0.0, %v3652
      %v3654 = vpop.f32.mrb[0].mxu0
      %3655 = vmatprep.mubr.bf16.mxu0 0
      %3656 = vmatmul.mubr.bf16.gmra.mrb[0].mxu0 %v3513
      %v3657 = vpop.f32.mrb[0].mxu0
      %v3658 = vadd.f32 0.0, %v3657
      %v3659 = vpop.f32.mrb[0].mxu0
      %v3660 = vpop.f32.mrb[0].mxu0
      %v3661 = vadd.f32 0.0, %v3660
      %v3662 = vpop.f32.mrb[0].mxu0
      %3663 = vmatprep.mubr.bf16.mxu0 0
      %3664 = vmatmul.mubr.bf16.gmra.mrb[0].mxu0 %v3516
      %v3665 = vpop.f32.mrb[0].mxu0
      %v3666 = vadd.f32 0.0, %v3665
      %v3667 = vpop.f32.mrb[0].mxu0
      %v3668 = vpop.f32.mrb[0].mxu0
      %v3669 = vadd.f32 0.0, %v3668
      %v3670 = vpop.f32.mrb[0].mxu0
      %3671 = vmatprep.mubr.bf16.mxu0 0
      %3672 = vmatmul.mubr.bf16.gmra.mrb[0].mxu0 %v3519
      %v3673 = vpop.f32.mrb[0].mxu0
      %v3674 = vadd.f32 0.0, %v3673
      %v3675 = vpop.f32.mrb[0].mxu0
      %v3676 = vpop.f32.mrb[0].mxu0
      %v3677 = vadd.f32 0.0, %v3676
      %v3678 = vpop.f32.mrb[0].mxu0
      %3679 = vmatprep.mubr.bf16.mxu0 0
      %3680 = vmatmul.mubr.bf16.gmra.mrb[0].mxu0 %v3522
      %v3681 = vpop.f32.mrb[0].mxu0
      %v3682 = vadd.f32 0.0, %v3681
      %v3683 = vpop.f32.mrb[0].mxu0
      %v3684 = vpop.f32.mrb[0].mxu0
      %v3685 = vadd.f32 0.0, %v3684
      %v3686 = vpop.f32.mrb[0].mxu0
      %3687 = vdwg.mxu0
      %v3688 = vadd.f32 %v3426, %v3562
      %v3689 = vadd.f32 %v3427, %v3565
      %v3690 = vadd.f32 %v3428, %v3570
      %v3691 = vadd.f32 %v3429, %v3573
      %v3692 = vadd.f32 %v3430, %v3578
      %v3693 = vadd.f32 %v3431, %v3581
      %v3694 = vadd.f32 %v3432, %v3586
      %v3695 = vadd.f32 %v3433, %v3589
      %v3696 = vadd.f32 %v3434, %v3594
      %v3697 = vadd.f32 %v3435, %v3597
      %v3698 = vadd.f32 %v3436, %v3602
      %v3699 = vadd.f32 %v3437, %v3605
      %v3700 = vadd.f32 %v3438, %v3610
      %v3701 = vadd.f32 %v3439, %v3613
      %v3702 = vadd.f32 %v3440, %v3618
      %v3703 = vadd.f32 %v3441, %v3621
      %v3704 = vadd.f32 %v3442, %v3626
      %v3705 = vadd.f32 %v3443, %v3629
      %v3706 = vadd.f32 %v3444, %v3634
      %v3707 = vadd.f32 %v3445, %v3637
      %v3708 = vadd.f32 %v3446, %v3642
      %v3709 = vadd.f32 %v3447, %v3645
      %v3710 = vadd.f32 %v3448, %v3650
      %v3711 = vadd.f32 %v3449, %v3653
      %v3712 = vadd.f32 %v3450, %v3658
      %v3713 = vadd.f32 %v3451, %v3661
      %v3714 = vadd.f32 %v3452, %v3666
      %v3715 = vadd.f32 %v3453, %v3669
      %v3716 = vadd.f32 %v3454, %v3674
      %v3717 = vadd.f32 %v3455, %v3677
      %v3718 = vadd.f32 %v3456, %v3682
      %v3719 = vadd.f32 %v3457, %v3685
      %v3720 = vld [vmem:[#allocation4 + $0x10] sm:$0xff]
      %v3721 = vld [vmem:[#allocation4 + $0x18] sm:$0xff]
      %v3722 = vld [vmem:[#allocation4 + $0x20] sm:$0xff]
      %v3723 = vld [vmem:[#allocation4 + $0x28] sm:$0xff]
      %v3724 = vld [vmem:[#allocation4 + $0x30] sm:$0xff]
      %v3725 = vld [vmem:[#allocation4 + $0x38] sm:$0xff]
      %v3726 = vld [vmem:[#allocation4 + $0x40] sm:$0xff]
      %v3727 = vld [vmem:[#allocation4 + $0x48] sm:$0xff]
      %v3728 = vld [vmem:[#allocation4 + $0x50] sm:$0xff]
      %v3729 = vld [vmem:[#allocation4 + $0x58] sm:$0xff]
      %v3730 = vld [vmem:[#allocation4 + $0x60] sm:$0xff]
      %v3731 = vld [vmem:[#allocation4 + $0x68] sm:$0xff]
      %v3732 = vld [vmem:[#allocation4 + $0x70] sm:$0xff]
      %v3733 = vld [vmem:[#allocation4 + $0x78] sm:$0xff]
      %v3734 = vld [vmem:[#allocation4 + $0x80] sm:$0xff]
      %v3735 = vld [vmem:[#allocation4 + $0x88] sm:$0xff]
      %s3736 = scalar_lea.vmem %s3, 16
      %v3737 = vld [vmem:[%s3736] sm:$0x3]
      %v3739 = vsel %vm346, %v3720, 0
      %v3742 = vsel %vm346, %v3721, 0
      %v3745 = vsel %vm346, %v3722, 0
      %v3748 = vsel %vm346, %v3723, 0
      %v3751 = vsel %vm346, %v3724, 0
      %v3754 = vsel %vm346, %v3725, 0
      %v3757 = vsel %vm346, %v3726, 0
      %v3760 = vsel %vm346, %v3727, 0
      %v3763 = vsel %vm346, %v3728, 0
      %v3766 = vsel %vm346, %v3729, 0
      %v3769 = vsel %vm346, %v3730, 0
      %v3772 = vsel %vm346, %v3731, 0
      %v3775 = vsel %vm346, %v3732, 0
      %v3778 = vsel %vm346, %v3733, 0
      %v3781 = vsel %vm346, %v3734, 0
      %v3784 = vsel %vm346, %v3735, 0
      %v3787 = vsel %vm395, %v3737, 0
      %3789 = vmatprep.subr.bf16.mxu0 0
      %3790 = vmatpush1.bf16.msra.mxu0 %v3787
      %3791 = vmatprep.subr.bf16.mxu0 0
      %3792 = vmatpush1.bf16.msra.mxu0 0
      %3793 = vmatprep.subr.bf16.mxu0 0
      %3794 = vmatpush1.bf16.msra.mxu0 0
      %3795 = vmatprep.subr.bf16.mxu0 0
      %3796 = vmatpush1.bf16.msra.mxu0 0
      %3797 = vmatprep.subr.bf16.mxu0 0
      %3798 = vmatpush1.bf16.msra.mxu0 0
      %3799 = vmatprep.subr.bf16.mxu0 0
      %3800 = vmatpush1.bf16.msra.mxu0 0
      %3801 = vmatprep.subr.bf16.mxu0 0
      %3802 = vmatpush1.bf16.msra.mxu0 0
      %3803 = vmatprep.subr.bf16.mxu0 0
      %3804 = vmatpush1.bf16.msra.mxu0 0
      %3805 = vmatprep.subr.bf16.mxu0 0
      %3806 = vmatpush1.bf16.msra.mxu0 0
      %3807 = vmatprep.subr.bf16.mxu0 0
      %3808 = vmatpush1.bf16.msra.mxu0 0
      %3809 = vmatprep.subr.bf16.mxu0 0
      %3810 = vmatpush1.bf16.msra.mxu0 0
      %3811 = vmatprep.subr.bf16.mxu0 0
      %3812 = vmatpush1.bf16.msra.mxu0 0
      %3813 = vmatprep.subr.bf16.mxu0 0
      %3814 = vmatpush1.bf16.msra.mxu0 0
      %3815 = vmatprep.subr.bf16.mxu0 0
      %3816 = vmatpush1.bf16.msra.mxu0 0
      %3817 = vmatprep.subr.bf16.mxu0 0
      %3818 = vmatpush1.bf16.msra.mxu0 0
      %3819 = vmatprep.subr.bf16.mxu0 0
      %3820 = vmatpush1.bf16.msra.mxu0 0
      %3821 = vmatprep.mubr.bf16.mxu0 0
      %3822 = vmatmul.mubr.bf16.gmra.mrb[0].mxu0 %v3739
      %v3823 = vpop.f32.mrb[0].mxu0
      %v3824 = vadd.f32 0.0, %v3823
      %v3825 = vpop.f32.mrb[0].mxu0
      %v3826 = vpop.f32.mrb[0].mxu0
      %v3827 = vadd.f32 0.0, %v3826
      %v3828 = vpop.f32.mrb[0].mxu0
      %3829 = vmatprep.mubr.bf16.mxu0 0
      %3830 = vmatmul.mubr.bf16.gmra.mrb[0].mxu0 %v3742
      %v3831 = vpop.f32.mrb[0].mxu0
      %v3832 = vadd.f32 0.0, %v3831
      %v3833 = vpop.f32.mrb[0].mxu0
      %v3834 = vpop.f32.mrb[0].mxu0
      %v3835 = vadd.f32 0.0, %v3834
      %v3836 = vpop.f32.mrb[0].mxu0
      %3837 = vmatprep.mubr.bf16.mxu0 0
      %3838 = vmatmul.mubr.bf16.gmra.mrb[0].mxu0 %v3745
      %v3839 = vpop.f32.mrb[0].mxu0
      %v3840 = vadd.f32 0.0, %v3839
      %v3841 = vpop.f32.mrb[0].mxu0
      %v3842 = vpop.f32.mrb[0].mxu0
      %v3843 = vadd.f32 0.0, %v3842
      %v3844 = vpop.f32.mrb[0].mxu0
      %3845 = vmatprep.mubr.bf16.mxu0 0
      %3846 = vmatmul.mubr.bf16.gmra.mrb[0].mxu0 %v3748
      %v3847 = vpop.f32.mrb[0].mxu0
      %v3848 = vadd.f32 0.0, %v3847
      %v3849 = vpop.f32.mrb[0].mxu0
      %v3850 = vpop.f32.mrb[0].mxu0
      %v3851 = vadd.f32 0.0, %v3850
      %v3852 = vpop.f32.mrb[0].mxu0
      %3853 = vmatprep.mubr.bf16.mxu0 0
      %3854 = vmatmul.mubr.bf16.gmra.mrb[0].mxu0 %v3751
      %v3855 = vpop.f32.mrb[0].mxu0
      %v3856 = vadd.f32 0.0, %v3855
      %v3857 = vpop.f32.mrb[0].mxu0
      %v3858 = vpop.f32.mrb[0].mxu0
      %v3859 = vadd.f32 0.0, %v3858
      %v3860 = vpop.f32.mrb[0].mxu0
      %3861 = vmatprep.mubr.bf16.mxu0 0
      %3862 = vmatmul.mubr.bf16.gmra.mrb[0].mxu0 %v3754
      %v3863 = vpop.f32.mrb[0].mxu0
      %v3864 = vadd.f32 0.0, %v3863
      %v3865 = vpop.f32.mrb[0].mxu0
      %v3866 = vpop.f32.mrb[0].mxu0
      %v3867 = vadd.f32 0.0, %v3866
      %v3868 = vpop.f32.mrb[0].mxu0
      %3869 = vmatprep.mubr.bf16.mxu0 0
      %3870 = vmatmul.mubr.bf16.gmra.mrb[0].mxu0 %v3757
      %v3871 = vpop.f32.mrb[0].mxu0
      %v3872 = vadd.f32 0.0, %v3871
      %v3873 = vpop.f32.mrb[0].mxu0
      %v3874 = vpop.f32.mrb[0].mxu0
      %v3875 = vadd.f32 0.0, %v3874
      %v3876 = vpop.f32.mrb[0].mxu0
      %3877 = vmatprep.mubr.bf16.mxu0 0
      %3878 = vmatmul.mubr.bf16.gmra.mrb[0].mxu0 %v3760
      %v3879 = vpop.f32.mrb[0].mxu0
      %v3880 = vadd.f32 0.0, %v3879
      %v3881 = vpop.f32.mrb[0].mxu0
      %v3882 = vpop.f32.mrb[0].mxu0
      %v3883 = vadd.f32 0.0, %v3882
      %v3884 = vpop.f32.mrb[0].mxu0
      %3885 = vmatprep.mubr.bf16.mxu0 0
      %3886 = vmatmul.mubr.bf16.gmra.mrb[0].mxu0 %v3763
      %v3887 = vpop.f32.mrb[0].mxu0
      %v3888 = vadd.f32 0.0, %v3887
      %v3889 = vpop.f32.mrb[0].mxu0
      %v3890 = vpop.f32.mrb[0].mxu0
      %v3891 = vadd.f32 0.0, %v3890
      %v3892 = vpop.f32.mrb[0].mxu0
      %3893 = vmatprep.mubr.bf16.mxu0 0
      %3894 = vmatmul.mubr.bf16.gmra.mrb[0].mxu0 %v3766
      %v3895 = vpop.f32.mrb[0].mxu0
      %v3896 = vadd.f32 0.0, %v3895
      %v3897 = vpop.f32.mrb[0].mxu0
      %v3898 = vpop.f32.mrb[0].mxu0
      %v3899 = vadd.f32 0.0, %v3898
      %v3900 = vpop.f32.mrb[0].mxu0
      %3901 = vmatprep.mubr.bf16.mxu0 0
      %3902 = vmatmul.mubr.bf16.gmra.mrb[0].mxu0 %v3769
      %v3903 = vpop.f32.mrb[0].mxu0
      %v3904 = vadd.f32 0.0, %v3903
      %v3905 = vpop.f32.mrb[0].mxu0
      %v3906 = vpop.f32.mrb[0].mxu0
      %v3907 = vadd.f32 0.0, %v3906
      %v3908 = vpop.f32.mrb[0].mxu0
      %3909 = vmatprep.mubr.bf16.mxu0 0
      %3910 = vmatmul.mubr.bf16.gmra.mrb[0].mxu0 %v3772
      %v3911 = vpop.f32.mrb[0].mxu0
      %v3912 = vadd.f32 0.0, %v3911
      %v3913 = vpop.f32.mrb[0].mxu0
      %v3914 = vpop.f32.mrb[0].mxu0
      %v3915 = vadd.f32 0.0, %v3914
      %v3916 = vpop.f32.mrb[0].mxu0
      %3917 = vmatprep.mubr.bf16.mxu0 0
      %3918 = vmatmul.mubr.bf16.gmra.mrb[0].mxu0 %v3775
      %v3919 = vpop.f32.mrb[0].mxu0
      %v3920 = vadd.f32 0.0, %v3919
      %v3921 = vpop.f32.mrb[0].mxu0
      %v3922 = vpop.f32.mrb[0].mxu0
      %v3923 = vadd.f32 0.0, %v3922
      %v3924 = vpop.f32.mrb[0].mxu0
      %3925 = vmatprep.mubr.bf16.mxu0 0
      %3926 = vmatmul.mubr.bf16.gmra.mrb[0].mxu0 %v3778
      %v3927 = vpop.f32.mrb[0].mxu0
      %v3928 = vadd.f32 0.0, %v3927
      %v3929 = vpop.f32.mrb[0].mxu0
      %v3930 = vpop.f32.mrb[0].mxu0
      %v3931 = vadd.f32 0.0, %v3930
      %v3932 = vpop.f32.mrb[0].mxu0
      %3933 = vmatprep.mubr.bf16.mxu0 0
      %3934 = vmatmul.mubr.bf16.gmra.mrb[0].mxu0 %v3781
      %v3935 = vpop.f32.mrb[0].mxu0
      %v3936 = vadd.f32 0.0, %v3935
      %v3937 = vpop.f32.mrb[0].mxu0
      %v3938 = vpop.f32.mrb[0].mxu0
      %v3939 = vadd.f32 0.0, %v3938
      %v3940 = vpop.f32.mrb[0].mxu0
      %3941 = vmatprep.mubr.bf16.mxu0 0
      %3942 = vmatmul.mubr.bf16.gmra.mrb[0].mxu0 %v3784
      %v3943 = vpop.f32.mrb[0].mxu0
      %v3944 = vadd.f32 0.0, %v3943
      %v3945 = vpop.f32.mrb[0].mxu0
      %v3946 = vpop.f32.mrb[0].mxu0
      %v3947 = vadd.f32 0.0, %v3946
      %v3948 = vpop.f32.mrb[0].mxu0
      %3949 = vdwg.mxu0
      %v3950 = vadd.f32 %v3688, %v3824
      %v3951 = vadd.f32 %v3689, %v3827
      %v3952 = vadd.f32 %v3690, %v3832
      %v3953 = vadd.f32 %v3691, %v3835
      %v3954 = vadd.f32 %v3692, %v3840
      %v3955 = vadd.f32 %v3693, %v3843
      %v3956 = vadd.f32 %v3694, %v3848
      %v3957 = vadd.f32 %v3695, %v3851
      %v3958 = vadd.f32 %v3696, %v3856
      %v3959 = vadd.f32 %v3697, %v3859
      %v3960 = vadd.f32 %v3698, %v3864
      %v3961 = vadd.f32 %v3699, %v3867
      %v3962 = vadd.f32 %v3700, %v3872
      %v3963 = vadd.f32 %v3701, %v3875
      %v3964 = vadd.f32 %v3702, %v3880
      %v3965 = vadd.f32 %v3703, %v3883
      %v3966 = vadd.f32 %v3704, %v3888
      %v3967 = vadd.f32 %v3705, %v3891
      %v3968 = vadd.f32 %v3706, %v3896
      %v3969 = vadd.f32 %v3707, %v3899
      %v3970 = vadd.f32 %v3708, %v3904
      %v3971 = vadd.f32 %v3709, %v3907
      %v3972 = vadd.f32 %v3710, %v3912
      %v3973 = vadd.f32 %v3711, %v3915
      %v3974 = vadd.f32 %v3712, %v3920
      %v3975 = vadd.f32 %v3713, %v3923
      %v3976 = vadd.f32 %v3714, %v3928
      %v3977 = vadd.f32 %v3715, %v3931
      %v3978 = vadd.f32 %v3716, %v3936
      %v3979 = vadd.f32 %v3717, %v3939
      %v3980 = vadd.f32 %v3718, %v3944
      %v3981 = vadd.f32 %v3719, %v3947
      %v3982 = vld [vmem:[%s4] sm:$0x1]
      %v3984 = vlaneseq
      %v3985 = vshrl.u32 %v3984, 7
      %v3986 = vsub.s32 0, %v3985
      %v3987 = vrot.slane %v3982, %v3986
      %v3989 = vadd.f32 %v3950, %v3987
      %v3990 = vadd.f32 %v3951, %v3987
      %v3991 = vadd.f32 %v3952, %v3987
      %v3992 = vadd.f32 %v3953, %v3987
      %v3993 = vadd.f32 %v3954, %v3987
      %v3994 = vadd.f32 %v3955, %v3987
      %v3995 = vadd.f32 %v3956, %v3987
      %v3996 = vadd.f32 %v3957, %v3987
      %v3997 = vadd.f32 %v3958, %v3987
      %v3998 = vadd.f32 %v3959, %v3987
      %v3999 = vadd.f32 %v3960, %v3987
      %v4000 = vadd.f32 %v3961, %v3987
      %v4001 = vadd.f32 %v3962, %v3987
      %v4002 = vadd.f32 %v3963, %v3987
      %v4003 = vadd.f32 %v3964, %v3987
      %v4004 = vadd.f32 %v3965, %v3987
      %v4005 = vadd.f32 %v3966, %v3987
      %v4006 = vadd.f32 %v3967, %v3987
      %v4007 = vadd.f32 %v3968, %v3987
      %v4008 = vadd.f32 %v3969, %v3987
      %v4009 = vadd.f32 %v3970, %v3987
      %v4010 = vadd.f32 %v3971, %v3987
      %v4011 = vadd.f32 %v3972, %v3987
      %v4012 = vadd.f32 %v3973, %v3987
      %v4013 = vadd.f32 %v3974, %v3987
      %v4014 = vadd.f32 %v3975, %v3987
      %v4015 = vadd.f32 %v3976, %v3987
      %v4016 = vadd.f32 %v3977, %v3987
      %v4017 = vadd.f32 %v3978, %v3987
      %v4018 = vadd.f32 %v3979, %v3987
      %v4019 = vadd.f32 %v3980, %v3987
      %v4020 = vadd.f32 %v3981, %v3987
      %v4021 = vxor.u32 %v3989, 2147483648
      %v4022 = vxor.u32 %v3990, 2147483648
      %v4023 = vxor.u32 %v3991, 2147483648
      %v4024 = vxor.u32 %v3992, 2147483648
      %v4025 = vxor.u32 %v3993, 2147483648
      %v4026 = vxor.u32 %v3994, 2147483648
      %v4027 = vxor.u32 %v3995, 2147483648
      %v4028 = vxor.u32 %v3996, 2147483648
      %v4029 = vxor.u32 %v3997, 2147483648
      %v4030 = vxor.u32 %v3998, 2147483648
      %v4031 = vxor.u32 %v3999, 2147483648
      %v4032 = vxor.u32 %v4000, 2147483648
      %v4033 = vxor.u32 %v4001, 2147483648
      %v4034 = vxor.u32 %v4002, 2147483648
      %v4035 = vxor.u32 %v4003, 2147483648
      %v4036 = vxor.u32 %v4004, 2147483648
      %v4037 = vxor.u32 %v4005, 2147483648
      %v4038 = vxor.u32 %v4006, 2147483648
      %v4039 = vxor.u32 %v4007, 2147483648
      %v4040 = vxor.u32 %v4008, 2147483648
      %v4041 = vxor.u32 %v4009, 2147483648
      %v4042 = vxor.u32 %v4010, 2147483648
      %v4043 = vxor.u32 %v4011, 2147483648
      %v4044 = vxor.u32 %v4012, 2147483648
      %v4045 = vxor.u32 %v4013, 2147483648
      %v4046 = vxor.u32 %v4014, 2147483648
      %v4047 = vxor.u32 %v4015, 2147483648
      %v4048 = vxor.u32 %v4016, 2147483648
      %v4049 = vxor.u32 %v4017, 2147483648
      %v4050 = vxor.u32 %v4018, 2147483648
      %v4051 = vxor.u32 %v4019, 2147483648
      %v4052 = vxor.u32 %v4020, 2147483648
      %v4053 = vmul.f32 %v4021, 1.442695
      %v4054 = vpow.pop %v4053
      %v4055 = vmul.f32 %v4022, 1.442695
      %v4056 = vpow.pop %v4055
      %v4057 = vmul.f32 %v4023, 1.442695
      %v4058 = vpow.pop %v4057
      %v4059 = vmul.f32 %v4024, 1.442695
      %v4060 = vpow.pop %v4059
      %v4061 = vmul.f32 %v4025, 1.442695
      %v4062 = vpow.pop %v4061
      %v4063 = vmul.f32 %v4026, 1.442695
      %v4064 = vpow.pop %v4063
      %v4065 = vmul.f32 %v4027, 1.442695
      %v4066 = vpow.pop %v4065
      %v4067 = vmul.f32 %v4028, 1.442695
      %v4068 = vpow.pop %v4067
      %v4069 = vmul.f32 %v4029, 1.442695
      %v4070 = vpow.pop %v4069
      %v4071 = vmul.f32 %v4030, 1.442695
      %v4072 = vpow.pop %v4071
      %v4073 = vmul.f32 %v4031, 1.442695
      %v4074 = vpow.pop %v4073
      %v4075 = vmul.f32 %v4032, 1.442695
      %v4076 = vpow.pop %v4075
      %v4077 = vmul.f32 %v4033, 1.442695
      %v4078 = vpow.pop %v4077
      %v4079 = vmul.f32 %v4034, 1.442695
      %v4080 = vpow.pop %v4079
      %v4081 = vmul.f32 %v4035, 1.442695
      %v4082 = vpow.pop %v4081
      %v4083 = vmul.f32 %v4036, 1.442695
      %v4084 = vpow.pop %v4083
      %v4085 = vmul.f32 %v4037, 1.442695
      %v4086 = vpow.pop %v4085
      %v4087 = vmul.f32 %v4038, 1.442695
      %v4088 = vpow.pop %v4087
      %v4089 = vmul.f32 %v4039, 1.442695
      %v4090 = vpow.pop %v4089
      %v4091 = vmul.f32 %v4040, 1.442695
      %v4092 = vpow.pop %v4091
      %v4093 = vmul.f32 %v4041, 1.442695
      %v4094 = vpow.pop %v4093
      %v4095 = vmul.f32 %v4042, 1.442695
      %v4096 = vpow.pop %v4095
      %v4097 = vmul.f32 %v4043, 1.442695
      %v4098 = vpow.pop %v4097
      %v4099 = vmul.f32 %v4044, 1.442695
      %v4100 = vpow.pop %v4099
      %v4101 = vmul.f32 %v4045, 1.442695
      %v4102 = vpow.pop %v4101
      %v4103 = vmul.f32 %v4046, 1.442695
      %v4104 = vpow.pop %v4103
      %v4105 = vmul.f32 %v4047, 1.442695
      %v4106 = vpow.pop %v4105
      %v4107 = vmul.f32 %v4048, 1.442695
      %v4108 = vpow.pop %v4107
      %v4109 = vmul.f32 %v4049, 1.442695
      %v4110 = vpow.pop %v4109
      %v4111 = vmul.f32 %v4050, 1.442695
      %v4112 = vpow.pop %v4111
      %v4113 = vmul.f32 %v4051, 1.442695
      %v4114 = vpow.pop %v4113
      %v4115 = vmul.f32 %v4052, 1.442695
      %v4116 = vpow.pop %v4115
      %v4117 = vadd.f32 %v4054, 1.0
      %v4118 = vadd.f32 %v4056, 1.0
      %v4119 = vadd.f32 %v4058, 1.0
      %v4120 = vadd.f32 %v4060, 1.0
      %v4121 = vadd.f32 %v4062, 1.0
      %v4122 = vadd.f32 %v4064, 1.0
      %v4123 = vadd.f32 %v4066, 1.0
      %v4124 = vadd.f32 %v4068, 1.0
      %v4125 = vadd.f32 %v4070, 1.0
      %v4126 = vadd.f32 %v4072, 1.0
      %v4127 = vadd.f32 %v4074, 1.0
      %v4128 = vadd.f32 %v4076, 1.0
      %v4129 = vadd.f32 %v4078, 1.0
      %v4130 = vadd.f32 %v4080, 1.0
      %v4131 = vadd.f32 %v4082, 1.0
      %v4132 = vadd.f32 %v4084, 1.0
      %v4133 = vadd.f32 %v4086, 1.0
      %v4134 = vadd.f32 %v4088, 1.0
      %v4135 = vadd.f32 %v4090, 1.0
      %v4136 = vadd.f32 %v4092, 1.0
      %v4137 = vadd.f32 %v4094, 1.0
      %v4138 = vadd.f32 %v4096, 1.0
      %v4139 = vadd.f32 %v4098, 1.0
      %v4140 = vadd.f32 %v4100, 1.0
      %v4141 = vadd.f32 %v4102, 1.0
      %v4142 = vadd.f32 %v4104, 1.0
      %v4143 = vadd.f32 %v4106, 1.0
      %v4144 = vadd.f32 %v4108, 1.0
      %v4145 = vadd.f32 %v4110, 1.0
      %v4146 = vadd.f32 %v4112, 1.0
      %v4147 = vadd.f32 %v4114, 1.0
      %v4148 = vadd.f32 %v4116, 1.0
      %v4149 = vrcp.pop %v4117
      %v4150 = vmul.f32 1.0, %v4149
      %v4151 = vrcp.pop %v4118
      %v4152 = vmul.f32 1.0, %v4151
      %v4153 = vrcp.pop %v4119
      %v4154 = vmul.f32 1.0, %v4153
      %v4155 = vrcp.pop %v4120
      %v4156 = vmul.f32 1.0, %v4155
      %v4157 = vrcp.pop %v4121
      %v4158 = vmul.f32 1.0, %v4157
      %v4159 = vrcp.pop %v4122
      %v4160 = vmul.f32 1.0, %v4159
      %v4161 = vrcp.pop %v4123
      %v4162 = vmul.f32 1.0, %v4161
      %v4163 = vrcp.pop %v4124
      %v4164 = vmul.f32 1.0, %v4163
      %v4165 = vrcp.pop %v4125
      %v4166 = vmul.f32 1.0, %v4165
      %v4167 = vrcp.pop %v4126
      %v4168 = vmul.f32 1.0, %v4167
      %v4169 = vrcp.pop %v4127
      %v4170 = vmul.f32 1.0, %v4169
      %v4171 = vrcp.pop %v4128
      %v4172 = vmul.f32 1.0, %v4171
      %v4173 = vrcp.pop %v4129
      %v4174 = vmul.f32 1.0, %v4173
      %v4175 = vrcp.pop %v4130
      %v4176 = vmul.f32 1.0, %v4175
      %v4177 = vrcp.pop %v4131
      %v4178 = vmul.f32 1.0, %v4177
      %v4179 = vrcp.pop %v4132
      %v4180 = vmul.f32 1.0, %v4179
      %v4181 = vrcp.pop %v4133
      %v4182 = vmul.f32 1.0, %v4181
      %v4183 = vrcp.pop %v4134
      %v4184 = vmul.f32 1.0, %v4183
      %v4185 = vrcp.pop %v4135
      %v4186 = vmul.f32 1.0, %v4185
      %v4187 = vrcp.pop %v4136
      %v4188 = vmul.f32 1.0, %v4187
      %v4189 = vrcp.pop %v4137
      %v4190 = vmul.f32 1.0, %v4189
      %v4191 = vrcp.pop %v4138
      %v4192 = vmul.f32 1.0, %v4191
      %v4193 = vrcp.pop %v4139
      %v4194 = vmul.f32 1.0, %v4193
      %v4195 = vrcp.pop %v4140
      %v4196 = vmul.f32 1.0, %v4195
      %v4197 = vrcp.pop %v4141
      %v4198 = vmul.f32 1.0, %v4197
      %v4199 = vrcp.pop %v4142
      %v4200 = vmul.f32 1.0, %v4199
      %v4201 = vrcp.pop %v4143
      %v4202 = vmul.f32 1.0, %v4201
      %v4203 = vrcp.pop %v4144
      %v4204 = vmul.f32 1.0, %v4203
      %v4205 = vrcp.pop %v4145
      %v4206 = vmul.f32 1.0, %v4205
      %v4207 = vrcp.pop %v4146
      %v4208 = vmul.f32 1.0, %v4207
      %v4209 = vrcp.pop %v4147
      %v4210 = vmul.f32 1.0, %v4209
      %v4211 = vrcp.pop %v4148
      %v4212 = vmul.f32 1.0, %v4211
      %v4213 = vmul.f32 %v3989, %v4150
      %v4214 = vmul.f32 %v3990, %v4152
      %v4215 = vmul.f32 %v3991, %v4154
      %v4216 = vmul.f32 %v3992, %v4156
      %v4217 = vmul.f32 %v3993, %v4158
      %v4218 = vmul.f32 %v3994, %v4160
      %v4219 = vmul.f32 %v3995, %v4162
      %v4220 = vmul.f32 %v3996, %v4164
      %v4221 = vmul.f32 %v3997, %v4166
      %v4222 = vmul.f32 %v3998, %v4168
      %v4223 = vmul.f32 %v3999, %v4170
      %v4224 = vmul.f32 %v4000, %v4172
      %v4225 = vmul.f32 %v4001, %v4174
      %v4226 = vmul.f32 %v4002, %v4176
      %v4227 = vmul.f32 %v4003, %v4178
      %v4228 = vmul.f32 %v4004, %v4180
      %v4229 = vmul.f32 %v4005, %v4182
      %v4230 = vmul.f32 %v4006, %v4184
      %v4231 = vmul.f32 %v4007, %v4186
      %v4232 = vmul.f32 %v4008, %v4188
      %v4233 = vmul.f32 %v4009, %v4190
      %v4234 = vmul.f32 %v4010, %v4192
      %v4235 = vmul.f32 %v4011, %v4194
      %v4236 = vmul.f32 %v4012, %v4196
      %v4237 = vmul.f32 %v4013, %v4198
      %v4238 = vmul.f32 %v4014, %v4200
      %v4239 = vmul.f32 %v4015, %v4202
      %v4240 = vmul.f32 %v4016, %v4204
      %v4241 = vmul.f32 %v4017, %v4206
      %v4242 = vmul.f32 %v4018, %v4208
      %v4243 = vmul.f32 %v4019, %v4210
      %v4244 = vmul.f32 %v4020, %v4212
      %v4245 = vunpack.c.l.bf16 %v226
      %v4246 = vunpack.c.l.bf16 %v227
      %v4247 = vunpack.c.l.bf16 %v228
      %v4248 = vunpack.c.l.bf16 %v229
      %v4249 = vunpack.c.l.bf16 %v230
      %v4250 = vunpack.c.l.bf16 %v231
      %v4251 = vunpack.c.l.bf16 %v232
      %v4252 = vunpack.c.l.bf16 %v233
      %v4253 = vunpack.c.l.bf16 %v234
      %v4254 = vunpack.c.l.bf16 %v235
      %v4255 = vunpack.c.l.bf16 %v236
      %v4256 = vunpack.c.l.bf16 %v237
      %v4257 = vunpack.c.l.bf16 %v238
      %v4258 = vunpack.c.l.bf16 %v239
      %v4259 = vunpack.c.l.bf16 %v240
      %v4260 = vunpack.c.l.bf16 %v241
      %v4261 = vunpack.c.l.bf16 %v242
      %v4262 = vunpack.c.l.bf16 %v243
      %v4263 = vunpack.c.l.bf16 %v244
      %v4264 = vunpack.c.l.bf16 %v245
      %v4265 = vunpack.c.l.bf16 %v246
      %v4266 = vunpack.c.l.bf16 %v247
      %v4267 = vunpack.c.l.bf16 %v248
      %v4268 = vunpack.c.l.bf16 %v249
      %v4269 = vunpack.c.l.bf16 %v250
      %v4270 = vunpack.c.l.bf16 %v251
      %v4271 = vunpack.c.l.bf16 %v252
      %v4272 = vunpack.c.l.bf16 %v253
      %v4273 = vunpack.c.l.bf16 %v254
      %v4274 = vunpack.c.l.bf16 %v255
      %v4275 = vunpack.c.l.bf16 %v256
      %v4276 = vunpack.c.l.bf16 %v257
      %v4277 = vadd.f32 %v4245, %v4213
      %v4278 = vadd.f32 %v4246, %v4214
      %v4279 = vadd.f32 %v4247, %v4215
      %v4280 = vadd.f32 %v4248, %v4216
      %v4281 = vadd.f32 %v4249, %v4217
      %v4282 = vadd.f32 %v4250, %v4218
      %v4283 = vadd.f32 %v4251, %v4219
      %v4284 = vadd.f32 %v4252, %v4220
      %v4285 = vadd.f32 %v4253, %v4221
      %v4286 = vadd.f32 %v4254, %v4222
      %v4287 = vadd.f32 %v4255, %v4223
      %v4288 = vadd.f32 %v4256, %v4224
      %v4289 = vadd.f32 %v4257, %v4225
      %v4290 = vadd.f32 %v4258, %v4226
      %v4291 = vadd.f32 %v4259, %v4227
      %v4292 = vadd.f32 %v4260, %v4228
      %v4293 = vadd.f32 %v4261, %v4229
      %v4294 = vadd.f32 %v4262, %v4230
      %v4295 = vadd.f32 %v4263, %v4231
      %v4296 = vadd.f32 %v4264, %v4232
      %v4297 = vadd.f32 %v4265, %v4233
      %v4298 = vadd.f32 %v4266, %v4234
      %v4299 = vadd.f32 %v4267, %v4235
      %v4300 = vadd.f32 %v4268, %v4236
      %v4301 = vadd.f32 %v4269, %v4237
      %v4302 = vadd.f32 %v4270, %v4238
      %v4303 = vadd.f32 %v4271, %v4239
      %v4304 = vadd.f32 %v4272, %v4240
      %v4305 = vadd.f32 %v4273, %v4241
      %v4306 = vadd.f32 %v4274, %v4242
      %v4307 = vadd.f32 %v4275, %v4243
      %v4308 = vadd.f32 %v4276, %v4244
      %v4309 = vpack.c.bf16 %v4278, %v4277
      %v4310 = vpack.c.bf16 %v4280, %v4279
      %v4311 = vpack.c.bf16 %v4282, %v4281
      %v4312 = vpack.c.bf16 %v4284, %v4283
      %v4313 = vpack.c.bf16 %v4286, %v4285
      %v4314 = vpack.c.bf16 %v4288, %v4287
      %v4315 = vpack.c.bf16 %v4290, %v4289
      %v4316 = vpack.c.bf16 %v4292, %v4291
      %v4317 = vpack.c.bf16 %v4294, %v4293
      %v4318 = vpack.c.bf16 %v4296, %v4295
      %v4319 = vpack.c.bf16 %v4298, %v4297
      %v4320 = vpack.c.bf16 %v4300, %v4299
      %v4321 = vpack.c.bf16 %v4302, %v4301
      %v4322 = vpack.c.bf16 %v4304, %v4303
      %v4323 = vpack.c.bf16 %v4306, %v4305
      %v4324 = vpack.c.bf16 %v4308, %v4307
      %v4341 = vunpack.c.l.b16 %v4309
      %v4342 = vunpack.c.h.b16 %v4309
      %v4343 = vunpack.c.l.b16 %v4310
      %v4344 = vunpack.c.h.b16 %v4310
      %v4345 = vunpack.c.l.b16 %v4311
      %v4346 = vunpack.c.h.b16 %v4311
      %v4347 = vunpack.c.l.b16 %v4312
      %v4348 = vunpack.c.h.b16 %v4312
      %v4349 = vunpack.c.l.b16 %v4313
      %v4350 = vunpack.c.h.b16 %v4313
      %v4351 = vunpack.c.l.b16 %v4314
      %v4352 = vunpack.c.h.b16 %v4314
      %v4353 = vunpack.c.l.b16 %v4315
      %v4354 = vunpack.c.h.b16 %v4315
      %v4355 = vunpack.c.l.b16 %v4316
      %v4356 = vunpack.c.h.b16 %v4316
      %v4357 = vunpack.c.l.b16 %v4317
      %v4358 = vunpack.c.h.b16 %v4317
      %v4359 = vunpack.c.l.b16 %v4318
      %v4360 = vunpack.c.h.b16 %v4318
      %v4361 = vunpack.c.l.b16 %v4319
      %v4362 = vunpack.c.h.b16 %v4319
      %v4363 = vunpack.c.l.b16 %v4320
      %v4364 = vunpack.c.h.b16 %v4320
      %v4365 = vunpack.c.l.b16 %v4321
      %v4366 = vunpack.c.h.b16 %v4321
      %v4367 = vunpack.c.l.b16 %v4322
      %v4368 = vunpack.c.h.b16 %v4322
      %v4369 = vunpack.c.l.b16 %v4323
      %v4370 = vunpack.c.h.b16 %v4323
      %v4371 = vunpack.c.l.b16 %v4324
      %v4372 = vunpack.c.h.b16 %v4324
      %v4373 = vpack.c.b16 %v4341, %v4341
      %v4374 = vpack.c.b16 %v4342, %v4342
      %v4375 = vpack.c.b16 %v4343, %v4343
      %v4376 = vpack.c.b16 %v4344, %v4344
      %v4377 = vpack.c.b16 %v4345, %v4345
      %v4378 = vpack.c.b16 %v4346, %v4346
      %v4379 = vpack.c.b16 %v4347, %v4347
      %v4380 = vpack.c.b16 %v4348, %v4348
      %v4381 = vpack.c.b16 %v4349, %v4349
      %v4382 = vpack.c.b16 %v4350, %v4350
      %v4383 = vpack.c.b16 %v4351, %v4351
      %v4384 = vpack.c.b16 %v4352, %v4352
      %v4385 = vpack.c.b16 %v4353, %v4353
      %v4386 = vpack.c.b16 %v4354, %v4354
      %v4387 = vpack.c.b16 %v4355, %v4355
      %v4388 = vpack.c.b16 %v4356, %v4356
      %v4389 = vpack.c.b16 %v4357, %v4357
      %v4390 = vpack.c.b16 %v4358, %v4358
      %v4391 = vpack.c.b16 %v4359, %v4359
      %v4392 = vpack.c.b16 %v4360, %v4360
      %v4393 = vpack.c.b16 %v4361, %v4361
      %v4394 = vpack.c.b16 %v4362, %v4362
      %v4395 = vpack.c.b16 %v4363, %v4363
      %v4396 = vpack.c.b16 %v4364, %v4364
      %v4397 = vpack.c.b16 %v4365, %v4365
      %v4398 = vpack.c.b16 %v4366, %v4366
      %v4399 = vpack.c.b16 %v4367, %v4367
      %v4400 = vpack.c.b16 %v4368, %v4368
      %v4401 = vpack.c.b16 %v4369, %v4369
      %v4402 = vpack.c.b16 %v4370, %v4370
      %v4403 = vpack.c.b16 %v4371, %v4371
      %v4404 = vpack.c.b16 %v4372, %v4372
      %vm4437 = vcmask 27648
      %4438 = vst.msk [vmem:[%s224] sm:$0xf] %vm4437, %v4373
      %4439 = vst.msk [vmem:[%s224 + $0x4] sm:$0xf] %vm4437, %v4374
      %4440 = vst.msk [vmem:[%s224 + $0x8] sm:$0xf] %vm4437, %v4375
      %4441 = vst.msk [vmem:[%s224 + $0xc] sm:$0xf] %vm4437, %v4376
      %4442 = vst.msk [vmem:[%s224 + $0x10] sm:$0xf] %vm4437, %v4377
      %4443 = vst.msk [vmem:[%s224 + $0x14] sm:$0xf] %vm4437, %v4378
      %4444 = vst.msk [vmem:[%s224 + $0x18] sm:$0xf] %vm4437, %v4379
      %4445 = vst.msk [vmem:[%s224 + $0x1c] sm:$0xf] %vm4437, %v4380
      %4446 = vst.msk [vmem:[%s224 + $0x20] sm:$0xf] %vm4437, %v4381
      %4447 = vst.msk [vmem:[%s224 + $0x24] sm:$0xf] %vm4437, %v4382
      %4448 = vst.msk [vmem:[%s224 + $0x28] sm:$0xf] %vm4437, %v4383
      %4449 = vst.msk [vmem:[%s224 + $0x2c] sm:$0xf] %vm4437, %v4384
      %4450 = vst.msk [vmem:[%s224 + $0x30] sm:$0xf] %vm4437, %v4385
      %4451 = vst.msk [vmem:[%s224 + $0x34] sm:$0xf] %vm4437, %v4386
      %4452 = vst.msk [vmem:[%s224 + $0x38] sm:$0xf] %vm4437, %v4387
      %4453 = vst.msk [vmem:[%s224 + $0x3c] sm:$0xf] %vm4437, %v4388
      %4454 = vst.msk [vmem:[%s224 + $0x40] sm:$0xf] %vm4437, %v4389
      %4455 = vst.msk [vmem:[%s224 + $0x44] sm:$0xf] %vm4437, %v4390
      %4456 = vst.msk [vmem:[%s224 + $0x48] sm:$0xf] %vm4437, %v4391
      %4457 = vst.msk [vmem:[%s224 + $0x4c] sm:$0xf] %vm4437, %v4392
      %4458 = vst.msk [vmem:[%s224 + $0x50] sm:$0xf] %vm4437, %v4393
      %4459 = vst.msk [vmem:[%s224 + $0x54] sm:$0xf] %vm4437, %v4394
      %4460 = vst.msk [vmem:[%s224 + $0x58] sm:$0xf] %vm4437, %v4395
      %4461 = vst.msk [vmem:[%s224 + $0x5c] sm:$0xf] %vm4437, %v4396
      %4462 = vst.msk [vmem:[%s224 + $0x60] sm:$0xf] %vm4437, %v4397
      %4463 = vst.msk [vmem:[%s224 + $0x64] sm:$0xf] %vm4437, %v4398
      %4464 = vst.msk [vmem:[%s224 + $0x68] sm:$0xf] %vm4437, %v4399
      %4465 = vst.msk [vmem:[%s224 + $0x6c] sm:$0xf] %vm4437, %v4400
      %4466 = vst.msk [vmem:[%s224 + $0x70] sm:$0xf] %vm4437, %v4401
      %4467 = vst.msk [vmem:[%s224 + $0x74] sm:$0xf] %vm4437, %v4402
      %4468 = vst.msk [vmem:[%s224 + $0x78] sm:$0xf] %vm4437, %v4403
      %4469 = vst.msk [vmem:[%s224 + $0x7c] sm:$0xf] %vm4437, %v4404
      %p4470 = scmp.lt.s32.totalorder %s16, 1
      %s4471 = scalar_select %p4470, %s16, 1
      %s4472 = smul.addr %s4471, 32
      %s4473 = smul.addr %s4472, 4
      %s4474 = scalar_lea.vmem %s5, %s4473
      // Predicated region
      $region41: #{c3_forward.5} parent=39 // pred_check
        %p4475 = pneg %p144
      $region42: #{c3_forward.5} parent=39 // pred_check_branch
        %4477 = sbr.rel (%p4475) target = $region44
      $region43: #{c3_forward.5} parent=39 // pred_region
        _
      $region44: #{c3_forward.5} parent=39 // pred_fallthru
        _
    $region40: #{c3_forward.5} parent=5 // pred_fallthru
      _
    %p4478 = scmp.le.s32.totalorder 2, %s11
    // Predicated region
    $region45: #{c3_forward.5} parent=5 // pred_check
      %p4479 = pneg %p4478
    $region46: #{c3_forward.5} parent=5 // pred_check_branch
      %4481 = sbr.rel (%p4479) target = $region48
    $region47: #{c3_forward.5} parent=5 // pred_region
      %s4482 = ssub.s32 %s11, 2
      // Predicated region
      $region49: #{c3_forward.5} parent=47 // pred_check
        %p4483 = pneg %p150
      $region50: #{c3_forward.5} parent=47 // pred_check_branch
        %4485 = sbr.rel (%p4483) target = $region52
      $region51: #{c3_forward.5} parent=47 // pred_region
        %p4486 = scmp.lt.s32.totalorder %s17, 1
        %s4487 = scalar_select %p4486, %s17, 1
        %s4488 = smul.addr %s4487, 32
        %s4489 = smul.addr %s4488, 4
        %s4490 = scalar_lea.vmem %s5, %s4489
      $region52: #{c3_forward.5} parent=47 // pred_fallthru
        _
    $region48: #{c3_forward.5} parent=5 // pred_fallthru
      _
  $region6: #{c3_forward.5} parent=0 // loop_footer
    %s15 = sadd.s32 1, %s11
  $region7: #{c3_forward.5} parent=0 // loop_footer_branch
    %10 = sbr.rel target = $region3
  $region8: #{c3_forward.5} parent=0 // loop_exit
    _

</llo_original>
